<compile_context>
chip_gen: v5e
topology: v5e:2x2
jax: 0.10.0
libtpu: 0.0.40
codegen_flags: <defaults>
</compile_context>

<pallas_src>
import jax
import jax.numpy as jnp
from jax.experimental import pallas as pl
from jax.experimental.pallas import tpu as pltpu

H = W = 14
C = 480
K = 3
PAD = 1
HP = H + 2 * PAD  # 16 padded rows


def dwconv3x3_kernel(x_ref, w_ref, o_ref, xs_ref):
    # x_ref : (H, W, C)      unpadded input (channels on lanes)
    # w_ref : (K*K, C)       depthwise weights, row t = kh*K + kw
    # o_ref : (H, W, C)      output
    # xs_ref: (K, HP, W, C)  scratch: xs[kw, r, w, :] = zeropad(x)[r, w + kw, :]

    # --- stage the three kw-shifted, zero-padded views (padding folded in-kernel) ---
    xs_ref[...] = jnp.zeros_like(xs_ref)
    x = x_ref[...]                                      # (H, W, C)
    xs_ref[0, PAD:PAD + H, 1:W, :] = x[:, 0:W - 1, :]   # kw = 0 window
    xs_ref[1, PAD:PAD + H, 0:W, :] = x                  # kw = 1 window (center)
    xs_ref[2, PAD:PAD + H, 0:W - 1, :] = x[:, 1:W, :]   # kw = 2 window

    w = w_ref[...]                                      # (K*K, C), loaded once

    # --- 9-tap stencil, accumulated one output row at a time; all reads are on
    #     leading (untiled) dims, one store per output row ---
    for h in range(H):
        acc = jnp.zeros((W, C), jnp.float32)
        for kh in range(K):
            for kw in range(K):
                acc = acc + xs_ref[kw, h + kh, :, :] * w[kh * K + kw]
        o_ref[h, :, :] = acc.astype(o_ref.dtype)


def depthwise_conv2d_hwc(x_hwc, w_tc):
    """Channels-last entry point: x_hwc (H, W, C), w_tc (K*K, C). No layout ops."""
    return pl.pallas_call(
        dwconv3x3_kernel,
        out_shape=jax.ShapeDtypeStruct((H, W, C), x_hwc.dtype),
        in_specs=[
            pl.BlockSpec((H, W, C), lambda: (0, 0, 0)),
            pl.BlockSpec((K * K, C), lambda: (0, 0)),
        ],
        out_specs=pl.BlockSpec((H, W, C), lambda: (0, 0, 0)),
        scratch_shapes=[pltpu.VMEM((K, HP, W, C), jnp.float32)],
    )(x_hwc, w_tc)


def depthwise_conv2d_nchw(x_nchw, w_oihw):
    """NCHW adapter matching torch Conv2d(480,480,3,padding=1,groups=480,bias=False).

    The transposes exist only to honor the PyTorch NCHW interface; a channels-last
    graph should call depthwise_conv2d_hwc directly and skip both relayouts.
    """
    assert x_nchw.shape == (1, C, H, W)
    assert w_oihw.shape == (C, 1, K, K)
    x_hwc = jnp.transpose(x_nchw[0], (1, 2, 0))                         # (H, W, C)
    w_tc = jnp.transpose(w_oihw[:, 0, :, :].reshape(C, K * K), (1, 0))  # (K*K, C)
    out_hwc = depthwise_conv2d_hwc(x_hwc, w_tc)
    return jnp.transpose(out_hwc, (2, 0, 1))[None]                      # (1, C, H, W)


def reference_conv(x_nchw, w_oihw):
    return jax.lax.conv_general_dilated(
        x_nchw, w_oihw,
        window_strides=(1, 1),
        padding=((PAD, PAD), (PAD, PAD)),
        dimension_numbers=("NCHW", "OIHW", "NCHW"),
        feature_group_count=C,
    )


if __name__ == "__main__":
    key = jax.random.PRNGKey(0)
    kx, kw_key = jax.random.split(key)
    x = jax.random.normal(kx, (1, C, H, W), dtype=jnp.float32)
    # Deterministic synthetic depthwise weights (torch shape: (480, 1, 3, 3)).
    w = jax.random.normal(kw_key, (C, 1, K, K), dtype=jnp.float32) * 0.1

    conv = jax.jit(depthwise_conv2d_nchw)
    out = conv(x, w)
    jax.block_until_ready(out)

    ref = reference_conv(x, w)
    assert out.shape == (1, C, H, W)
    assert jnp.allclose(out, ref, atol=1e-4, rtol=1e-4), float(jnp.max(jnp.abs(out - ref)))
    print("KERNEL_OK")
</pallas_src>

<mosaic_0001>
module attributes {stable_mosaic.version = 11 : i64} {
  func.func @dwconv3x3_kernel(%arg0: memref<14x14x480xf32, #tpu.memory_space<vmem>>, %arg1: memref<9x480xf32, #tpu.memory_space<vmem>>, %arg2: memref<14x14x480xf32, #tpu.memory_space<vmem>>, %arg3: memref<3x16x14x480xf32, #tpu.memory_space<vmem>>) attributes {dimension_semantics = [], scalar_prefetch = 0 : i64, scratch_operands = 1 : i64, tpu.core_type = #tpu.core_type<tc>} {
    %cst = arith.constant 0.000000e+00 : f32
    %0 = vector.broadcast %cst : f32 to vector<3x16x14x480xf32>
    %c0 = arith.constant 0 : index
    %c0_0 = arith.constant 0 : index
    %c0_1 = arith.constant 0 : index
    %c0_2 = arith.constant 0 : index
    %1 = vector.load %arg3[%c0, %c0_0, %c0_1, %c0_2] : memref<3x16x14x480xf32, #tpu.memory_space<vmem>>, vector<3x16x14x480xf32>
    tpu.vector_store %arg3[%c0, %c0_0, %c0_1, %c0_2], %0 {strides = array<i32>} : memref<3x16x14x480xf32, #tpu.memory_space<vmem>>, vector<3x16x14x480xf32>,
    %c0_3 = arith.constant 0 : index
    %c0_4 = arith.constant 0 : index
    %c0_5 = arith.constant 0 : index
    %2 = vector.load %arg0[%c0_3, %c0_4, %c0_5] : memref<14x14x480xf32, #tpu.memory_space<vmem>>, vector<14x14x480xf32>
    %3 = vector.extract_strided_slice %2 {offsets = [0, 0, 0], sizes = [14, 13, 480], strides = [1, 1, 1]} : vector<14x14x480xf32> to vector<14x13x480xf32>
    %c0_6 = arith.constant 0 : index
    %c1 = arith.constant 1 : index
    %c1_7 = arith.constant 1 : index
    %c0_8 = arith.constant 0 : index
    %4 = vector.load %arg3[%c0_6, %c1, %c1_7, %c0_8] : memref<3x16x14x480xf32, #tpu.memory_space<vmem>>, vector<1x14x13x480xf32>
    %5 = vector.shape_cast %4 : vector<1x14x13x480xf32> to vector<14x13x480xf32>
    %6 = vector.shape_cast %3 : vector<14x13x480xf32> to vector<1x14x13x480xf32>
    tpu.vector_store %arg3[%c0_6, %c1, %c1_7, %c0_8], %6 {strides = array<i32>} : memref<3x16x14x480xf32, #tpu.memory_space<vmem>>, vector<1x14x13x480xf32>,
    %c1_9 = arith.constant 1 : index
    %c1_10 = arith.constant 1 : index
    %c0_11 = arith.constant 0 : index
    %c0_12 = arith.constant 0 : index
    %7 = vector.load %arg3[%c1_9, %c1_10, %c0_11, %c0_12] : memref<3x16x14x480xf32, #tpu.memory_space<vmem>>, vector<1x14x14x480xf32>
    %8 = vector.shape_cast %7 : vector<1x14x14x480xf32> to vector<14x14x480xf32>
    %9 = vector.shape_cast %2 : vector<14x14x480xf32> to vector<1x14x14x480xf32>
    tpu.vector_store %arg3[%c1_9, %c1_10, %c0_11, %c0_12], %9 {strides = array<i32>} : memref<3x16x14x480xf32, #tpu.memory_space<vmem>>, vector<1x14x14x480xf32>,
    %10 = vector.extract_strided_slice %2 {offsets = [0, 1, 0], sizes = [14, 13, 480], strides = [1, 1, 1]} : vector<14x14x480xf32> to vector<14x13x480xf32>
    %c2 = arith.constant 2 : index
    %c1_13 = arith.constant 1 : index
    %c0_14 = arith.constant 0 : index
    %c0_15 = arith.constant 0 : index
    %11 = vector.load %arg3[%c2, %c1_13, %c0_14, %c0_15] : memref<3x16x14x480xf32, #tpu.memory_space<vmem>>, vector<1x14x13x480xf32>
    %12 = vector.shape_cast %11 : vector<1x14x13x480xf32> to vector<14x13x480xf32>
    %13 = vector.shape_cast %10 : vector<14x13x480xf32> to vector<1x14x13x480xf32>
    tpu.vector_store %arg3[%c2, %c1_13, %c0_14, %c0_15], %13 {strides = array<i32>} : memref<3x16x14x480xf32, #tpu.memory_space<vmem>>, vector<1x14x13x480xf32>,
    %c0_16 = arith.constant 0 : index
    %c0_17 = arith.constant 0 : index
    %14 = vector.load %arg1[%c0_16, %c0_17] : memref<9x480xf32, #tpu.memory_space<vmem>>, vector<9x480xf32>
    %cst_18 = arith.constant 0.000000e+00 : f32
    %15 = vector.broadcast %cst_18 : f32 to vector<14x480xf32>
    %c0_19 = arith.constant 0 : index
    %c0_20 = arith.constant 0 : index
    %c0_21 = arith.constant 0 : index
    %c0_22 = arith.constant 0 : index
    %16 = vector.load %arg3[%c0_19, %c0_20, %c0_21, %c0_22] : memref<3x16x14x480xf32, #tpu.memory_space<vmem>>, vector<1x1x14x480xf32>
    %17 = vector.shape_cast %16 : vector<1x1x14x480xf32> to vector<14x480xf32>
    %18 = vector.extract_strided_slice %14 {offsets = [0, 0], sizes = [1, 480], strides = [1, 1]} : vector<9x480xf32> to vector<1x480xf32>
    %19 = vector.shape_cast %18 : vector<1x480xf32> to vector<480xf32>
    %20 = vector.shape_cast %19 : vector<480xf32> to vector<1x480xf32>
    %21 = vector.broadcast %20 : vector<1x480xf32> to vector<14x480xf32>
    %22 = arith.mulf %17, %21 : vector<14x480xf32>
    %23 = arith.addf %15, %22 : vector<14x480xf32>
    %c1_23 = arith.constant 1 : index
    %c0_24 = arith.constant 0 : index
    %c0_25 = arith.constant 0 : index
    %c0_26 = arith.constant 0 : index
    %24 = vector.load %arg3[%c1_23, %c0_24, %c0_25, %c0_26] : memref<3x16x14x480xf32, #tpu.memory_space<vmem>>, vector<1x1x14x480xf32>
    %25 = vector.shape_cast %24 : vector<1x1x14x480xf32> to vector<14x480xf32>
    %26 = vector.extract_strided_slice %14 {offsets = [1, 0], sizes = [1, 480], strides = [1, 1]} : vector<9x480xf32> to vector<1x480xf32>
    %27 = vector.shape_cast %26 : vector<1x480xf32> to vector<480xf32>
    %28 = vector.shape_cast %27 : vector<480xf32> to vector<1x480xf32>
    %29 = vector.broadcast %28 : vector<1x480xf32> to vector<14x480xf32>
    %30 = arith.mulf %25, %29 : vector<14x480xf32>
    %31 = arith.addf %23, %30 : vector<14x480xf32>
    %c2_27 = arith.constant 2 : index
    %c0_28 = arith.constant 0 : index
    %c0_29 = arith.constant 0 : index
    %c0_30 = arith.constant 0 : index
    %32 = vector.load %arg3[%c2_27, %c0_28, %c0_29, %c0_30] : memref<3x16x14x480xf32, #tpu.memory_space<vmem>>, vector<1x1x14x480xf32>
    %33 = vector.shape_cast %32 : vector<1x1x14x480xf32> to vector<14x480xf32>
    %34 = vector.extract_strided_slice %14 {offsets = [2, 0], sizes = [1, 480], strides = [1, 1]} : vector<9x480xf32> to vector<1x480xf32>
    %35 = vector.shape_cast %34 : vector<1x480xf32> to vector<480xf32>
    %36 = vector.shape_cast %35 : vector<480xf32> to vector<1x480xf32>
    %37 = vector.broadcast %36 : vector<1x480xf32> to vector<14x480xf32>
    %38 = arith.mulf %33, %37 : vector<14x480xf32>
    %39 = arith.addf %31, %38 : vector<14x480xf32>
    %c0_31 = arith.constant 0 : index
    %c1_32 = arith.constant 1 : index
    %c0_33 = arith.constant 0 : index
    %c0_34 = arith.constant 0 : index
    %40 = vector.load %arg3[%c0_31, %c1_32, %c0_33, %c0_34] : memref<3x16x14x480xf32, #tpu.memory_space<vmem>>, vector<1x1x14x480xf32>
    %41 = vector.shape_cast %40 : vector<1x1x14x480xf32> to vector<14x480xf32>
    %42 = vector.extract_strided_slice %14 {offsets = [3, 0], sizes = [1, 480], strides = [1, 1]} : vector<9x480xf32> to vector<1x480xf32>
    %43 = vector.shape_cast %42 : vector<1x480xf32> to vector<480xf32>
    %44 = vector.shape_cast %43 : vector<480xf32> to vector<1x480xf32>
    %45 = vector.broadcast %44 : vector<1x480xf32> to vector<14x480xf32>
    %46 = arith.mulf %41, %45 : vector<14x480xf32>
    %47 = arith.addf %39, %46 : vector<14x480xf32>
    %c1_35 = arith.constant 1 : index
    %c1_36 = arith.constant 1 : index
    %c0_37 = arith.constant 0 : index
    %c0_38 = arith.constant 0 : index
    %48 = vector.load %arg3[%c1_35, %c1_36, %c0_37, %c0_38] : memref<3x16x14x480xf32, #tpu.memory_space<vmem>>, vector<1x1x14x480xf32>
    %49 = vector.shape_cast %48 : vector<1x1x14x480xf32> to vector<14x480xf32>
    %50 = vector.extract_strided_slice %14 {offsets = [4, 0], sizes = [1, 480], strides = [1, 1]} : vector<9x480xf32> to vector<1x480xf32>
    %51 = vector.shape_cast %50 : vector<1x480xf32> to vector<480xf32>
    %52 = vector.shape_cast %51 : vector<480xf32> to vector<1x480xf32>
    %53 = vector.broadcast %52 : vector<1x480xf32> to vector<14x480xf32>
    %54 = arith.mulf %49, %53 : vector<14x480xf32>
    %55 = arith.addf %47, %54 : vector<14x480xf32>
    %c2_39 = arith.constant 2 : index
    %c1_40 = arith.constant 1 : index
    %c0_41 = arith.constant 0 : index
    %c0_42 = arith.constant 0 : index
    %56 = vector.load %arg3[%c2_39, %c1_40, %c0_41, %c0_42] : memref<3x16x14x480xf32, #tpu.memory_space<vmem>>, vector<1x1x14x480xf32>
    %57 = vector.shape_cast %56 : vector<1x1x14x480xf32> to vector<14x480xf32>
    %58 = vector.extract_strided_slice %14 {offsets = [5, 0], sizes = [1, 480], strides = [1, 1]} : vector<9x480xf32> to vector<1x480xf32>
    %59 = vector.shape_cast %58 : vector<1x480xf32> to vector<480xf32>
    %60 = vector.shape_cast %59 : vector<480xf32> to vector<1x480xf32>
    %61 = vector.broadcast %60 : vector<1x480xf32> to vector<14x480xf32>
    %62 = arith.mulf %57, %61 : vector<14x480xf32>
    %63 = arith.addf %55, %62 : vector<14x480xf32>
    %c0_43 = arith.constant 0 : index
    %c2_44 = arith.constant 2 : index
    %c0_45 = arith.constant 0 : index
    %c0_46 = arith.constant 0 : index
    %64 = vector.load %arg3[%c0_43, %c2_44, %c0_45, %c0_46] : memref<3x16x14x480xf32, #tpu.memory_space<vmem>>, vector<1x1x14x480xf32>
    %65 = vector.shape_cast %64 : vector<1x1x14x480xf32> to vector<14x480xf32>
    %66 = vector.extract_strided_slice %14 {offsets = [6, 0], sizes = [1, 480], strides = [1, 1]} : vector<9x480xf32> to vector<1x480xf32>
    %67 = vector.shape_cast %66 : vector<1x480xf32> to vector<480xf32>
    %68 = vector.shape_cast %67 : vector<480xf32> to vector<1x480xf32>
    %69 = vector.broadcast %68 : vector<1x480xf32> to vector<14x480xf32>
    %70 = arith.mulf %65, %69 : vector<14x480xf32>
    %71 = arith.addf %63, %70 : vector<14x480xf32>
    %c1_47 = arith.constant 1 : index
    %c2_48 = arith.constant 2 : index
    %c0_49 = arith.constant 0 : index
    %c0_50 = arith.constant 0 : index
    %72 = vector.load %arg3[%c1_47, %c2_48, %c0_49, %c0_50] : memref<3x16x14x480xf32, #tpu.memory_space<vmem>>, vector<1x1x14x480xf32>
    %73 = vector.shape_cast %72 : vector<1x1x14x480xf32> to vector<14x480xf32>
    %74 = vector.extract_strided_slice %14 {offsets = [7, 0], sizes = [1, 480], strides = [1, 1]} : vector<9x480xf32> to vector<1x480xf32>
    %75 = vector.shape_cast %74 : vector<1x480xf32> to vector<480xf32>
    %76 = vector.shape_cast %75 : vector<480xf32> to vector<1x480xf32>
    %77 = vector.broadcast %76 : vector<1x480xf32> to vector<14x480xf32>
    %78 = arith.mulf %73, %77 : vector<14x480xf32>
    %79 = arith.addf %71, %78 : vector<14x480xf32>
    %c2_51 = arith.constant 2 : index
    %c2_52 = arith.constant 2 : index
    %c0_53 = arith.constant 0 : index
    %c0_54 = arith.constant 0 : index
    %80 = vector.load %arg3[%c2_51, %c2_52, %c0_53, %c0_54] : memref<3x16x14x480xf32, #tpu.memory_space<vmem>>, vector<1x1x14x480xf32>
    %81 = vector.shape_cast %80 : vector<1x1x14x480xf32> to vector<14x480xf32>
    %82 = vector.extract_strided_slice %14 {offsets = [8, 0], sizes = [1, 480], strides = [1, 1]} : vector<9x480xf32> to vector<1x480xf32>
    %83 = vector.shape_cast %82 : vector<1x480xf32> to vector<480xf32>
    %84 = vector.shape_cast %83 : vector<480xf32> to vector<1x480xf32>
    %85 = vector.broadcast %84 : vector<1x480xf32> to vector<14x480xf32>
    %86 = arith.mulf %81, %85 : vector<14x480xf32>
    %87 = arith.addf %79, %86 : vector<14x480xf32>
    %c0_55 = arith.constant 0 : index
    %c0_56 = arith.constant 0 : index
    %c0_57 = arith.constant 0 : index
    %88 = vector.load %arg2[%c0_55, %c0_56, %c0_57] : memref<14x14x480xf32, #tpu.memory_space<vmem>>, vector<1x14x480xf32>
    %89 = vector.shape_cast %88 : vector<1x14x480xf32> to vector<14x480xf32>
    %90 = vector.shape_cast %87 : vector<14x480xf32> to vector<1x14x480xf32>
    tpu.vector_store %arg2[%c0_55, %c0_56, %c0_57], %90 {strides = array<i32>} : memref<14x14x480xf32, #tpu.memory_space<vmem>>, vector<1x14x480xf32>,
    %cst_58 = arith.constant 0.000000e+00 : f32
    %91 = vector.broadcast %cst_58 : f32 to vector<14x480xf32>
    %c0_59 = arith.constant 0 : index
    %c1_60 = arith.constant 1 : index
    %c0_61 = arith.constant 0 : index
    %c0_62 = arith.constant 0 : index
    %92 = vector.load %arg3[%c0_59, %c1_60, %c0_61, %c0_62] : memref<3x16x14x480xf32, #tpu.memory_space<vmem>>, vector<1x1x14x480xf32>
    %93 = vector.shape_cast %92 : vector<1x1x14x480xf32> to vector<14x480xf32>
    %94 = vector.extract_strided_slice %14 {offsets = [0, 0], sizes = [1, 480], strides = [1, 1]} : vector<9x480xf32> to vector<1x480xf32>
    %95 = vector.shape_cast %94 : vector<1x480xf32> to vector<480xf32>
    %96 = vector.shape_cast %95 : vector<480xf32> to vector<1x480xf32>
    %97 = vector.broadcast %96 : vector<1x480xf32> to vector<14x480xf32>
    %98 = arith.mulf %93, %97 : vector<14x480xf32>
    %99 = arith.addf %91, %98 : vector<14x480xf32>
    %c1_63 = arith.constant 1 : index
    %c1_64 = arith.constant 1 : index
    %c0_65 = arith.constant 0 : index
    %c0_66 = arith.constant 0 : index
    %100 = vector.load %arg3[%c1_63, %c1_64, %c0_65, %c0_66] : memref<3x16x14x480xf32, #tpu.memory_space<vmem>>, vector<1x1x14x480xf32>
    %101 = vector.shape_cast %100 : vector<1x1x14x480xf32> to vector<14x480xf32>
    %102 = vector.extract_strided_slice %14 {offsets = [1, 0], sizes = [1, 480], strides = [1, 1]} : vector<9x480xf32> to vector<1x480xf32>
    %103 = vector.shape_cast %102 : vector<1x480xf32> to vector<480xf32>
    %104 = vector.shape_cast %103 : vector<480xf32> to vector<1x480xf32>
    %105 = vector.broadcast %104 : vector<1x480xf32> to vector<14x480xf32>
    %106 = arith.mulf %101, %105 : vector<14x480xf32>
    %107 = arith.addf %99, %106 : vector<14x480xf32>
    %c2_67 = arith.constant 2 : index
    %c1_68 = arith.constant 1 : index
    %c0_69 = arith.constant 0 : index
    %c0_70 = arith.constant 0 : index
    %108 = vector.load %arg3[%c2_67, %c1_68, %c0_69, %c0_70] : memref<3x16x14x480xf32, #tpu.memory_space<vmem>>, vector<1x1x14x480xf32>
    %109 = vector.shape_cast %108 : vector<1x1x14x480xf32> to vector<14x480xf32>
    %110 = vector.extract_strided_slice %14 {offsets = [2, 0], sizes = [1, 480], strides = [1, 1]} : vector<9x480xf32> to vector<1x480xf32>
    %111 = vector.shape_cast %110 : vector<1x480xf32> to vector<480xf32>
    %112 = vector.shape_cast %111 : vector<480xf32> to vector<1x480xf32>
    %113 = vector.broadcast %112 : vector<1x480xf32> to vector<14x480xf32>
    %114 = arith.mulf %109, %113 : vector<14x480xf32>
    %115 = arith.addf %107, %114 : vector<14x480xf32>
    %c0_71 = arith.constant 0 : index
    %c2_72 = arith.constant 2 : index
    %c0_73 = arith.constant 0 : index
    %c0_74 = arith.constant 0 : index
    %116 = vector.load %arg3[%c0_71, %c2_72, %c0_73, %c0_74] : memref<3x16x14x480xf32, #tpu.memory_space<vmem>>, vector<1x1x14x480xf32>
    %117 = vector.shape_cast %116 : vector<1x1x14x480xf32> to vector<14x480xf32>
    %118 = vector.extract_strided_slice %14 {offsets = [3, 0], sizes = [1, 480], strides = [1, 1]} : vector<9x480xf32> to vector<1x480xf32>
    %119 = vector.shape_cast %118 : vector<1x480xf32> to vector<480xf32>
    %120 = vector.shape_cast %119 : vector<480xf32> to vector<1x480xf32>
    %121 = vector.broadcast %120 : vector<1x480xf32> to vector<14x480xf32>
    %122 = arith.mulf %117, %121 : vector<14x480xf32>
    %123 = arith.addf %115, %122 : vector<14x480xf32>
    %c1_75 = arith.constant 1 : index
    %c2_76 = arith.constant 2 : index
    %c0_77 = arith.constant 0 : index
    %c0_78 = arith.constant 0 : index
    %124 = vector.load %arg3[%c1_75, %c2_76, %c0_77, %c0_78] : memref<3x16x14x480xf32, #tpu.memory_space<vmem>>, vector<1x1x14x480xf32>
    %125 = vector.shape_cast %124 : vector<1x1x14x480xf32> to vector<14x480xf32>
    %126 = vector.extract_strided_slice %14 {offsets = [4, 0], sizes = [1, 480], strides = [1, 1]} : vector<9x480xf32> to vector<1x480xf32>
    %127 = vector.shape_cast %126 : vector<1x480xf32> to vector<480xf32>
    %128 = vector.shape_cast %127 : vector<480xf32> to vector<1x480xf32>
    %129 = vector.broadcast %128 : vector<1x480xf32> to vector<14x480xf32>
    %130 = arith.mulf %125, %129 : vector<14x480xf32>
    %131 = arith.addf %123, %130 : vector<14x480xf32>
    %c2_79 = arith.constant 2 : index
    %c2_80 = arith.constant 2 : index
    %c0_81 = arith.constant 0 : index
    %c0_82 = arith.constant 0 : index
    %132 = vector.load %arg3[%c2_79, %c2_80, %c0_81, %c0_82] : memref<3x16x14x480xf32, #tpu.memory_space<vmem>>, vector<1x1x14x480xf32>
    %133 = vector.shape_cast %132 : vector<1x1x14x480xf32> to vector<14x480xf32>
    %134 = vector.extract_strided_slice %14 {offsets = [5, 0], sizes = [1, 480], strides = [1, 1]} : vector<9x480xf32> to vector<1x480xf32>
    %135 = vector.shape_cast %134 : vector<1x480xf32> to vector<480xf32>
    %136 = vector.shape_cast %135 : vector<480xf32> to vector<1x480xf32>
    %137 = vector.broadcast %136 : vector<1x480xf32> to vector<14x480xf32>
    %138 = arith.mulf %133, %137 : vector<14x480xf32>
    %139 = arith.addf %131, %138 : vector<14x480xf32>
    %c0_83 = arith.constant 0 : index
    %c3 = arith.constant 3 : index
    %c0_84 = arith.constant 0 : index
    %c0_85 = arith.constant 0 : index
    %140 = vector.load %arg3[%c0_83, %c3, %c0_84, %c0_85] : memref<3x16x14x480xf32, #tpu.memory_space<vmem>>, vector<1x1x14x480xf32>
    %141 = vector.shape_cast %140 : vector<1x1x14x480xf32> to vector<14x480xf32>
    %142 = vector.extract_strided_slice %14 {offsets = [6, 0], sizes = [1, 480], strides = [1, 1]} : vector<9x480xf32> to vector<1x480xf32>
    %143 = vector.shape_cast %142 : vector<1x480xf32> to vector<480xf32>
    %144 = vector.shape_cast %143 : vector<480xf32> to vector<1x480xf32>
    %145 = vector.broadcast %144 : vector<1x480xf32> to vector<14x480xf32>
    %146 = arith.mulf %141, %145 : vector<14x480xf32>
    %147 = arith.addf %139, %146 : vector<14x480xf32>
    %c1_86 = arith.constant 1 : index
    %c3_87 = arith.constant 3 : index
    %c0_88 = arith.constant 0 : index
    %c0_89 = arith.constant 0 : index
    %148 = vector.load %arg3[%c1_86, %c3_87, %c0_88, %c0_89] : memref<3x16x14x480xf32, #tpu.memory_space<vmem>>, vector<1x1x14x480xf32>
    %149 = vector.shape_cast %148 : vector<1x1x14x480xf32> to vector<14x480xf32>
    %150 = vector.extract_strided_slice %14 {offsets = [7, 0], sizes = [1, 480], strides = [1, 1]} : vector<9x480xf32> to vector<1x480xf32>
    %151 = vector.shape_cast %150 : vector<1x480xf32> to vector<480xf32>
    %152 = vector.shape_cast %151 : vector<480xf32> to vector<1x480xf32>
    %153 = vector.broadcast %152 : vector<1x480xf32> to vector<14x480xf32>
    %154 = arith.mulf %149, %153 : vector<14x480xf32>
    %155 = arith.addf %147, %154 : vector<14x480xf32>
    %c2_90 = arith.constant 2 : index
    %c3_91 = arith.constant 3 : index
    %c0_92 = arith.constant 0 : index
    %c0_93 = arith.constant 0 : index
    %156 = vector.load %arg3[%c2_90, %c3_91, %c0_92, %c0_93] : memref<3x16x14x480xf32, #tpu.memory_space<vmem>>, vector<1x1x14x480xf32>
    %157 = vector.shape_cast %156 : vector<1x1x14x480xf32> to vector<14x480xf32>
    %158 = vector.extract_strided_slice %14 {offsets = [8, 0], sizes = [1, 480], strides = [1, 1]} : vector<9x480xf32> to vector<1x480xf32>
    %159 = vector.shape_cast %158 : vector<1x480xf32> to vector<480xf32>
    %160 = vector.shape_cast %159 : vector<480xf32> to vector<1x480xf32>
    %161 = vector.broadcast %160 : vector<1x480xf32> to vector<14x480xf32>
    %162 = arith.mulf %157, %161 : vector<14x480xf32>
    %163 = arith.addf %155, %162 : vector<14x480xf32>
    %c1_94 = arith.constant 1 : index
    %c0_95 = arith.constant 0 : index
    %c0_96 = arith.constant 0 : index
    %164 = vector.load %arg2[%c1_94, %c0_95, %c0_96] : memref<14x14x480xf32, #tpu.memory_space<vmem>>, vector<1x14x480xf32>
    %165 = vector.shape_cast %164 : vector<1x14x480xf32> to vector<14x480xf32>
    %166 = vector.shape_cast %163 : vector<14x480xf32> to vector<1x14x480xf32>
    tpu.vector_store %arg2[%c1_94, %c0_95, %c0_96], %166 {strides = array<i32>} : memref<14x14x480xf32, #tpu.memory_space<vmem>>, vector<1x14x480xf32>,
    %cst_97 = arith.constant 0.000000e+00 : f32
    %167 = vector.broadcast %cst_97 : f32 to vector<14x480xf32>
    %c0_98 = arith.constant 0 : index
    %c2_99 = arith.constant 2 : index
    %c0_100 = arith.constant 0 : index
    %c0_101 = arith.constant 0 : index
    %168 = vector.load %arg3[%c0_98, %c2_99, %c0_100, %c0_101] : memref<3x16x14x480xf32, #tpu.memory_space<vmem>>, vector<1x1x14x480xf32>
    %169 = vector.shape_cast %168 : vector<1x1x14x480xf32> to vector<14x480xf32>
    %170 = vector.extract_strided_slice %14 {offsets = [0, 0], sizes = [1, 480], strides = [1, 1]} : vector<9x480xf32> to vector<1x480xf32>
    %171 = vector.shape_cast %170 : vector<1x480xf32> to vector<480xf32>
    %172 = vector.shape_cast %171 : vector<480xf32> to vector<1x480xf32>
    %173 = vector.broadcast %172 : vector<1x480xf32> to vector<14x480xf32>
    %174 = arith.mulf %169, %173 : vector<14x480xf32>
    %175 = arith.addf %167, %174 : vector<14x480xf32>
    %c1_102 = arith.constant 1 : index
    %c2_103 = arith.constant 2 : index
    %c0_104 = arith.constant 0 : index
    %c0_105 = arith.constant 0 : index
    %176 = vector.load %arg3[%c1_102, %c2_103, %c0_104, %c0_105] : memref<3x16x14x480xf32, #tpu.memory_space<vmem>>, vector<1x1x14x480xf32>
    %177 = vector.shape_cast %176 : vector<1x1x14x480xf32> to vector<14x480xf32>
    %178 = vector.extract_strided_slice %14 {offsets = [1, 0], sizes = [1, 480], strides = [1, 1]} : vector<9x480xf32> to vector<1x480xf32>
    %179 = vector.shape_cast %178 : vector<1x480xf32> to vector<480xf32>
    %180 = vector.shape_cast %179 : vector<480xf32> to vector<1x480xf32>
    %181 = vector.broadcast %180 : vector<1x480xf32> to vector<14x480xf32>
    %182 = arith.mulf %177, %181 : vector<14x480xf32>
    %183 = arith.addf %175, %182 : vector<14x480xf32>
    %c2_106 = arith.constant 2 : index
    %c2_107 = arith.constant 2 : index
    %c0_108 = arith.constant 0 : index
    %c0_109 = arith.constant 0 : index
    %184 = vector.load %arg3[%c2_106, %c2_107, %c0_108, %c0_109] : memref<3x16x14x480xf32, #tpu.memory_space<vmem>>, vector<1x1x14x480xf32>
    %185 = vector.shape_cast %184 : vector<1x1x14x480xf32> to vector<14x480xf32>
    %186 = vector.extract_strided_slice %14 {offsets = [2, 0], sizes = [1, 480], strides = [1, 1]} : vector<9x480xf32> to vector<1x480xf32>
    %187 = vector.shape_cast %186 : vector<1x480xf32> to vector<480xf32>
    %188 = vector.shape_cast %187 : vector<480xf32> to vector<1x480xf32>
    %189 = vector.broadcast %188 : vector<1x480xf32> to vector<14x480xf32>
    %190 = arith.mulf %185, %189 : vector<14x480xf32>
    %191 = arith.addf %183, %190 : vector<14x480xf32>
    %c0_110 = arith.constant 0 : index
    %c3_111 = arith.constant 3 : index
    %c0_112 = arith.constant 0 : index
    %c0_113 = arith.constant 0 : index
    %192 = vector.load %arg3[%c0_110, %c3_111, %c0_112, %c0_113] : memref<3x16x14x480xf32, #tpu.memory_space<vmem>>, vector<1x1x14x480xf32>
    %193 = vector.shape_cast %192 : vector<1x1x14x480xf32> to vector<14x480xf32>
    %194 = vector.extract_strided_slice %14 {offsets = [3, 0], sizes = [1, 480], strides = [1, 1]} : vector<9x480xf32> to vector<1x480xf32>
    %195 = vector.shape_cast %194 : vector<1x480xf32> to vector<480xf32>
    %196 = vector.shape_cast %195 : vector<480xf32> to vector<1x480xf32>
    %197 = vector.broadcast %196 : vector<1x480xf32> to vector<14x480xf32>
    %198 = arith.mulf %193, %197 : vector<14x480xf32>
    %199 = arith.addf %191, %198 : vector<14x480xf32>
    %c1_114 = arith.constant 1 : index
    %c3_115 = arith.constant 3 : index
    %c0_116 = arith.constant 0 : index
    %c0_117 = arith.constant 0 : index
    %200 = vector.load %arg3[%c1_114, %c3_115, %c0_116, %c0_117] : memref<3x16x14x480xf32, #tpu.memory_space<vmem>>, vector<1x1x14x480xf32>
    %201 = vector.shape_cast %200 : vector<1x1x14x480xf32> to vector<14x480xf32>
    %202 = vector.extract_strided_slice %14 {offsets = [4, 0], sizes = [1, 480], strides = [1, 1]} : vector<9x480xf32> to vector<1x480xf32>
    %203 = vector.shape_cast %202 : vector<1x480xf32> to vector<480xf32>
    %204 = vector.shape_cast %203 : vector<480xf32> to vector<1x480xf32>
    %205 = vector.broadcast %204 : vector<1x480xf32> to vector<14x480xf32>
    %206 = arith.mulf %201, %205 : vector<14x480xf32>
    %207 = arith.addf %199, %206 : vector<14x480xf32>
    %c2_118 = arith.constant 2 : index
    %c3_119 = arith.constant 3 : index
    %c0_120 = arith.constant 0 : index
    %c0_121 = arith.constant 0 : index
    %208 = vector.load %arg3[%c2_118, %c3_119, %c0_120, %c0_121] : memref<3x16x14x480xf32, #tpu.memory_space<vmem>>, vector<1x1x14x480xf32>
    %209 = vector.shape_cast %208 : vector<1x1x14x480xf32> to vector<14x480xf32>
    %210 = vector.extract_strided_slice %14 {offsets = [5, 0], sizes = [1, 480], strides = [1, 1]} : vector<9x480xf32> to vector<1x480xf32>
    %211 = vector.shape_cast %210 : vector<1x480xf32> to vector<480xf32>
    %212 = vector.shape_cast %211 : vector<480xf32> to vector<1x480xf32>
    %213 = vector.broadcast %212 : vector<1x480xf32> to vector<14x480xf32>
    %214 = arith.mulf %209, %213 : vector<14x480xf32>
    %215 = arith.addf %207, %214 : vector<14x480xf32>
    %c0_122 = arith.constant 0 : index
    %c4 = arith.constant 4 : index
    %c0_123 = arith.constant 0 : index
    %c0_124 = arith.constant 0 : index
    %216 = vector.load %arg3[%c0_122, %c4, %c0_123, %c0_124] : memref<3x16x14x480xf32, #tpu.memory_space<vmem>>, vector<1x1x14x480xf32>
    %217 = vector.shape_cast %216 : vector<1x1x14x480xf32> to vector<14x480xf32>
    %218 = vector.extract_strided_slice %14 {offsets = [6, 0], sizes = [1, 480], strides = [1, 1]} : vector<9x480xf32> to vector<1x480xf32>
    %219 = vector.shape_cast %218 : vector<1x480xf32> to vector<480xf32>
    %220 = vector.shape_cast %219 : vector<480xf32> to vector<1x480xf32>
    %221 = vector.broadcast %220 : vector<1x480xf32> to vector<14x480xf32>
    %222 = arith.mulf %217, %221 : vector<14x480xf32>
    %223 = arith.addf %215, %222 : vector<14x480xf32>
    %c1_125 = arith.constant 1 : index
    %c4_126 = arith.constant 4 : index
    %c0_127 = arith.constant 0 : index
    %c0_128 = arith.constant 0 : index
    %224 = vector.load %arg3[%c1_125, %c4_126, %c0_127, %c0_128] : memref<3x16x14x480xf32, #tpu.memory_space<vmem>>, vector<1x1x14x480xf32>
    %225 = vector.shape_cast %224 : vector<1x1x14x480xf32> to vector<14x480xf32>
    %226 = vector.extract_strided_slice %14 {offsets = [7, 0], sizes = [1, 480], strides = [1, 1]} : vector<9x480xf32> to vector<1x480xf32>
    %227 = vector.shape_cast %226 : vector<1x480xf32> to vector<480xf32>
    %228 = vector.shape_cast %227 : vector<480xf32> to vector<1x480xf32>
    %229 = vector.broadcast %228 : vector<1x480xf32> to vector<14x480xf32>
    %230 = arith.mulf %225, %229 : vector<14x480xf32>
    %231 = arith.addf %223, %230 : vector<14x480xf32>
    %c2_129 = arith.constant 2 : index
    %c4_130 = arith.constant 4 : index
    %c0_131 = arith.constant 0 : index
    %c0_132 = arith.constant 0 : index
    %232 = vector.load %arg3[%c2_129, %c4_130, %c0_131, %c0_132] : memref<3x16x14x480xf32, #tpu.memory_space<vmem>>, vector<1x1x14x480xf32>
    %233 = vector.shape_cast %232 : vector<1x1x14x480xf32> to vector<14x480xf32>
    %234 = vector.extract_strided_slice %14 {offsets = [8, 0], sizes = [1, 480], strides = [1, 1]} : vector<9x480xf32> to vector<1x480xf32>
    %235 = vector.shape_cast %234 : vector<1x480xf32> to vector<480xf32>
    %236 = vector.shape_cast %235 : vector<480xf32> to vector<1x480xf32>
    %237 = vector.broadcast %236 : vector<1x480xf32> to vector<14x480xf32>
    %238 = arith.mulf %233, %237 : vector<14x480xf32>
    %239 = arith.addf %231, %238 : vector<14x480xf32>
    %c2_133 = arith.constant 2 : index
    %c0_134 = arith.constant 0 : index
    %c0_135 = arith.constant 0 : index
    %240 = vector.load %arg2[%c2_133, %c0_134, %c0_135] : memref<14x14x480xf32, #tpu.memory_space<vmem>>, vector<1x14x480xf32>
    %241 = vector.shape_cast %240 : vector<1x14x480xf32> to vector<14x480xf32>
    %242 = vector.shape_cast %239 : vector<14x480xf32> to vector<1x14x480xf32>
    tpu.vector_store %arg2[%c2_133, %c0_134, %c0_135], %242 {strides = array<i32>} : memref<14x14x480xf32, #tpu.memory_space<vmem>>, vector<1x14x480xf32>,
    %cst_136 = arith.constant 0.000000e+00 : f32
    %243 = vector.broadcast %cst_136 : f32 to vector<14x480xf32>
    %c0_137 = arith.constant 0 : index
    %c3_138 = arith.constant 3 : index
    %c0_139 = arith.constant 0 : index
    %c0_140 = arith.constant 0 : index
    %244 = vector.load %arg3[%c0_137, %c3_138, %c0_139, %c0_140] : memref<3x16x14x480xf32, #tpu.memory_space<vmem>>, vector<1x1x14x480xf32>
    %245 = vector.shape_cast %244 : vector<1x1x14x480xf32> to vector<14x480xf32>
    %246 = vector.extract_strided_slice %14 {offsets = [0, 0], sizes = [1, 480], strides = [1, 1]} : vector<9x480xf32> to vector<1x480xf32>
    %247 = vector.shape_cast %246 : vector<1x480xf32> to vector<480xf32>
    %248 = vector.shape_cast %247 : vector<480xf32> to vector<1x480xf32>
    %249 = vector.broadcast %248 : vector<1x480xf32> to vector<14x480xf32>
    %250 = arith.mulf %245, %249 : vector<14x480xf32>
    %251 = arith.addf %243, %250 : vector<14x480xf32>
    %c1_141 = arith.constant 1 : index
    %c3_142 = arith.constant 3 : index
    %c0_143 = arith.constant 0 : index
    %c0_144 = arith.constant 0 : index
    %252 = vector.load %arg3[%c1_141, %c3_142, %c0_143, %c0_144] : memref<3x16x14x480xf32, #tpu.memory_space<vmem>>, vector<1x1x14x480xf32>
    %253 = vector.shape_cast %252 : vector<1x1x14x480xf32> to vector<14x480xf32>
    %254 = vector.extract_strided_slice %14 {offsets = [1, 0], sizes = [1, 480], strides = [1, 1]} : vector<9x480xf32> to vector<1x480xf32>
    %255 = vector.shape_cast %254 : vector<1x480xf32> to vector<480xf32>
    %256 = vector.shape_cast %255 : vector<480xf32> to vector<1x480xf32>
    %257 = vector.broadcast %256 : vector<1x480xf32> to vector<14x480xf32>
    %258 = arith.mulf %253, %257 : vector<14x480xf32>
    %259 = arith.addf %251, %258 : vector<14x480xf32>
    %c2_145 = arith.constant 2 : index
    %c3_146 = arith.constant 3 : index
    %c0_147 = arith.constant 0 : index
    %c0_148 = arith.constant 0 : index
    %260 = vector.load %arg3[%c2_145, %c3_146, %c0_147, %c0_148] : memref<3x16x14x480xf32, #tpu.memory_space<vmem>>, vector<1x1x14x480xf32>
    %261 = vector.shape_cast %260 : vector<1x1x14x480xf32> to vector<14x480xf32>
    %262 = vector.extract_strided_slice %14 {offsets = [2, 0], sizes = [1, 480], strides = [1, 1]} : vector<9x480xf32> to vector<1x480xf32>
    %263 = vector.shape_cast %262 : vector<1x480xf32> to vector<480xf32>
    %264 = vector.shape_cast %263 : vector<480xf32> to vector<1x480xf32>
    %265 = vector.broadcast %264 : vector<1x480xf32> to vector<14x480xf32>
    %266 = arith.mulf %261, %265 : vector<14x480xf32>
    %267 = arith.addf %259, %266 : vector<14x480xf32>
    %c0_149 = arith.constant 0 : index
    %c4_150 = arith.constant 4 : index
    %c0_151 = arith.constant 0 : index
    %c0_152 = arith.constant 0 : index
    %268 = vector.load %arg3[%c0_149, %c4_150, %c0_151, %c0_152] : memref<3x16x14x480xf32, #tpu.memory_space<vmem>>, vector<1x1x14x480xf32>
    %269 = vector.shape_cast %268 : vector<1x1x14x480xf32> to vector<14x480xf32>
    %270 = vector.extract_strided_slice %14 {offsets = [3, 0], sizes = [1, 480], strides = [1, 1]} : vector<9x480xf32> to vector<1x480xf32>
    %271 = vector.shape_cast %270 : vector<1x480xf32> to vector<480xf32>
    %272 = vector.shape_cast %271 : vector<480xf32> to vector<1x480xf32>
    %273 = vector.broadcast %272 : vector<1x480xf32> to vector<14x480xf32>
    %274 = arith.mulf %269, %273 : vector<14x480xf32>
    %275 = arith.addf %267, %274 : vector<14x480xf32>
    %c1_153 = arith.constant 1 : index
    %c4_154 = arith.constant 4 : index
    %c0_155 = arith.constant 0 : index
    %c0_156 = arith.constant 0 : index
    %276 = vector.load %arg3[%c1_153, %c4_154, %c0_155, %c0_156] : memref<3x16x14x480xf32, #tpu.memory_space<vmem>>, vector<1x1x14x480xf32>
    %277 = vector.shape_cast %276 : vector<1x1x14x480xf32> to vector<14x480xf32>
    %278 = vector.extract_strided_slice %14 {offsets = [4, 0], sizes = [1, 480], strides = [1, 1]} : vector<9x480xf32> to vector<1x480xf32>
    %279 = vector.shape_cast %278 : vector<1x480xf32> to vector<480xf32>
    %280 = vector.shape_cast %279 : vector<480xf32> to vector<1x480xf32>
    %281 = vector.broadcast %280 : vector<1x480xf32> to vector<14x480xf32>
    %282 = arith.mulf %277, %281 : vector<14x480xf32>
    %283 = arith.addf %275, %282 : vector<14x480xf32>
    %c2_157 = arith.constant 2 : index
    %c4_158 = arith.constant 4 : index
    %c0_159 = arith.constant 0 : index
    %c0_160 = arith.constant 0 : index
    %284 = vector.load %arg3[%c2_157, %c4_158, %c0_159, %c0_160] : memref<3x16x14x480xf32, #tpu.memory_space<vmem>>, vector<1x1x14x480xf32>
    %285 = vector.shape_cast %284 : vector<1x1x14x480xf32> to vector<14x480xf32>
    %286 = vector.extract_strided_slice %14 {offsets = [5, 0], sizes = [1, 480], strides = [1, 1]} : vector<9x480xf32> to vector<1x480xf32>
    %287 = vector.shape_cast %286 : vector<1x480xf32> to vector<480xf32>
    %288 = vector.shape_cast %287 : vector<480xf32> to vector<1x480xf32>
    %289 = vector.broadcast %288 : vector<1x480xf32> to vector<14x480xf32>
    %290 = arith.mulf %285, %289 : vector<14x480xf32>
    %291 = arith.addf %283, %290 : vector<14x480xf32>
    %c0_161 = arith.constant 0 : index
    %c5 = arith.constant 5 : index
    %c0_162 = arith.constant 0 : index
    %c0_163 = arith.constant 0 : index
    %292 = vector.load %arg3[%c0_161, %c5, %c0_162, %c0_163] : memref<3x16x14x480xf32, #tpu.memory_space<vmem>>, vector<1x1x14x480xf32>
    %293 = vector.shape_cast %292 : vector<1x1x14x480xf32> to vector<14x480xf32>
    %294 = vector.extract_strided_slice %14 {offsets = [6, 0], sizes = [1, 480], strides = [1, 1]} : vector<9x480xf32> to vector<1x480xf32>
    %295 = vector.shape_cast %294 : vector<1x480xf32> to vector<480xf32>
    %296 = vector.shape_cast %295 : vector<480xf32> to vector<1x480xf32>
    %297 = vector.broadcast %296 : vector<1x480xf32> to vector<14x480xf32>
    %298 = arith.mulf %293, %297 : vector<14x480xf32>
    %299 = arith.addf %291, %298 : vector<14x480xf32>
    %c1_164 = arith.constant 1 : index
    %c5_165 = arith.constant 5 : index
    %c0_166 = arith.constant 0 : index
    %c0_167 = arith.constant 0 : index
    %300 = vector.load %arg3[%c1_164, %c5_165, %c0_166, %c0_167] : memref<3x16x14x480xf32, #tpu.memory_space<vmem>>, vector<1x1x14x480xf32>
    %301 = vector.shape_cast %300 : vector<1x1x14x480xf32> to vector<14x480xf32>
    %302 = vector.extract_strided_slice %14 {offsets = [7, 0], sizes = [1, 480], strides = [1, 1]} : vector<9x480xf32> to vector<1x480xf32>
    %303 = vector.shape_cast %302 : vector<1x480xf32> to vector<480xf32>
    %304 = vector.shape_cast %303 : vector<480xf32> to vector<1x480xf32>
    %305 = vector.broadcast %304 : vector<1x480xf32> to vector<14x480xf32>
    %306 = arith.mulf %301, %305 : vector<14x480xf32>
    %307 = arith.addf %299, %306 : vector<14x480xf32>
    %c2_168 = arith.constant 2 : index
    %c5_169 = arith.constant 5 : index
    %c0_170 = arith.constant 0 : index
    %c0_171 = arith.constant 0 : index
    %308 = vector.load %arg3[%c2_168, %c5_169, %c0_170, %c0_171] : memref<3x16x14x480xf32, #tpu.memory_space<vmem>>, vector<1x1x14x480xf32>
    %309 = vector.shape_cast %308 : vector<1x1x14x480xf32> to vector<14x480xf32>
    %310 = vector.extract_strided_slice %14 {offsets = [8, 0], sizes = [1, 480], strides = [1, 1]} : vector<9x480xf32> to vector<1x480xf32>
    %311 = vector.shape_cast %310 : vector<1x480xf32> to vector<480xf32>
    %312 = vector.shape_cast %311 : vector<480xf32> to vector<1x480xf32>
    %313 = vector.broadcast %312 : vector<1x480xf32> to vector<14x480xf32>
    %314 = arith.mulf %309, %313 : vector<14x480xf32>
    %315 = arith.addf %307, %314 : vector<14x480xf32>
    %c3_172 = arith.constant 3 : index
    %c0_173 = arith.constant 0 : index
    %c0_174 = arith.constant 0 : index
    %316 = vector.load %arg2[%c3_172, %c0_173, %c0_174] : memref<14x14x480xf32, #tpu.memory_space<vmem>>, vector<1x14x480xf32>
    %317 = vector.shape_cast %316 : vector<1x14x480xf32> to vector<14x480xf32>
    %318 = vector.shape_cast %315 : vector<14x480xf32> to vector<1x14x480xf32>
    tpu.vector_store %arg2[%c3_172, %c0_173, %c0_174], %318 {strides = array<i32>} : memref<14x14x480xf32, #tpu.memory_space<vmem>>, vector<1x14x480xf32>,
    %cst_175 = arith.constant 0.000000e+00 : f32
    %319 = vector.broadcast %cst_175 : f32 to vector<14x480xf32>
    %c0_176 = arith.constant 0 : index
    %c4_177 = arith.constant 4 : index
    %c0_178 = arith.constant 0 : index
    %c0_179 = arith.constant 0 : index
    %320 = vector.load %arg3[%c0_176, %c4_177, %c0_178, %c0_179] : memref<3x16x14x480xf32, #tpu.memory_space<vmem>>, vector<1x1x14x480xf32>
    %321 = vector.shape_cast %320 : vector<1x1x14x480xf32> to vector<14x480xf32>
    %322 = vector.extract_strided_slice %14 {offsets = [0, 0], sizes = [1, 480], strides = [1, 1]} : vector<9x480xf32> to vector<1x480xf32>
    %323 = vector.shape_cast %322 : vector<1x480xf32> to vector<480xf32>
    %324 = vector.shape_cast %323 : vector<480xf32> to vector<1x480xf32>
    %325 = vector.broadcast %324 : vector<1x480xf32> to vector<14x480xf32>
    %326 = arith.mulf %321, %325 : vector<14x480xf32>
    %327 = arith.addf %319, %326 : vector<14x480xf32>
    %c1_180 = arith.constant 1 : index
    %c4_181 = arith.constant 4 : index
    %c0_182 = arith.constant 0 : index
    %c0_183 = arith.constant 0 : index
    %328 = vector.load %arg3[%c1_180, %c4_181, %c0_182, %c0_183] : memref<3x16x14x480xf32, #tpu.memory_space<vmem>>, vector<1x1x14x480xf32>
    %329 = vector.shape_cast %328 : vector<1x1x14x480xf32> to vector<14x480xf32>
    %330 = vector.extract_strided_slice %14 {offsets = [1, 0], sizes = [1, 480], strides = [1, 1]} : vector<9x480xf32> to vector<1x480xf32>
    %331 = vector.shape_cast %330 : vector<1x480xf32> to vector<480xf32>
    %332 = vector.shape_cast %331 : vector<480xf32> to vector<1x480xf32>
    %333 = vector.broadcast %332 : vector<1x480xf32> to vector<14x480xf32>
    %334 = arith.mulf %329, %333 : vector<14x480xf32>
    %335 = arith.addf %327, %334 : vector<14x480xf32>
    %c2_184 = arith.constant 2 : index
    %c4_185 = arith.constant 4 : index
    %c0_186 = arith.constant 0 : index
    %c0_187 = arith.constant 0 : index
    %336 = vector.load %arg3[%c2_184, %c4_185, %c0_186, %c0_187] : memref<3x16x14x480xf32, #tpu.memory_space<vmem>>, vector<1x1x14x480xf32>
    %337 = vector.shape_cast %336 : vector<1x1x14x480xf32> to vector<14x480xf32>
    %338 = vector.extract_strided_slice %14 {offsets = [2, 0], sizes = [1, 480], strides = [1, 1]} : vector<9x480xf32> to vector<1x480xf32>
    %339 = vector.shape_cast %338 : vector<1x480xf32> to vector<480xf32>
    %340 = vector.shape_cast %339 : vector<480xf32> to vector<1x480xf32>
    %341 = vector.broadcast %340 : vector<1x480xf32> to vector<14x480xf32>
    %342 = arith.mulf %337, %341 : vector<14x480xf32>
    %343 = arith.addf %335, %342 : vector<14x480xf32>
    %c0_188 = arith.constant 0 : index
    %c5_189 = arith.constant 5 : index
    %c0_190 = arith.constant 0 : index
    %c0_191 = arith.constant 0 : index
    %344 = vector.load %arg3[%c0_188, %c5_189, %c0_190, %c0_191] : memref<3x16x14x480xf32, #tpu.memory_space<vmem>>, vector<1x1x14x480xf32>
    %345 = vector.shape_cast %344 : vector<1x1x14x480xf32> to vector<14x480xf32>
    %346 = vector.extract_strided_slice %14 {offsets = [3, 0], sizes = [1, 480], strides = [1, 1]} : vector<9x480xf32> to vector<1x480xf32>
    %347 = vector.shape_cast %346 : vector<1x480xf32> to vector<480xf32>
    %348 = vector.shape_cast %347 : vector<480xf32> to vector<1x480xf32>
    %349 = vector.broadcast %348 : vector<1x480xf32> to vector<14x480xf32>
    %350 = arith.mulf %345, %349 : vector<14x480xf32>
    %351 = arith.addf %343, %350 : vector<14x480xf32>
    %c1_192 = arith.constant 1 : index
    %c5_193 = arith.constant 5 : index
    %c0_194 = arith.constant 0 : index
    %c0_195 = arith.constant 0 : index
    %352 = vector.load %arg3[%c1_192, %c5_193, %c0_194, %c0_195] : memref<3x16x14x480xf32, #tpu.memory_space<vmem>>, vector<1x1x14x480xf32>
    %353 = vector.shape_cast %352 : vector<1x1x14x480xf32> to vector<14x480xf32>
    %354 = vector.extract_strided_slice %14 {offsets = [4, 0], sizes = [1, 480], strides = [1, 1]} : vector<9x480xf32> to vector<1x480xf32>
    %355 = vector.shape_cast %354 : vector<1x480xf32> to vector<480xf32>
    %356 = vector.shape_cast %355 : vector<480xf32> to vector<1x480xf32>
    %357 = vector.broadcast %356 : vector<1x480xf32> to vector<14x480xf32>
    %358 = arith.mulf %353, %357 : vector<14x480xf32>
    %359 = arith.addf %351, %358 : vector<14x480xf32>
    %c2_196 = arith.constant 2 : index
    %c5_197 = arith.constant 5 : index
    %c0_198 = arith.constant 0 : index
    %c0_199 = arith.constant 0 : index
    %360 = vector.load %arg3[%c2_196, %c5_197, %c0_198, %c0_199] : memref<3x16x14x480xf32, #tpu.memory_space<vmem>>, vector<1x1x14x480xf32>
    %361 = vector.shape_cast %360 : vector<1x1x14x480xf32> to vector<14x480xf32>
    %362 = vector.extract_strided_slice %14 {offsets = [5, 0], sizes = [1, 480], strides = [1, 1]} : vector<9x480xf32> to vector<1x480xf32>
    %363 = vector.shape_cast %362 : vector<1x480xf32> to vector<480xf32>
    %364 = vector.shape_cast %363 : vector<480xf32> to vector<1x480xf32>
    %365 = vector.broadcast %364 : vector<1x480xf32> to vector<14x480xf32>
    %366 = arith.mulf %361, %365 : vector<14x480xf32>
    %367 = arith.addf %359, %366 : vector<14x480xf32>
    %c0_200 = arith.constant 0 : index
    %c6 = arith.constant 6 : index
    %c0_201 = arith.constant 0 : index
    %c0_202 = arith.constant 0 : index
    %368 = vector.load %arg3[%c0_200, %c6, %c0_201, %c0_202] : memref<3x16x14x480xf32, #tpu.memory_space<vmem>>, vector<1x1x14x480xf32>
    %369 = vector.shape_cast %368 : vector<1x1x14x480xf32> to vector<14x480xf32>
    %370 = vector.extract_strided_slice %14 {offsets = [6, 0], sizes = [1, 480], strides = [1, 1]} : vector<9x480xf32> to vector<1x480xf32>
    %371 = vector.shape_cast %370 : vector<1x480xf32> to vector<480xf32>
    %372 = vector.shape_cast %371 : vector<480xf32> to vector<1x480xf32>
    %373 = vector.broadcast %372 : vector<1x480xf32> to vector<14x480xf32>
    %374 = arith.mulf %369, %373 : vector<14x480xf32>
    %375 = arith.addf %367, %374 : vector<14x480xf32>
    %c1_203 = arith.constant 1 : index
    %c6_204 = arith.constant 6 : index
    %c0_205 = arith.constant 0 : index
    %c0_206 = arith.constant 0 : index
    %376 = vector.load %arg3[%c1_203, %c6_204, %c0_205, %c0_206] : memref<3x16x14x480xf32, #tpu.memory_space<vmem>>, vector<1x1x14x480xf32>
    %377 = vector.shape_cast %376 : vector<1x1x14x480xf32> to vector<14x480xf32>
    %378 = vector.extract_strided_slice %14 {offsets = [7, 0], sizes = [1, 480], strides = [1, 1]} : vector<9x480xf32> to vector<1x480xf32>
    %379 = vector.shape_cast %378 : vector<1x480xf32> to vector<480xf32>
    %380 = vector.shape_cast %379 : vector<480xf32> to vector<1x480xf32>
    %381 = vector.broadcast %380 : vector<1x480xf32> to vector<14x480xf32>
    %382 = arith.mulf %377, %381 : vector<14x480xf32>
    %383 = arith.addf %375, %382 : vector<14x480xf32>
    %c2_207 = arith.constant 2 : index
    %c6_208 = arith.constant 6 : index
    %c0_209 = arith.constant 0 : index
    %c0_210 = arith.constant 0 : index
    %384 = vector.load %arg3[%c2_207, %c6_208, %c0_209, %c0_210] : memref<3x16x14x480xf32, #tpu.memory_space<vmem>>, vector<1x1x14x480xf32>
    %385 = vector.shape_cast %384 : vector<1x1x14x480xf32> to vector<14x480xf32>
    %386 = vector.extract_strided_slice %14 {offsets = [8, 0], sizes = [1, 480], strides = [1, 1]} : vector<9x480xf32> to vector<1x480xf32>
    %387 = vector.shape_cast %386 : vector<1x480xf32> to vector<480xf32>
    %388 = vector.shape_cast %387 : vector<480xf32> to vector<1x480xf32>
    %389 = vector.broadcast %388 : vector<1x480xf32> to vector<14x480xf32>
    %390 = arith.mulf %385, %389 : vector<14x480xf32>
    %391 = arith.addf %383, %390 : vector<14x480xf32>
    %c4_211 = arith.constant 4 : index
    %c0_212 = arith.constant 0 : index
    %c0_213 = arith.constant 0 : index
    %392 = vector.load %arg2[%c4_211, %c0_212, %c0_213] : memref<14x14x480xf32, #tpu.memory_space<vmem>>, vector<1x14x480xf32>
    %393 = vector.shape_cast %392 : vector<1x14x480xf32> to vector<14x480xf32>
    %394 = vector.shape_cast %391 : vector<14x480xf32> to vector<1x14x480xf32>
    tpu.vector_store %arg2[%c4_211, %c0_212, %c0_213], %394 {strides = array<i32>} : memref<14x14x480xf32, #tpu.memory_space<vmem>>, vector<1x14x480xf32>,
    %cst_214 = arith.constant 0.000000e+00 : f32
    %395 = vector.broadcast %cst_214 : f32 to vector<14x480xf32>
    %c0_215 = arith.constant 0 : index
    %c5_216 = arith.constant 5 : index
    %c0_217 = arith.constant 0 : index
    %c0_218 = arith.constant 0 : index
    %396 = vector.load %arg3[%c0_215, %c5_216, %c0_217, %c0_218] : memref<3x16x14x480xf32, #tpu.memory_space<vmem>>, vector<1x1x14x480xf32>
    %397 = vector.shape_cast %396 : vector<1x1x14x480xf32> to vector<14x480xf32>
    %398 = vector.extract_strided_slice %14 {offsets = [0, 0], sizes = [1, 480], strides = [1, 1]} : vector<9x480xf32> to vector<1x480xf32>
    %399 = vector.shape_cast %398 : vector<1x480xf32> to vector<480xf32>
    %400 = vector.shape_cast %399 : vector<480xf32> to vector<1x480xf32>
    %401 = vector.broadcast %400 : vector<1x480xf32> to vector<14x480xf32>
    %402 = arith.mulf %397, %401 : vector<14x480xf32>
    %403 = arith.addf %395, %402 : vector<14x480xf32>
    %c1_219 = arith.constant 1 : index
    %c5_220 = arith.constant 5 : index
    %c0_221 = arith.constant 0 : index
    %c0_222 = arith.constant 0 : index
    %404 = vector.load %arg3[%c1_219, %c5_220, %c0_221, %c0_222] : memref<3x16x14x480xf32, #tpu.memory_space<vmem>>, vector<1x1x14x480xf32>
    %405 = vector.shape_cast %404 : vector<1x1x14x480xf32> to vector<14x480xf32>
    %406 = vector.extract_strided_slice %14 {offsets = [1, 0], sizes = [1, 480], strides = [1, 1]} : vector<9x480xf32> to vector<1x480xf32>
    %407 = vector.shape_cast %406 : vector<1x480xf32> to vector<480xf32>
    %408 = vector.shape_cast %407 : vector<480xf32> to vector<1x480xf32>
    %409 = vector.broadcast %408 : vector<1x480xf32> to vector<14x480xf32>
    %410 = arith.mulf %405, %409 : vector<14x480xf32>
    %411 = arith.addf %403, %410 : vector<14x480xf32>
    %c2_223 = arith.constant 2 : index
    %c5_224 = arith.constant 5 : index
    %c0_225 = arith.constant 0 : index
    %c0_226 = arith.constant 0 : index
    %412 = vector.load %arg3[%c2_223, %c5_224, %c0_225, %c0_226] : memref<3x16x14x480xf32, #tpu.memory_space<vmem>>, vector<1x1x14x480xf32>
    %413 = vector.shape_cast %412 : vector<1x1x14x480xf32> to vector<14x480xf32>
    %414 = vector.extract_strided_slice %14 {offsets = [2, 0], sizes = [1, 480], strides = [1, 1]} : vector<9x480xf32> to vector<1x480xf32>
    %415 = vector.shape_cast %414 : vector<1x480xf32> to vector<480xf32>
    %416 = vector.shape_cast %415 : vector<480xf32> to vector<1x480xf32>
    %417 = vector.broadcast %416 : vector<1x480xf32> to vector<14x480xf32>
    %418 = arith.mulf %413, %417 : vector<14x480xf32>
    %419 = arith.addf %411, %418 : vector<14x480xf32>
    %c0_227 = arith.constant 0 : index
    %c6_228 = arith.constant 6 : index
    %c0_229 = arith.constant 0 : index
    %c0_230 = arith.constant 0 : index
    %420 = vector.load %arg3[%c0_227, %c6_228, %c0_229, %c0_230] : memref<3x16x14x480xf32, #tpu.memory_space<vmem>>, vector<1x1x14x480xf32>
    %421 = vector.shape_cast %420 : vector<1x1x14x480xf32> to vector<14x480xf32>
    %422 = vector.extract_strided_slice %14 {offsets = [3, 0], sizes = [1, 480], strides = [1, 1]} : vector<9x480xf32> to vector<1x480xf32>
    %423 = vector.shape_cast %422 : vector<1x480xf32> to vector<480xf32>
    %424 = vector.shape_cast %423 : vector<480xf32> to vector<1x480xf32>
    %425 = vector.broadcast %424 : vector<1x480xf32> to vector<14x480xf32>
    %426 = arith.mulf %421, %425 : vector<14x480xf32>
    %427 = arith.addf %419, %426 : vector<14x480xf32>
    %c1_231 = arith.constant 1 : index
    %c6_232 = arith.constant 6 : index
    %c0_233 = arith.constant 0 : index
    %c0_234 = arith.constant 0 : index
    %428 = vector.load %arg3[%c1_231, %c6_232, %c0_233, %c0_234] : memref<3x16x14x480xf32, #tpu.memory_space<vmem>>, vector<1x1x14x480xf32>
    %429 = vector.shape_cast %428 : vector<1x1x14x480xf32> to vector<14x480xf32>
    %430 = vector.extract_strided_slice %14 {offsets = [4, 0], sizes = [1, 480], strides = [1, 1]} : vector<9x480xf32> to vector<1x480xf32>
    %431 = vector.shape_cast %430 : vector<1x480xf32> to vector<480xf32>
    %432 = vector.shape_cast %431 : vector<480xf32> to vector<1x480xf32>
    %433 = vector.broadcast %432 : vector<1x480xf32> to vector<14x480xf32>
    %434 = arith.mulf %429, %433 : vector<14x480xf32>
    %435 = arith.addf %427, %434 : vector<14x480xf32>
    %c2_235 = arith.constant 2 : index
    %c6_236 = arith.constant 6 : index
    %c0_237 = arith.constant 0 : index
    %c0_238 = arith.constant 0 : index
    %436 = vector.load %arg3[%c2_235, %c6_236, %c0_237, %c0_238] : memref<3x16x14x480xf32, #tpu.memory_space<vmem>>, vector<1x1x14x480xf32>
    %437 = vector.shape_cast %436 : vector<1x1x14x480xf32> to vector<14x480xf32>
    %438 = vector.extract_strided_slice %14 {offsets = [5, 0], sizes = [1, 480], strides = [1, 1]} : vector<9x480xf32> to vector<1x480xf32>
    %439 = vector.shape_cast %438 : vector<1x480xf32> to vector<480xf32>
    %440 = vector.shape_cast %439 : vector<480xf32> to vector<1x480xf32>
    %441 = vector.broadcast %440 : vector<1x480xf32> to vector<14x480xf32>
    %442 = arith.mulf %437, %441 : vector<14x480xf32>
    %443 = arith.addf %435, %442 : vector<14x480xf32>
    %c0_239 = arith.constant 0 : index
    %c7 = arith.constant 7 : index
    %c0_240 = arith.constant 0 : index
    %c0_241 = arith.constant 0 : index
    %444 = vector.load %arg3[%c0_239, %c7, %c0_240, %c0_241] : memref<3x16x14x480xf32, #tpu.memory_space<vmem>>, vector<1x1x14x480xf32>
    %445 = vector.shape_cast %444 : vector<1x1x14x480xf32> to vector<14x480xf32>
    %446 = vector.extract_strided_slice %14 {offsets = [6, 0], sizes = [1, 480], strides = [1, 1]} : vector<9x480xf32> to vector<1x480xf32>
    %447 = vector.shape_cast %446 : vector<1x480xf32> to vector<480xf32>
    %448 = vector.shape_cast %447 : vector<480xf32> to vector<1x480xf32>
    %449 = vector.broadcast %448 : vector<1x480xf32> to vector<14x480xf32>
    %450 = arith.mulf %445, %449 : vector<14x480xf32>
    %451 = arith.addf %443, %450 : vector<14x480xf32>
    %c1_242 = arith.constant 1 : index
    %c7_243 = arith.constant 7 : index
    %c0_244 = arith.constant 0 : index
    %c0_245 = arith.constant 0 : index
    %452 = vector.load %arg3[%c1_242, %c7_243, %c0_244, %c0_245] : memref<3x16x14x480xf32, #tpu.memory_space<vmem>>, vector<1x1x14x480xf32>
    %453 = vector.shape_cast %452 : vector<1x1x14x480xf32> to vector<14x480xf32>
    %454 = vector.extract_strided_slice %14 {offsets = [7, 0], sizes = [1, 480], strides = [1, 1]} : vector<9x480xf32> to vector<1x480xf32>
    %455 = vector.shape_cast %454 : vector<1x480xf32> to vector<480xf32>
    %456 = vector.shape_cast %455 : vector<480xf32> to vector<1x480xf32>
    %457 = vector.broadcast %456 : vector<1x480xf32> to vector<14x480xf32>
    %458 = arith.mulf %453, %457 : vector<14x480xf32>
    %459 = arith.addf %451, %458 : vector<14x480xf32>
    %c2_246 = arith.constant 2 : index
    %c7_247 = arith.constant 7 : index
    %c0_248 = arith.constant 0 : index
    %c0_249 = arith.constant 0 : index
    %460 = vector.load %arg3[%c2_246, %c7_247, %c0_248, %c0_249] : memref<3x16x14x480xf32, #tpu.memory_space<vmem>>, vector<1x1x14x480xf32>
    %461 = vector.shape_cast %460 : vector<1x1x14x480xf32> to vector<14x480xf32>
    %462 = vector.extract_strided_slice %14 {offsets = [8, 0], sizes = [1, 480], strides = [1, 1]} : vector<9x480xf32> to vector<1x480xf32>
    %463 = vector.shape_cast %462 : vector<1x480xf32> to vector<480xf32>
    %464 = vector.shape_cast %463 : vector<480xf32> to vector<1x480xf32>
    %465 = vector.broadcast %464 : vector<1x480xf32> to vector<14x480xf32>
    %466 = arith.mulf %461, %465 : vector<14x480xf32>
    %467 = arith.addf %459, %466 : vector<14x480xf32>
    %c5_250 = arith.constant 5 : index
    %c0_251 = arith.constant 0 : index
    %c0_252 = arith.constant 0 : index
    %468 = vector.load %arg2[%c5_250, %c0_251, %c0_252] : memref<14x14x480xf32, #tpu.memory_space<vmem>>, vector<1x14x480xf32>
    %469 = vector.shape_cast %468 : vector<1x14x480xf32> to vector<14x480xf32>
    %470 = vector.shape_cast %467 : vector<14x480xf32> to vector<1x14x480xf32>
    tpu.vector_store %arg2[%c5_250, %c0_251, %c0_252], %470 {strides = array<i32>} : memref<14x14x480xf32, #tpu.memory_space<vmem>>, vector<1x14x480xf32>,
    %cst_253 = arith.constant 0.000000e+00 : f32
    %471 = vector.broadcast %cst_253 : f32 to vector<14x480xf32>
    %c0_254 = arith.constant 0 : index
    %c6_255 = arith.constant 6 : index
    %c0_256 = arith.constant 0 : index
    %c0_257 = arith.constant 0 : index
    %472 = vector.load %arg3[%c0_254, %c6_255, %c0_256, %c0_257] : memref<3x16x14x480xf32, #tpu.memory_space<vmem>>, vector<1x1x14x480xf32>
    %473 = vector.shape_cast %472 : vector<1x1x14x480xf32> to vector<14x480xf32>
    %474 = vector.extract_strided_slice %14 {offsets = [0, 0], sizes = [1, 480], strides = [1, 1]} : vector<9x480xf32> to vector<1x480xf32>
    %475 = vector.shape_cast %474 : vector<1x480xf32> to vector<480xf32>
    %476 = vector.shape_cast %475 : vector<480xf32> to vector<1x480xf32>
    %477 = vector.broadcast %476 : vector<1x480xf32> to vector<14x480xf32>
    %478 = arith.mulf %473, %477 : vector<14x480xf32>
    %479 = arith.addf %471, %478 : vector<14x480xf32>
    %c1_258 = arith.constant 1 : index
    %c6_259 = arith.constant 6 : index
    %c0_260 = arith.constant 0 : index
    %c0_261 = arith.constant 0 : index
    %480 = vector.load %arg3[%c1_258, %c6_259, %c0_260, %c0_261] : memref<3x16x14x480xf32, #tpu.memory_space<vmem>>, vector<1x1x14x480xf32>
    %481 = vector.shape_cast %480 : vector<1x1x14x480xf32> to vector<14x480xf32>
    %482 = vector.extract_strided_slice %14 {offsets = [1, 0], sizes = [1, 480], strides = [1, 1]} : vector<9x480xf32> to vector<1x480xf32>
    %483 = vector.shape_cast %482 : vector<1x480xf32> to vector<480xf32>
    %484 = vector.shape_cast %483 : vector<480xf32> to vector<1x480xf32>
    %485 = vector.broadcast %484 : vector<1x480xf32> to vector<14x480xf32>
    %486 = arith.mulf %481, %485 : vector<14x480xf32>
    %487 = arith.addf %479, %486 : vector<14x480xf32>
    %c2_262 = arith.constant 2 : index
    %c6_263 = arith.constant 6 : index
    %c0_264 = arith.constant 0 : index
    %c0_265 = arith.constant 0 : index
    %488 = vector.load %arg3[%c2_262, %c6_263, %c0_264, %c0_265] : memref<3x16x14x480xf32, #tpu.memory_space<vmem>>, vector<1x1x14x480xf32>
    %489 = vector.shape_cast %488 : vector<1x1x14x480xf32> to vector<14x480xf32>
    %490 = vector.extract_strided_slice %14 {offsets = [2, 0], sizes = [1, 480], strides = [1, 1]} : vector<9x480xf32> to vector<1x480xf32>
    %491 = vector.shape_cast %490 : vector<1x480xf32> to vector<480xf32>
    %492 = vector.shape_cast %491 : vector<480xf32> to vector<1x480xf32>
    %493 = vector.broadcast %492 : vector<1x480xf32> to vector<14x480xf32>
    %494 = arith.mulf %489, %493 : vector<14x480xf32>
    %495 = arith.addf %487, %494 : vector<14x480xf32>
    %c0_266 = arith.constant 0 : index
    %c7_267 = arith.constant 7 : index
    %c0_268 = arith.constant 0 : index
    %c0_269 = arith.constant 0 : index
    %496 = vector.load %arg3[%c0_266, %c7_267, %c0_268, %c0_269] : memref<3x16x14x480xf32, #tpu.memory_space<vmem>>, vector<1x1x14x480xf32>
    %497 = vector.shape_cast %496 : vector<1x1x14x480xf32> to vector<14x480xf32>
    %498 = vector.extract_strided_slice %14 {offsets = [3, 0], sizes = [1, 480], strides = [1, 1]} : vector<9x480xf32> to vector<1x480xf32>
    %499 = vector.shape_cast %498 : vector<1x480xf32> to vector<480xf32>
    %500 = vector.shape_cast %499 : vector<480xf32> to vector<1x480xf32>
    %501 = vector.broadcast %500 : vector<1x480xf32> to vector<14x480xf32>
    %502 = arith.mulf %497, %501 : vector<14x480xf32>
    %503 = arith.addf %495, %502 : vector<14x480xf32>
    %c1_270 = arith.constant 1 : index
    %c7_271 = arith.constant 7 : index
    %c0_272 = arith.constant 0 : index
    %c0_273 = arith.constant 0 : index
    %504 = vector.load %arg3[%c1_270, %c7_271, %c0_272, %c0_273] : memref<3x16x14x480xf32, #tpu.memory_space<vmem>>, vector<1x1x14x480xf32>
    %505 = vector.shape_cast %504 : vector<1x1x14x480xf32> to vector<14x480xf32>
    %506 = vector.extract_strided_slice %14 {offsets = [4, 0], sizes = [1, 480], strides = [1, 1]} : vector<9x480xf32> to vector<1x480xf32>
    %507 = vector.shape_cast %506 : vector<1x480xf32> to vector<480xf32>
    %508 = vector.shape_cast %507 : vector<480xf32> to vector<1x480xf32>
    %509 = vector.broadcast %508 : vector<1x480xf32> to vector<14x480xf32>
    %510 = arith.mulf %505, %509 : vector<14x480xf32>
    %511 = arith.addf %503, %510 : vector<14x480xf32>
    %c2_274 = arith.constant 2 : index
    %c7_275 = arith.constant 7 : index
    %c0_276 = arith.constant 0 : index
    %c0_277 = arith.constant 0 : index
    %512 = vector.load %arg3[%c2_274, %c7_275, %c0_276, %c0_277] : memref<3x16x14x480xf32, #tpu.memory_space<vmem>>, vector<1x1x14x480xf32>
    %513 = vector.shape_cast %512 : vector<1x1x14x480xf32> to vector<14x480xf32>
    %514 = vector.extract_strided_slice %14 {offsets = [5, 0], sizes = [1, 480], strides = [1, 1]} : vector<9x480xf32> to vector<1x480xf32>
    %515 = vector.shape_cast %514 : vector<1x480xf32> to vector<480xf32>
    %516 = vector.shape_cast %515 : vector<480xf32> to vector<1x480xf32>
    %517 = vector.broadcast %516 : vector<1x480xf32> to vector<14x480xf32>
    %518 = arith.mulf %513, %517 : vector<14x480xf32>
    %519 = arith.addf %511, %518 : vector<14x480xf32>
    %c0_278 = arith.constant 0 : index
    %c8 = arith.constant 8 : index
    %c0_279 = arith.constant 0 : index
    %c0_280 = arith.constant 0 : index
    %520 = vector.load %arg3[%c0_278, %c8, %c0_279, %c0_280] : memref<3x16x14x480xf32, #tpu.memory_space<vmem>>, vector<1x1x14x480xf32>
    %521 = vector.shape_cast %520 : vector<1x1x14x480xf32> to vector<14x480xf32>
    %522 = vector.extract_strided_slice %14 {offsets = [6, 0], sizes = [1, 480], strides = [1, 1]} : vector<9x480xf32> to vector<1x480xf32>
    %523 = vector.shape_cast %522 : vector<1x480xf32> to vector<480xf32>
    %524 = vector.shape_cast %523 : vector<480xf32> to vector<1x480xf32>
    %525 = vector.broadcast %524 : vector<1x480xf32> to vector<14x480xf32>
    %526 = arith.mulf %521, %525 : vector<14x480xf32>
    %527 = arith.addf %519, %526 : vector<14x480xf32>
    %c1_281 = arith.constant 1 : index
    %c8_282 = arith.constant 8 : index
    %c0_283 = arith.constant 0 : index
    %c0_284 = arith.constant 0 : index
    %528 = vector.load %arg3[%c1_281, %c8_282, %c0_283, %c0_284] : memref<3x16x14x480xf32, #tpu.memory_space<vmem>>, vector<1x1x14x480xf32>
    %529 = vector.shape_cast %528 : vector<1x1x14x480xf32> to vector<14x480xf32>
    %530 = vector.extract_strided_slice %14 {offsets = [7, 0], sizes = [1, 480], strides = [1, 1]} : vector<9x480xf32> to vector<1x480xf32>
    %531 = vector.shape_cast %530 : vector<1x480xf32> to vector<480xf32>
    %532 = vector.shape_cast %531 : vector<480xf32> to vector<1x480xf32>
    %533 = vector.broadcast %532 : vector<1x480xf32> to vector<14x480xf32>
    %534 = arith.mulf %529, %533 : vector<14x480xf32>
    %535 = arith.addf %527, %534 : vector<14x480xf32>
    %c2_285 = arith.constant 2 : index
    %c8_286 = arith.constant 8 : index
    %c0_287 = arith.constant 0 : index
    %c0_288 = arith.constant 0 : index
    %536 = vector.load %arg3[%c2_285, %c8_286, %c0_287, %c0_288] : memref<3x16x14x480xf32, #tpu.memory_space<vmem>>, vector<1x1x14x480xf32>
    %537 = vector.shape_cast %536 : vector<1x1x14x480xf32> to vector<14x480xf32>
    %538 = vector.extract_strided_slice %14 {offsets = [8, 0], sizes = [1, 480], strides = [1, 1]} : vector<9x480xf32> to vector<1x480xf32>
    %539 = vector.shape_cast %538 : vector<1x480xf32> to vector<480xf32>
    %540 = vector.shape_cast %539 : vector<480xf32> to vector<1x480xf32>
    %541 = vector.broadcast %540 : vector<1x480xf32> to vector<14x480xf32>
    %542 = arith.mulf %537, %541 : vector<14x480xf32>
    %543 = arith.addf %535, %542 : vector<14x480xf32>
    %c6_289 = arith.constant 6 : index
    %c0_290 = arith.constant 0 : index
    %c0_291 = arith.constant 0 : index
    %544 = vector.load %arg2[%c6_289, %c0_290, %c0_291] : memref<14x14x480xf32, #tpu.memory_space<vmem>>, vector<1x14x480xf32>
    %545 = vector.shape_cast %544 : vector<1x14x480xf32> to vector<14x480xf32>
    %546 = vector.shape_cast %543 : vector<14x480xf32> to vector<1x14x480xf32>
    tpu.vector_store %arg2[%c6_289, %c0_290, %c0_291], %546 {strides = array<i32>} : memref<14x14x480xf32, #tpu.memory_space<vmem>>, vector<1x14x480xf32>,
    %cst_292 = arith.constant 0.000000e+00 : f32
    %547 = vector.broadcast %cst_292 : f32 to vector<14x480xf32>
    %c0_293 = arith.constant 0 : index
    %c7_294 = arith.constant 7 : index
    %c0_295 = arith.constant 0 : index
    %c0_296 = arith.constant 0 : index
    %548 = vector.load %arg3[%c0_293, %c7_294, %c0_295, %c0_296] : memref<3x16x14x480xf32, #tpu.memory_space<vmem>>, vector<1x1x14x480xf32>
    %549 = vector.shape_cast %548 : vector<1x1x14x480xf32> to vector<14x480xf32>
    %550 = vector.extract_strided_slice %14 {offsets = [0, 0], sizes = [1, 480], strides = [1, 1]} : vector<9x480xf32> to vector<1x480xf32>
    %551 = vector.shape_cast %550 : vector<1x480xf32> to vector<480xf32>
    %552 = vector.shape_cast %551 : vector<480xf32> to vector<1x480xf32>
    %553 = vector.broadcast %552 : vector<1x480xf32> to vector<14x480xf32>
    %554 = arith.mulf %549, %553 : vector<14x480xf32>
    %555 = arith.addf %547, %554 : vector<14x480xf32>
    %c1_297 = arith.constant 1 : index
    %c7_298 = arith.constant 7 : index
    %c0_299 = arith.constant 0 : index
    %c0_300 = arith.constant 0 : index
    %556 = vector.load %arg3[%c1_297, %c7_298, %c0_299, %c0_300] : memref<3x16x14x480xf32, #tpu.memory_space<vmem>>, vector<1x1x14x480xf32>
    %557 = vector.shape_cast %556 : vector<1x1x14x480xf32> to vector<14x480xf32>
    %558 = vector.extract_strided_slice %14 {offsets = [1, 0], sizes = [1, 480], strides = [1, 1]} : vector<9x480xf32> to vector<1x480xf32>
    %559 = vector.shape_cast %558 : vector<1x480xf32> to vector<480xf32>
    %560 = vector.shape_cast %559 : vector<480xf32> to vector<1x480xf32>
    %561 = vector.broadcast %560 : vector<1x480xf32> to vector<14x480xf32>
    %562 = arith.mulf %557, %561 : vector<14x480xf32>
    %563 = arith.addf %555, %562 : vector<14x480xf32>
    %c2_301 = arith.constant 2 : index
    %c7_302 = arith.constant 7 : index
    %c0_303 = arith.constant 0 : index
    %c0_304 = arith.constant 0 : index
    %564 = vector.load %arg3[%c2_301, %c7_302, %c0_303, %c0_304] : memref<3x16x14x480xf32, #tpu.memory_space<vmem>>, vector<1x1x14x480xf32>
    %565 = vector.shape_cast %564 : vector<1x1x14x480xf32> to vector<14x480xf32>
    %566 = vector.extract_strided_slice %14 {offsets = [2, 0], sizes = [1, 480], strides = [1, 1]} : vector<9x480xf32> to vector<1x480xf32>
    %567 = vector.shape_cast %566 : vector<1x480xf32> to vector<480xf32>
    %568 = vector.shape_cast %567 : vector<480xf32> to vector<1x480xf32>
    %569 = vector.broadcast %568 : vector<1x480xf32> to vector<14x480xf32>
    %570 = arith.mulf %565, %569 : vector<14x480xf32>
    %571 = arith.addf %563, %570 : vector<14x480xf32>
    %c0_305 = arith.constant 0 : index
    %c8_306 = arith.constant 8 : index
    %c0_307 = arith.constant 0 : index
    %c0_308 = arith.constant 0 : index
    %572 = vector.load %arg3[%c0_305, %c8_306, %c0_307, %c0_308] : memref<3x16x14x480xf32, #tpu.memory_space<vmem>>, vector<1x1x14x480xf32>
    %573 = vector.shape_cast %572 : vector<1x1x14x480xf32> to vector<14x480xf32>
    %574 = vector.extract_strided_slice %14 {offsets = [3, 0], sizes = [1, 480], strides = [1, 1]} : vector<9x480xf32> to vector<1x480xf32>
    %575 = vector.shape_cast %574 : vector<1x480xf32> to vector<480xf32>
    %576 = vector.shape_cast %575 : vector<480xf32> to vector<1x480xf32>
    %577 = vector.broadcast %576 : vector<1x480xf32> to vector<14x480xf32>
    %578 = arith.mulf %573, %577 : vector<14x480xf32>
    %579 = arith.addf %571, %578 : vector<14x480xf32>
    %c1_309 = arith.constant 1 : index
    %c8_310 = arith.constant 8 : index
    %c0_311 = arith.constant 0 : index
    %c0_312 = arith.constant 0 : index
    %580 = vector.load %arg3[%c1_309, %c8_310, %c0_311, %c0_312] : memref<3x16x14x480xf32, #tpu.memory_space<vmem>>, vector<1x1x14x480xf32>
    %581 = vector.shape_cast %580 : vector<1x1x14x480xf32> to vector<14x480xf32>
    %582 = vector.extract_strided_slice %14 {offsets = [4, 0], sizes = [1, 480], strides = [1, 1]} : vector<9x480xf32> to vector<1x480xf32>
    %583 = vector.shape_cast %582 : vector<1x480xf32> to vector<480xf32>
    %584 = vector.shape_cast %583 : vector<480xf32> to vector<1x480xf32>
    %585 = vector.broadcast %584 : vector<1x480xf32> to vector<14x480xf32>
    %586 = arith.mulf %581, %585 : vector<14x480xf32>
    %587 = arith.addf %579, %586 : vector<14x480xf32>
    %c2_313 = arith.constant 2 : index
    %c8_314 = arith.constant 8 : index
    %c0_315 = arith.constant 0 : index
    %c0_316 = arith.constant 0 : index
    %588 = vector.load %arg3[%c2_313, %c8_314, %c0_315, %c0_316] : memref<3x16x14x480xf32, #tpu.memory_space<vmem>>, vector<1x1x14x480xf32>
    %589 = vector.shape_cast %588 : vector<1x1x14x480xf32> to vector<14x480xf32>
    %590 = vector.extract_strided_slice %14 {offsets = [5, 0], sizes = [1, 480], strides = [1, 1]} : vector<9x480xf32> to vector<1x480xf32>
    %591 = vector.shape_cast %590 : vector<1x480xf32> to vector<480xf32>
    %592 = vector.shape_cast %591 : vector<480xf32> to vector<1x480xf32>
    %593 = vector.broadcast %592 : vector<1x480xf32> to vector<14x480xf32>
    %594 = arith.mulf %589, %593 : vector<14x480xf32>
    %595 = arith.addf %587, %594 : vector<14x480xf32>
    %c0_317 = arith.constant 0 : index
    %c9 = arith.constant 9 : index
    %c0_318 = arith.constant 0 : index
    %c0_319 = arith.constant 0 : index
    %596 = vector.load %arg3[%c0_317, %c9, %c0_318, %c0_319] : memref<3x16x14x480xf32, #tpu.memory_space<vmem>>, vector<1x1x14x480xf32>
    %597 = vector.shape_cast %596 : vector<1x1x14x480xf32> to vector<14x480xf32>
    %598 = vector.extract_strided_slice %14 {offsets = [6, 0], sizes = [1, 480], strides = [1, 1]} : vector<9x480xf32> to vector<1x480xf32>
    %599 = vector.shape_cast %598 : vector<1x480xf32> to vector<480xf32>
    %600 = vector.shape_cast %599 : vector<480xf32> to vector<1x480xf32>
    %601 = vector.broadcast %600 : vector<1x480xf32> to vector<14x480xf32>
    %602 = arith.mulf %597, %601 : vector<14x480xf32>
    %603 = arith.addf %595, %602 : vector<14x480xf32>
    %c1_320 = arith.constant 1 : index
    %c9_321 = arith.constant 9 : index
    %c0_322 = arith.constant 0 : index
    %c0_323 = arith.constant 0 : index
    %604 = vector.load %arg3[%c1_320, %c9_321, %c0_322, %c0_323] : memref<3x16x14x480xf32, #tpu.memory_space<vmem>>, vector<1x1x14x480xf32>
    %605 = vector.shape_cast %604 : vector<1x1x14x480xf32> to vector<14x480xf32>
    %606 = vector.extract_strided_slice %14 {offsets = [7, 0], sizes = [1, 480], strides = [1, 1]} : vector<9x480xf32> to vector<1x480xf32>
    %607 = vector.shape_cast %606 : vector<1x480xf32> to vector<480xf32>
    %608 = vector.shape_cast %607 : vector<480xf32> to vector<1x480xf32>
    %609 = vector.broadcast %608 : vector<1x480xf32> to vector<14x480xf32>
    %610 = arith.mulf %605, %609 : vector<14x480xf32>
    %611 = arith.addf %603, %610 : vector<14x480xf32>
    %c2_324 = arith.constant 2 : index
    %c9_325 = arith.constant 9 : index
    %c0_326 = arith.constant 0 : index
    %c0_327 = arith.constant 0 : index
    %612 = vector.load %arg3[%c2_324, %c9_325, %c0_326, %c0_327] : memref<3x16x14x480xf32, #tpu.memory_space<vmem>>, vector<1x1x14x480xf32>
    %613 = vector.shape_cast %612 : vector<1x1x14x480xf32> to vector<14x480xf32>
    %614 = vector.extract_strided_slice %14 {offsets = [8, 0], sizes = [1, 480], strides = [1, 1]} : vector<9x480xf32> to vector<1x480xf32>
    %615 = vector.shape_cast %614 : vector<1x480xf32> to vector<480xf32>
    %616 = vector.shape_cast %615 : vector<480xf32> to vector<1x480xf32>
    %617 = vector.broadcast %616 : vector<1x480xf32> to vector<14x480xf32>
    %618 = arith.mulf %613, %617 : vector<14x480xf32>
    %619 = arith.addf %611, %618 : vector<14x480xf32>
    %c7_328 = arith.constant 7 : index
    %c0_329 = arith.constant 0 : index
    %c0_330 = arith.constant 0 : index
    %620 = vector.load %arg2[%c7_328, %c0_329, %c0_330] : memref<14x14x480xf32, #tpu.memory_space<vmem>>, vector<1x14x480xf32>
    %621 = vector.shape_cast %620 : vector<1x14x480xf32> to vector<14x480xf32>
    %622 = vector.shape_cast %619 : vector<14x480xf32> to vector<1x14x480xf32>
    tpu.vector_store %arg2[%c7_328, %c0_329, %c0_330], %622 {strides = array<i32>} : memref<14x14x480xf32, #tpu.memory_space<vmem>>, vector<1x14x480xf32>,
    %cst_331 = arith.constant 0.000000e+00 : f32
    %623 = vector.broadcast %cst_331 : f32 to vector<14x480xf32>
    %c0_332 = arith.constant 0 : index
    %c8_333 = arith.constant 8 : index
    %c0_334 = arith.constant 0 : index
    %c0_335 = arith.constant 0 : index
    %624 = vector.load %arg3[%c0_332, %c8_333, %c0_334, %c0_335] : memref<3x16x14x480xf32, #tpu.memory_space<vmem>>, vector<1x1x14x480xf32>
    %625 = vector.shape_cast %624 : vector<1x1x14x480xf32> to vector<14x480xf32>
    %626 = vector.extract_strided_slice %14 {offsets = [0, 0], sizes = [1, 480], strides = [1, 1]} : vector<9x480xf32> to vector<1x480xf32>
    %627 = vector.shape_cast %626 : vector<1x480xf32> to vector<480xf32>
    %628 = vector.shape_cast %627 : vector<480xf32> to vector<1x480xf32>
    %629 = vector.broadcast %628 : vector<1x480xf32> to vector<14x480xf32>
    %630 = arith.mulf %625, %629 : vector<14x480xf32>
    %631 = arith.addf %623, %630 : vector<14x480xf32>
    %c1_336 = arith.constant 1 : index
    %c8_337 = arith.constant 8 : index
    %c0_338 = arith.constant 0 : index
    %c0_339 = arith.constant 0 : index
    %632 = vector.load %arg3[%c1_336, %c8_337, %c0_338, %c0_339] : memref<3x16x14x480xf32, #tpu.memory_space<vmem>>, vector<1x1x14x480xf32>
    %633 = vector.shape_cast %632 : vector<1x1x14x480xf32> to vector<14x480xf32>
    %634 = vector.extract_strided_slice %14 {offsets = [1, 0], sizes = [1, 480], strides = [1, 1]} : vector<9x480xf32> to vector<1x480xf32>
    %635 = vector.shape_cast %634 : vector<1x480xf32> to vector<480xf32>
    %636 = vector.shape_cast %635 : vector<480xf32> to vector<1x480xf32>
    %637 = vector.broadcast %636 : vector<1x480xf32> to vector<14x480xf32>
    %638 = arith.mulf %633, %637 : vector<14x480xf32>
    %639 = arith.addf %631, %638 : vector<14x480xf32>
    %c2_340 = arith.constant 2 : index
    %c8_341 = arith.constant 8 : index
    %c0_342 = arith.constant 0 : index
    %c0_343 = arith.constant 0 : index
    %640 = vector.load %arg3[%c2_340, %c8_341, %c0_342, %c0_343] : memref<3x16x14x480xf32, #tpu.memory_space<vmem>>, vector<1x1x14x480xf32>
    %641 = vector.shape_cast %640 : vector<1x1x14x480xf32> to vector<14x480xf32>
    %642 = vector.extract_strided_slice %14 {offsets = [2, 0], sizes = [1, 480], strides = [1, 1]} : vector<9x480xf32> to vector<1x480xf32>
    %643 = vector.shape_cast %642 : vector<1x480xf32> to vector<480xf32>
    %644 = vector.shape_cast %643 : vector<480xf32> to vector<1x480xf32>
    %645 = vector.broadcast %644 : vector<1x480xf32> to vector<14x480xf32>
    %646 = arith.mulf %641, %645 : vector<14x480xf32>
    %647 = arith.addf %639, %646 : vector<14x480xf32>
    %c0_344 = arith.constant 0 : index
    %c9_345 = arith.constant 9 : index
    %c0_346 = arith.constant 0 : index
    %c0_347 = arith.constant 0 : index
    %648 = vector.load %arg3[%c0_344, %c9_345, %c0_346, %c0_347] : memref<3x16x14x480xf32, #tpu.memory_space<vmem>>, vector<1x1x14x480xf32>
    %649 = vector.shape_cast %648 : vector<1x1x14x480xf32> to vector<14x480xf32>
    %650 = vector.extract_strided_slice %14 {offsets = [3, 0], sizes = [1, 480], strides = [1, 1]} : vector<9x480xf32> to vector<1x480xf32>
    %651 = vector.shape_cast %650 : vector<1x480xf32> to vector<480xf32>
    %652 = vector.shape_cast %651 : vector<480xf32> to vector<1x480xf32>
    %653 = vector.broadcast %652 : vector<1x480xf32> to vector<14x480xf32>
    %654 = arith.mulf %649, %653 : vector<14x480xf32>
    %655 = arith.addf %647, %654 : vector<14x480xf32>
    %c1_348 = arith.constant 1 : index
    %c9_349 = arith.constant 9 : index
    %c0_350 = arith.constant 0 : index
    %c0_351 = arith.constant 0 : index
    %656 = vector.load %arg3[%c1_348, %c9_349, %c0_350, %c0_351] : memref<3x16x14x480xf32, #tpu.memory_space<vmem>>, vector<1x1x14x480xf32>
    %657 = vector.shape_cast %656 : vector<1x1x14x480xf32> to vector<14x480xf32>
    %658 = vector.extract_strided_slice %14 {offsets = [4, 0], sizes = [1, 480], strides = [1, 1]} : vector<9x480xf32> to vector<1x480xf32>
    %659 = vector.shape_cast %658 : vector<1x480xf32> to vector<480xf32>
    %660 = vector.shape_cast %659 : vector<480xf32> to vector<1x480xf32>
    %661 = vector.broadcast %660 : vector<1x480xf32> to vector<14x480xf32>
    %662 = arith.mulf %657, %661 : vector<14x480xf32>
    %663 = arith.addf %655, %662 : vector<14x480xf32>
    %c2_352 = arith.constant 2 : index
    %c9_353 = arith.constant 9 : index
    %c0_354 = arith.constant 0 : index
    %c0_355 = arith.constant 0 : index
    %664 = vector.load %arg3[%c2_352, %c9_353, %c0_354, %c0_355] : memref<3x16x14x480xf32, #tpu.memory_space<vmem>>, vector<1x1x14x480xf32>
    %665 = vector.shape_cast %664 : vector<1x1x14x480xf32> to vector<14x480xf32>
    %666 = vector.extract_strided_slice %14 {offsets = [5, 0], sizes = [1, 480], strides = [1, 1]} : vector<9x480xf32> to vector<1x480xf32>
    %667 = vector.shape_cast %666 : vector<1x480xf32> to vector<480xf32>
    %668 = vector.shape_cast %667 : vector<480xf32> to vector<1x480xf32>
    %669 = vector.broadcast %668 : vector<1x480xf32> to vector<14x480xf32>
    %670 = arith.mulf %665, %669 : vector<14x480xf32>
    %671 = arith.addf %663, %670 : vector<14x480xf32>
    %c0_356 = arith.constant 0 : index
    %c10 = arith.constant 10 : index
    %c0_357 = arith.constant 0 : index
    %c0_358 = arith.constant 0 : index
    %672 = vector.load %arg3[%c0_356, %c10, %c0_357, %c0_358] : memref<3x16x14x480xf32, #tpu.memory_space<vmem>>, vector<1x1x14x480xf32>
    %673 = vector.shape_cast %672 : vector<1x1x14x480xf32> to vector<14x480xf32>
    %674 = vector.extract_strided_slice %14 {offsets = [6, 0], sizes = [1, 480], strides = [1, 1]} : vector<9x480xf32> to vector<1x480xf32>
    %675 = vector.shape_cast %674 : vector<1x480xf32> to vector<480xf32>
    %676 = vector.shape_cast %675 : vector<480xf32> to vector<1x480xf32>
    %677 = vector.broadcast %676 : vector<1x480xf32> to vector<14x480xf32>
    %678 = arith.mulf %673, %677 : vector<14x480xf32>
    %679 = arith.addf %671, %678 : vector<14x480xf32>
    %c1_359 = arith.constant 1 : index
    %c10_360 = arith.constant 10 : index
    %c0_361 = arith.constant 0 : index
    %c0_362 = arith.constant 0 : index
    %680 = vector.load %arg3[%c1_359, %c10_360, %c0_361, %c0_362] : memref<3x16x14x480xf32, #tpu.memory_space<vmem>>, vector<1x1x14x480xf32>
    %681 = vector.shape_cast %680 : vector<1x1x14x480xf32> to vector<14x480xf32>
    %682 = vector.extract_strided_slice %14 {offsets = [7, 0], sizes = [1, 480], strides = [1, 1]} : vector<9x480xf32> to vector<1x480xf32>
    %683 = vector.shape_cast %682 : vector<1x480xf32> to vector<480xf32>
    %684 = vector.shape_cast %683 : vector<480xf32> to vector<1x480xf32>
    %685 = vector.broadcast %684 : vector<1x480xf32> to vector<14x480xf32>
    %686 = arith.mulf %681, %685 : vector<14x480xf32>
    %687 = arith.addf %679, %686 : vector<14x480xf32>
    %c2_363 = arith.constant 2 : index
    %c10_364 = arith.constant 10 : index
    %c0_365 = arith.constant 0 : index
    %c0_366 = arith.constant 0 : index
    %688 = vector.load %arg3[%c2_363, %c10_364, %c0_365, %c0_366] : memref<3x16x14x480xf32, #tpu.memory_space<vmem>>, vector<1x1x14x480xf32>
    %689 = vector.shape_cast %688 : vector<1x1x14x480xf32> to vector<14x480xf32>
    %690 = vector.extract_strided_slice %14 {offsets = [8, 0], sizes = [1, 480], strides = [1, 1]} : vector<9x480xf32> to vector<1x480xf32>
    %691 = vector.shape_cast %690 : vector<1x480xf32> to vector<480xf32>
    %692 = vector.shape_cast %691 : vector<480xf32> to vector<1x480xf32>
    %693 = vector.broadcast %692 : vector<1x480xf32> to vector<14x480xf32>
    %694 = arith.mulf %689, %693 : vector<14x480xf32>
    %695 = arith.addf %687, %694 : vector<14x480xf32>
    %c8_367 = arith.constant 8 : index
    %c0_368 = arith.constant 0 : index
    %c0_369 = arith.constant 0 : index
    %696 = vector.load %arg2[%c8_367, %c0_368, %c0_369] : memref<14x14x480xf32, #tpu.memory_space<vmem>>, vector<1x14x480xf32>
    %697 = vector.shape_cast %696 : vector<1x14x480xf32> to vector<14x480xf32>
    %698 = vector.shape_cast %695 : vector<14x480xf32> to vector<1x14x480xf32>
    tpu.vector_store %arg2[%c8_367, %c0_368, %c0_369], %698 {strides = array<i32>} : memref<14x14x480xf32, #tpu.memory_space<vmem>>, vector<1x14x480xf32>,
    %cst_370 = arith.constant 0.000000e+00 : f32
    %699 = vector.broadcast %cst_370 : f32 to vector<14x480xf32>
    %c0_371 = arith.constant 0 : index
    %c9_372 = arith.constant 9 : index
    %c0_373 = arith.constant 0 : index
    %c0_374 = arith.constant 0 : index
    %700 = vector.load %arg3[%c0_371, %c9_372, %c0_373, %c0_374] : memref<3x16x14x480xf32, #tpu.memory_space<vmem>>, vector<1x1x14x480xf32>
    %701 = vector.shape_cast %700 : vector<1x1x14x480xf32> to vector<14x480xf32>
    %702 = vector.extract_strided_slice %14 {offsets = [0, 0], sizes = [1, 480], strides = [1, 1]} : vector<9x480xf32> to vector<1x480xf32>
    %703 = vector.shape_cast %702 : vector<1x480xf32> to vector<480xf32>
    %704 = vector.shape_cast %703 : vector<480xf32> to vector<1x480xf32>
    %705 = vector.broadcast %704 : vector<1x480xf32> to vector<14x480xf32>
    %706 = arith.mulf %701, %705 : vector<14x480xf32>
    %707 = arith.addf %699, %706 : vector<14x480xf32>
    %c1_375 = arith.constant 1 : index
    %c9_376 = arith.constant 9 : index
    %c0_377 = arith.constant 0 : index
    %c0_378 = arith.constant 0 : index
    %708 = vector.load %arg3[%c1_375, %c9_376, %c0_377, %c0_378] : memref<3x16x14x480xf32, #tpu.memory_space<vmem>>, vector<1x1x14x480xf32>
    %709 = vector.shape_cast %708 : vector<1x1x14x480xf32> to vector<14x480xf32>
    %710 = vector.extract_strided_slice %14 {offsets = [1, 0], sizes = [1, 480], strides = [1, 1]} : vector<9x480xf32> to vector<1x480xf32>
    %711 = vector.shape_cast %710 : vector<1x480xf32> to vector<480xf32>
    %712 = vector.shape_cast %711 : vector<480xf32> to vector<1x480xf32>
    %713 = vector.broadcast %712 : vector<1x480xf32> to vector<14x480xf32>
    %714 = arith.mulf %709, %713 : vector<14x480xf32>
    %715 = arith.addf %707, %714 : vector<14x480xf32>
    %c2_379 = arith.constant 2 : index
    %c9_380 = arith.constant 9 : index
    %c0_381 = arith.constant 0 : index
    %c0_382 = arith.constant 0 : index
    %716 = vector.load %arg3[%c2_379, %c9_380, %c0_381, %c0_382] : memref<3x16x14x480xf32, #tpu.memory_space<vmem>>, vector<1x1x14x480xf32>
    %717 = vector.shape_cast %716 : vector<1x1x14x480xf32> to vector<14x480xf32>
    %718 = vector.extract_strided_slice %14 {offsets = [2, 0], sizes = [1, 480], strides = [1, 1]} : vector<9x480xf32> to vector<1x480xf32>
    %719 = vector.shape_cast %718 : vector<1x480xf32> to vector<480xf32>
    %720 = vector.shape_cast %719 : vector<480xf32> to vector<1x480xf32>
    %721 = vector.broadcast %720 : vector<1x480xf32> to vector<14x480xf32>
    %722 = arith.mulf %717, %721 : vector<14x480xf32>
    %723 = arith.addf %715, %722 : vector<14x480xf32>
    %c0_383 = arith.constant 0 : index
    %c10_384 = arith.constant 10 : index
    %c0_385 = arith.constant 0 : index
    %c0_386 = arith.constant 0 : index
    %724 = vector.load %arg3[%c0_383, %c10_384, %c0_385, %c0_386] : memref<3x16x14x480xf32, #tpu.memory_space<vmem>>, vector<1x1x14x480xf32>
    %725 = vector.shape_cast %724 : vector<1x1x14x480xf32> to vector<14x480xf32>
    %726 = vector.extract_strided_slice %14 {offsets = [3, 0], sizes = [1, 480], strides = [1, 1]} : vector<9x480xf32> to vector<1x480xf32>
    %727 = vector.shape_cast %726 : vector<1x480xf32> to vector<480xf32>
    %728 = vector.shape_cast %727 : vector<480xf32> to vector<1x480xf32>
    %729 = vector.broadcast %728 : vector<1x480xf32> to vector<14x480xf32>
    %730 = arith.mulf %725, %729 : vector<14x480xf32>
    %731 = arith.addf %723, %730 : vector<14x480xf32>
    %c1_387 = arith.constant 1 : index
    %c10_388 = arith.constant 10 : index
    %c0_389 = arith.constant 0 : index
    %c0_390 = arith.constant 0 : index
    %732 = vector.load %arg3[%c1_387, %c10_388, %c0_389, %c0_390] : memref<3x16x14x480xf32, #tpu.memory_space<vmem>>, vector<1x1x14x480xf32>
    %733 = vector.shape_cast %732 : vector<1x1x14x480xf32> to vector<14x480xf32>
    %734 = vector.extract_strided_slice %14 {offsets = [4, 0], sizes = [1, 480], strides = [1, 1]} : vector<9x480xf32> to vector<1x480xf32>
    %735 = vector.shape_cast %734 : vector<1x480xf32> to vector<480xf32>
    %736 = vector.shape_cast %735 : vector<480xf32> to vector<1x480xf32>
    %737 = vector.broadcast %736 : vector<1x480xf32> to vector<14x480xf32>
    %738 = arith.mulf %733, %737 : vector<14x480xf32>
    %739 = arith.addf %731, %738 : vector<14x480xf32>
    %c2_391 = arith.constant 2 : index
    %c10_392 = arith.constant 10 : index
    %c0_393 = arith.constant 0 : index
    %c0_394 = arith.constant 0 : index
    %740 = vector.load %arg3[%c2_391, %c10_392, %c0_393, %c0_394] : memref<3x16x14x480xf32, #tpu.memory_space<vmem>>, vector<1x1x14x480xf32>
    %741 = vector.shape_cast %740 : vector<1x1x14x480xf32> to vector<14x480xf32>
    %742 = vector.extract_strided_slice %14 {offsets = [5, 0], sizes = [1, 480], strides = [1, 1]} : vector<9x480xf32> to vector<1x480xf32>
    %743 = vector.shape_cast %742 : vector<1x480xf32> to vector<480xf32>
    %744 = vector.shape_cast %743 : vector<480xf32> to vector<1x480xf32>
    %745 = vector.broadcast %744 : vector<1x480xf32> to vector<14x480xf32>
    %746 = arith.mulf %741, %745 : vector<14x480xf32>
    %747 = arith.addf %739, %746 : vector<14x480xf32>
    %c0_395 = arith.constant 0 : index
    %c11 = arith.constant 11 : index
    %c0_396 = arith.constant 0 : index
    %c0_397 = arith.constant 0 : index
    %748 = vector.load %arg3[%c0_395, %c11, %c0_396, %c0_397] : memref<3x16x14x480xf32, #tpu.memory_space<vmem>>, vector<1x1x14x480xf32>
    %749 = vector.shape_cast %748 : vector<1x1x14x480xf32> to vector<14x480xf32>
    %750 = vector.extract_strided_slice %14 {offsets = [6, 0], sizes = [1, 480], strides = [1, 1]} : vector<9x480xf32> to vector<1x480xf32>
    %751 = vector.shape_cast %750 : vector<1x480xf32> to vector<480xf32>
    %752 = vector.shape_cast %751 : vector<480xf32> to vector<1x480xf32>
    %753 = vector.broadcast %752 : vector<1x480xf32> to vector<14x480xf32>
    %754 = arith.mulf %749, %753 : vector<14x480xf32>
    %755 = arith.addf %747, %754 : vector<14x480xf32>
    %c1_398 = arith.constant 1 : index
    %c11_399 = arith.constant 11 : index
    %c0_400 = arith.constant 0 : index
    %c0_401 = arith.constant 0 : index
    %756 = vector.load %arg3[%c1_398, %c11_399, %c0_400, %c0_401] : memref<3x16x14x480xf32, #tpu.memory_space<vmem>>, vector<1x1x14x480xf32>
    %757 = vector.shape_cast %756 : vector<1x1x14x480xf32> to vector<14x480xf32>
    %758 = vector.extract_strided_slice %14 {offsets = [7, 0], sizes = [1, 480], strides = [1, 1]} : vector<9x480xf32> to vector<1x480xf32>
    %759 = vector.shape_cast %758 : vector<1x480xf32> to vector<480xf32>
    %760 = vector.shape_cast %759 : vector<480xf32> to vector<1x480xf32>
    %761 = vector.broadcast %760 : vector<1x480xf32> to vector<14x480xf32>
    %762 = arith.mulf %757, %761 : vector<14x480xf32>
    %763 = arith.addf %755, %762 : vector<14x480xf32>
    %c2_402 = arith.constant 2 : index
    %c11_403 = arith.constant 11 : index
    %c0_404 = arith.constant 0 : index
    %c0_405 = arith.constant 0 : index
    %764 = vector.load %arg3[%c2_402, %c11_403, %c0_404, %c0_405] : memref<3x16x14x480xf32, #tpu.memory_space<vmem>>, vector<1x1x14x480xf32>
    %765 = vector.shape_cast %764 : vector<1x1x14x480xf32> to vector<14x480xf32>
    %766 = vector.extract_strided_slice %14 {offsets = [8, 0], sizes = [1, 480], strides = [1, 1]} : vector<9x480xf32> to vector<1x480xf32>
    %767 = vector.shape_cast %766 : vector<1x480xf32> to vector<480xf32>
    %768 = vector.shape_cast %767 : vector<480xf32> to vector<1x480xf32>
    %769 = vector.broadcast %768 : vector<1x480xf32> to vector<14x480xf32>
    %770 = arith.mulf %765, %769 : vector<14x480xf32>
    %771 = arith.addf %763, %770 : vector<14x480xf32>
    %c9_406 = arith.constant 9 : index
    %c0_407 = arith.constant 0 : index
    %c0_408 = arith.constant 0 : index
    %772 = vector.load %arg2[%c9_406, %c0_407, %c0_408] : memref<14x14x480xf32, #tpu.memory_space<vmem>>, vector<1x14x480xf32>
    %773 = vector.shape_cast %772 : vector<1x14x480xf32> to vector<14x480xf32>
    %774 = vector.shape_cast %771 : vector<14x480xf32> to vector<1x14x480xf32>
    tpu.vector_store %arg2[%c9_406, %c0_407, %c0_408], %774 {strides = array<i32>} : memref<14x14x480xf32, #tpu.memory_space<vmem>>, vector<1x14x480xf32>,
    %cst_409 = arith.constant 0.000000e+00 : f32
    %775 = vector.broadcast %cst_409 : f32 to vector<14x480xf32>
    %c0_410 = arith.constant 0 : index
    %c10_411 = arith.constant 10 : index
    %c0_412 = arith.constant 0 : index
    %c0_413 = arith.constant 0 : index
    %776 = vector.load %arg3[%c0_410, %c10_411, %c0_412, %c0_413] : memref<3x16x14x480xf32, #tpu.memory_space<vmem>>, vector<1x1x14x480xf32>
    %777 = vector.shape_cast %776 : vector<1x1x14x480xf32> to vector<14x480xf32>
    %778 = vector.extract_strided_slice %14 {offsets = [0, 0], sizes = [1, 480], strides = [1, 1]} : vector<9x480xf32> to vector<1x480xf32>
    %779 = vector.shape_cast %778 : vector<1x480xf32> to vector<480xf32>
    %780 = vector.shape_cast %779 : vector<480xf32> to vector<1x480xf32>
    %781 = vector.broadcast %780 : vector<1x480xf32> to vector<14x480xf32>
    %782 = arith.mulf %777, %781 : vector<14x480xf32>
    %783 = arith.addf %775, %782 : vector<14x480xf32>
    %c1_414 = arith.constant 1 : index
    %c10_415 = arith.constant 10 : index
    %c0_416 = arith.constant 0 : index
    %c0_417 = arith.constant 0 : index
    %784 = vector.load %arg3[%c1_414, %c10_415, %c0_416, %c0_417] : memref<3x16x14x480xf32, #tpu.memory_space<vmem>>, vector<1x1x14x480xf32>
    %785 = vector.shape_cast %784 : vector<1x1x14x480xf32> to vector<14x480xf32>
    %786 = vector.extract_strided_slice %14 {offsets = [1, 0], sizes = [1, 480], strides = [1, 1]} : vector<9x480xf32> to vector<1x480xf32>
    %787 = vector.shape_cast %786 : vector<1x480xf32> to vector<480xf32>
    %788 = vector.shape_cast %787 : vector<480xf32> to vector<1x480xf32>
    %789 = vector.broadcast %788 : vector<1x480xf32> to vector<14x480xf32>
    %790 = arith.mulf %785, %789 : vector<14x480xf32>
    %791 = arith.addf %783, %790 : vector<14x480xf32>
    %c2_418 = arith.constant 2 : index
    %c10_419 = arith.constant 10 : index
    %c0_420 = arith.constant 0 : index
    %c0_421 = arith.constant 0 : index
    %792 = vector.load %arg3[%c2_418, %c10_419, %c0_420, %c0_421] : memref<3x16x14x480xf32, #tpu.memory_space<vmem>>, vector<1x1x14x480xf32>
    %793 = vector.shape_cast %792 : vector<1x1x14x480xf32> to vector<14x480xf32>
    %794 = vector.extract_strided_slice %14 {offsets = [2, 0], sizes = [1, 480], strides = [1, 1]} : vector<9x480xf32> to vector<1x480xf32>
    %795 = vector.shape_cast %794 : vector<1x480xf32> to vector<480xf32>
    %796 = vector.shape_cast %795 : vector<480xf32> to vector<1x480xf32>
    %797 = vector.broadcast %796 : vector<1x480xf32> to vector<14x480xf32>
    %798 = arith.mulf %793, %797 : vector<14x480xf32>
    %799 = arith.addf %791, %798 : vector<14x480xf32>
    %c0_422 = arith.constant 0 : index
    %c11_423 = arith.constant 11 : index
    %c0_424 = arith.constant 0 : index
    %c0_425 = arith.constant 0 : index
    %800 = vector.load %arg3[%c0_422, %c11_423, %c0_424, %c0_425] : memref<3x16x14x480xf32, #tpu.memory_space<vmem>>, vector<1x1x14x480xf32>
    %801 = vector.shape_cast %800 : vector<1x1x14x480xf32> to vector<14x480xf32>
    %802 = vector.extract_strided_slice %14 {offsets = [3, 0], sizes = [1, 480], strides = [1, 1]} : vector<9x480xf32> to vector<1x480xf32>
    %803 = vector.shape_cast %802 : vector<1x480xf32> to vector<480xf32>
    %804 = vector.shape_cast %803 : vector<480xf32> to vector<1x480xf32>
    %805 = vector.broadcast %804 : vector<1x480xf32> to vector<14x480xf32>
    %806 = arith.mulf %801, %805 : vector<14x480xf32>
    %807 = arith.addf %799, %806 : vector<14x480xf32>
    %c1_426 = arith.constant 1 : index
    %c11_427 = arith.constant 11 : index
    %c0_428 = arith.constant 0 : index
    %c0_429 = arith.constant 0 : index
    %808 = vector.load %arg3[%c1_426, %c11_427, %c0_428, %c0_429] : memref<3x16x14x480xf32, #tpu.memory_space<vmem>>, vector<1x1x14x480xf32>
    %809 = vector.shape_cast %808 : vector<1x1x14x480xf32> to vector<14x480xf32>
    %810 = vector.extract_strided_slice %14 {offsets = [4, 0], sizes = [1, 480], strides = [1, 1]} : vector<9x480xf32> to vector<1x480xf32>
    %811 = vector.shape_cast %810 : vector<1x480xf32> to vector<480xf32>
    %812 = vector.shape_cast %811 : vector<480xf32> to vector<1x480xf32>
    %813 = vector.broadcast %812 : vector<1x480xf32> to vector<14x480xf32>
    %814 = arith.mulf %809, %813 : vector<14x480xf32>
    %815 = arith.addf %807, %814 : vector<14x480xf32>
    %c2_430 = arith.constant 2 : index
    %c11_431 = arith.constant 11 : index
    %c0_432 = arith.constant 0 : index
    %c0_433 = arith.constant 0 : index
    %816 = vector.load %arg3[%c2_430, %c11_431, %c0_432, %c0_433] : memref<3x16x14x480xf32, #tpu.memory_space<vmem>>, vector<1x1x14x480xf32>
    %817 = vector.shape_cast %816 : vector<1x1x14x480xf32> to vector<14x480xf32>
    %818 = vector.extract_strided_slice %14 {offsets = [5, 0], sizes = [1, 480], strides = [1, 1]} : vector<9x480xf32> to vector<1x480xf32>
    %819 = vector.shape_cast %818 : vector<1x480xf32> to vector<480xf32>
    %820 = vector.shape_cast %819 : vector<480xf32> to vector<1x480xf32>
    %821 = vector.broadcast %820 : vector<1x480xf32> to vector<14x480xf32>
    %822 = arith.mulf %817, %821 : vector<14x480xf32>
    %823 = arith.addf %815, %822 : vector<14x480xf32>
    %c0_434 = arith.constant 0 : index
    %c12 = arith.constant 12 : index
    %c0_435 = arith.constant 0 : index
    %c0_436 = arith.constant 0 : index
    %824 = vector.load %arg3[%c0_434, %c12, %c0_435, %c0_436] : memref<3x16x14x480xf32, #tpu.memory_space<vmem>>, vector<1x1x14x480xf32>
    %825 = vector.shape_cast %824 : vector<1x1x14x480xf32> to vector<14x480xf32>
    %826 = vector.extract_strided_slice %14 {offsets = [6, 0], sizes = [1, 480], strides = [1, 1]} : vector<9x480xf32> to vector<1x480xf32>
    %827 = vector.shape_cast %826 : vector<1x480xf32> to vector<480xf32>
    %828 = vector.shape_cast %827 : vector<480xf32> to vector<1x480xf32>
    %829 = vector.broadcast %828 : vector<1x480xf32> to vector<14x480xf32>
    %830 = arith.mulf %825, %829 : vector<14x480xf32>
    %831 = arith.addf %823, %830 : vector<14x480xf32>
    %c1_437 = arith.constant 1 : index
    %c12_438 = arith.constant 12 : index
    %c0_439 = arith.constant 0 : index
    %c0_440 = arith.constant 0 : index
    %832 = vector.load %arg3[%c1_437, %c12_438, %c0_439, %c0_440] : memref<3x16x14x480xf32, #tpu.memory_space<vmem>>, vector<1x1x14x480xf32>
    %833 = vector.shape_cast %832 : vector<1x1x14x480xf32> to vector<14x480xf32>
    %834 = vector.extract_strided_slice %14 {offsets = [7, 0], sizes = [1, 480], strides = [1, 1]} : vector<9x480xf32> to vector<1x480xf32>
    %835 = vector.shape_cast %834 : vector<1x480xf32> to vector<480xf32>
    %836 = vector.shape_cast %835 : vector<480xf32> to vector<1x480xf32>
    %837 = vector.broadcast %836 : vector<1x480xf32> to vector<14x480xf32>
    %838 = arith.mulf %833, %837 : vector<14x480xf32>
    %839 = arith.addf %831, %838 : vector<14x480xf32>
    %c2_441 = arith.constant 2 : index
    %c12_442 = arith.constant 12 : index
    %c0_443 = arith.constant 0 : index
    %c0_444 = arith.constant 0 : index
    %840 = vector.load %arg3[%c2_441, %c12_442, %c0_443, %c0_444] : memref<3x16x14x480xf32, #tpu.memory_space<vmem>>, vector<1x1x14x480xf32>
    %841 = vector.shape_cast %840 : vector<1x1x14x480xf32> to vector<14x480xf32>
    %842 = vector.extract_strided_slice %14 {offsets = [8, 0], sizes = [1, 480], strides = [1, 1]} : vector<9x480xf32> to vector<1x480xf32>
    %843 = vector.shape_cast %842 : vector<1x480xf32> to vector<480xf32>
    %844 = vector.shape_cast %843 : vector<480xf32> to vector<1x480xf32>
    %845 = vector.broadcast %844 : vector<1x480xf32> to vector<14x480xf32>
    %846 = arith.mulf %841, %845 : vector<14x480xf32>
    %847 = arith.addf %839, %846 : vector<14x480xf32>
    %c10_445 = arith.constant 10 : index
    %c0_446 = arith.constant 0 : index
    %c0_447 = arith.constant 0 : index
    %848 = vector.load %arg2[%c10_445, %c0_446, %c0_447] : memref<14x14x480xf32, #tpu.memory_space<vmem>>, vector<1x14x480xf32>
    %849 = vector.shape_cast %848 : vector<1x14x480xf32> to vector<14x480xf32>
    %850 = vector.shape_cast %847 : vector<14x480xf32> to vector<1x14x480xf32>
    tpu.vector_store %arg2[%c10_445, %c0_446, %c0_447], %850 {strides = array<i32>} : memref<14x14x480xf32, #tpu.memory_space<vmem>>, vector<1x14x480xf32>,
    %cst_448 = arith.constant 0.000000e+00 : f32
    %851 = vector.broadcast %cst_448 : f32 to vector<14x480xf32>
    %c0_449 = arith.constant 0 : index
    %c11_450 = arith.constant 11 : index
    %c0_451 = arith.constant 0 : index
    %c0_452 = arith.constant 0 : index
    %852 = vector.load %arg3[%c0_449, %c11_450, %c0_451, %c0_452] : memref<3x16x14x480xf32, #tpu.memory_space<vmem>>, vector<1x1x14x480xf32>
    %853 = vector.shape_cast %852 : vector<1x1x14x480xf32> to vector<14x480xf32>
    %854 = vector.extract_strided_slice %14 {offsets = [0, 0], sizes = [1, 480], strides = [1, 1]} : vector<9x480xf32> to vector<1x480xf32>
    %855 = vector.shape_cast %854 : vector<1x480xf32> to vector<480xf32>
    %856 = vector.shape_cast %855 : vector<480xf32> to vector<1x480xf32>
    %857 = vector.broadcast %856 : vector<1x480xf32> to vector<14x480xf32>
    %858 = arith.mulf %853, %857 : vector<14x480xf32>
    %859 = arith.addf %851, %858 : vector<14x480xf32>
    %c1_453 = arith.constant 1 : index
    %c11_454 = arith.constant 11 : index
    %c0_455 = arith.constant 0 : index
    %c0_456 = arith.constant 0 : index
    %860 = vector.load %arg3[%c1_453, %c11_454, %c0_455, %c0_456] : memref<3x16x14x480xf32, #tpu.memory_space<vmem>>, vector<1x1x14x480xf32>
    %861 = vector.shape_cast %860 : vector<1x1x14x480xf32> to vector<14x480xf32>
    %862 = vector.extract_strided_slice %14 {offsets = [1, 0], sizes = [1, 480], strides = [1, 1]} : vector<9x480xf32> to vector<1x480xf32>
    %863 = vector.shape_cast %862 : vector<1x480xf32> to vector<480xf32>
    %864 = vector.shape_cast %863 : vector<480xf32> to vector<1x480xf32>
    %865 = vector.broadcast %864 : vector<1x480xf32> to vector<14x480xf32>
    %866 = arith.mulf %861, %865 : vector<14x480xf32>
    %867 = arith.addf %859, %866 : vector<14x480xf32>
    %c2_457 = arith.constant 2 : index
    %c11_458 = arith.constant 11 : index
    %c0_459 = arith.constant 0 : index
    %c0_460 = arith.constant 0 : index
    %868 = vector.load %arg3[%c2_457, %c11_458, %c0_459, %c0_460] : memref<3x16x14x480xf32, #tpu.memory_space<vmem>>, vector<1x1x14x480xf32>
    %869 = vector.shape_cast %868 : vector<1x1x14x480xf32> to vector<14x480xf32>
    %870 = vector.extract_strided_slice %14 {offsets = [2, 0], sizes = [1, 480], strides = [1, 1]} : vector<9x480xf32> to vector<1x480xf32>
    %871 = vector.shape_cast %870 : vector<1x480xf32> to vector<480xf32>
    %872 = vector.shape_cast %871 : vector<480xf32> to vector<1x480xf32>
    %873 = vector.broadcast %872 : vector<1x480xf32> to vector<14x480xf32>
    %874 = arith.mulf %869, %873 : vector<14x480xf32>
    %875 = arith.addf %867, %874 : vector<14x480xf32>
    %c0_461 = arith.constant 0 : index
    %c12_462 = arith.constant 12 : index
    %c0_463 = arith.constant 0 : index
    %c0_464 = arith.constant 0 : index
    %876 = vector.load %arg3[%c0_461, %c12_462, %c0_463, %c0_464] : memref<3x16x14x480xf32, #tpu.memory_space<vmem>>, vector<1x1x14x480xf32>
    %877 = vector.shape_cast %876 : vector<1x1x14x480xf32> to vector<14x480xf32>
    %878 = vector.extract_strided_slice %14 {offsets = [3, 0], sizes = [1, 480], strides = [1, 1]} : vector<9x480xf32> to vector<1x480xf32>
    %879 = vector.shape_cast %878 : vector<1x480xf32> to vector<480xf32>
    %880 = vector.shape_cast %879 : vector<480xf32> to vector<1x480xf32>
    %881 = vector.broadcast %880 : vector<1x480xf32> to vector<14x480xf32>
    %882 = arith.mulf %877, %881 : vector<14x480xf32>
    %883 = arith.addf %875, %882 : vector<14x480xf32>
    %c1_465 = arith.constant 1 : index
    %c12_466 = arith.constant 12 : index
    %c0_467 = arith.constant 0 : index
    %c0_468 = arith.constant 0 : index
    %884 = vector.load %arg3[%c1_465, %c12_466, %c0_467, %c0_468] : memref<3x16x14x480xf32, #tpu.memory_space<vmem>>, vector<1x1x14x480xf32>
    %885 = vector.shape_cast %884 : vector<1x1x14x480xf32> to vector<14x480xf32>
    %886 = vector.extract_strided_slice %14 {offsets = [4, 0], sizes = [1, 480], strides = [1, 1]} : vector<9x480xf32> to vector<1x480xf32>
    %887 = vector.shape_cast %886 : vector<1x480xf32> to vector<480xf32>
    %888 = vector.shape_cast %887 : vector<480xf32> to vector<1x480xf32>
    %889 = vector.broadcast %888 : vector<1x480xf32> to vector<14x480xf32>
    %890 = arith.mulf %885, %889 : vector<14x480xf32>
    %891 = arith.addf %883, %890 : vector<14x480xf32>
    %c2_469 = arith.constant 2 : index
    %c12_470 = arith.constant 12 : index
    %c0_471 = arith.constant 0 : index
    %c0_472 = arith.constant 0 : index
    %892 = vector.load %arg3[%c2_469, %c12_470, %c0_471, %c0_472] : memref<3x16x14x480xf32, #tpu.memory_space<vmem>>, vector<1x1x14x480xf32>
    %893 = vector.shape_cast %892 : vector<1x1x14x480xf32> to vector<14x480xf32>
    %894 = vector.extract_strided_slice %14 {offsets = [5, 0], sizes = [1, 480], strides = [1, 1]} : vector<9x480xf32> to vector<1x480xf32>
    %895 = vector.shape_cast %894 : vector<1x480xf32> to vector<480xf32>
    %896 = vector.shape_cast %895 : vector<480xf32> to vector<1x480xf32>
    %897 = vector.broadcast %896 : vector<1x480xf32> to vector<14x480xf32>
    %898 = arith.mulf %893, %897 : vector<14x480xf32>
    %899 = arith.addf %891, %898 : vector<14x480xf32>
    %c0_473 = arith.constant 0 : index
    %c13 = arith.constant 13 : index
    %c0_474 = arith.constant 0 : index
    %c0_475 = arith.constant 0 : index
    %900 = vector.load %arg3[%c0_473, %c13, %c0_474, %c0_475] : memref<3x16x14x480xf32, #tpu.memory_space<vmem>>, vector<1x1x14x480xf32>
    %901 = vector.shape_cast %900 : vector<1x1x14x480xf32> to vector<14x480xf32>
    %902 = vector.extract_strided_slice %14 {offsets = [6, 0], sizes = [1, 480], strides = [1, 1]} : vector<9x480xf32> to vector<1x480xf32>
    %903 = vector.shape_cast %902 : vector<1x480xf32> to vector<480xf32>
    %904 = vector.shape_cast %903 : vector<480xf32> to vector<1x480xf32>
    %905 = vector.broadcast %904 : vector<1x480xf32> to vector<14x480xf32>
    %906 = arith.mulf %901, %905 : vector<14x480xf32>
    %907 = arith.addf %899, %906 : vector<14x480xf32>
    %c1_476 = arith.constant 1 : index
    %c13_477 = arith.constant 13 : index
    %c0_478 = arith.constant 0 : index
    %c0_479 = arith.constant 0 : index
    %908 = vector.load %arg3[%c1_476, %c13_477, %c0_478, %c0_479] : memref<3x16x14x480xf32, #tpu.memory_space<vmem>>, vector<1x1x14x480xf32>
    %909 = vector.shape_cast %908 : vector<1x1x14x480xf32> to vector<14x480xf32>
    %910 = vector.extract_strided_slice %14 {offsets = [7, 0], sizes = [1, 480], strides = [1, 1]} : vector<9x480xf32> to vector<1x480xf32>
    %911 = vector.shape_cast %910 : vector<1x480xf32> to vector<480xf32>
    %912 = vector.shape_cast %911 : vector<480xf32> to vector<1x480xf32>
    %913 = vector.broadcast %912 : vector<1x480xf32> to vector<14x480xf32>
    %914 = arith.mulf %909, %913 : vector<14x480xf32>
    %915 = arith.addf %907, %914 : vector<14x480xf32>
    %c2_480 = arith.constant 2 : index
    %c13_481 = arith.constant 13 : index
    %c0_482 = arith.constant 0 : index
    %c0_483 = arith.constant 0 : index
    %916 = vector.load %arg3[%c2_480, %c13_481, %c0_482, %c0_483] : memref<3x16x14x480xf32, #tpu.memory_space<vmem>>, vector<1x1x14x480xf32>
    %917 = vector.shape_cast %916 : vector<1x1x14x480xf32> to vector<14x480xf32>
    %918 = vector.extract_strided_slice %14 {offsets = [8, 0], sizes = [1, 480], strides = [1, 1]} : vector<9x480xf32> to vector<1x480xf32>
    %919 = vector.shape_cast %918 : vector<1x480xf32> to vector<480xf32>
    %920 = vector.shape_cast %919 : vector<480xf32> to vector<1x480xf32>
    %921 = vector.broadcast %920 : vector<1x480xf32> to vector<14x480xf32>
    %922 = arith.mulf %917, %921 : vector<14x480xf32>
    %923 = arith.addf %915, %922 : vector<14x480xf32>
    %c11_484 = arith.constant 11 : index
    %c0_485 = arith.constant 0 : index
    %c0_486 = arith.constant 0 : index
    %924 = vector.load %arg2[%c11_484, %c0_485, %c0_486] : memref<14x14x480xf32, #tpu.memory_space<vmem>>, vector<1x14x480xf32>
    %925 = vector.shape_cast %924 : vector<1x14x480xf32> to vector<14x480xf32>
    %926 = vector.shape_cast %923 : vector<14x480xf32> to vector<1x14x480xf32>
    tpu.vector_store %arg2[%c11_484, %c0_485, %c0_486], %926 {strides = array<i32>} : memref<14x14x480xf32, #tpu.memory_space<vmem>>, vector<1x14x480xf32>,
    %cst_487 = arith.constant 0.000000e+00 : f32
    %927 = vector.broadcast %cst_487 : f32 to vector<14x480xf32>
    %c0_488 = arith.constant 0 : index
    %c12_489 = arith.constant 12 : index
    %c0_490 = arith.constant 0 : index
    %c0_491 = arith.constant 0 : index
    %928 = vector.load %arg3[%c0_488, %c12_489, %c0_490, %c0_491] : memref<3x16x14x480xf32, #tpu.memory_space<vmem>>, vector<1x1x14x480xf32>
    %929 = vector.shape_cast %928 : vector<1x1x14x480xf32> to vector<14x480xf32>
    %930 = vector.extract_strided_slice %14 {offsets = [0, 0], sizes = [1, 480], strides = [1, 1]} : vector<9x480xf32> to vector<1x480xf32>
    %931 = vector.shape_cast %930 : vector<1x480xf32> to vector<480xf32>
    %932 = vector.shape_cast %931 : vector<480xf32> to vector<1x480xf32>
    %933 = vector.broadcast %932 : vector<1x480xf32> to vector<14x480xf32>
    %934 = arith.mulf %929, %933 : vector<14x480xf32>
    %935 = arith.addf %927, %934 : vector<14x480xf32>
    %c1_492 = arith.constant 1 : index
    %c12_493 = arith.constant 12 : index
    %c0_494 = arith.constant 0 : index
    %c0_495 = arith.constant 0 : index
    %936 = vector.load %arg3[%c1_492, %c12_493, %c0_494, %c0_495] : memref<3x16x14x480xf32, #tpu.memory_space<vmem>>, vector<1x1x14x480xf32>
    %937 = vector.shape_cast %936 : vector<1x1x14x480xf32> to vector<14x480xf32>
    %938 = vector.extract_strided_slice %14 {offsets = [1, 0], sizes = [1, 480], strides = [1, 1]} : vector<9x480xf32> to vector<1x480xf32>
    %939 = vector.shape_cast %938 : vector<1x480xf32> to vector<480xf32>
    %940 = vector.shape_cast %939 : vector<480xf32> to vector<1x480xf32>
    %941 = vector.broadcast %940 : vector<1x480xf32> to vector<14x480xf32>
    %942 = arith.mulf %937, %941 : vector<14x480xf32>
    %943 = arith.addf %935, %942 : vector<14x480xf32>
    %c2_496 = arith.constant 2 : index
    %c12_497 = arith.constant 12 : index
    %c0_498 = arith.constant 0 : index
    %c0_499 = arith.constant 0 : index
    %944 = vector.load %arg3[%c2_496, %c12_497, %c0_498, %c0_499] : memref<3x16x14x480xf32, #tpu.memory_space<vmem>>, vector<1x1x14x480xf32>
    %945 = vector.shape_cast %944 : vector<1x1x14x480xf32> to vector<14x480xf32>
    %946 = vector.extract_strided_slice %14 {offsets = [2, 0], sizes = [1, 480], strides = [1, 1]} : vector<9x480xf32> to vector<1x480xf32>
    %947 = vector.shape_cast %946 : vector<1x480xf32> to vector<480xf32>
    %948 = vector.shape_cast %947 : vector<480xf32> to vector<1x480xf32>
    %949 = vector.broadcast %948 : vector<1x480xf32> to vector<14x480xf32>
    %950 = arith.mulf %945, %949 : vector<14x480xf32>
    %951 = arith.addf %943, %950 : vector<14x480xf32>
    %c0_500 = arith.constant 0 : index
    %c13_501 = arith.constant 13 : index
    %c0_502 = arith.constant 0 : index
    %c0_503 = arith.constant 0 : index
    %952 = vector.load %arg3[%c0_500, %c13_501, %c0_502, %c0_503] : memref<3x16x14x480xf32, #tpu.memory_space<vmem>>, vector<1x1x14x480xf32>
    %953 = vector.shape_cast %952 : vector<1x1x14x480xf32> to vector<14x480xf32>
    %954 = vector.extract_strided_slice %14 {offsets = [3, 0], sizes = [1, 480], strides = [1, 1]} : vector<9x480xf32> to vector<1x480xf32>
    %955 = vector.shape_cast %954 : vector<1x480xf32> to vector<480xf32>
    %956 = vector.shape_cast %955 : vector<480xf32> to vector<1x480xf32>
    %957 = vector.broadcast %956 : vector<1x480xf32> to vector<14x480xf32>
    %958 = arith.mulf %953, %957 : vector<14x480xf32>
    %959 = arith.addf %951, %958 : vector<14x480xf32>
    %c1_504 = arith.constant 1 : index
    %c13_505 = arith.constant 13 : index
    %c0_506 = arith.constant 0 : index
    %c0_507 = arith.constant 0 : index
    %960 = vector.load %arg3[%c1_504, %c13_505, %c0_506, %c0_507] : memref<3x16x14x480xf32, #tpu.memory_space<vmem>>, vector<1x1x14x480xf32>
    %961 = vector.shape_cast %960 : vector<1x1x14x480xf32> to vector<14x480xf32>
    %962 = vector.extract_strided_slice %14 {offsets = [4, 0], sizes = [1, 480], strides = [1, 1]} : vector<9x480xf32> to vector<1x480xf32>
    %963 = vector.shape_cast %962 : vector<1x480xf32> to vector<480xf32>
    %964 = vector.shape_cast %963 : vector<480xf32> to vector<1x480xf32>
    %965 = vector.broadcast %964 : vector<1x480xf32> to vector<14x480xf32>
    %966 = arith.mulf %961, %965 : vector<14x480xf32>
    %967 = arith.addf %959, %966 : vector<14x480xf32>
    %c2_508 = arith.constant 2 : index
    %c13_509 = arith.constant 13 : index
    %c0_510 = arith.constant 0 : index
    %c0_511 = arith.constant 0 : index
    %968 = vector.load %arg3[%c2_508, %c13_509, %c0_510, %c0_511] : memref<3x16x14x480xf32, #tpu.memory_space<vmem>>, vector<1x1x14x480xf32>
    %969 = vector.shape_cast %968 : vector<1x1x14x480xf32> to vector<14x480xf32>
    %970 = vector.extract_strided_slice %14 {offsets = [5, 0], sizes = [1, 480], strides = [1, 1]} : vector<9x480xf32> to vector<1x480xf32>
    %971 = vector.shape_cast %970 : vector<1x480xf32> to vector<480xf32>
    %972 = vector.shape_cast %971 : vector<480xf32> to vector<1x480xf32>
    %973 = vector.broadcast %972 : vector<1x480xf32> to vector<14x480xf32>
    %974 = arith.mulf %969, %973 : vector<14x480xf32>
    %975 = arith.addf %967, %974 : vector<14x480xf32>
    %c0_512 = arith.constant 0 : index
    %c14 = arith.constant 14 : index
    %c0_513 = arith.constant 0 : index
    %c0_514 = arith.constant 0 : index
    %976 = vector.load %arg3[%c0_512, %c14, %c0_513, %c0_514] : memref<3x16x14x480xf32, #tpu.memory_space<vmem>>, vector<1x1x14x480xf32>
    %977 = vector.shape_cast %976 : vector<1x1x14x480xf32> to vector<14x480xf32>
    %978 = vector.extract_strided_slice %14 {offsets = [6, 0], sizes = [1, 480], strides = [1, 1]} : vector<9x480xf32> to vector<1x480xf32>
    %979 = vector.shape_cast %978 : vector<1x480xf32> to vector<480xf32>
    %980 = vector.shape_cast %979 : vector<480xf32> to vector<1x480xf32>
    %981 = vector.broadcast %980 : vector<1x480xf32> to vector<14x480xf32>
    %982 = arith.mulf %977, %981 : vector<14x480xf32>
    %983 = arith.addf %975, %982 : vector<14x480xf32>
    %c1_515 = arith.constant 1 : index
    %c14_516 = arith.constant 14 : index
    %c0_517 = arith.constant 0 : index
    %c0_518 = arith.constant 0 : index
    %984 = vector.load %arg3[%c1_515, %c14_516, %c0_517, %c0_518] : memref<3x16x14x480xf32, #tpu.memory_space<vmem>>, vector<1x1x14x480xf32>
    %985 = vector.shape_cast %984 : vector<1x1x14x480xf32> to vector<14x480xf32>
    %986 = vector.extract_strided_slice %14 {offsets = [7, 0], sizes = [1, 480], strides = [1, 1]} : vector<9x480xf32> to vector<1x480xf32>
    %987 = vector.shape_cast %986 : vector<1x480xf32> to vector<480xf32>
    %988 = vector.shape_cast %987 : vector<480xf32> to vector<1x480xf32>
    %989 = vector.broadcast %988 : vector<1x480xf32> to vector<14x480xf32>
    %990 = arith.mulf %985, %989 : vector<14x480xf32>
    %991 = arith.addf %983, %990 : vector<14x480xf32>
    %c2_519 = arith.constant 2 : index
    %c14_520 = arith.constant 14 : index
    %c0_521 = arith.constant 0 : index
    %c0_522 = arith.constant 0 : index
    %992 = vector.load %arg3[%c2_519, %c14_520, %c0_521, %c0_522] : memref<3x16x14x480xf32, #tpu.memory_space<vmem>>, vector<1x1x14x480xf32>
    %993 = vector.shape_cast %992 : vector<1x1x14x480xf32> to vector<14x480xf32>
    %994 = vector.extract_strided_slice %14 {offsets = [8, 0], sizes = [1, 480], strides = [1, 1]} : vector<9x480xf32> to vector<1x480xf32>
    %995 = vector.shape_cast %994 : vector<1x480xf32> to vector<480xf32>
    %996 = vector.shape_cast %995 : vector<480xf32> to vector<1x480xf32>
    %997 = vector.broadcast %996 : vector<1x480xf32> to vector<14x480xf32>
    %998 = arith.mulf %993, %997 : vector<14x480xf32>
    %999 = arith.addf %991, %998 : vector<14x480xf32>
    %c12_523 = arith.constant 12 : index
    %c0_524 = arith.constant 0 : index
    %c0_525 = arith.constant 0 : index
    %1000 = vector.load %arg2[%c12_523, %c0_524, %c0_525] : memref<14x14x480xf32, #tpu.memory_space<vmem>>, vector<1x14x480xf32>
    %1001 = vector.shape_cast %1000 : vector<1x14x480xf32> to vector<14x480xf32>
    %1002 = vector.shape_cast %999 : vector<14x480xf32> to vector<1x14x480xf32>
    tpu.vector_store %arg2[%c12_523, %c0_524, %c0_525], %1002 {strides = array<i32>} : memref<14x14x480xf32, #tpu.memory_space<vmem>>, vector<1x14x480xf32>,
    %cst_526 = arith.constant 0.000000e+00 : f32
    %1003 = vector.broadcast %cst_526 : f32 to vector<14x480xf32>
    %c0_527 = arith.constant 0 : index
    %c13_528 = arith.constant 13 : index
    %c0_529 = arith.constant 0 : index
    %c0_530 = arith.constant 0 : index
    %1004 = vector.load %arg3[%c0_527, %c13_528, %c0_529, %c0_530] : memref<3x16x14x480xf32, #tpu.memory_space<vmem>>, vector<1x1x14x480xf32>
    %1005 = vector.shape_cast %1004 : vector<1x1x14x480xf32> to vector<14x480xf32>
    %1006 = vector.extract_strided_slice %14 {offsets = [0, 0], sizes = [1, 480], strides = [1, 1]} : vector<9x480xf32> to vector<1x480xf32>
    %1007 = vector.shape_cast %1006 : vector<1x480xf32> to vector<480xf32>
    %1008 = vector.shape_cast %1007 : vector<480xf32> to vector<1x480xf32>
    %1009 = vector.broadcast %1008 : vector<1x480xf32> to vector<14x480xf32>
    %1010 = arith.mulf %1005, %1009 : vector<14x480xf32>
    %1011 = arith.addf %1003, %1010 : vector<14x480xf32>
    %c1_531 = arith.constant 1 : index
    %c13_532 = arith.constant 13 : index
    %c0_533 = arith.constant 0 : index
    %c0_534 = arith.constant 0 : index
    %1012 = vector.load %arg3[%c1_531, %c13_532, %c0_533, %c0_534] : memref<3x16x14x480xf32, #tpu.memory_space<vmem>>, vector<1x1x14x480xf32>
    %1013 = vector.shape_cast %1012 : vector<1x1x14x480xf32> to vector<14x480xf32>
    %1014 = vector.extract_strided_slice %14 {offsets = [1, 0], sizes = [1, 480], strides = [1, 1]} : vector<9x480xf32> to vector<1x480xf32>
    %1015 = vector.shape_cast %1014 : vector<1x480xf32> to vector<480xf32>
    %1016 = vector.shape_cast %1015 : vector<480xf32> to vector<1x480xf32>
    %1017 = vector.broadcast %1016 : vector<1x480xf32> to vector<14x480xf32>
    %1018 = arith.mulf %1013, %1017 : vector<14x480xf32>
    %1019 = arith.addf %1011, %1018 : vector<14x480xf32>
    %c2_535 = arith.constant 2 : index
    %c13_536 = arith.constant 13 : index
    %c0_537 = arith.constant 0 : index
    %c0_538 = arith.constant 0 : index
    %1020 = vector.load %arg3[%c2_535, %c13_536, %c0_537, %c0_538] : memref<3x16x14x480xf32, #tpu.memory_space<vmem>>, vector<1x1x14x480xf32>
    %1021 = vector.shape_cast %1020 : vector<1x1x14x480xf32> to vector<14x480xf32>
    %1022 = vector.extract_strided_slice %14 {offsets = [2, 0], sizes = [1, 480], strides = [1, 1]} : vector<9x480xf32> to vector<1x480xf32>
    %1023 = vector.shape_cast %1022 : vector<1x480xf32> to vector<480xf32>
    %1024 = vector.shape_cast %1023 : vector<480xf32> to vector<1x480xf32>
    %1025 = vector.broadcast %1024 : vector<1x480xf32> to vector<14x480xf32>
    %1026 = arith.mulf %1021, %1025 : vector<14x480xf32>
    %1027 = arith.addf %1019, %1026 : vector<14x480xf32>
    %c0_539 = arith.constant 0 : index
    %c14_540 = arith.constant 14 : index
    %c0_541 = arith.constant 0 : index
    %c0_542 = arith.constant 0 : index
    %1028 = vector.load %arg3[%c0_539, %c14_540, %c0_541, %c0_542] : memref<3x16x14x480xf32, #tpu.memory_space<vmem>>, vector<1x1x14x480xf32>
    %1029 = vector.shape_cast %1028 : vector<1x1x14x480xf32> to vector<14x480xf32>
    %1030 = vector.extract_strided_slice %14 {offsets = [3, 0], sizes = [1, 480], strides = [1, 1]} : vector<9x480xf32> to vector<1x480xf32>
    %1031 = vector.shape_cast %1030 : vector<1x480xf32> to vector<480xf32>
    %1032 = vector.shape_cast %1031 : vector<480xf32> to vector<1x480xf32>
    %1033 = vector.broadcast %1032 : vector<1x480xf32> to vector<14x480xf32>
    %1034 = arith.mulf %1029, %1033 : vector<14x480xf32>
    %1035 = arith.addf %1027, %1034 : vector<14x480xf32>
    %c1_543 = arith.constant 1 : index
    %c14_544 = arith.constant 14 : index
    %c0_545 = arith.constant 0 : index
    %c0_546 = arith.constant 0 : index
    %1036 = vector.load %arg3[%c1_543, %c14_544, %c0_545, %c0_546] : memref<3x16x14x480xf32, #tpu.memory_space<vmem>>, vector<1x1x14x480xf32>
    %1037 = vector.shape_cast %1036 : vector<1x1x14x480xf32> to vector<14x480xf32>
    %1038 = vector.extract_strided_slice %14 {offsets = [4, 0], sizes = [1, 480], strides = [1, 1]} : vector<9x480xf32> to vector<1x480xf32>
    %1039 = vector.shape_cast %1038 : vector<1x480xf32> to vector<480xf32>
    %1040 = vector.shape_cast %1039 : vector<480xf32> to vector<1x480xf32>
    %1041 = vector.broadcast %1040 : vector<1x480xf32> to vector<14x480xf32>
    %1042 = arith.mulf %1037, %1041 : vector<14x480xf32>
    %1043 = arith.addf %1035, %1042 : vector<14x480xf32>
    %c2_547 = arith.constant 2 : index
    %c14_548 = arith.constant 14 : index
    %c0_549 = arith.constant 0 : index
    %c0_550 = arith.constant 0 : index
    %1044 = vector.load %arg3[%c2_547, %c14_548, %c0_549, %c0_550] : memref<3x16x14x480xf32, #tpu.memory_space<vmem>>, vector<1x1x14x480xf32>
    %1045 = vector.shape_cast %1044 : vector<1x1x14x480xf32> to vector<14x480xf32>
    %1046 = vector.extract_strided_slice %14 {offsets = [5, 0], sizes = [1, 480], strides = [1, 1]} : vector<9x480xf32> to vector<1x480xf32>
    %1047 = vector.shape_cast %1046 : vector<1x480xf32> to vector<480xf32>
    %1048 = vector.shape_cast %1047 : vector<480xf32> to vector<1x480xf32>
    %1049 = vector.broadcast %1048 : vector<1x480xf32> to vector<14x480xf32>
    %1050 = arith.mulf %1045, %1049 : vector<14x480xf32>
    %1051 = arith.addf %1043, %1050 : vector<14x480xf32>
    %c0_551 = arith.constant 0 : index
    %c15 = arith.constant 15 : index
    %c0_552 = arith.constant 0 : index
    %c0_553 = arith.constant 0 : index
    %1052 = vector.load %arg3[%c0_551, %c15, %c0_552, %c0_553] : memref<3x16x14x480xf32, #tpu.memory_space<vmem>>, vector<1x1x14x480xf32>
    %1053 = vector.shape_cast %1052 : vector<1x1x14x480xf32> to vector<14x480xf32>
    %1054 = vector.extract_strided_slice %14 {offsets = [6, 0], sizes = [1, 480], strides = [1, 1]} : vector<9x480xf32> to vector<1x480xf32>
    %1055 = vector.shape_cast %1054 : vector<1x480xf32> to vector<480xf32>
    %1056 = vector.shape_cast %1055 : vector<480xf32> to vector<1x480xf32>
    %1057 = vector.broadcast %1056 : vector<1x480xf32> to vector<14x480xf32>
    %1058 = arith.mulf %1053, %1057 : vector<14x480xf32>
    %1059 = arith.addf %1051, %1058 : vector<14x480xf32>
    %c1_554 = arith.constant 1 : index
    %c15_555 = arith.constant 15 : index
    %c0_556 = arith.constant 0 : index
    %c0_557 = arith.constant 0 : index
    %1060 = vector.load %arg3[%c1_554, %c15_555, %c0_556, %c0_557] : memref<3x16x14x480xf32, #tpu.memory_space<vmem>>, vector<1x1x14x480xf32>
    %1061 = vector.shape_cast %1060 : vector<1x1x14x480xf32> to vector<14x480xf32>
    %1062 = vector.extract_strided_slice %14 {offsets = [7, 0], sizes = [1, 480], strides = [1, 1]} : vector<9x480xf32> to vector<1x480xf32>
    %1063 = vector.shape_cast %1062 : vector<1x480xf32> to vector<480xf32>
    %1064 = vector.shape_cast %1063 : vector<480xf32> to vector<1x480xf32>
    %1065 = vector.broadcast %1064 : vector<1x480xf32> to vector<14x480xf32>
    %1066 = arith.mulf %1061, %1065 : vector<14x480xf32>
    %1067 = arith.addf %1059, %1066 : vector<14x480xf32>
    %c2_558 = arith.constant 2 : index
    %c15_559 = arith.constant 15 : index
    %c0_560 = arith.constant 0 : index
    %c0_561 = arith.constant 0 : index
    %1068 = vector.load %arg3[%c2_558, %c15_559, %c0_560, %c0_561] : memref<3x16x14x480xf32, #tpu.memory_space<vmem>>, vector<1x1x14x480xf32>
    %1069 = vector.shape_cast %1068 : vector<1x1x14x480xf32> to vector<14x480xf32>
    %1070 = vector.extract_strided_slice %14 {offsets = [8, 0], sizes = [1, 480], strides = [1, 1]} : vector<9x480xf32> to vector<1x480xf32>
    %1071 = vector.shape_cast %1070 : vector<1x480xf32> to vector<480xf32>
    %1072 = vector.shape_cast %1071 : vector<480xf32> to vector<1x480xf32>
    %1073 = vector.broadcast %1072 : vector<1x480xf32> to vector<14x480xf32>
    %1074 = arith.mulf %1069, %1073 : vector<14x480xf32>
    %1075 = arith.addf %1067, %1074 : vector<14x480xf32>
    %c13_562 = arith.constant 13 : index
    %c0_563 = arith.constant 0 : index
    %c0_564 = arith.constant 0 : index
    %1076 = vector.load %arg2[%c13_562, %c0_563, %c0_564] : memref<14x14x480xf32, #tpu.memory_space<vmem>>, vector<1x14x480xf32>
    %1077 = vector.shape_cast %1076 : vector<1x14x480xf32> to vector<14x480xf32>
    %1078 = vector.shape_cast %1075 : vector<14x480xf32> to vector<1x14x480xf32>
    tpu.vector_store %arg2[%c13_562, %c0_563, %c0_564], %1078 {strides = array<i32>} : memref<14x14x480xf32, #tpu.memory_space<vmem>>, vector<1x14x480xf32>,
    return
  }
}

</mosaic_0001>

<llo_original>
// kernel: squeeze.3
$region0: #{squeeze.3}
  %s0 = inlined_call_operand.vmem [shape: f32[480,3,3], index: 0, kind: input, shape index: {}]
  %s1 = inlined_call_operand.vmem [shape: f32[480,9], index: 1, kind: output, shape index: {}]
  $region1: #{squeeze.3} parent=0
    #allocation0 [shape = 'u8[49152]{0}', space=vmem, size = 0xc000, scoped, tag = 'scoped mem for input reshape']
    %s3 = ssub.s32 16, 1
    %s4 = scalar_lea.vmem %s0, 44
    %v5 = vld [vmem:[%s4] sm:%s3]
    %s6 = scalar_lea.vmem [#allocation0], 88
    %7 = vst [vmem:[%s6] sm:%s3] %v5
    %s8 = scalar_lea.vmem %s0, 40
    %v9 = vld [vmem:[%s8] sm:%s3]
    %s10 = scalar_lea.vmem [#allocation0], 80
    %11 = vst [vmem:[%s10] sm:%s3] %v9
    %s12 = scalar_lea.vmem %s0, 36
    %v13 = vld [vmem:[%s12] sm:%s3]
    %s14 = scalar_lea.vmem [#allocation0], 72
    %15 = vst [vmem:[%s14] sm:%s3] %v13
    %s16 = scalar_lea.vmem %s0, 32
    %v17 = vld [vmem:[%s16] sm:%s3]
    %s18 = scalar_lea.vmem [#allocation0], 64
    %19 = vst [vmem:[%s18] sm:%s3] %v17
    %s20 = scalar_lea.vmem %s0, 28
    %v21 = vld [vmem:[%s20] sm:%s3]
    %s22 = scalar_lea.vmem [#allocation0], 56
    %23 = vst [vmem:[%s22] sm:%s3] %v21
    %s24 = scalar_lea.vmem %s0, 24
    %v25 = vld [vmem:[%s24] sm:%s3]
    %s26 = scalar_lea.vmem [#allocation0], 48
    %27 = vst [vmem:[%s26] sm:%s3] %v25
    %s28 = scalar_lea.vmem %s0, 20
    %v29 = vld [vmem:[%s28] sm:%s3]
    %s30 = scalar_lea.vmem [#allocation0], 40
    %31 = vst [vmem:[%s30] sm:%s3] %v29
    %s32 = scalar_lea.vmem %s0, 16
    %v33 = vld [vmem:[%s32] sm:%s3]
    %s34 = scalar_lea.vmem [#allocation0], 32
    %35 = vst [vmem:[%s34] sm:%s3] %v33
    %s36 = scalar_lea.vmem %s0, 12
    %v37 = vld [vmem:[%s36] sm:%s3]
    %s38 = scalar_lea.vmem [#allocation0], 24
    %39 = vst [vmem:[%s38] sm:%s3] %v37
    %s40 = scalar_lea.vmem %s0, 8
    %v41 = vld [vmem:[%s40] sm:%s3]
    %s42 = scalar_lea.vmem [#allocation0], 16
    %43 = vst [vmem:[%s42] sm:%s3] %v41
    %s44 = scalar_lea.vmem %s0, 4
    %v45 = vld [vmem:[%s44] sm:%s3]
    %s46 = scalar_lea.vmem [#allocation0], 8
    %47 = vst [vmem:[%s46] sm:%s3] %v45
    %v48 = vld [vmem:[%s0] sm:%s3]
    %49 = vst [vmem:[#allocation0] sm:%s3] %v48
    %s50 = scalar_lea.vmem [#allocation0], 24
    %v51 = vld [vmem:[%s50] sm:$0x7]
    %vm52 = vcmask 785408
    %s53 = scalar_lea.vmem %s1, 24
    %54 = vst.msk [vmem:[%s53] sm:$0x7] %vm52, %v51
    %s55 = scalar_lea.vmem [#allocation0], 56
    %v56 = vld [vmem:[%s55] sm:$0x7]
    %vm57 = vcmask 785408
    %s58 = scalar_lea.vmem %s1, 27
    %59 = vst.msk [vmem:[%s58] sm:$0x7] %vm57, %v56
    %s60 = scalar_lea.vmem [#allocation0], 88
    %v61 = vld [vmem:[%s60] sm:$0x7]
    %vm62 = vcmask 785408
    %s63 = scalar_lea.vmem %s1, 30
    %64 = vst.msk [vmem:[%s63] sm:$0x3] %vm62, %v61
    %s65 = scalar_lea.vmem %s1, 54
    %66 = vst.msk [vmem:[%s65] sm:$0x4] %vm62, %v61
    %v67 = vld [vmem:[#allocation0] sm:$0x7]
    %68 = vst [vmem:[%s1] sm:$0x7] %v67
    %s69 = scalar_lea.vmem [#allocation0], 8
    %v70 = vld [vmem:[%s69] sm:$0x7]
    %s71 = scalar_lea.vmem %s1, 8
    %72 = vst [vmem:[%s71] sm:$0x7] %v70
    %s73 = scalar_lea.vmem [#allocation0], 16
    %v74 = vld [vmem:[%s73] sm:$0x7]
    %s75 = scalar_lea.vmem %s1, 16
    %76 = vst [vmem:[%s75] sm:$0x7] %v74
    %s77 = scalar_lea.vmem [#allocation0], 32
    %v78 = vld [vmem:[%s77] sm:$0x7]
    %s79 = scalar_lea.vmem %s1, 3
    %80 = vst [vmem:[%s79] sm:$0x7] %v78
    %s81 = scalar_lea.vmem [#allocation0], 40
    %v82 = vld [vmem:[%s81] sm:$0x7]
    %s83 = scalar_lea.vmem %s1, 11
    %84 = vst [vmem:[%s83] sm:$0x7] %v82
    %s85 = scalar_lea.vmem [#allocation0], 48
    %v86 = vld [vmem:[%s85] sm:$0x7]
    %s87 = scalar_lea.vmem %s1, 19
    %88 = vst [vmem:[%s87] sm:$0x7] %v86
    %s89 = scalar_lea.vmem [#allocation0], 64
    %v90 = vld [vmem:[%s89] sm:$0x7]
    %s91 = scalar_lea.vmem %s1, 6
    %92 = vst [vmem:[%s91] sm:$0x3] %v90
    %s93 = scalar_lea.vmem %s1, 30
    %94 = vst [vmem:[%s93] sm:$0x4] %v90
    %s95 = scalar_lea.vmem [#allocation0], 72
    %v96 = vld [vmem:[%s95] sm:$0x7]
    %s97 = scalar_lea.vmem %s1, 14
    %98 = vst [vmem:[%s97] sm:$0x3] %v96
    %s99 = scalar_lea.vmem %s1, 38
    %100 = vst [vmem:[%s99] sm:$0x4] %v96
    %s101 = scalar_lea.vmem [#allocation0], 80
    %v102 = vld [vmem:[%s101] sm:$0x7]
    %s103 = scalar_lea.vmem %s1, 22
    %104 = vst [vmem:[%s103] sm:$0x3] %v102
    %s105 = scalar_lea.vmem %s1, 46
    %106 = vst [vmem:[%s105] sm:$0x4] %v102

// kernel: depthwise_conv2d_nchw.1
$region0: #{depthwise_conv2d_nchw.1}
  #allocation0 [shape = 'u32[]', space=smem, size = 0x4, offset = 0x4, fixed_abs, tag = 'smem constant byte address 0x4 - core index']
  #allocation1 [shape = 'u32[72,128]{1,0:T(1,128)}', space=vmem, size = 0x9000, scoped, tag = 'internal scratch']
  #allocation2 [shape = 'f32[3,16,14,480]{3,2,1,0:T(8,128)}', space=vmem, size = 0x180000, scoped, tag = 'scratch operand']
  %s0 = inlined_call_operand.vmem [shape: f32[14,14,480], index: 0, kind: input, shape index: {}]
  %s1 = inlined_call_operand.vmem [shape: f32[9,480], index: 1, kind: input, shape index: {}]
  %s2 = inlined_call_operand.vmem [shape: f32[14,14,480], index: 2, kind: output, shape index: {}]
  %s3 = sld [smem:[#allocation0]]
  $region18: #{depthwise_conv2d_nchw.1} parent=0
    _
  %s5 = ssub.s32 1, %s3
  %s6 = scalar_select 0, %s5, %s3
  // Predicated region
  $region2: #{depthwise_conv2d_nchw.1} parent=0 // pred_check
    _
  $region3: #{depthwise_conv2d_nchw.1} parent=0 // pred_check_branch
    %8 = sbr.rel (0) target = $region5
  $region4: #{depthwise_conv2d_nchw.1} parent=0 // pred_region
    _
  $region5: #{depthwise_conv2d_nchw.1} parent=0 // pred_fallthru
    _
  // Predicated region
  $region6: #{depthwise_conv2d_nchw.1} parent=0 // pred_check
    _
  $region7: #{depthwise_conv2d_nchw.1} parent=0 // pred_check_branch
    %10 = sbr.rel (0) target = $region9
  $region8: #{depthwise_conv2d_nchw.1} parent=0 // pred_region
    _
  $region9: #{depthwise_conv2d_nchw.1} parent=0 // pred_fallthru
    _
  %11 = vst [vmem:[#allocation2] sm:$0xff] 0.0
  %12 = vst [vmem:[#allocation2 + $0x8] sm:$0xff] 0.0
  %13 = vst [vmem:[#allocation2 + $0x10] sm:$0xff] 0.0
  %vm14 = vcmask 785408
  %15 = vst.msk [vmem:[#allocation2 + $0x18] sm:$0xff] %vm14, 0.0
  %16 = vst [vmem:[#allocation2 + $0x20] sm:$0x3f] 0.0
  %17 = vst [vmem:[#allocation2 + $0x28] sm:$0x3f] 0.0
  %18 = vst [vmem:[#allocation2 + $0x30] sm:$0x3f] 0.0
  %vm19 = vcmask 783360
  %20 = vst.msk [vmem:[#allocation2 + $0x38] sm:$0x3f] %vm19, 0.0
  %21 = vst [vmem:[#allocation2 + $0x40] sm:$0xff] 0.0
  %22 = vst [vmem:[#allocation2 + $0x48] sm:$0xff] 0.0
  %23 = vst [vmem:[#allocation2 + $0x50] sm:$0xff] 0.0
  %24 = vst.msk [vmem:[#allocation2 + $0x58] sm:$0xff] %vm14, 0.0
  %25 = vst [vmem:[#allocation2 + $0x60] sm:$0x3f] 0.0
  %26 = vst [vmem:[#allocation2 + $0x68] sm:$0x3f] 0.0
  %27 = vst [vmem:[#allocation2 + $0x70] sm:$0x3f] 0.0
  %28 = vst.msk [vmem:[#allocation2 + $0x78] sm:$0x3f] %vm19, 0.0
  %29 = vst [vmem:[#allocation2 + $0x80] sm:$0xff] 0.0
  %30 = vst [vmem:[#allocation2 + $0x88] sm:$0xff] 0.0
  %31 = vst [vmem:[#allocation2 + $0x90] sm:$0xff] 0.0
  %32 = vst.msk [vmem:[#allocation2 + $0x98] sm:$0xff] %vm14, 0.0
  %33 = vst [vmem:[#allocation2 + $0xa0] sm:$0x3f] 0.0
  %34 = vst [vmem:[#allocation2 + $0xa8] sm:$0x3f] 0.0
  %35 = vst [vmem:[#allocation2 + $0xb0] sm:$0x3f] 0.0
  %36 = vst.msk [vmem:[#allocation2 + $0xb8] sm:$0x3f] %vm19, 0.0
  %37 = vst [vmem:[#allocation2 + $0xc0] sm:$0xff] 0.0
  %38 = vst [vmem:[#allocation2 + $0xc8] sm:$0xff] 0.0
  %39 = vst [vmem:[#allocation2 + $0xd0] sm:$0xff] 0.0
  %40 = vst.msk [vmem:[#allocation2 + $0xd8] sm:$0xff] %vm14, 0.0
  %41 = vst [vmem:[#allocation2 + $0xe0] sm:$0x3f] 0.0
  %42 = vst [vmem:[#allocation2 + $0xe8] sm:$0x3f] 0.0
  %43 = vst [vmem:[#allocation2 + $0xf0] sm:$0x3f] 0.0
  %44 = vst.msk [vmem:[#allocation2 + $0xf8] sm:$0x3f] %vm19, 0.0
  %45 = vst [vmem:[#allocation2 + $0x100] sm:$0xff] 0.0
  %46 = vst [vmem:[#allocation2 + $0x108] sm:$0xff] 0.0
  %47 = vst [vmem:[#allocation2 + $0x110] sm:$0xff] 0.0
  %48 = vst.msk [vmem:[#allocation2 + $0x118] sm:$0xff] %vm14, 0.0
  %49 = vst [vmem:[#allocation2 + $0x120] sm:$0x3f] 0.0
  %50 = vst [vmem:[#allocation2 + $0x128] sm:$0x3f] 0.0
  %51 = vst [vmem:[#allocation2 + $0x130] sm:$0x3f] 0.0
  %52 = vst.msk [vmem:[#allocation2 + $0x138] sm:$0x3f] %vm19, 0.0
  %53 = vst [vmem:[#allocation2 + $0x140] sm:$0xff] 0.0
  %54 = vst [vmem:[#allocation2 + $0x148] sm:$0xff] 0.0
  %55 = vst [vmem:[#allocation2 + $0x150] sm:$0xff] 0.0
  %56 = vst.msk [vmem:[#allocation2 + $0x158] sm:$0xff] %vm14, 0.0
  %57 = vst [vmem:[#allocation2 + $0x160] sm:$0x3f] 0.0
  %58 = vst [vmem:[#allocation2 + $0x168] sm:$0x3f] 0.0
  %59 = vst [vmem:[#allocation2 + $0x170] sm:$0x3f] 0.0
  %60 = vst.msk [vmem:[#allocation2 + $0x178] sm:$0x3f] %vm19, 0.0
  %61 = vst [vmem:[#allocation2 + $0x180] sm:$0xff] 0.0
  %62 = vst [vmem:[#allocation2 + $0x188] sm:$0xff] 0.0
  %63 = vst [vmem:[#allocation2 + $0x190] sm:$0xff] 0.0
  %64 = vst.msk [vmem:[#allocation2 + $0x198] sm:$0xff] %vm14, 0.0
  %65 = vst [vmem:[#allocation2 + $0x1a0] sm:$0x3f] 0.0
  %66 = vst [vmem:[#allocation2 + $0x1a8] sm:$0x3f] 0.0
  %67 = vst [vmem:[#allocation2 + $0x1b0] sm:$0x3f] 0.0
  %68 = vst.msk [vmem:[#allocation2 + $0x1b8] sm:$0x3f] %vm19, 0.0
  %69 = vst [vmem:[#allocation2 + $0x1c0] sm:$0xff] 0.0
  %70 = vst [vmem:[#allocation2 + $0x1c8] sm:$0xff] 0.0
  %71 = vst [vmem:[#allocation2 + $0x1d0] sm:$0xff] 0.0
  %72 = vst.msk [vmem:[#allocation2 + $0x1d8] sm:$0xff] %vm14, 0.0
  %73 = vst [vmem:[#allocation2 + $0x1e0] sm:$0x3f] 0.0
  %74 = vst [vmem:[#allocation2 + $0x1e8] sm:$0x3f] 0.0
  %75 = vst [vmem:[#allocation2 + $0x1f0] sm:$0x3f] 0.0
  %76 = vst.msk [vmem:[#allocation2 + $0x1f8] sm:$0x3f] %vm19, 0.0
  %77 = vst [vmem:[#allocation2 + $0x200] sm:$0xff] 0.0
  %78 = vst [vmem:[#allocation2 + $0x208] sm:$0xff] 0.0
  %79 = vst [vmem:[#allocation2 + $0x210] sm:$0xff] 0.0
  %80 = vst.msk [vmem:[#allocation2 + $0x218] sm:$0xff] %vm14, 0.0
  %81 = vst [vmem:[#allocation2 + $0x220] sm:$0x3f] 0.0
  %82 = vst [vmem:[#allocation2 + $0x228] sm:$0x3f] 0.0
  %83 = vst [vmem:[#allocation2 + $0x230] sm:$0x3f] 0.0
  %84 = vst.msk [vmem:[#allocation2 + $0x238] sm:$0x3f] %vm19, 0.0
  %85 = vst [vmem:[#allocation2 + $0x240] sm:$0xff] 0.0
  %86 = vst [vmem:[#allocation2 + $0x248] sm:$0xff] 0.0
  %87 = vst [vmem:[#allocation2 + $0x250] sm:$0xff] 0.0
  %88 = vst.msk [vmem:[#allocation2 + $0x258] sm:$0xff] %vm14, 0.0
  %89 = vst [vmem:[#allocation2 + $0x260] sm:$0x3f] 0.0
  %90 = vst [vmem:[#allocation2 + $0x268] sm:$0x3f] 0.0
  %91 = vst [vmem:[#allocation2 + $0x270] sm:$0x3f] 0.0
  %92 = vst.msk [vmem:[#allocation2 + $0x278] sm:$0x3f] %vm19, 0.0
  %93 = vst [vmem:[#allocation2 + $0x280] sm:$0xff] 0.0
  %94 = vst [vmem:[#allocation2 + $0x288] sm:$0xff] 0.0
  %95 = vst [vmem:[#allocation2 + $0x290] sm:$0xff] 0.0
  %96 = vst.msk [vmem:[#allocation2 + $0x298] sm:$0xff] %vm14, 0.0
  %97 = vst [vmem:[#allocation2 + $0x2a0] sm:$0x3f] 0.0
  %98 = vst [vmem:[#allocation2 + $0x2a8] sm:$0x3f] 0.0
  %99 = vst [vmem:[#allocation2 + $0x2b0] sm:$0x3f] 0.0
  %100 = vst.msk [vmem:[#allocation2 + $0x2b8] sm:$0x3f] %vm19, 0.0
  %101 = vst [vmem:[#allocation2 + $0x2c0] sm:$0xff] 0.0
  %102 = vst [vmem:[#allocation2 + $0x2c8] sm:$0xff] 0.0
  %103 = vst [vmem:[#allocation2 + $0x2d0] sm:$0xff] 0.0
  %104 = vst.msk [vmem:[#allocation2 + $0x2d8] sm:$0xff] %vm14, 0.0
  %105 = vst [vmem:[#allocation2 + $0x2e0] sm:$0x3f] 0.0
  %106 = vst [vmem:[#allocation2 + $0x2e8] sm:$0x3f] 0.0
  %107 = vst [vmem:[#allocation2 + $0x2f0] sm:$0x3f] 0.0
  %108 = vst.msk [vmem:[#allocation2 + $0x2f8] sm:$0x3f] %vm19, 0.0
  %109 = vst [vmem:[#allocation2 + $0x300] sm:$0xff] 0.0
  %110 = vst [vmem:[#allocation2 + $0x308] sm:$0xff] 0.0
  %111 = vst [vmem:[#allocation2 + $0x310] sm:$0xff] 0.0
  %112 = vst.msk [vmem:[#allocation2 + $0x318] sm:$0xff] %vm14, 0.0
  %113 = vst [vmem:[#allocation2 + $0x320] sm:$0x3f] 0.0
  %114 = vst [vmem:[#allocation2 + $0x328] sm:$0x3f] 0.0
  %115 = vst [vmem:[#allocation2 + $0x330] sm:$0x3f] 0.0
  %116 = vst.msk [vmem:[#allocation2 + $0x338] sm:$0x3f] %vm19, 0.0
  %117 = vst [vmem:[#allocation2 + $0x340] sm:$0xff] 0.0
  %118 = vst [vmem:[#allocation2 + $0x348] sm:$0xff] 0.0
  %119 = vst [vmem:[#allocation2 + $0x350] sm:$0xff] 0.0
  %120 = vst.msk [vmem:[#allocation2 + $0x358] sm:$0xff] %vm14, 0.0
  %121 = vst [vmem:[#allocation2 + $0x360] sm:$0x3f] 0.0
  %122 = vst [vmem:[#allocation2 + $0x368] sm:$0x3f] 0.0
  %123 = vst [vmem:[#allocation2 + $0x370] sm:$0x3f] 0.0
  %124 = vst.msk [vmem:[#allocation2 + $0x378] sm:$0x3f] %vm19, 0.0
  %125 = vst [vmem:[#allocation2 + $0x380] sm:$0xff] 0.0
  %126 = vst [vmem:[#allocation2 + $0x388] sm:$0xff] 0.0
  %127 = vst [vmem:[#allocation2 + $0x390] sm:$0xff] 0.0
  %128 = vst.msk [vmem:[#allocation2 + $0x398] sm:$0xff] %vm14, 0.0
  %129 = vst [vmem:[#allocation2 + $0x3a0] sm:$0x3f] 0.0
  %130 = vst [vmem:[#allocation2 + $0x3a8] sm:$0x3f] 0.0
  %131 = vst [vmem:[#allocation2 + $0x3b0] sm:$0x3f] 0.0
  %132 = vst.msk [vmem:[#allocation2 + $0x3b8] sm:$0x3f] %vm19, 0.0
  %133 = vst [vmem:[#allocation2 + $0x3c0] sm:$0xff] 0.0
  %134 = vst [vmem:[#allocation2 + $0x3c8] sm:$0xff] 0.0
  %135 = vst [vmem:[#allocation2 + $0x3d0] sm:$0xff] 0.0
  %136 = vst.msk [vmem:[#allocation2 + $0x3d8] sm:$0xff] %vm14, 0.0
  %137 = vst [vmem:[#allocation2 + $0x3e0] sm:$0x3f] 0.0
  %138 = vst [vmem:[#allocation2 + $0x3e8] sm:$0x3f] 0.0
  %139 = vst [vmem:[#allocation2 + $0x3f0] sm:$0x3f] 0.0
  %140 = vst.msk [vmem:[#allocation2 + $0x3f8] sm:$0x3f] %vm19, 0.0
  %141 = vst [vmem:[#allocation2 + $0x400] sm:$0xff] 0.0
  %142 = vst [vmem:[#allocation2 + $0x408] sm:$0xff] 0.0
  %143 = vst [vmem:[#allocation2 + $0x410] sm:$0xff] 0.0
  %144 = vst.msk [vmem:[#allocation2 + $0x418] sm:$0xff] %vm14, 0.0
  %145 = vst [vmem:[#allocation2 + $0x420] sm:$0x3f] 0.0
  %146 = vst [vmem:[#allocation2 + $0x428] sm:$0x3f] 0.0
  %147 = vst [vmem:[#allocation2 + $0x430] sm:$0x3f] 0.0
  %148 = vst.msk [vmem:[#allocation2 + $0x438] sm:$0x3f] %vm19, 0.0
  %149 = vst [vmem:[#allocation2 + $0x440] sm:$0xff] 0.0
  %150 = vst [vmem:[#allocation2 + $0x448] sm:$0xff] 0.0
  %151 = vst [vmem:[#allocation2 + $0x450] sm:$0xff] 0.0
  %152 = vst.msk [vmem:[#allocation2 + $0x458] sm:$0xff] %vm14, 0.0
  %153 = vst [vmem:[#allocation2 + $0x460] sm:$0x3f] 0.0
  %154 = vst [vmem:[#allocation2 + $0x468] sm:$0x3f] 0.0
  %155 = vst [vmem:[#allocation2 + $0x470] sm:$0x3f] 0.0
  %156 = vst.msk [vmem:[#allocation2 + $0x478] sm:$0x3f] %vm19, 0.0
  %157 = vst [vmem:[#allocation2 + $0x480] sm:$0xff] 0.0
  %158 = vst [vmem:[#allocation2 + $0x488] sm:$0xff] 0.0
  %159 = vst [vmem:[#allocation2 + $0x490] sm:$0xff] 0.0
  %160 = vst.msk [vmem:[#allocation2 + $0x498] sm:$0xff] %vm14, 0.0
  %161 = vst [vmem:[#allocation2 + $0x4a0] sm:$0x3f] 0.0
  %162 = vst [vmem:[#allocation2 + $0x4a8] sm:$0x3f] 0.0
  %163 = vst [vmem:[#allocation2 + $0x4b0] sm:$0x3f] 0.0
  %164 = vst.msk [vmem:[#allocation2 + $0x4b8] sm:$0x3f] %vm19, 0.0
  %165 = vst [vmem:[#allocation2 + $0x4c0] sm:$0xff] 0.0
  %166 = vst [vmem:[#allocation2 + $0x4c8] sm:$0xff] 0.0
  %167 = vst [vmem:[#allocation2 + $0x4d0] sm:$0xff] 0.0
  %168 = vst.msk [vmem:[#allocation2 + $0x4d8] sm:$0xff] %vm14, 0.0
  %169 = vst [vmem:[#allocation2 + $0x4e0] sm:$0x3f] 0.0
  %170 = vst [vmem:[#allocation2 + $0x4e8] sm:$0x3f] 0.0
  %171 = vst [vmem:[#allocation2 + $0x4f0] sm:$0x3f] 0.0
  %172 = vst.msk [vmem:[#allocation2 + $0x4f8] sm:$0x3f] %vm19, 0.0
  %173 = vst [vmem:[#allocation2 + $0x500] sm:$0xff] 0.0
  %174 = vst [vmem:[#allocation2 + $0x508] sm:$0xff] 0.0
  %175 = vst [vmem:[#allocation2 + $0x510] sm:$0xff] 0.0
  %176 = vst.msk [vmem:[#allocation2 + $0x518] sm:$0xff] %vm14, 0.0
  %177 = vst [vmem:[#allocation2 + $0x520] sm:$0x3f] 0.0
  %178 = vst [vmem:[#allocation2 + $0x528] sm:$0x3f] 0.0
  %179 = vst [vmem:[#allocation2 + $0x530] sm:$0x3f] 0.0
  %180 = vst.msk [vmem:[#allocation2 + $0x538] sm:$0x3f] %vm19, 0.0
  %181 = vst [vmem:[#allocation2 + $0x540] sm:$0xff] 0.0
  %182 = vst [vmem:[#allocation2 + $0x548] sm:$0xff] 0.0
  %183 = vst [vmem:[#allocation2 + $0x550] sm:$0xff] 0.0
  %184 = vst.msk [vmem:[#allocation2 + $0x558] sm:$0xff] %vm14, 0.0
  %185 = vst [vmem:[#allocation2 + $0x560] sm:$0x3f] 0.0
  %186 = vst [vmem:[#allocation2 + $0x568] sm:$0x3f] 0.0
  %187 = vst [vmem:[#allocation2 + $0x570] sm:$0x3f] 0.0
  %188 = vst.msk [vmem:[#allocation2 + $0x578] sm:$0x3f] %vm19, 0.0
  %189 = vst [vmem:[#allocation2 + $0x580] sm:$0xff] 0.0
  %190 = vst [vmem:[#allocation2 + $0x588] sm:$0xff] 0.0
  %191 = vst [vmem:[#allocation2 + $0x590] sm:$0xff] 0.0
  %192 = vst.msk [vmem:[#allocation2 + $0x598] sm:$0xff] %vm14, 0.0
  %193 = vst [vmem:[#allocation2 + $0x5a0] sm:$0x3f] 0.0
  %194 = vst [vmem:[#allocation2 + $0x5a8] sm:$0x3f] 0.0
  %195 = vst [vmem:[#allocation2 + $0x5b0] sm:$0x3f] 0.0
  %196 = vst.msk [vmem:[#allocation2 + $0x5b8] sm:$0x3f] %vm19, 0.0
  %197 = vst [vmem:[#allocation2 + $0x5c0] sm:$0xff] 0.0
  %198 = vst [vmem:[#allocation2 + $0x5c8] sm:$0xff] 0.0
  %199 = vst [vmem:[#allocation2 + $0x5d0] sm:$0xff] 0.0
  %200 = vst.msk [vmem:[#allocation2 + $0x5d8] sm:$0xff] %vm14, 0.0
  %201 = vst [vmem:[#allocation2 + $0x5e0] sm:$0x3f] 0.0
  %202 = vst [vmem:[#allocation2 + $0x5e8] sm:$0x3f] 0.0
  %203 = vst [vmem:[#allocation2 + $0x5f0] sm:$0x3f] 0.0
  %204 = vst.msk [vmem:[#allocation2 + $0x5f8] sm:$0x3f] %vm19, 0.0
  %205 = vst [vmem:[#allocation2 + $0x600] sm:$0xff] 0.0
  %206 = vst [vmem:[#allocation2 + $0x608] sm:$0xff] 0.0
  %207 = vst [vmem:[#allocation2 + $0x610] sm:$0xff] 0.0
  %208 = vst.msk [vmem:[#allocation2 + $0x618] sm:$0xff] %vm14, 0.0
  %209 = vst [vmem:[#allocation2 + $0x620] sm:$0x3f] 0.0
  %210 = vst [vmem:[#allocation2 + $0x628] sm:$0x3f] 0.0
  %211 = vst [vmem:[#allocation2 + $0x630] sm:$0x3f] 0.0
  %212 = vst.msk [vmem:[#allocation2 + $0x638] sm:$0x3f] %vm19, 0.0
  %213 = vst [vmem:[#allocation2 + $0x640] sm:$0xff] 0.0
  %214 = vst [vmem:[#allocation2 + $0x648] sm:$0xff] 0.0
  %215 = vst [vmem:[#allocation2 + $0x650] sm:$0xff] 0.0
  %216 = vst.msk [vmem:[#allocation2 + $0x658] sm:$0xff] %vm14, 0.0
  %217 = vst [vmem:[#allocation2 + $0x660] sm:$0x3f] 0.0
  %218 = vst [vmem:[#allocation2 + $0x668] sm:$0x3f] 0.0
  %219 = vst [vmem:[#allocation2 + $0x670] sm:$0x3f] 0.0
  %220 = vst.msk [vmem:[#allocation2 + $0x678] sm:$0x3f] %vm19, 0.0
  %221 = vst [vmem:[#allocation2 + $0x680] sm:$0xff] 0.0
  %222 = vst [vmem:[#allocation2 + $0x688] sm:$0xff] 0.0
  %223 = vst [vmem:[#allocation2 + $0x690] sm:$0xff] 0.0
  %224 = vst.msk [vmem:[#allocation2 + $0x698] sm:$0xff] %vm14, 0.0
  %225 = vst [vmem:[#allocation2 + $0x6a0] sm:$0x3f] 0.0
  %226 = vst [vmem:[#allocation2 + $0x6a8] sm:$0x3f] 0.0
  %227 = vst [vmem:[#allocation2 + $0x6b0] sm:$0x3f] 0.0
  %228 = vst.msk [vmem:[#allocation2 + $0x6b8] sm:$0x3f] %vm19, 0.0
  %229 = vst [vmem:[#allocation2 + $0x6c0] sm:$0xff] 0.0
  %230 = vst [vmem:[#allocation2 + $0x6c8] sm:$0xff] 0.0
  %231 = vst [vmem:[#allocation2 + $0x6d0] sm:$0xff] 0.0
  %232 = vst.msk [vmem:[#allocation2 + $0x6d8] sm:$0xff] %vm14, 0.0
  %233 = vst [vmem:[#allocation2 + $0x6e0] sm:$0x3f] 0.0
  %234 = vst [vmem:[#allocation2 + $0x6e8] sm:$0x3f] 0.0
  %235 = vst [vmem:[#allocation2 + $0x6f0] sm:$0x3f] 0.0
  %236 = vst.msk [vmem:[#allocation2 + $0x6f8] sm:$0x3f] %vm19, 0.0
  %237 = vst [vmem:[#allocation2 + $0x700] sm:$0xff] 0.0
  %238 = vst [vmem:[#allocation2 + $0x708] sm:$0xff] 0.0
  %239 = vst [vmem:[#allocation2 + $0x710] sm:$0xff] 0.0
  %240 = vst.msk [vmem:[#allocation2 + $0x718] sm:$0xff] %vm14, 0.0
  %241 = vst [vmem:[#allocation2 + $0x720] sm:$0x3f] 0.0
  %242 = vst [vmem:[#allocation2 + $0x728] sm:$0x3f] 0.0
  %243 = vst [vmem:[#allocation2 + $0x730] sm:$0x3f] 0.0
  %244 = vst.msk [vmem:[#allocation2 + $0x738] sm:$0x3f] %vm19, 0.0
  %245 = vst [vmem:[#allocation2 + $0x740] sm:$0xff] 0.0
  %246 = vst [vmem:[#allocation2 + $0x748] sm:$0xff] 0.0
  %247 = vst [vmem:[#allocation2 + $0x750] sm:$0xff] 0.0
  %248 = vst.msk [vmem:[#allocation2 + $0x758] sm:$0xff] %vm14, 0.0
  %249 = vst [vmem:[#allocation2 + $0x760] sm:$0x3f] 0.0
  %250 = vst [vmem:[#allocation2 + $0x768] sm:$0x3f] 0.0
  %251 = vst [vmem:[#allocation2 + $0x770] sm:$0x3f] 0.0
  %252 = vst.msk [vmem:[#allocation2 + $0x778] sm:$0x3f] %vm19, 0.0
  %253 = vst [vmem:[#allocation2 + $0x780] sm:$0xff] 0.0
  %254 = vst [vmem:[#allocation2 + $0x788] sm:$0xff] 0.0
  %255 = vst [vmem:[#allocation2 + $0x790] sm:$0xff] 0.0
  %256 = vst.msk [vmem:[#allocation2 + $0x798] sm:$0xff] %vm14, 0.0
  %257 = vst [vmem:[#allocation2 + $0x7a0] sm:$0x3f] 0.0
  %258 = vst [vmem:[#allocation2 + $0x7a8] sm:$0x3f] 0.0
  %259 = vst [vmem:[#allocation2 + $0x7b0] sm:$0x3f] 0.0
  %260 = vst.msk [vmem:[#allocation2 + $0x7b8] sm:$0x3f] %vm19, 0.0
  %261 = vst [vmem:[#allocation2 + $0x7c0] sm:$0xff] 0.0
  %262 = vst [vmem:[#allocation2 + $0x7c8] sm:$0xff] 0.0
  %263 = vst [vmem:[#allocation2 + $0x7d0] sm:$0xff] 0.0
  %264 = vst.msk [vmem:[#allocation2 + $0x7d8] sm:$0xff] %vm14, 0.0
  %265 = vst [vmem:[#allocation2 + $0x7e0] sm:$0x3f] 0.0
  %266 = vst [vmem:[#allocation2 + $0x7e8] sm:$0x3f] 0.0
  %267 = vst [vmem:[#allocation2 + $0x7f0] sm:$0x3f] 0.0
  %268 = vst.msk [vmem:[#allocation2 + $0x7f8] sm:$0x3f] %vm19, 0.0
  %269 = vst [vmem:[#allocation2 + $0x800] sm:$0xff] 0.0
  %270 = vst [vmem:[#allocation2 + $0x808] sm:$0xff] 0.0
  %271 = vst [vmem:[#allocation2 + $0x810] sm:$0xff] 0.0
  %272 = vst.msk [vmem:[#allocation2 + $0x818] sm:$0xff] %vm14, 0.0
  %273 = vst [vmem:[#allocation2 + $0x820] sm:$0x3f] 0.0
  %274 = vst [vmem:[#allocation2 + $0x828] sm:$0x3f] 0.0
  %275 = vst [vmem:[#allocation2 + $0x830] sm:$0x3f] 0.0
  %276 = vst.msk [vmem:[#allocation2 + $0x838] sm:$0x3f] %vm19, 0.0
  %277 = vst [vmem:[#allocation2 + $0x840] sm:$0xff] 0.0
  %278 = vst [vmem:[#allocation2 + $0x848] sm:$0xff] 0.0
  %279 = vst [vmem:[#allocation2 + $0x850] sm:$0xff] 0.0
  %280 = vst.msk [vmem:[#allocation2 + $0x858] sm:$0xff] %vm14, 0.0
  %281 = vst [vmem:[#allocation2 + $0x860] sm:$0x3f] 0.0
  %282 = vst [vmem:[#allocation2 + $0x868] sm:$0x3f] 0.0
  %283 = vst [vmem:[#allocation2 + $0x870] sm:$0x3f] 0.0
  %284 = vst.msk [vmem:[#allocation2 + $0x878] sm:$0x3f] %vm19, 0.0
  %285 = vst [vmem:[#allocation2 + $0x880] sm:$0xff] 0.0
  %286 = vst [vmem:[#allocation2 + $0x888] sm:$0xff] 0.0
  %287 = vst [vmem:[#allocation2 + $0x890] sm:$0xff] 0.0
  %288 = vst.msk [vmem:[#allocation2 + $0x898] sm:$0xff] %vm14, 0.0
  %289 = vst [vmem:[#allocation2 + $0x8a0] sm:$0x3f] 0.0
  %290 = vst [vmem:[#allocation2 + $0x8a8] sm:$0x3f] 0.0
  %291 = vst [vmem:[#allocation2 + $0x8b0] sm:$0x3f] 0.0
  %292 = vst.msk [vmem:[#allocation2 + $0x8b8] sm:$0x3f] %vm19, 0.0
  %293 = vst [vmem:[#allocation2 + $0x8c0] sm:$0xff] 0.0
  %294 = vst [vmem:[#allocation2 + $0x8c8] sm:$0xff] 0.0
  %295 = vst [vmem:[#allocation2 + $0x8d0] sm:$0xff] 0.0
  %296 = vst.msk [vmem:[#allocation2 + $0x8d8] sm:$0xff] %vm14, 0.0
  %297 = vst [vmem:[#allocation2 + $0x8e0] sm:$0x3f] 0.0
  %298 = vst [vmem:[#allocation2 + $0x8e8] sm:$0x3f] 0.0
  %299 = vst [vmem:[#allocation2 + $0x8f0] sm:$0x3f] 0.0
  %300 = vst.msk [vmem:[#allocation2 + $0x8f8] sm:$0x3f] %vm19, 0.0
  %301 = vst [vmem:[#allocation2 + $0x900] sm:$0xff] 0.0
  %302 = vst [vmem:[#allocation2 + $0x908] sm:$0xff] 0.0
  %303 = vst [vmem:[#allocation2 + $0x910] sm:$0xff] 0.0
  %304 = vst.msk [vmem:[#allocation2 + $0x918] sm:$0xff] %vm14, 0.0
  %305 = vst [vmem:[#allocation2 + $0x920] sm:$0x3f] 0.0
  %306 = vst [vmem:[#allocation2 + $0x928] sm:$0x3f] 0.0
  %307 = vst [vmem:[#allocation2 + $0x930] sm:$0x3f] 0.0
  %308 = vst.msk [vmem:[#allocation2 + $0x938] sm:$0x3f] %vm19, 0.0
  %309 = vst [vmem:[#allocation2 + $0x940] sm:$0xff] 0.0
  %310 = vst [vmem:[#allocation2 + $0x948] sm:$0xff] 0.0
  %311 = vst [vmem:[#allocation2 + $0x950] sm:$0xff] 0.0
  %312 = vst.msk [vmem:[#allocation2 + $0x958] sm:$0xff] %vm14, 0.0
  %313 = vst [vmem:[#allocation2 + $0x960] sm:$0x3f] 0.0
  %314 = vst [vmem:[#allocation2 + $0x968] sm:$0x3f] 0.0
  %315 = vst [vmem:[#allocation2 + $0x970] sm:$0x3f] 0.0
  %316 = vst.msk [vmem:[#allocation2 + $0x978] sm:$0x3f] %vm19, 0.0
  %317 = vst [vmem:[#allocation2 + $0x980] sm:$0xff] 0.0
  %318 = vst [vmem:[#allocation2 + $0x988] sm:$0xff] 0.0
  %319 = vst [vmem:[#allocation2 + $0x990] sm:$0xff] 0.0
  %320 = vst.msk [vmem:[#allocation2 + $0x998] sm:$0xff] %vm14, 0.0
  %321 = vst [vmem:[#allocation2 + $0x9a0] sm:$0x3f] 0.0
  %322 = vst [vmem:[#allocation2 + $0x9a8] sm:$0x3f] 0.0
  %323 = vst [vmem:[#allocation2 + $0x9b0] sm:$0x3f] 0.0
  %324 = vst.msk [vmem:[#allocation2 + $0x9b8] sm:$0x3f] %vm19, 0.0
  %325 = vst [vmem:[#allocation2 + $0x9c0] sm:$0xff] 0.0
  %326 = vst [vmem:[#allocation2 + $0x9c8] sm:$0xff] 0.0
  %327 = vst [vmem:[#allocation2 + $0x9d0] sm:$0xff] 0.0
  %328 = vst.msk [vmem:[#allocation2 + $0x9d8] sm:$0xff] %vm14, 0.0
  %329 = vst [vmem:[#allocation2 + $0x9e0] sm:$0x3f] 0.0
  %330 = vst [vmem:[#allocation2 + $0x9e8] sm:$0x3f] 0.0
  %331 = vst [vmem:[#allocation2 + $0x9f0] sm:$0x3f] 0.0
  %332 = vst.msk [vmem:[#allocation2 + $0x9f8] sm:$0x3f] %vm19, 0.0
  %333 = vst [vmem:[#allocation2 + $0xa00] sm:$0xff] 0.0
  %334 = vst [vmem:[#allocation2 + $0xa08] sm:$0xff] 0.0
  %335 = vst [vmem:[#allocation2 + $0xa10] sm:$0xff] 0.0
  %336 = vst.msk [vmem:[#allocation2 + $0xa18] sm:$0xff] %vm14, 0.0
  %337 = vst [vmem:[#allocation2 + $0xa20] sm:$0x3f] 0.0
  %338 = vst [vmem:[#allocation2 + $0xa28] sm:$0x3f] 0.0
  %339 = vst [vmem:[#allocation2 + $0xa30] sm:$0x3f] 0.0
  %340 = vst.msk [vmem:[#allocation2 + $0xa38] sm:$0x3f] %vm19, 0.0
  %341 = vst [vmem:[#allocation2 + $0xa40] sm:$0xff] 0.0
  %342 = vst [vmem:[#allocation2 + $0xa48] sm:$0xff] 0.0
  %343 = vst [vmem:[#allocation2 + $0xa50] sm:$0xff] 0.0
  %344 = vst.msk [vmem:[#allocation2 + $0xa58] sm:$0xff] %vm14, 0.0
  %345 = vst [vmem:[#allocation2 + $0xa60] sm:$0x3f] 0.0
  %346 = vst [vmem:[#allocation2 + $0xa68] sm:$0x3f] 0.0
  %347 = vst [vmem:[#allocation2 + $0xa70] sm:$0x3f] 0.0
  %348 = vst.msk [vmem:[#allocation2 + $0xa78] sm:$0x3f] %vm19, 0.0
  %349 = vst [vmem:[#allocation2 + $0xa80] sm:$0xff] 0.0
  %350 = vst [vmem:[#allocation2 + $0xa88] sm:$0xff] 0.0
  %351 = vst [vmem:[#allocation2 + $0xa90] sm:$0xff] 0.0
  %352 = vst.msk [vmem:[#allocation2 + $0xa98] sm:$0xff] %vm14, 0.0
  %353 = vst [vmem:[#allocation2 + $0xaa0] sm:$0x3f] 0.0
  %354 = vst [vmem:[#allocation2 + $0xaa8] sm:$0x3f] 0.0
  %355 = vst [vmem:[#allocation2 + $0xab0] sm:$0x3f] 0.0
  %356 = vst.msk [vmem:[#allocation2 + $0xab8] sm:$0x3f] %vm19, 0.0
  %357 = vst [vmem:[#allocation2 + $0xac0] sm:$0xff] 0.0
  %358 = vst [vmem:[#allocation2 + $0xac8] sm:$0xff] 0.0
  %359 = vst [vmem:[#allocation2 + $0xad0] sm:$0xff] 0.0
  %360 = vst.msk [vmem:[#allocation2 + $0xad8] sm:$0xff] %vm14, 0.0
  %361 = vst [vmem:[#allocation2 + $0xae0] sm:$0x3f] 0.0
  %362 = vst [vmem:[#allocation2 + $0xae8] sm:$0x3f] 0.0
  %363 = vst [vmem:[#allocation2 + $0xaf0] sm:$0x3f] 0.0
  %364 = vst.msk [vmem:[#allocation2 + $0xaf8] sm:$0x3f] %vm19, 0.0
  %365 = vst [vmem:[#allocation2 + $0xb00] sm:$0xff] 0.0
  %366 = vst [vmem:[#allocation2 + $0xb08] sm:$0xff] 0.0
  %367 = vst [vmem:[#allocation2 + $0xb10] sm:$0xff] 0.0
  %368 = vst.msk [vmem:[#allocation2 + $0xb18] sm:$0xff] %vm14, 0.0
  %369 = vst [vmem:[#allocation2 + $0xb20] sm:$0x3f] 0.0
  %370 = vst [vmem:[#allocation2 + $0xb28] sm:$0x3f] 0.0
  %371 = vst [vmem:[#allocation2 + $0xb30] sm:$0x3f] 0.0
  %372 = vst.msk [vmem:[#allocation2 + $0xb38] sm:$0x3f] %vm19, 0.0
  %373 = vst [vmem:[#allocation2 + $0xb40] sm:$0xff] 0.0
  %374 = vst [vmem:[#allocation2 + $0xb48] sm:$0xff] 0.0
  %375 = vst [vmem:[#allocation2 + $0xb50] sm:$0xff] 0.0
  %376 = vst.msk [vmem:[#allocation2 + $0xb58] sm:$0xff] %vm14, 0.0
  %377 = vst [vmem:[#allocation2 + $0xb60] sm:$0x3f] 0.0
  %378 = vst [vmem:[#allocation2 + $0xb68] sm:$0x3f] 0.0
  %379 = vst [vmem:[#allocation2 + $0xb70] sm:$0x3f] 0.0
  %380 = vst.msk [vmem:[#allocation2 + $0xb78] sm:$0x3f] %vm19, 0.0
  %381 = vst [vmem:[#allocation2 + $0xb80] sm:$0xff] 0.0
  %382 = vst [vmem:[#allocation2 + $0xb88] sm:$0xff] 0.0
  %383 = vst [vmem:[#allocation2 + $0xb90] sm:$0xff] 0.0
  %384 = vst.msk [vmem:[#allocation2 + $0xb98] sm:$0xff] %vm14, 0.0
  %385 = vst [vmem:[#allocation2 + $0xba0] sm:$0x3f] 0.0
  %386 = vst [vmem:[#allocation2 + $0xba8] sm:$0x3f] 0.0
  %387 = vst [vmem:[#allocation2 + $0xbb0] sm:$0x3f] 0.0
  %388 = vst.msk [vmem:[#allocation2 + $0xbb8] sm:$0x3f] %vm19, 0.0
  %389 = vst [vmem:[#allocation2 + $0xbc0] sm:$0xff] 0.0
  %390 = vst [vmem:[#allocation2 + $0xbc8] sm:$0xff] 0.0
  %391 = vst [vmem:[#allocation2 + $0xbd0] sm:$0xff] 0.0
  %392 = vst.msk [vmem:[#allocation2 + $0xbd8] sm:$0xff] %vm14, 0.0
  %393 = vst [vmem:[#allocation2 + $0xbe0] sm:$0x3f] 0.0
  %394 = vst [vmem:[#allocation2 + $0xbe8] sm:$0x3f] 0.0
  %395 = vst [vmem:[#allocation2 + $0xbf0] sm:$0x3f] 0.0
  %396 = vst.msk [vmem:[#allocation2 + $0xbf8] sm:$0x3f] %vm19, 0.0
  %v397 = vld [vmem:[%s0] sm:$0xff]
  %v398 = vld [vmem:[%s0 + $0x8] sm:$0xff]
  %v399 = vld [vmem:[%s0 + $0x10] sm:$0xff]
  %v400 = vld [vmem:[%s0 + $0x18] sm:$0xff]
  %v401 = vld [vmem:[%s0 + $0x20] sm:$0x3f]
  %v402 = vld [vmem:[%s0 + $0x28] sm:$0x3f]
  %v403 = vld [vmem:[%s0 + $0x30] sm:$0x3f]
  %v404 = vld [vmem:[%s0 + $0x38] sm:$0x3f]
  %v405 = vld [vmem:[%s0 + $0x40] sm:$0xff]
  %v406 = vld [vmem:[%s0 + $0x48] sm:$0xff]
  %v407 = vld [vmem:[%s0 + $0x50] sm:$0xff]
  %v408 = vld [vmem:[%s0 + $0x58] sm:$0xff]
  %v409 = vld [vmem:[%s0 + $0x60] sm:$0x3f]
  %v410 = vld [vmem:[%s0 + $0x68] sm:$0x3f]
  %v411 = vld [vmem:[%s0 + $0x70] sm:$0x3f]
  %v412 = vld [vmem:[%s0 + $0x78] sm:$0x3f]
  %v413 = vld [vmem:[%s0 + $0x80] sm:$0xff]
  %v414 = vld [vmem:[%s0 + $0x88] sm:$0xff]
  %v415 = vld [vmem:[%s0 + $0x90] sm:$0xff]
  %v416 = vld [vmem:[%s0 + $0x98] sm:$0xff]
  %v417 = vld [vmem:[%s0 + $0xa0] sm:$0x3f]
  %v418 = vld [vmem:[%s0 + $0xa8] sm:$0x3f]
  %v419 = vld [vmem:[%s0 + $0xb0] sm:$0x3f]
  %v420 = vld [vmem:[%s0 + $0xb8] sm:$0x3f]
  %v421 = vld [vmem:[%s0 + $0xc0] sm:$0xff]
  %v422 = vld [vmem:[%s0 + $0xc8] sm:$0xff]
  %v423 = vld [vmem:[%s0 + $0xd0] sm:$0xff]
  %v424 = vld [vmem:[%s0 + $0xd8] sm:$0xff]
  %v425 = vld [vmem:[%s0 + $0xe0] sm:$0x3f]
  %v426 = vld [vmem:[%s0 + $0xe8] sm:$0x3f]
  %v427 = vld [vmem:[%s0 + $0xf0] sm:$0x3f]
  %v428 = vld [vmem:[%s0 + $0xf8] sm:$0x3f]
  %v429 = vld [vmem:[%s0 + $0x100] sm:$0xff]
  %v430 = vld [vmem:[%s0 + $0x108] sm:$0xff]
  %v431 = vld [vmem:[%s0 + $0x110] sm:$0xff]
  %v432 = vld [vmem:[%s0 + $0x118] sm:$0xff]
  %v433 = vld [vmem:[%s0 + $0x120] sm:$0x3f]
  %v434 = vld [vmem:[%s0 + $0x128] sm:$0x3f]
  %v435 = vld [vmem:[%s0 + $0x130] sm:$0x3f]
  %v436 = vld [vmem:[%s0 + $0x138] sm:$0x3f]
  %v437 = vld [vmem:[%s0 + $0x140] sm:$0xff]
  %v438 = vld [vmem:[%s0 + $0x148] sm:$0xff]
  %v439 = vld [vmem:[%s0 + $0x150] sm:$0xff]
  %v440 = vld [vmem:[%s0 + $0x158] sm:$0xff]
  %v441 = vld [vmem:[%s0 + $0x160] sm:$0x3f]
  %v442 = vld [vmem:[%s0 + $0x168] sm:$0x3f]
  %v443 = vld [vmem:[%s0 + $0x170] sm:$0x3f]
  %v444 = vld [vmem:[%s0 + $0x178] sm:$0x3f]
  %v445 = vld [vmem:[%s0 + $0x180] sm:$0xff]
  %v446 = vld [vmem:[%s0 + $0x188] sm:$0xff]
  %v447 = vld [vmem:[%s0 + $0x190] sm:$0xff]
  %v448 = vld [vmem:[%s0 + $0x198] sm:$0xff]
  %v449 = vld [vmem:[%s0 + $0x1a0] sm:$0x3f]
  %v450 = vld [vmem:[%s0 + $0x1a8] sm:$0x3f]
  %v451 = vld [vmem:[%s0 + $0x1b0] sm:$0x3f]
  %v452 = vld [vmem:[%s0 + $0x1b8] sm:$0x3f]
  %v453 = vld [vmem:[%s0 + $0x1c0] sm:$0xff]
  %v454 = vld [vmem:[%s0 + $0x1c8] sm:$0xff]
  %v455 = vld [vmem:[%s0 + $0x1d0] sm:$0xff]
  %v456 = vld [vmem:[%s0 + $0x1d8] sm:$0xff]
  %v457 = vld [vmem:[%s0 + $0x1e0] sm:$0x3f]
  %v458 = vld [vmem:[%s0 + $0x1e8] sm:$0x3f]
  %v459 = vld [vmem:[%s0 + $0x1f0] sm:$0x3f]
  %v460 = vld [vmem:[%s0 + $0x1f8] sm:$0x3f]
  %v461 = vld [vmem:[%s0 + $0x200] sm:$0xff]
  %v462 = vld [vmem:[%s0 + $0x208] sm:$0xff]
  %v463 = vld [vmem:[%s0 + $0x210] sm:$0xff]
  %v464 = vld [vmem:[%s0 + $0x218] sm:$0xff]
  %v465 = vld [vmem:[%s0 + $0x220] sm:$0x3f]
  %v466 = vld [vmem:[%s0 + $0x228] sm:$0x3f]
  %v467 = vld [vmem:[%s0 + $0x230] sm:$0x3f]
  %v468 = vld [vmem:[%s0 + $0x238] sm:$0x3f]
  %v469 = vld [vmem:[%s0 + $0x240] sm:$0xff]
  %v470 = vld [vmem:[%s0 + $0x248] sm:$0xff]
  %v471 = vld [vmem:[%s0 + $0x250] sm:$0xff]
  %v472 = vld [vmem:[%s0 + $0x258] sm:$0xff]
  %v473 = vld [vmem:[%s0 + $0x260] sm:$0x3f]
  %v474 = vld [vmem:[%s0 + $0x268] sm:$0x3f]
  %v475 = vld [vmem:[%s0 + $0x270] sm:$0x3f]
  %v476 = vld [vmem:[%s0 + $0x278] sm:$0x3f]
  %v477 = vld [vmem:[%s0 + $0x280] sm:$0xff]
  %v478 = vld [vmem:[%s0 + $0x288] sm:$0xff]
  %v479 = vld [vmem:[%s0 + $0x290] sm:$0xff]
  %v480 = vld [vmem:[%s0 + $0x298] sm:$0xff]
  %v481 = vld [vmem:[%s0 + $0x2a0] sm:$0x3f]
  %v482 = vld [vmem:[%s0 + $0x2a8] sm:$0x3f]
  %v483 = vld [vmem:[%s0 + $0x2b0] sm:$0x3f]
  %v484 = vld [vmem:[%s0 + $0x2b8] sm:$0x3f]
  %v485 = vld [vmem:[%s0 + $0x2c0] sm:$0xff]
  %v486 = vld [vmem:[%s0 + $0x2c8] sm:$0xff]
  %v487 = vld [vmem:[%s0 + $0x2d0] sm:$0xff]
  %v488 = vld [vmem:[%s0 + $0x2d8] sm:$0xff]
  %v489 = vld [vmem:[%s0 + $0x2e0] sm:$0x3f]
  %v490 = vld [vmem:[%s0 + $0x2e8] sm:$0x3f]
  %v491 = vld [vmem:[%s0 + $0x2f0] sm:$0x3f]
  %v492 = vld [vmem:[%s0 + $0x2f8] sm:$0x3f]
  %v493 = vld [vmem:[%s0 + $0x300] sm:$0xff]
  %v494 = vld [vmem:[%s0 + $0x308] sm:$0xff]
  %v495 = vld [vmem:[%s0 + $0x310] sm:$0xff]
  %v496 = vld [vmem:[%s0 + $0x318] sm:$0xff]
  %v497 = vld [vmem:[%s0 + $0x320] sm:$0x3f]
  %v498 = vld [vmem:[%s0 + $0x328] sm:$0x3f]
  %v499 = vld [vmem:[%s0 + $0x330] sm:$0x3f]
  %v500 = vld [vmem:[%s0 + $0x338] sm:$0x3f]
  %v501 = vld [vmem:[%s0 + $0x340] sm:$0xff]
  %v502 = vld [vmem:[%s0 + $0x348] sm:$0xff]
  %v503 = vld [vmem:[%s0 + $0x350] sm:$0xff]
  %v504 = vld [vmem:[%s0 + $0x358] sm:$0xff]
  %v505 = vld [vmem:[%s0 + $0x360] sm:$0x3f]
  %v506 = vld [vmem:[%s0 + $0x368] sm:$0x3f]
  %v507 = vld [vmem:[%s0 + $0x370] sm:$0x3f]
  %v508 = vld [vmem:[%s0 + $0x378] sm:$0x3f]
  %vm621 = vcmask 1040384
  %v622 = vrot.slane %v397, 7
  %v623 = vrot.slane %v398, 7
  %v624 = vrot.slane %v399, 7
  %v625 = vrot.slane %v400, 7
  %v626 = vrot.slane %v401, 7
  %v627 = vsel %vm621, %v622, %v626
  %v628 = vrot.slane %v402, 7
  %v629 = vsel %vm621, %v623, %v628
  %v630 = vrot.slane %v403, 7
  %v631 = vsel %vm621, %v624, %v630
  %v632 = vrot.slane %v404, 7
  %v633 = vsel %vm621, %v625, %v632
  %v634 = vrot.slane %v405, 7
  %v635 = vrot.slane %v406, 7
  %v636 = vrot.slane %v407, 7
  %v637 = vrot.slane %v408, 7
  %v638 = vrot.slane %v409, 7
  %v639 = vsel %vm621, %v634, %v638
  %v640 = vrot.slane %v410, 7
  %v641 = vsel %vm621, %v635, %v640
  %v642 = vrot.slane %v411, 7
  %v643 = vsel %vm621, %v636, %v642
  %v644 = vrot.slane %v412, 7
  %v645 = vsel %vm621, %v637, %v644
  %v646 = vrot.slane %v413, 7
  %v647 = vrot.slane %v414, 7
  %v648 = vrot.slane %v415, 7
  %v649 = vrot.slane %v416, 7
  %v650 = vrot.slane %v417, 7
  %v651 = vsel %vm621, %v646, %v650
  %v652 = vrot.slane %v418, 7
  %v653 = vsel %vm621, %v647, %v652
  %v654 = vrot.slane %v419, 7
  %v655 = vsel %vm621, %v648, %v654
  %v656 = vrot.slane %v420, 7
  %v657 = vsel %vm621, %v649, %v656
  %v658 = vrot.slane %v421, 7
  %v659 = vrot.slane %v422, 7
  %v660 = vrot.slane %v423, 7
  %v661 = vrot.slane %v424, 7
  %v662 = vrot.slane %v425, 7
  %v663 = vsel %vm621, %v658, %v662
  %v664 = vrot.slane %v426, 7
  %v665 = vsel %vm621, %v659, %v664
  %v666 = vrot.slane %v427, 7
  %v667 = vsel %vm621, %v660, %v666
  %v668 = vrot.slane %v428, 7
  %v669 = vsel %vm621, %v661, %v668
  %v670 = vrot.slane %v429, 7
  %v671 = vrot.slane %v430, 7
  %v672 = vrot.slane %v431, 7
  %v673 = vrot.slane %v432, 7
  %v674 = vrot.slane %v433, 7
  %v675 = vsel %vm621, %v670, %v674
  %v676 = vrot.slane %v434, 7
  %v677 = vsel %vm621, %v671, %v676
  %v678 = vrot.slane %v435, 7
  %v679 = vsel %vm621, %v672, %v678
  %v680 = vrot.slane %v436, 7
  %v681 = vsel %vm621, %v673, %v680
  %v682 = vrot.slane %v437, 7
  %v683 = vrot.slane %v438, 7
  %v684 = vrot.slane %v439, 7
  %v685 = vrot.slane %v440, 7
  %v686 = vrot.slane %v441, 7
  %v687 = vsel %vm621, %v682, %v686
  %v688 = vrot.slane %v442, 7
  %v689 = vsel %vm621, %v683, %v688
  %v690 = vrot.slane %v443, 7
  %v691 = vsel %vm621, %v684, %v690
  %v692 = vrot.slane %v444, 7
  %v693 = vsel %vm621, %v685, %v692
  %v694 = vrot.slane %v445, 7
  %v695 = vrot.slane %v446, 7
  %v696 = vrot.slane %v447, 7
  %v697 = vrot.slane %v448, 7
  %v698 = vrot.slane %v449, 7
  %v699 = vsel %vm621, %v694, %v698
  %v700 = vrot.slane %v450, 7
  %v701 = vsel %vm621, %v695, %v700
  %v702 = vrot.slane %v451, 7
  %v703 = vsel %vm621, %v696, %v702
  %v704 = vrot.slane %v452, 7
  %v705 = vsel %vm621, %v697, %v704
  %v706 = vrot.slane %v453, 7
  %v707 = vrot.slane %v454, 7
  %v708 = vrot.slane %v455, 7
  %v709 = vrot.slane %v456, 7
  %v710 = vrot.slane %v457, 7
  %v711 = vsel %vm621, %v706, %v710
  %v712 = vrot.slane %v458, 7
  %v713 = vsel %vm621, %v707, %v712
  %v714 = vrot.slane %v459, 7
  %v715 = vsel %vm621, %v708, %v714
  %v716 = vrot.slane %v460, 7
  %v717 = vsel %vm621, %v709, %v716
  %v718 = vrot.slane %v461, 7
  %v719 = vrot.slane %v462, 7
  %v720 = vrot.slane %v463, 7
  %v721 = vrot.slane %v464, 7
  %v722 = vrot.slane %v465, 7
  %v723 = vsel %vm621, %v718, %v722
  %v724 = vrot.slane %v466, 7
  %v725 = vsel %vm621, %v719, %v724
  %v726 = vrot.slane %v467, 7
  %v727 = vsel %vm621, %v720, %v726
  %v728 = vrot.slane %v468, 7
  %v729 = vsel %vm621, %v721, %v728
  %v730 = vrot.slane %v469, 7
  %v731 = vrot.slane %v470, 7
  %v732 = vrot.slane %v471, 7
  %v733 = vrot.slane %v472, 7
  %v734 = vrot.slane %v473, 7
  %v735 = vsel %vm621, %v730, %v734
  %v736 = vrot.slane %v474, 7
  %v737 = vsel %vm621, %v731, %v736
  %v738 = vrot.slane %v475, 7
  %v739 = vsel %vm621, %v732, %v738
  %v740 = vrot.slane %v476, 7
  %v741 = vsel %vm621, %v733, %v740
  %v742 = vrot.slane %v477, 7
  %v743 = vrot.slane %v478, 7
  %v744 = vrot.slane %v479, 7
  %v745 = vrot.slane %v480, 7
  %v746 = vrot.slane %v481, 7
  %v747 = vsel %vm621, %v742, %v746
  %v748 = vrot.slane %v482, 7
  %v749 = vsel %vm621, %v743, %v748
  %v750 = vrot.slane %v483, 7
  %v751 = vsel %vm621, %v744, %v750
  %v752 = vrot.slane %v484, 7
  %v753 = vsel %vm621, %v745, %v752
  %v754 = vrot.slane %v485, 7
  %v755 = vrot.slane %v486, 7
  %v756 = vrot.slane %v487, 7
  %v757 = vrot.slane %v488, 7
  %v758 = vrot.slane %v489, 7
  %v759 = vsel %vm621, %v754, %v758
  %v760 = vrot.slane %v490, 7
  %v761 = vsel %vm621, %v755, %v760
  %v762 = vrot.slane %v491, 7
  %v763 = vsel %vm621, %v756, %v762
  %v764 = vrot.slane %v492, 7
  %v765 = vsel %vm621, %v757, %v764
  %v766 = vrot.slane %v493, 7
  %v767 = vrot.slane %v494, 7
  %v768 = vrot.slane %v495, 7
  %v769 = vrot.slane %v496, 7
  %v770 = vrot.slane %v497, 7
  %v771 = vsel %vm621, %v766, %v770
  %v772 = vrot.slane %v498, 7
  %v773 = vsel %vm621, %v767, %v772
  %v774 = vrot.slane %v499, 7
  %v775 = vsel %vm621, %v768, %v774
  %v776 = vrot.slane %v500, 7
  %v777 = vsel %vm621, %v769, %v776
  %v778 = vrot.slane %v501, 7
  %v779 = vrot.slane %v502, 7
  %v780 = vrot.slane %v503, 7
  %v781 = vrot.slane %v504, 7
  %v782 = vrot.slane %v505, 7
  %v783 = vsel %vm621, %v778, %v782
  %v784 = vrot.slane %v506, 7
  %v785 = vsel %vm621, %v779, %v784
  %v786 = vrot.slane %v507, 7
  %v787 = vsel %vm621, %v780, %v786
  %v788 = vrot.slane %v508, 7
  %v789 = vsel %vm621, %v781, %v788
  %s902 = scalar_lea.vmem [#allocation2], 64
  %903 = vst [vmem:[%s902] sm:$0xfe] %v622
  %904 = vst [vmem:[%s902 + $0x8] sm:$0xfe] %v623
  %905 = vst [vmem:[%s902 + $0x10] sm:$0xfe] %v624
  %vm906 = vcmask 785409
  %907 = vst.msk [vmem:[%s902 + $0x18] sm:$0xfe] %vm906, %v625
  %908 = vst [vmem:[%s902 + $0x20] sm:$0x3f] %v627
  %909 = vst [vmem:[%s902 + $0x28] sm:$0x3f] %v629
  %910 = vst [vmem:[%s902 + $0x30] sm:$0x3f] %v631
  %911 = vst.msk [vmem:[%s902 + $0x38] sm:$0x3f] %vm19, %v633
  %912 = vst [vmem:[%s902 + $0x40] sm:$0xfe] %v634
  %913 = vst [vmem:[%s902 + $0x48] sm:$0xfe] %v635
  %914 = vst [vmem:[%s902 + $0x50] sm:$0xfe] %v636
  %915 = vst.msk [vmem:[%s902 + $0x58] sm:$0xfe] %vm906, %v637
  %916 = vst [vmem:[%s902 + $0x60] sm:$0x3f] %v639
  %917 = vst [vmem:[%s902 + $0x68] sm:$0x3f] %v641
  %918 = vst [vmem:[%s902 + $0x70] sm:$0x3f] %v643
  %919 = vst.msk [vmem:[%s902 + $0x78] sm:$0x3f] %vm19, %v645
  %920 = vst [vmem:[%s902 + $0x80] sm:$0xfe] %v646
  %921 = vst [vmem:[%s902 + $0x88] sm:$0xfe] %v647
  %922 = vst [vmem:[%s902 + $0x90] sm:$0xfe] %v648
  %923 = vst.msk [vmem:[%s902 + $0x98] sm:$0xfe] %vm906, %v649
  %924 = vst [vmem:[%s902 + $0xa0] sm:$0x3f] %v651
  %925 = vst [vmem:[%s902 + $0xa8] sm:$0x3f] %v653
  %926 = vst [vmem:[%s902 + $0xb0] sm:$0x3f] %v655
  %927 = vst.msk [vmem:[%s902 + $0xb8] sm:$0x3f] %vm19, %v657
  %928 = vst [vmem:[%s902 + $0xc0] sm:$0xfe] %v658
  %929 = vst [vmem:[%s902 + $0xc8] sm:$0xfe] %v659
  %930 = vst [vmem:[%s902 + $0xd0] sm:$0xfe] %v660
  %931 = vst.msk [vmem:[%s902 + $0xd8] sm:$0xfe] %vm906, %v661
  %932 = vst [vmem:[%s902 + $0xe0] sm:$0x3f] %v663
  %933 = vst [vmem:[%s902 + $0xe8] sm:$0x3f] %v665
  %934 = vst [vmem:[%s902 + $0xf0] sm:$0x3f] %v667
  %935 = vst.msk [vmem:[%s902 + $0xf8] sm:$0x3f] %vm19, %v669
  %936 = vst [vmem:[%s902 + $0x100] sm:$0xfe] %v670
  %937 = vst [vmem:[%s902 + $0x108] sm:$0xfe] %v671
  %938 = vst [vmem:[%s902 + $0x110] sm:$0xfe] %v672
  %939 = vst.msk [vmem:[%s902 + $0x118] sm:$0xfe] %vm906, %v673
  %940 = vst [vmem:[%s902 + $0x120] sm:$0x3f] %v675
  %941 = vst [vmem:[%s902 + $0x128] sm:$0x3f] %v677
  %942 = vst [vmem:[%s902 + $0x130] sm:$0x3f] %v679
  %943 = vst.msk [vmem:[%s902 + $0x138] sm:$0x3f] %vm19, %v681
  %944 = vst [vmem:[%s902 + $0x140] sm:$0xfe] %v682
  %945 = vst [vmem:[%s902 + $0x148] sm:$0xfe] %v683
  %946 = vst [vmem:[%s902 + $0x150] sm:$0xfe] %v684
  %947 = vst.msk [vmem:[%s902 + $0x158] sm:$0xfe] %vm906, %v685
  %948 = vst [vmem:[%s902 + $0x160] sm:$0x3f] %v687
  %949 = vst [vmem:[%s902 + $0x168] sm:$0x3f] %v689
  %950 = vst [vmem:[%s902 + $0x170] sm:$0x3f] %v691
  %951 = vst.msk [vmem:[%s902 + $0x178] sm:$0x3f] %vm19, %v693
  %952 = vst [vmem:[%s902 + $0x180] sm:$0xfe] %v694
  %953 = vst [vmem:[%s902 + $0x188] sm:$0xfe] %v695
  %954 = vst [vmem:[%s902 + $0x190] sm:$0xfe] %v696
  %955 = vst.msk [vmem:[%s902 + $0x198] sm:$0xfe] %vm906, %v697
  %956 = vst [vmem:[%s902 + $0x1a0] sm:$0x3f] %v699
  %957 = vst [vmem:[%s902 + $0x1a8] sm:$0x3f] %v701
  %958 = vst [vmem:[%s902 + $0x1b0] sm:$0x3f] %v703
  %959 = vst.msk [vmem:[%s902 + $0x1b8] sm:$0x3f] %vm19, %v705
  %960 = vst [vmem:[%s902 + $0x1c0] sm:$0xfe] %v706
  %961 = vst [vmem:[%s902 + $0x1c8] sm:$0xfe] %v707
  %962 = vst [vmem:[%s902 + $0x1d0] sm:$0xfe] %v708
  %963 = vst.msk [vmem:[%s902 + $0x1d8] sm:$0xfe] %vm906, %v709
  %964 = vst [vmem:[%s902 + $0x1e0] sm:$0x3f] %v711
  %965 = vst [vmem:[%s902 + $0x1e8] sm:$0x3f] %v713
  %966 = vst [vmem:[%s902 + $0x1f0] sm:$0x3f] %v715
  %967 = vst.msk [vmem:[%s902 + $0x1f8] sm:$0x3f] %vm19, %v717
  %968 = vst [vmem:[%s902 + $0x200] sm:$0xfe] %v718
  %969 = vst [vmem:[%s902 + $0x208] sm:$0xfe] %v719
  %970 = vst [vmem:[%s902 + $0x210] sm:$0xfe] %v720
  %971 = vst.msk [vmem:[%s902 + $0x218] sm:$0xfe] %vm906, %v721
  %972 = vst [vmem:[%s902 + $0x220] sm:$0x3f] %v723
  %973 = vst [vmem:[%s902 + $0x228] sm:$0x3f] %v725
  %974 = vst [vmem:[%s902 + $0x230] sm:$0x3f] %v727
  %975 = vst.msk [vmem:[%s902 + $0x238] sm:$0x3f] %vm19, %v729
  %976 = vst [vmem:[%s902 + $0x240] sm:$0xfe] %v730
  %977 = vst [vmem:[%s902 + $0x248] sm:$0xfe] %v731
  %978 = vst [vmem:[%s902 + $0x250] sm:$0xfe] %v732
  %979 = vst.msk [vmem:[%s902 + $0x258] sm:$0xfe] %vm906, %v733
  %980 = vst [vmem:[%s902 + $0x260] sm:$0x3f] %v735
  %981 = vst [vmem:[%s902 + $0x268] sm:$0x3f] %v737
  %982 = vst [vmem:[%s902 + $0x270] sm:$0x3f] %v739
  %983 = vst.msk [vmem:[%s902 + $0x278] sm:$0x3f] %vm19, %v741
  %984 = vst [vmem:[%s902 + $0x280] sm:$0xfe] %v742
  %985 = vst [vmem:[%s902 + $0x288] sm:$0xfe] %v743
  %986 = vst [vmem:[%s902 + $0x290] sm:$0xfe] %v744
  %987 = vst.msk [vmem:[%s902 + $0x298] sm:$0xfe] %vm906, %v745
  %988 = vst [vmem:[%s902 + $0x2a0] sm:$0x3f] %v747
  %989 = vst [vmem:[%s902 + $0x2a8] sm:$0x3f] %v749
  %990 = vst [vmem:[%s902 + $0x2b0] sm:$0x3f] %v751
  %991 = vst.msk [vmem:[%s902 + $0x2b8] sm:$0x3f] %vm19, %v753
  %992 = vst [vmem:[%s902 + $0x2c0] sm:$0xfe] %v754
  %993 = vst [vmem:[%s902 + $0x2c8] sm:$0xfe] %v755
  %994 = vst [vmem:[%s902 + $0x2d0] sm:$0xfe] %v756
  %995 = vst.msk [vmem:[%s902 + $0x2d8] sm:$0xfe] %vm906, %v757
  %996 = vst [vmem:[%s902 + $0x2e0] sm:$0x3f] %v759
  %997 = vst [vmem:[%s902 + $0x2e8] sm:$0x3f] %v761
  %998 = vst [vmem:[%s902 + $0x2f0] sm:$0x3f] %v763
  %999 = vst.msk [vmem:[%s902 + $0x2f8] sm:$0x3f] %vm19, %v765
  %1000 = vst [vmem:[%s902 + $0x300] sm:$0xfe] %v766
  %1001 = vst [vmem:[%s902 + $0x308] sm:$0xfe] %v767
  %1002 = vst [vmem:[%s902 + $0x310] sm:$0xfe] %v768
  %1003 = vst.msk [vmem:[%s902 + $0x318] sm:$0xfe] %vm906, %v769
  %1004 = vst [vmem:[%s902 + $0x320] sm:$0x3f] %v771
  %1005 = vst [vmem:[%s902 + $0x328] sm:$0x3f] %v773
  %1006 = vst [vmem:[%s902 + $0x330] sm:$0x3f] %v775
  %1007 = vst.msk [vmem:[%s902 + $0x338] sm:$0x3f] %vm19, %v777
  %1008 = vst [vmem:[%s902 + $0x340] sm:$0xfe] %v778
  %1009 = vst [vmem:[%s902 + $0x348] sm:$0xfe] %v779
  %1010 = vst [vmem:[%s902 + $0x350] sm:$0xfe] %v780
  %1011 = vst.msk [vmem:[%s902 + $0x358] sm:$0xfe] %vm906, %v781
  %1012 = vst [vmem:[%s902 + $0x360] sm:$0x3f] %v783
  %1013 = vst [vmem:[%s902 + $0x368] sm:$0x3f] %v785
  %1014 = vst [vmem:[%s902 + $0x370] sm:$0x3f] %v787
  %1015 = vst.msk [vmem:[%s902 + $0x378] sm:$0x3f] %vm19, %v789
  %s1016 = scalar_lea.vmem [#allocation2], 1088
  %1017 = vst [vmem:[%s1016] sm:$0xff] %v397
  %1018 = vst [vmem:[%s1016 + $0x8] sm:$0xff] %v398
  %1019 = vst [vmem:[%s1016 + $0x10] sm:$0xff] %v399
  %1020 = vst.msk [vmem:[%s1016 + $0x18] sm:$0xff] %vm14, %v400
  %1021 = vst [vmem:[%s1016 + $0x20] sm:$0x3f] %v401
  %1022 = vst [vmem:[%s1016 + $0x28] sm:$0x3f] %v402
  %1023 = vst [vmem:[%s1016 + $0x30] sm:$0x3f] %v403
  %1024 = vst.msk [vmem:[%s1016 + $0x38] sm:$0x3f] %vm19, %v404
  %1025 = vst [vmem:[%s1016 + $0x40] sm:$0xff] %v405
  %1026 = vst [vmem:[%s1016 + $0x48] sm:$0xff] %v406
  %1027 = vst [vmem:[%s1016 + $0x50] sm:$0xff] %v407
  %1028 = vst.msk [vmem:[%s1016 + $0x58] sm:$0xff] %vm14, %v408
  %1029 = vst [vmem:[%s1016 + $0x60] sm:$0x3f] %v409
  %1030 = vst [vmem:[%s1016 + $0x68] sm:$0x3f] %v410
  %1031 = vst [vmem:[%s1016 + $0x70] sm:$0x3f] %v411
  %1032 = vst.msk [vmem:[%s1016 + $0x78] sm:$0x3f] %vm19, %v412
  %1033 = vst [vmem:[%s1016 + $0x80] sm:$0xff] %v413
  %1034 = vst [vmem:[%s1016 + $0x88] sm:$0xff] %v414
  %1035 = vst [vmem:[%s1016 + $0x90] sm:$0xff] %v415
  %1036 = vst.msk [vmem:[%s1016 + $0x98] sm:$0xff] %vm14, %v416
  %1037 = vst [vmem:[%s1016 + $0xa0] sm:$0x3f] %v417
  %1038 = vst [vmem:[%s1016 + $0xa8] sm:$0x3f] %v418
  %1039 = vst [vmem:[%s1016 + $0xb0] sm:$0x3f] %v419
  %1040 = vst.msk [vmem:[%s1016 + $0xb8] sm:$0x3f] %vm19, %v420
  %1041 = vst [vmem:[%s1016 + $0xc0] sm:$0xff] %v421
  %1042 = vst [vmem:[%s1016 + $0xc8] sm:$0xff] %v422
  %1043 = vst [vmem:[%s1016 + $0xd0] sm:$0xff] %v423
  %1044 = vst.msk [vmem:[%s1016 + $0xd8] sm:$0xff] %vm14, %v424
  %1045 = vst [vmem:[%s1016 + $0xe0] sm:$0x3f] %v425
  %1046 = vst [vmem:[%s1016 + $0xe8] sm:$0x3f] %v426
  %1047 = vst [vmem:[%s1016 + $0xf0] sm:$0x3f] %v427
  %1048 = vst.msk [vmem:[%s1016 + $0xf8] sm:$0x3f] %vm19, %v428
  %1049 = vst [vmem:[%s1016 + $0x100] sm:$0xff] %v429
  %1050 = vst [vmem:[%s1016 + $0x108] sm:$0xff] %v430
  %1051 = vst [vmem:[%s1016 + $0x110] sm:$0xff] %v431
  %1052 = vst.msk [vmem:[%s1016 + $0x118] sm:$0xff] %vm14, %v432
  %1053 = vst [vmem:[%s1016 + $0x120] sm:$0x3f] %v433
  %1054 = vst [vmem:[%s1016 + $0x128] sm:$0x3f] %v434
  %1055 = vst [vmem:[%s1016 + $0x130] sm:$0x3f] %v435
  %1056 = vst.msk [vmem:[%s1016 + $0x138] sm:$0x3f] %vm19, %v436
  %1057 = vst [vmem:[%s1016 + $0x140] sm:$0xff] %v437
  %1058 = vst [vmem:[%s1016 + $0x148] sm:$0xff] %v438
  %1059 = vst [vmem:[%s1016 + $0x150] sm:$0xff] %v439
  %1060 = vst.msk [vmem:[%s1016 + $0x158] sm:$0xff] %vm14, %v440
  %1061 = vst [vmem:[%s1016 + $0x160] sm:$0x3f] %v441
  %1062 = vst [vmem:[%s1016 + $0x168] sm:$0x3f] %v442
  %1063 = vst [vmem:[%s1016 + $0x170] sm:$0x3f] %v443
  %1064 = vst.msk [vmem:[%s1016 + $0x178] sm:$0x3f] %vm19, %v444
  %1065 = vst [vmem:[%s1016 + $0x180] sm:$0xff] %v445
  %1066 = vst [vmem:[%s1016 + $0x188] sm:$0xff] %v446
  %1067 = vst [vmem:[%s1016 + $0x190] sm:$0xff] %v447
  %1068 = vst.msk [vmem:[%s1016 + $0x198] sm:$0xff] %vm14, %v448
  %1069 = vst [vmem:[%s1016 + $0x1a0] sm:$0x3f] %v449
  %1070 = vst [vmem:[%s1016 + $0x1a8] sm:$0x3f] %v450
  %1071 = vst [vmem:[%s1016 + $0x1b0] sm:$0x3f] %v451
  %1072 = vst.msk [vmem:[%s1016 + $0x1b8] sm:$0x3f] %vm19, %v452
  %1073 = vst [vmem:[%s1016 + $0x1c0] sm:$0xff] %v453
  %1074 = vst [vmem:[%s1016 + $0x1c8] sm:$0xff] %v454
  %1075 = vst [vmem:[%s1016 + $0x1d0] sm:$0xff] %v455
  %1076 = vst.msk [vmem:[%s1016 + $0x1d8] sm:$0xff] %vm14, %v456
  %1077 = vst [vmem:[%s1016 + $0x1e0] sm:$0x3f] %v457
  %1078 = vst [vmem:[%s1016 + $0x1e8] sm:$0x3f] %v458
  %1079 = vst [vmem:[%s1016 + $0x1f0] sm:$0x3f] %v459
  %1080 = vst.msk [vmem:[%s1016 + $0x1f8] sm:$0x3f] %vm19, %v460
  %1081 = vst [vmem:[%s1016 + $0x200] sm:$0xff] %v461
  %1082 = vst [vmem:[%s1016 + $0x208] sm:$0xff] %v462
  %1083 = vst [vmem:[%s1016 + $0x210] sm:$0xff] %v463
  %1084 = vst.msk [vmem:[%s1016 + $0x218] sm:$0xff] %vm14, %v464
  %1085 = vst [vmem:[%s1016 + $0x220] sm:$0x3f] %v465
  %1086 = vst [vmem:[%s1016 + $0x228] sm:$0x3f] %v466
  %1087 = vst [vmem:[%s1016 + $0x230] sm:$0x3f] %v467
  %1088 = vst.msk [vmem:[%s1016 + $0x238] sm:$0x3f] %vm19, %v468
  %1089 = vst [vmem:[%s1016 + $0x240] sm:$0xff] %v469
  %1090 = vst [vmem:[%s1016 + $0x248] sm:$0xff] %v470
  %1091 = vst [vmem:[%s1016 + $0x250] sm:$0xff] %v471
  %1092 = vst.msk [vmem:[%s1016 + $0x258] sm:$0xff] %vm14, %v472
  %1093 = vst [vmem:[%s1016 + $0x260] sm:$0x3f] %v473
  %1094 = vst [vmem:[%s1016 + $0x268] sm:$0x3f] %v474
  %1095 = vst [vmem:[%s1016 + $0x270] sm:$0x3f] %v475
  %1096 = vst.msk [vmem:[%s1016 + $0x278] sm:$0x3f] %vm19, %v476
  %1097 = vst [vmem:[%s1016 + $0x280] sm:$0xff] %v477
  %1098 = vst [vmem:[%s1016 + $0x288] sm:$0xff] %v478
  %1099 = vst [vmem:[%s1016 + $0x290] sm:$0xff] %v479
  %1100 = vst.msk [vmem:[%s1016 + $0x298] sm:$0xff] %vm14, %v480
  %1101 = vst [vmem:[%s1016 + $0x2a0] sm:$0x3f] %v481
  %1102 = vst [vmem:[%s1016 + $0x2a8] sm:$0x3f] %v482
  %1103 = vst [vmem:[%s1016 + $0x2b0] sm:$0x3f] %v483
  %1104 = vst.msk [vmem:[%s1016 + $0x2b8] sm:$0x3f] %vm19, %v484
  %1105 = vst [vmem:[%s1016 + $0x2c0] sm:$0xff] %v485
  %1106 = vst [vmem:[%s1016 + $0x2c8] sm:$0xff] %v486
  %1107 = vst [vmem:[%s1016 + $0x2d0] sm:$0xff] %v487
  %1108 = vst.msk [vmem:[%s1016 + $0x2d8] sm:$0xff] %vm14, %v488
  %1109 = vst [vmem:[%s1016 + $0x2e0] sm:$0x3f] %v489
  %1110 = vst [vmem:[%s1016 + $0x2e8] sm:$0x3f] %v490
  %1111 = vst [vmem:[%s1016 + $0x2f0] sm:$0x3f] %v491
  %1112 = vst.msk [vmem:[%s1016 + $0x2f8] sm:$0x3f] %vm19, %v492
  %1113 = vst [vmem:[%s1016 + $0x300] sm:$0xff] %v493
  %1114 = vst [vmem:[%s1016 + $0x308] sm:$0xff] %v494
  %1115 = vst [vmem:[%s1016 + $0x310] sm:$0xff] %v495
  %1116 = vst.msk [vmem:[%s1016 + $0x318] sm:$0xff] %vm14, %v496
  %1117 = vst [vmem:[%s1016 + $0x320] sm:$0x3f] %v497
  %1118 = vst [vmem:[%s1016 + $0x328] sm:$0x3f] %v498
  %1119 = vst [vmem:[%s1016 + $0x330] sm:$0x3f] %v499
  %1120 = vst.msk [vmem:[%s1016 + $0x338] sm:$0x3f] %vm19, %v500
  %1121 = vst [vmem:[%s1016 + $0x340] sm:$0xff] %v501
  %1122 = vst [vmem:[%s1016 + $0x348] sm:$0xff] %v502
  %1123 = vst [vmem:[%s1016 + $0x350] sm:$0xff] %v503
  %1124 = vst.msk [vmem:[%s1016 + $0x358] sm:$0xff] %vm14, %v504
  %1125 = vst [vmem:[%s1016 + $0x360] sm:$0x3f] %v505
  %1126 = vst [vmem:[%s1016 + $0x368] sm:$0x3f] %v506
  %1127 = vst [vmem:[%s1016 + $0x370] sm:$0x3f] %v507
  %1128 = vst.msk [vmem:[%s1016 + $0x378] sm:$0x3f] %vm19, %v508
  %vm1129 = vcmask 1046528
  %v1130 = vrot.slane %v397, 1
  %v1131 = vrot.slane %v401, 1
  %v1132 = vsel %vm1129, %v1130, %v1131
  %v1133 = vrot.slane %v398, 1
  %v1134 = vrot.slane %v402, 1
  %v1135 = vsel %vm1129, %v1133, %v1134
  %v1136 = vrot.slane %v399, 1
  %v1137 = vrot.slane %v403, 1
  %v1138 = vsel %vm1129, %v1136, %v1137
  %v1139 = vrot.slane %v400, 1
  %v1140 = vrot.slane %v404, 1
  %v1141 = vsel %vm1129, %v1139, %v1140
  %v1142 = vrot.slane %v405, 1
  %v1143 = vrot.slane %v409, 1
  %v1144 = vsel %vm1129, %v1142, %v1143
  %v1145 = vrot.slane %v406, 1
  %v1146 = vrot.slane %v410, 1
  %v1147 = vsel %vm1129, %v1145, %v1146
  %v1148 = vrot.slane %v407, 1
  %v1149 = vrot.slane %v411, 1
  %v1150 = vsel %vm1129, %v1148, %v1149
  %v1151 = vrot.slane %v408, 1
  %v1152 = vrot.slane %v412, 1
  %v1153 = vsel %vm1129, %v1151, %v1152
  %v1154 = vrot.slane %v413, 1
  %v1155 = vrot.slane %v417, 1
  %v1156 = vsel %vm1129, %v1154, %v1155
  %v1157 = vrot.slane %v414, 1
  %v1158 = vrot.slane %v418, 1
  %v1159 = vsel %vm1129, %v1157, %v1158
  %v1160 = vrot.slane %v415, 1
  %v1161 = vrot.slane %v419, 1
  %v1162 = vsel %vm1129, %v1160, %v1161
  %v1163 = vrot.slane %v416, 1
  %v1164 = vrot.slane %v420, 1
  %v1165 = vsel %vm1129, %v1163, %v1164
  %v1166 = vrot.slane %v421, 1
  %v1167 = vrot.slane %v425, 1
  %v1168 = vsel %vm1129, %v1166, %v1167
  %v1169 = vrot.slane %v422, 1
  %v1170 = vrot.slane %v426, 1
  %v1171 = vsel %vm1129, %v1169, %v1170
  %v1172 = vrot.slane %v423, 1
  %v1173 = vrot.slane %v427, 1
  %v1174 = vsel %vm1129, %v1172, %v1173
  %v1175 = vrot.slane %v424, 1
  %v1176 = vrot.slane %v428, 1
  %v1177 = vsel %vm1129, %v1175, %v1176
  %v1178 = vrot.slane %v429, 1
  %v1179 = vrot.slane %v433, 1
  %v1180 = vsel %vm1129, %v1178, %v1179
  %v1181 = vrot.slane %v430, 1
  %v1182 = vrot.slane %v434, 1
  %v1183 = vsel %vm1129, %v1181, %v1182
  %v1184 = vrot.slane %v431, 1
  %v1185 = vrot.slane %v435, 1
  %v1186 = vsel %vm1129, %v1184, %v1185
  %v1187 = vrot.slane %v432, 1
  %v1188 = vrot.slane %v436, 1
  %v1189 = vsel %vm1129, %v1187, %v1188
  %v1190 = vrot.slane %v437, 1
  %v1191 = vrot.slane %v441, 1
  %v1192 = vsel %vm1129, %v1190, %v1191
  %v1193 = vrot.slane %v438, 1
  %v1194 = vrot.slane %v442, 1
  %v1195 = vsel %vm1129, %v1193, %v1194
  %v1196 = vrot.slane %v439, 1
  %v1197 = vrot.slane %v443, 1
  %v1198 = vsel %vm1129, %v1196, %v1197
  %v1199 = vrot.slane %v440, 1
  %v1200 = vrot.slane %v444, 1
  %v1201 = vsel %vm1129, %v1199, %v1200
  %v1202 = vrot.slane %v445, 1
  %v1203 = vrot.slane %v449, 1
  %v1204 = vsel %vm1129, %v1202, %v1203
  %v1205 = vrot.slane %v446, 1
  %v1206 = vrot.slane %v450, 1
  %v1207 = vsel %vm1129, %v1205, %v1206
  %v1208 = vrot.slane %v447, 1
  %v1209 = vrot.slane %v451, 1
  %v1210 = vsel %vm1129, %v1208, %v1209
  %v1211 = vrot.slane %v448, 1
  %v1212 = vrot.slane %v452, 1
  %v1213 = vsel %vm1129, %v1211, %v1212
  %v1214 = vrot.slane %v453, 1
  %v1215 = vrot.slane %v457, 1
  %v1216 = vsel %vm1129, %v1214, %v1215
  %v1217 = vrot.slane %v454, 1
  %v1218 = vrot.slane %v458, 1
  %v1219 = vsel %vm1129, %v1217, %v1218
  %v1220 = vrot.slane %v455, 1
  %v1221 = vrot.slane %v459, 1
  %v1222 = vsel %vm1129, %v1220, %v1221
  %v1223 = vrot.slane %v456, 1
  %v1224 = vrot.slane %v460, 1
  %v1225 = vsel %vm1129, %v1223, %v1224
  %v1226 = vrot.slane %v461, 1
  %v1227 = vrot.slane %v465, 1
  %v1228 = vsel %vm1129, %v1226, %v1227
  %v1229 = vrot.slane %v462, 1
  %v1230 = vrot.slane %v466, 1
  %v1231 = vsel %vm1129, %v1229, %v1230
  %v1232 = vrot.slane %v463, 1
  %v1233 = vrot.slane %v467, 1
  %v1234 = vsel %vm1129, %v1232, %v1233
  %v1235 = vrot.slane %v464, 1
  %v1236 = vrot.slane %v468, 1
  %v1237 = vsel %vm1129, %v1235, %v1236
  %v1238 = vrot.slane %v469, 1
  %v1239 = vrot.slane %v473, 1
  %v1240 = vsel %vm1129, %v1238, %v1239
  %v1241 = vrot.slane %v470, 1
  %v1242 = vrot.slane %v474, 1
  %v1243 = vsel %vm1129, %v1241, %v1242
  %v1244 = vrot.slane %v471, 1
  %v1245 = vrot.slane %v475, 1
  %v1246 = vsel %vm1129, %v1244, %v1245
  %v1247 = vrot.slane %v472, 1
  %v1248 = vrot.slane %v476, 1
  %v1249 = vsel %vm1129, %v1247, %v1248
  %v1250 = vrot.slane %v477, 1
  %v1251 = vrot.slane %v481, 1
  %v1252 = vsel %vm1129, %v1250, %v1251
  %v1253 = vrot.slane %v478, 1
  %v1254 = vrot.slane %v482, 1
  %v1255 = vsel %vm1129, %v1253, %v1254
  %v1256 = vrot.slane %v479, 1
  %v1257 = vrot.slane %v483, 1
  %v1258 = vsel %vm1129, %v1256, %v1257
  %v1259 = vrot.slane %v480, 1
  %v1260 = vrot.slane %v484, 1
  %v1261 = vsel %vm1129, %v1259, %v1260
  %v1262 = vrot.slane %v485, 1
  %v1263 = vrot.slane %v489, 1
  %v1264 = vsel %vm1129, %v1262, %v1263
  %v1265 = vrot.slane %v486, 1
  %v1266 = vrot.slane %v490, 1
  %v1267 = vsel %vm1129, %v1265, %v1266
  %v1268 = vrot.slane %v487, 1
  %v1269 = vrot.slane %v491, 1
  %v1270 = vsel %vm1129, %v1268, %v1269
  %v1271 = vrot.slane %v488, 1
  %v1272 = vrot.slane %v492, 1
  %v1273 = vsel %vm1129, %v1271, %v1272
  %v1274 = vrot.slane %v493, 1
  %v1275 = vrot.slane %v497, 1
  %v1276 = vsel %vm1129, %v1274, %v1275
  %v1277 = vrot.slane %v494, 1
  %v1278 = vrot.slane %v498, 1
  %v1279 = vsel %vm1129, %v1277, %v1278
  %v1280 = vrot.slane %v495, 1
  %v1281 = vrot.slane %v499, 1
  %v1282 = vsel %vm1129, %v1280, %v1281
  %v1283 = vrot.slane %v496, 1
  %v1284 = vrot.slane %v500, 1
  %v1285 = vsel %vm1129, %v1283, %v1284
  %v1286 = vrot.slane %v501, 1
  %v1287 = vrot.slane %v505, 1
  %v1288 = vsel %vm1129, %v1286, %v1287
  %v1289 = vrot.slane %v502, 1
  %v1290 = vrot.slane %v506, 1
  %v1291 = vsel %vm1129, %v1289, %v1290
  %v1292 = vrot.slane %v503, 1
  %v1293 = vrot.slane %v507, 1
  %v1294 = vsel %vm1129, %v1292, %v1293
  %v1295 = vrot.slane %v504, 1
  %v1296 = vrot.slane %v508, 1
  %v1297 = vsel %vm1129, %v1295, %v1296
  %s1410 = scalar_lea.vmem [#allocation2], 2112
  %1411 = vst [vmem:[%s1410] sm:$0xff] %v1132
  %1412 = vst [vmem:[%s1410 + $0x8] sm:$0xff] %v1135
  %1413 = vst [vmem:[%s1410 + $0x10] sm:$0xff] %v1138
  %1414 = vst.msk [vmem:[%s1410 + $0x18] sm:$0xff] %vm14, %v1141
  %1415 = vst [vmem:[%s1410 + $0x20] sm:$0x1f] %v1131
  %1416 = vst [vmem:[%s1410 + $0x28] sm:$0x1f] %v1134
  %1417 = vst [vmem:[%s1410 + $0x30] sm:$0x1f] %v1137
  %vm1418 = vcmask 782336
  %1419 = vst.msk [vmem:[%s1410 + $0x38] sm:$0x1f] %vm1418, %v1140
  %1420 = vst [vmem:[%s1410 + $0x40] sm:$0xff] %v1144
  %1421 = vst [vmem:[%s1410 + $0x48] sm:$0xff] %v1147
  %1422 = vst [vmem:[%s1410 + $0x50] sm:$0xff] %v1150
  %1423 = vst.msk [vmem:[%s1410 + $0x58] sm:$0xff] %vm14, %v1153
  %1424 = vst [vmem:[%s1410 + $0x60] sm:$0x1f] %v1143
  %1425 = vst [vmem:[%s1410 + $0x68] sm:$0x1f] %v1146
  %1426 = vst [vmem:[%s1410 + $0x70] sm:$0x1f] %v1149
  %1427 = vst.msk [vmem:[%s1410 + $0x78] sm:$0x1f] %vm1418, %v1152
  %1428 = vst [vmem:[%s1410 + $0x80] sm:$0xff] %v1156
  %1429 = vst [vmem:[%s1410 + $0x88] sm:$0xff] %v1159
  %1430 = vst [vmem:[%s1410 + $0x90] sm:$0xff] %v1162
  %1431 = vst.msk [vmem:[%s1410 + $0x98] sm:$0xff] %vm14, %v1165
  %1432 = vst [vmem:[%s1410 + $0xa0] sm:$0x1f] %v1155
  %1433 = vst [vmem:[%s1410 + $0xa8] sm:$0x1f] %v1158
  %1434 = vst [vmem:[%s1410 + $0xb0] sm:$0x1f] %v1161
  %1435 = vst.msk [vmem:[%s1410 + $0xb8] sm:$0x1f] %vm1418, %v1164
  %1436 = vst [vmem:[%s1410 + $0xc0] sm:$0xff] %v1168
  %1437 = vst [vmem:[%s1410 + $0xc8] sm:$0xff] %v1171
  %1438 = vst [vmem:[%s1410 + $0xd0] sm:$0xff] %v1174
  %1439 = vst.msk [vmem:[%s1410 + $0xd8] sm:$0xff] %vm14, %v1177
  %1440 = vst [vmem:[%s1410 + $0xe0] sm:$0x1f] %v1167
  %1441 = vst [vmem:[%s1410 + $0xe8] sm:$0x1f] %v1170
  %1442 = vst [vmem:[%s1410 + $0xf0] sm:$0x1f] %v1173
  %1443 = vst.msk [vmem:[%s1410 + $0xf8] sm:$0x1f] %vm1418, %v1176
  %1444 = vst [vmem:[%s1410 + $0x100] sm:$0xff] %v1180
  %1445 = vst [vmem:[%s1410 + $0x108] sm:$0xff] %v1183
  %1446 = vst [vmem:[%s1410 + $0x110] sm:$0xff] %v1186
  %1447 = vst.msk [vmem:[%s1410 + $0x118] sm:$0xff] %vm14, %v1189
  %1448 = vst [vmem:[%s1410 + $0x120] sm:$0x1f] %v1179
  %1449 = vst [vmem:[%s1410 + $0x128] sm:$0x1f] %v1182
  %1450 = vst [vmem:[%s1410 + $0x130] sm:$0x1f] %v1185
  %1451 = vst.msk [vmem:[%s1410 + $0x138] sm:$0x1f] %vm1418, %v1188
  %1452 = vst [vmem:[%s1410 + $0x140] sm:$0xff] %v1192
  %1453 = vst [vmem:[%s1410 + $0x148] sm:$0xff] %v1195
  %1454 = vst [vmem:[%s1410 + $0x150] sm:$0xff] %v1198
  %1455 = vst.msk [vmem:[%s1410 + $0x158] sm:$0xff] %vm14, %v1201
  %1456 = vst [vmem:[%s1410 + $0x160] sm:$0x1f] %v1191
  %1457 = vst [vmem:[%s1410 + $0x168] sm:$0x1f] %v1194
  %1458 = vst [vmem:[%s1410 + $0x170] sm:$0x1f] %v1197
  %1459 = vst.msk [vmem:[%s1410 + $0x178] sm:$0x1f] %vm1418, %v1200
  %1460 = vst [vmem:[%s1410 + $0x180] sm:$0xff] %v1204
  %1461 = vst [vmem:[%s1410 + $0x188] sm:$0xff] %v1207
  %1462 = vst [vmem:[%s1410 + $0x190] sm:$0xff] %v1210
  %1463 = vst.msk [vmem:[%s1410 + $0x198] sm:$0xff] %vm14, %v1213
  %1464 = vst [vmem:[%s1410 + $0x1a0] sm:$0x1f] %v1203
  %1465 = vst [vmem:[%s1410 + $0x1a8] sm:$0x1f] %v1206
  %1466 = vst [vmem:[%s1410 + $0x1b0] sm:$0x1f] %v1209
  %1467 = vst.msk [vmem:[%s1410 + $0x1b8] sm:$0x1f] %vm1418, %v1212
  %1468 = vst [vmem:[%s1410 + $0x1c0] sm:$0xff] %v1216
  %1469 = vst [vmem:[%s1410 + $0x1c8] sm:$0xff] %v1219
  %1470 = vst [vmem:[%s1410 + $0x1d0] sm:$0xff] %v1222
  %1471 = vst.msk [vmem:[%s1410 + $0x1d8] sm:$0xff] %vm14, %v1225
  %1472 = vst [vmem:[%s1410 + $0x1e0] sm:$0x1f] %v1215
  %1473 = vst [vmem:[%s1410 + $0x1e8] sm:$0x1f] %v1218
  %1474 = vst [vmem:[%s1410 + $0x1f0] sm:$0x1f] %v1221
  %1475 = vst.msk [vmem:[%s1410 + $0x1f8] sm:$0x1f] %vm1418, %v1224
  %1476 = vst [vmem:[%s1410 + $0x200] sm:$0xff] %v1228
  %1477 = vst [vmem:[%s1410 + $0x208] sm:$0xff] %v1231
  %1478 = vst [vmem:[%s1410 + $0x210] sm:$0xff] %v1234
  %1479 = vst.msk [vmem:[%s1410 + $0x218] sm:$0xff] %vm14, %v1237
  %1480 = vst [vmem:[%s1410 + $0x220] sm:$0x1f] %v1227
  %1481 = vst [vmem:[%s1410 + $0x228] sm:$0x1f] %v1230
  %1482 = vst [vmem:[%s1410 + $0x230] sm:$0x1f] %v1233
  %1483 = vst.msk [vmem:[%s1410 + $0x238] sm:$0x1f] %vm1418, %v1236
  %1484 = vst [vmem:[%s1410 + $0x240] sm:$0xff] %v1240
  %1485 = vst [vmem:[%s1410 + $0x248] sm:$0xff] %v1243
  %1486 = vst [vmem:[%s1410 + $0x250] sm:$0xff] %v1246
  %1487 = vst.msk [vmem:[%s1410 + $0x258] sm:$0xff] %vm14, %v1249
  %1488 = vst [vmem:[%s1410 + $0x260] sm:$0x1f] %v1239
  %1489 = vst [vmem:[%s1410 + $0x268] sm:$0x1f] %v1242
  %1490 = vst [vmem:[%s1410 + $0x270] sm:$0x1f] %v1245
  %1491 = vst.msk [vmem:[%s1410 + $0x278] sm:$0x1f] %vm1418, %v1248
  %1492 = vst [vmem:[%s1410 + $0x280] sm:$0xff] %v1252
  %1493 = vst [vmem:[%s1410 + $0x288] sm:$0xff] %v1255
  %1494 = vst [vmem:[%s1410 + $0x290] sm:$0xff] %v1258
  %1495 = vst.msk [vmem:[%s1410 + $0x298] sm:$0xff] %vm14, %v1261
  %1496 = vst [vmem:[%s1410 + $0x2a0] sm:$0x1f] %v1251
  %1497 = vst [vmem:[%s1410 + $0x2a8] sm:$0x1f] %v1254
  %1498 = vst [vmem:[%s1410 + $0x2b0] sm:$0x1f] %v1257
  %1499 = vst.msk [vmem:[%s1410 + $0x2b8] sm:$0x1f] %vm1418, %v1260
  %1500 = vst [vmem:[%s1410 + $0x2c0] sm:$0xff] %v1264
  %1501 = vst [vmem:[%s1410 + $0x2c8] sm:$0xff] %v1267
  %1502 = vst [vmem:[%s1410 + $0x2d0] sm:$0xff] %v1270
  %1503 = vst.msk [vmem:[%s1410 + $0x2d8] sm:$0xff] %vm14, %v1273
  %1504 = vst [vmem:[%s1410 + $0x2e0] sm:$0x1f] %v1263
  %1505 = vst [vmem:[%s1410 + $0x2e8] sm:$0x1f] %v1266
  %1506 = vst [vmem:[%s1410 + $0x2f0] sm:$0x1f] %v1269
  %1507 = vst.msk [vmem:[%s1410 + $0x2f8] sm:$0x1f] %vm1418, %v1272
  %1508 = vst [vmem:[%s1410 + $0x300] sm:$0xff] %v1276
  %1509 = vst [vmem:[%s1410 + $0x308] sm:$0xff] %v1279
  %1510 = vst [vmem:[%s1410 + $0x310] sm:$0xff] %v1282
  %1511 = vst.msk [vmem:[%s1410 + $0x318] sm:$0xff] %vm14, %v1285
  %1512 = vst [vmem:[%s1410 + $0x320] sm:$0x1f] %v1275
  %1513 = vst [vmem:[%s1410 + $0x328] sm:$0x1f] %v1278
  %1514 = vst [vmem:[%s1410 + $0x330] sm:$0x1f] %v1281
  %1515 = vst.msk [vmem:[%s1410 + $0x338] sm:$0x1f] %vm1418, %v1284
  %1516 = vst [vmem:[%s1410 + $0x340] sm:$0xff] %v1288
  %1517 = vst [vmem:[%s1410 + $0x348] sm:$0xff] %v1291
  %1518 = vst [vmem:[%s1410 + $0x350] sm:$0xff] %v1294
  %1519 = vst.msk [vmem:[%s1410 + $0x358] sm:$0xff] %vm14, %v1297
  %1520 = vst [vmem:[%s1410 + $0x360] sm:$0x1f] %v1287
  %1521 = vst [vmem:[%s1410 + $0x368] sm:$0x1f] %v1290
  %1522 = vst [vmem:[%s1410 + $0x370] sm:$0x1f] %v1293
  %1523 = vst.msk [vmem:[%s1410 + $0x378] sm:$0x1f] %vm1418, %v1296
  %v1524 = vld [vmem:[%s1] sm:$0xff]
  %v1525 = vld [vmem:[%s1 + $0x8] sm:$0xff]
  %v1526 = vld [vmem:[%s1 + $0x10] sm:$0xff]
  %v1527 = vld [vmem:[%s1 + $0x18] sm:$0xff]
  %v1528 = vld [vmem:[%s1 + $0x20] sm:$0x1]
  %v1529 = vld [vmem:[%s1 + $0x28] sm:$0x1]
  %v1530 = vld [vmem:[%s1 + $0x30] sm:$0x1]
  %v1531 = vld [vmem:[%s1 + $0x38] sm:$0x1]
  %v1532 = vld [vmem:[#allocation2] sm:$0xff]
  %v1533 = vld [vmem:[#allocation2 + $0x8] sm:$0xff]
  %v1534 = vld [vmem:[#allocation2 + $0x10] sm:$0xff]
  %v1535 = vld [vmem:[#allocation2 + $0x18] sm:$0xff]
  %v1536 = vld [vmem:[#allocation2 + $0x20] sm:$0x3f]
  %v1537 = vld [vmem:[#allocation2 + $0x28] sm:$0x3f]
  %v1538 = vld [vmem:[#allocation2 + $0x30] sm:$0x3f]
  %v1539 = vld [vmem:[#allocation2 + $0x38] sm:$0x3f]
  %v1540 = vperm.slane %v1524, 0
  %v1541 = vperm.slane %v1525, 0
  %v1542 = vperm.slane %v1526, 0
  %v1543 = vperm.slane %v1527, 0
  %v1544 = vmul.f32 %v1532, %v1540
  %v1545 = vmul.f32 %v1533, %v1541
  %v1546 = vmul.f32 %v1534, %v1542
  %v1547 = vmul.f32 %v1535, %v1543
  %v1548 = vmul.f32 %v1536, %v1540
  %v1549 = vmul.f32 %v1537, %v1541
  %v1550 = vmul.f32 %v1538, %v1542
  %v1551 = vmul.f32 %v1539, %v1543
  %v1552 = vadd.f32 %v1544, 0.0
  %v1553 = vadd.f32 %v1545, 0.0
  %v1554 = vadd.f32 %v1546, 0.0
  %v1555 = vadd.f32 %v1547, 0.0
  %v1556 = vadd.f32 %v1548, 0.0
  %v1557 = vadd.f32 %v1549, 0.0
  %v1558 = vadd.f32 %v1550, 0.0
  %v1559 = vadd.f32 %v1551, 0.0
  %s1560 = scalar_lea.vmem [#allocation2], 1024
  %v1561 = vld [vmem:[%s1560] sm:$0xff]
  %v1562 = vld [vmem:[%s1560 + $0x8] sm:$0xff]
  %v1563 = vld [vmem:[%s1560 + $0x10] sm:$0xff]
  %v1564 = vld [vmem:[%s1560 + $0x18] sm:$0xff]
  %v1565 = vld [vmem:[%s1560 + $0x20] sm:$0x3f]
  %v1566 = vld [vmem:[%s1560 + $0x28] sm:$0x3f]
  %v1567 = vld [vmem:[%s1560 + $0x30] sm:$0x3f]
  %v1568 = vld [vmem:[%s1560 + $0x38] sm:$0x3f]
  %v1569 = vperm.slane %v1524, 1
  %v1570 = vperm.slane %v1525, 1
  %v1571 = vperm.slane %v1526, 1
  %v1572 = vperm.slane %v1527, 1
  %v1573 = vmul.f32 %v1561, %v1569
  %v1574 = vmul.f32 %v1562, %v1570
  %v1575 = vmul.f32 %v1563, %v1571
  %v1576 = vmul.f32 %v1564, %v1572
  %v1577 = vmul.f32 %v1565, %v1569
  %v1578 = vmul.f32 %v1566, %v1570
  %v1579 = vmul.f32 %v1567, %v1571
  %v1580 = vmul.f32 %v1568, %v1572
  %v1581 = vadd.f32 %v1552, %v1573
  %v1582 = vadd.f32 %v1553, %v1574
  %v1583 = vadd.f32 %v1554, %v1575
  %v1584 = vadd.f32 %v1555, %v1576
  %v1585 = vadd.f32 %v1556, %v1577
  %v1586 = vadd.f32 %v1557, %v1578
  %v1587 = vadd.f32 %v1558, %v1579
  %v1588 = vadd.f32 %v1559, %v1580
  %s1589 = scalar_lea.vmem [#allocation2], 2048
  %v1590 = vld [vmem:[%s1589] sm:$0xff]
  %v1591 = vld [vmem:[%s1589 + $0x8] sm:$0xff]
  %v1592 = vld [vmem:[%s1589 + $0x10] sm:$0xff]
  %v1593 = vld [vmem:[%s1589 + $0x18] sm:$0xff]
  %v1594 = vld [vmem:[%s1589 + $0x20] sm:$0x3f]
  %v1595 = vld [vmem:[%s1589 + $0x28] sm:$0x3f]
  %v1596 = vld [vmem:[%s1589 + $0x30] sm:$0x3f]
  %v1597 = vld [vmem:[%s1589 + $0x38] sm:$0x3f]
  %v1598 = vperm.slane %v1524, 2
  %v1599 = vperm.slane %v1525, 2
  %v1600 = vperm.slane %v1526, 2
  %v1601 = vperm.slane %v1527, 2
  %v1602 = vmul.f32 %v1590, %v1598
  %v1603 = vmul.f32 %v1591, %v1599
  %v1604 = vmul.f32 %v1592, %v1600
  %v1605 = vmul.f32 %v1593, %v1601
  %v1606 = vmul.f32 %v1594, %v1598
  %v1607 = vmul.f32 %v1595, %v1599
  %v1608 = vmul.f32 %v1596, %v1600
  %v1609 = vmul.f32 %v1597, %v1601
  %v1610 = vadd.f32 %v1581, %v1602
  %v1611 = vadd.f32 %v1582, %v1603
  %v1612 = vadd.f32 %v1583, %v1604
  %v1613 = vadd.f32 %v1584, %v1605
  %v1614 = vadd.f32 %v1585, %v1606
  %v1615 = vadd.f32 %v1586, %v1607
  %v1616 = vadd.f32 %v1587, %v1608
  %v1617 = vadd.f32 %v1588, %v1609
  %v1618 = vld [vmem:[%s902] sm:$0xff]
  %v1619 = vld [vmem:[%s902 + $0x8] sm:$0xff]
  %v1620 = vld [vmem:[%s902 + $0x10] sm:$0xff]
  %v1621 = vld [vmem:[%s902 + $0x18] sm:$0xff]
  %v1622 = vld [vmem:[%s902 + $0x20] sm:$0x3f]
  %v1623 = vld [vmem:[%s902 + $0x28] sm:$0x3f]
  %v1624 = vld [vmem:[%s902 + $0x30] sm:$0x3f]
  %v1625 = vld [vmem:[%s902 + $0x38] sm:$0x3f]
  %v1626 = vperm.slane %v1524, 3
  %v1627 = vperm.slane %v1525, 3
  %v1628 = vperm.slane %v1526, 3
  %v1629 = vperm.slane %v1527, 3
  %v1630 = vmul.f32 %v1618, %v1626
  %v1631 = vmul.f32 %v1619, %v1627
  %v1632 = vmul.f32 %v1620, %v1628
  %v1633 = vmul.f32 %v1621, %v1629
  %v1634 = vmul.f32 %v1622, %v1626
  %v1635 = vmul.f32 %v1623, %v1627
  %v1636 = vmul.f32 %v1624, %v1628
  %v1637 = vmul.f32 %v1625, %v1629
  %v1638 = vadd.f32 %v1610, %v1630
  %v1639 = vadd.f32 %v1611, %v1631
  %v1640 = vadd.f32 %v1612, %v1632
  %v1641 = vadd.f32 %v1613, %v1633
  %v1642 = vadd.f32 %v1614, %v1634
  %v1643 = vadd.f32 %v1615, %v1635
  %v1644 = vadd.f32 %v1616, %v1636
  %v1645 = vadd.f32 %v1617, %v1637
  %v1646 = vld [vmem:[%s1016] sm:$0xff]
  %v1647 = vld [vmem:[%s1016 + $0x8] sm:$0xff]
  %v1648 = vld [vmem:[%s1016 + $0x10] sm:$0xff]
  %v1649 = vld [vmem:[%s1016 + $0x18] sm:$0xff]
  %v1650 = vld [vmem:[%s1016 + $0x20] sm:$0x3f]
  %v1651 = vld [vmem:[%s1016 + $0x28] sm:$0x3f]
  %v1652 = vld [vmem:[%s1016 + $0x30] sm:$0x3f]
  %v1653 = vld [vmem:[%s1016 + $0x38] sm:$0x3f]
  %v1654 = vperm.slane %v1524, 4
  %v1655 = vperm.slane %v1525, 4
  %v1656 = vperm.slane %v1526, 4
  %v1657 = vperm.slane %v1527, 4
  %v1658 = vmul.f32 %v1646, %v1654
  %v1659 = vmul.f32 %v1647, %v1655
  %v1660 = vmul.f32 %v1648, %v1656
  %v1661 = vmul.f32 %v1649, %v1657
  %v1662 = vmul.f32 %v1650, %v1654
  %v1663 = vmul.f32 %v1651, %v1655
  %v1664 = vmul.f32 %v1652, %v1656
  %v1665 = vmul.f32 %v1653, %v1657
  %v1666 = vadd.f32 %v1638, %v1658
  %v1667 = vadd.f32 %v1639, %v1659
  %v1668 = vadd.f32 %v1640, %v1660
  %v1669 = vadd.f32 %v1641, %v1661
  %v1670 = vadd.f32 %v1642, %v1662
  %v1671 = vadd.f32 %v1643, %v1663
  %v1672 = vadd.f32 %v1644, %v1664
  %v1673 = vadd.f32 %v1645, %v1665
  %v1674 = vld [vmem:[%s1410] sm:$0xff]
  %v1675 = vld [vmem:[%s1410 + $0x8] sm:$0xff]
  %v1676 = vld [vmem:[%s1410 + $0x10] sm:$0xff]
  %v1677 = vld [vmem:[%s1410 + $0x18] sm:$0xff]
  %v1678 = vld [vmem:[%s1410 + $0x20] sm:$0x3f]
  %v1679 = vld [vmem:[%s1410 + $0x28] sm:$0x3f]
  %v1680 = vld [vmem:[%s1410 + $0x30] sm:$0x3f]
  %v1681 = vld [vmem:[%s1410 + $0x38] sm:$0x3f]
  %v1682 = vperm.slane %v1524, 5
  %v1683 = vperm.slane %v1525, 5
  %v1684 = vperm.slane %v1526, 5
  %v1685 = vperm.slane %v1527, 5
  %v1686 = vmul.f32 %v1674, %v1682
  %v1687 = vmul.f32 %v1675, %v1683
  %v1688 = vmul.f32 %v1676, %v1684
  %v1689 = vmul.f32 %v1677, %v1685
  %v1690 = vmul.f32 %v1678, %v1682
  %v1691 = vmul.f32 %v1679, %v1683
  %v1692 = vmul.f32 %v1680, %v1684
  %v1693 = vmul.f32 %v1681, %v1685
  %v1694 = vadd.f32 %v1666, %v1686
  %v1695 = vadd.f32 %v1667, %v1687
  %v1696 = vadd.f32 %v1668, %v1688
  %v1697 = vadd.f32 %v1669, %v1689
  %v1698 = vadd.f32 %v1670, %v1690
  %v1699 = vadd.f32 %v1671, %v1691
  %v1700 = vadd.f32 %v1672, %v1692
  %v1701 = vadd.f32 %v1673, %v1693
  %s1702 = scalar_lea.vmem [#allocation2], 128
  %v1703 = vld [vmem:[%s1702] sm:$0xff]
  %v1704 = vld [vmem:[%s1702 + $0x8] sm:$0xff]
  %v1705 = vld [vmem:[%s1702 + $0x10] sm:$0xff]
  %v1706 = vld [vmem:[%s1702 + $0x18] sm:$0xff]
  %v1707 = vld [vmem:[%s1702 + $0x20] sm:$0x3f]
  %v1708 = vld [vmem:[%s1702 + $0x28] sm:$0x3f]
  %v1709 = vld [vmem:[%s1702 + $0x30] sm:$0x3f]
  %v1710 = vld [vmem:[%s1702 + $0x38] sm:$0x3f]
  %v1711 = vperm.slane %v1524, 6
  %v1712 = vperm.slane %v1525, 6
  %v1713 = vperm.slane %v1526, 6
  %v1714 = vperm.slane %v1527, 6
  %v1715 = vmul.f32 %v1703, %v1711
  %v1716 = vmul.f32 %v1704, %v1712
  %v1717 = vmul.f32 %v1705, %v1713
  %v1718 = vmul.f32 %v1706, %v1714
  %v1719 = vmul.f32 %v1707, %v1711
  %v1720 = vmul.f32 %v1708, %v1712
  %v1721 = vmul.f32 %v1709, %v1713
  %v1722 = vmul.f32 %v1710, %v1714
  %v1723 = vadd.f32 %v1694, %v1715
  %v1724 = vadd.f32 %v1695, %v1716
  %v1725 = vadd.f32 %v1696, %v1717
  %v1726 = vadd.f32 %v1697, %v1718
  %v1727 = vadd.f32 %v1698, %v1719
  %v1728 = vadd.f32 %v1699, %v1720
  %v1729 = vadd.f32 %v1700, %v1721
  %v1730 = vadd.f32 %v1701, %v1722
  %s1731 = scalar_lea.vmem [#allocation2], 1152
  %v1732 = vld [vmem:[%s1731] sm:$0xff]
  %v1733 = vld [vmem:[%s1731 + $0x8] sm:$0xff]
  %v1734 = vld [vmem:[%s1731 + $0x10] sm:$0xff]
  %v1735 = vld [vmem:[%s1731 + $0x18] sm:$0xff]
  %v1736 = vld [vmem:[%s1731 + $0x20] sm:$0x3f]
  %v1737 = vld [vmem:[%s1731 + $0x28] sm:$0x3f]
  %v1738 = vld [vmem:[%s1731 + $0x30] sm:$0x3f]
  %v1739 = vld [vmem:[%s1731 + $0x38] sm:$0x3f]
  %v1740 = vperm.slane %v1524, 7
  %v1741 = vperm.slane %v1525, 7
  %v1742 = vperm.slane %v1526, 7
  %v1743 = vperm.slane %v1527, 7
  %v1744 = vmul.f32 %v1732, %v1740
  %v1745 = vmul.f32 %v1733, %v1741
  %v1746 = vmul.f32 %v1734, %v1742
  %v1747 = vmul.f32 %v1735, %v1743
  %v1748 = vmul.f32 %v1736, %v1740
  %v1749 = vmul.f32 %v1737, %v1741
  %v1750 = vmul.f32 %v1738, %v1742
  %v1751 = vmul.f32 %v1739, %v1743
  %v1752 = vadd.f32 %v1723, %v1744
  %v1753 = vadd.f32 %v1724, %v1745
  %v1754 = vadd.f32 %v1725, %v1746
  %v1755 = vadd.f32 %v1726, %v1747
  %v1756 = vadd.f32 %v1727, %v1748
  %v1757 = vadd.f32 %v1728, %v1749
  %v1758 = vadd.f32 %v1729, %v1750
  %v1759 = vadd.f32 %v1730, %v1751
  %s1760 = scalar_lea.vmem [#allocation2], 2176
  %v1761 = vld [vmem:[%s1760] sm:$0xff]
  %v1762 = vld [vmem:[%s1760 + $0x8] sm:$0xff]
  %v1763 = vld [vmem:[%s1760 + $0x10] sm:$0xff]
  %v1764 = vld [vmem:[%s1760 + $0x18] sm:$0xff]
  %v1765 = vld [vmem:[%s1760 + $0x20] sm:$0x3f]
  %v1766 = vld [vmem:[%s1760 + $0x28] sm:$0x3f]
  %v1767 = vld [vmem:[%s1760 + $0x30] sm:$0x3f]
  %v1768 = vld [vmem:[%s1760 + $0x38] sm:$0x3f]
  %v1769 = vperm.slane %v1528, 0
  %v1770 = vperm.slane %v1529, 0
  %v1771 = vperm.slane %v1530, 0
  %v1772 = vperm.slane %v1531, 0
  %v1773 = vmul.f32 %v1761, %v1769
  %v1774 = vmul.f32 %v1762, %v1770
  %v1775 = vmul.f32 %v1763, %v1771
  %v1776 = vmul.f32 %v1764, %v1772
  %v1777 = vmul.f32 %v1765, %v1769
  %v1778 = vmul.f32 %v1766, %v1770
  %v1779 = vmul.f32 %v1767, %v1771
  %v1780 = vmul.f32 %v1768, %v1772
  %v1781 = vadd.f32 %v1752, %v1773
  %v1782 = vadd.f32 %v1753, %v1774
  %v1783 = vadd.f32 %v1754, %v1775
  %v1784 = vadd.f32 %v1755, %v1776
  %v1785 = vadd.f32 %v1756, %v1777
  %v1786 = vadd.f32 %v1757, %v1778
  %v1787 = vadd.f32 %v1758, %v1779
  %v1788 = vadd.f32 %v1759, %v1780
  %1789 = vst [vmem:[%s2] sm:$0xff] %v1781
  %1790 = vst [vmem:[%s2 + $0x8] sm:$0xff] %v1782
  %1791 = vst [vmem:[%s2 + $0x10] sm:$0xff] %v1783
  %1792 = vst.msk [vmem:[%s2 + $0x18] sm:$0xff] %vm14, %v1784
  %1793 = vst [vmem:[%s2 + $0x20] sm:$0x3f] %v1785
  %1794 = vst [vmem:[%s2 + $0x28] sm:$0x3f] %v1786
  %1795 = vst [vmem:[%s2 + $0x30] sm:$0x3f] %v1787
  %1796 = vst.msk [vmem:[%s2 + $0x38] sm:$0x3f] %vm19, %v1788
  %v1797 = vld [vmem:[%s902] sm:$0xff]
  %v1798 = vld [vmem:[%s902 + $0x8] sm:$0xff]
  %v1799 = vld [vmem:[%s902 + $0x10] sm:$0xff]
  %v1800 = vld [vmem:[%s902 + $0x18] sm:$0xff]
  %v1801 = vld [vmem:[%s902 + $0x20] sm:$0x3f]
  %v1802 = vld [vmem:[%s902 + $0x28] sm:$0x3f]
  %v1803 = vld [vmem:[%s902 + $0x30] sm:$0x3f]
  %v1804 = vld [vmem:[%s902 + $0x38] sm:$0x3f]
  %v1805 = vmul.f32 %v1797, %v1540
  %v1806 = vmul.f32 %v1798, %v1541
  %v1807 = vmul.f32 %v1799, %v1542
  %v1808 = vmul.f32 %v1800, %v1543
  %v1809 = vmul.f32 %v1801, %v1540
  %v1810 = vmul.f32 %v1802, %v1541
  %v1811 = vmul.f32 %v1803, %v1542
  %v1812 = vmul.f32 %v1804, %v1543
  %v1813 = vadd.f32 %v1805, 0.0
  %v1814 = vadd.f32 %v1806, 0.0
  %v1815 = vadd.f32 %v1807, 0.0
  %v1816 = vadd.f32 %v1808, 0.0
  %v1817 = vadd.f32 %v1809, 0.0
  %v1818 = vadd.f32 %v1810, 0.0
  %v1819 = vadd.f32 %v1811, 0.0
  %v1820 = vadd.f32 %v1812, 0.0
  %v1821 = vld [vmem:[%s1016] sm:$0xff]
  %v1822 = vld [vmem:[%s1016 + $0x8] sm:$0xff]
  %v1823 = vld [vmem:[%s1016 + $0x10] sm:$0xff]
  %v1824 = vld [vmem:[%s1016 + $0x18] sm:$0xff]
  %v1825 = vld [vmem:[%s1016 + $0x20] sm:$0x3f]
  %v1826 = vld [vmem:[%s1016 + $0x28] sm:$0x3f]
  %v1827 = vld [vmem:[%s1016 + $0x30] sm:$0x3f]
  %v1828 = vld [vmem:[%s1016 + $0x38] sm:$0x3f]
  %v1829 = vmul.f32 %v1821, %v1569
  %v1830 = vmul.f32 %v1822, %v1570
  %v1831 = vmul.f32 %v1823, %v1571
  %v1832 = vmul.f32 %v1824, %v1572
  %v1833 = vmul.f32 %v1825, %v1569
  %v1834 = vmul.f32 %v1826, %v1570
  %v1835 = vmul.f32 %v1827, %v1571
  %v1836 = vmul.f32 %v1828, %v1572
  %v1837 = vadd.f32 %v1813, %v1829
  %v1838 = vadd.f32 %v1814, %v1830
  %v1839 = vadd.f32 %v1815, %v1831
  %v1840 = vadd.f32 %v1816, %v1832
  %v1841 = vadd.f32 %v1817, %v1833
  %v1842 = vadd.f32 %v1818, %v1834
  %v1843 = vadd.f32 %v1819, %v1835
  %v1844 = vadd.f32 %v1820, %v1836
  %v1845 = vld [vmem:[%s1410] sm:$0xff]
  %v1846 = vld [vmem:[%s1410 + $0x8] sm:$0xff]
  %v1847 = vld [vmem:[%s1410 + $0x10] sm:$0xff]
  %v1848 = vld [vmem:[%s1410 + $0x18] sm:$0xff]
  %v1849 = vld [vmem:[%s1410 + $0x20] sm:$0x3f]
  %v1850 = vld [vmem:[%s1410 + $0x28] sm:$0x3f]
  %v1851 = vld [vmem:[%s1410 + $0x30] sm:$0x3f]
  %v1852 = vld [vmem:[%s1410 + $0x38] sm:$0x3f]
  %v1853 = vmul.f32 %v1845, %v1598
  %v1854 = vmul.f32 %v1846, %v1599
  %v1855 = vmul.f32 %v1847, %v1600
  %v1856 = vmul.f32 %v1848, %v1601
  %v1857 = vmul.f32 %v1849, %v1598
  %v1858 = vmul.f32 %v1850, %v1599
  %v1859 = vmul.f32 %v1851, %v1600
  %v1860 = vmul.f32 %v1852, %v1601
  %v1861 = vadd.f32 %v1837, %v1853
  %v1862 = vadd.f32 %v1838, %v1854
  %v1863 = vadd.f32 %v1839, %v1855
  %v1864 = vadd.f32 %v1840, %v1856
  %v1865 = vadd.f32 %v1841, %v1857
  %v1866 = vadd.f32 %v1842, %v1858
  %v1867 = vadd.f32 %v1843, %v1859
  %v1868 = vadd.f32 %v1844, %v1860
  %v1869 = vld [vmem:[%s1702] sm:$0xff]
  %v1870 = vld [vmem:[%s1702 + $0x8] sm:$0xff]
  %v1871 = vld [vmem:[%s1702 + $0x10] sm:$0xff]
  %v1872 = vld [vmem:[%s1702 + $0x18] sm:$0xff]
  %v1873 = vld [vmem:[%s1702 + $0x20] sm:$0x3f]
  %v1874 = vld [vmem:[%s1702 + $0x28] sm:$0x3f]
  %v1875 = vld [vmem:[%s1702 + $0x30] sm:$0x3f]
  %v1876 = vld [vmem:[%s1702 + $0x38] sm:$0x3f]
  %v1877 = vmul.f32 %v1869, %v1626
  %v1878 = vmul.f32 %v1870, %v1627
  %v1879 = vmul.f32 %v1871, %v1628
  %v1880 = vmul.f32 %v1872, %v1629
  %v1881 = vmul.f32 %v1873, %v1626
  %v1882 = vmul.f32 %v1874, %v1627
  %v1883 = vmul.f32 %v1875, %v1628
  %v1884 = vmul.f32 %v1876, %v1629
  %v1885 = vadd.f32 %v1861, %v1877
  %v1886 = vadd.f32 %v1862, %v1878
  %v1887 = vadd.f32 %v1863, %v1879
  %v1888 = vadd.f32 %v1864, %v1880
  %v1889 = vadd.f32 %v1865, %v1881
  %v1890 = vadd.f32 %v1866, %v1882
  %v1891 = vadd.f32 %v1867, %v1883
  %v1892 = vadd.f32 %v1868, %v1884
  %v1893 = vld [vmem:[%s1731] sm:$0xff]
  %v1894 = vld [vmem:[%s1731 + $0x8] sm:$0xff]
  %v1895 = vld [vmem:[%s1731 + $0x10] sm:$0xff]
  %v1896 = vld [vmem:[%s1731 + $0x18] sm:$0xff]
  %v1897 = vld [vmem:[%s1731 + $0x20] sm:$0x3f]
  %v1898 = vld [vmem:[%s1731 + $0x28] sm:$0x3f]
  %v1899 = vld [vmem:[%s1731 + $0x30] sm:$0x3f]
  %v1900 = vld [vmem:[%s1731 + $0x38] sm:$0x3f]
  %v1901 = vmul.f32 %v1893, %v1654
  %v1902 = vmul.f32 %v1894, %v1655
  %v1903 = vmul.f32 %v1895, %v1656
  %v1904 = vmul.f32 %v1896, %v1657
  %v1905 = vmul.f32 %v1897, %v1654
  %v1906 = vmul.f32 %v1898, %v1655
  %v1907 = vmul.f32 %v1899, %v1656
  %v1908 = vmul.f32 %v1900, %v1657
  %v1909 = vadd.f32 %v1885, %v1901
  %v1910 = vadd.f32 %v1886, %v1902
  %v1911 = vadd.f32 %v1887, %v1903
  %v1912 = vadd.f32 %v1888, %v1904
  %v1913 = vadd.f32 %v1889, %v1905
  %v1914 = vadd.f32 %v1890, %v1906
  %v1915 = vadd.f32 %v1891, %v1907
  %v1916 = vadd.f32 %v1892, %v1908
  %v1917 = vld [vmem:[%s1760] sm:$0xff]
  %v1918 = vld [vmem:[%s1760 + $0x8] sm:$0xff]
  %v1919 = vld [vmem:[%s1760 + $0x10] sm:$0xff]
  %v1920 = vld [vmem:[%s1760 + $0x18] sm:$0xff]
  %v1921 = vld [vmem:[%s1760 + $0x20] sm:$0x3f]
  %v1922 = vld [vmem:[%s1760 + $0x28] sm:$0x3f]
  %v1923 = vld [vmem:[%s1760 + $0x30] sm:$0x3f]
  %v1924 = vld [vmem:[%s1760 + $0x38] sm:$0x3f]
  %v1925 = vmul.f32 %v1917, %v1682
  %v1926 = vmul.f32 %v1918, %v1683
  %v1927 = vmul.f32 %v1919, %v1684
  %v1928 = vmul.f32 %v1920, %v1685
  %v1929 = vmul.f32 %v1921, %v1682
  %v1930 = vmul.f32 %v1922, %v1683
  %v1931 = vmul.f32 %v1923, %v1684
  %v1932 = vmul.f32 %v1924, %v1685
  %v1933 = vadd.f32 %v1909, %v1925
  %v1934 = vadd.f32 %v1910, %v1926
  %v1935 = vadd.f32 %v1911, %v1927
  %v1936 = vadd.f32 %v1912, %v1928
  %v1937 = vadd.f32 %v1913, %v1929
  %v1938 = vadd.f32 %v1914, %v1930
  %v1939 = vadd.f32 %v1915, %v1931
  %v1940 = vadd.f32 %v1916, %v1932
  %s1941 = scalar_lea.vmem [#allocation2], 192
  %v1942 = vld [vmem:[%s1941] sm:$0xff]
  %v1943 = vld [vmem:[%s1941 + $0x8] sm:$0xff]
  %v1944 = vld [vmem:[%s1941 + $0x10] sm:$0xff]
  %v1945 = vld [vmem:[%s1941 + $0x18] sm:$0xff]
  %v1946 = vld [vmem:[%s1941 + $0x20] sm:$0x3f]
  %v1947 = vld [vmem:[%s1941 + $0x28] sm:$0x3f]
  %v1948 = vld [vmem:[%s1941 + $0x30] sm:$0x3f]
  %v1949 = vld [vmem:[%s1941 + $0x38] sm:$0x3f]
  %v1950 = vmul.f32 %v1942, %v1711
  %v1951 = vmul.f32 %v1943, %v1712
  %v1952 = vmul.f32 %v1944, %v1713
  %v1953 = vmul.f32 %v1945, %v1714
  %v1954 = vmul.f32 %v1946, %v1711
  %v1955 = vmul.f32 %v1947, %v1712
  %v1956 = vmul.f32 %v1948, %v1713
  %v1957 = vmul.f32 %v1949, %v1714
  %v1958 = vadd.f32 %v1933, %v1950
  %v1959 = vadd.f32 %v1934, %v1951
  %v1960 = vadd.f32 %v1935, %v1952
  %v1961 = vadd.f32 %v1936, %v1953
  %v1962 = vadd.f32 %v1937, %v1954
  %v1963 = vadd.f32 %v1938, %v1955
  %v1964 = vadd.f32 %v1939, %v1956
  %v1965 = vadd.f32 %v1940, %v1957
  %s1966 = scalar_lea.vmem [#allocation2], 1216
  %v1967 = vld [vmem:[%s1966] sm:$0xff]
  %v1968 = vld [vmem:[%s1966 + $0x8] sm:$0xff]
  %v1969 = vld [vmem:[%s1966 + $0x10] sm:$0xff]
  %v1970 = vld [vmem:[%s1966 + $0x18] sm:$0xff]
  %v1971 = vld [vmem:[%s1966 + $0x20] sm:$0x3f]
  %v1972 = vld [vmem:[%s1966 + $0x28] sm:$0x3f]
  %v1973 = vld [vmem:[%s1966 + $0x30] sm:$0x3f]
  %v1974 = vld [vmem:[%s1966 + $0x38] sm:$0x3f]
  %v1975 = vmul.f32 %v1967, %v1740
  %v1976 = vmul.f32 %v1968, %v1741
  %v1977 = vmul.f32 %v1969, %v1742
  %v1978 = vmul.f32 %v1970, %v1743
  %v1979 = vmul.f32 %v1971, %v1740
  %v1980 = vmul.f32 %v1972, %v1741
  %v1981 = vmul.f32 %v1973, %v1742
  %v1982 = vmul.f32 %v1974, %v1743
  %v1983 = vadd.f32 %v1958, %v1975
  %v1984 = vadd.f32 %v1959, %v1976
  %v1985 = vadd.f32 %v1960, %v1977
  %v1986 = vadd.f32 %v1961, %v1978
  %v1987 = vadd.f32 %v1962, %v1979
  %v1988 = vadd.f32 %v1963, %v1980
  %v1989 = vadd.f32 %v1964, %v1981
  %v1990 = vadd.f32 %v1965, %v1982
  %s1991 = scalar_lea.vmem [#allocation2], 2240
  %v1992 = vld [vmem:[%s1991] sm:$0xff]
  %v1993 = vld [vmem:[%s1991 + $0x8] sm:$0xff]
  %v1994 = vld [vmem:[%s1991 + $0x10] sm:$0xff]
  %v1995 = vld [vmem:[%s1991 + $0x18] sm:$0xff]
  %v1996 = vld [vmem:[%s1991 + $0x20] sm:$0x3f]
  %v1997 = vld [vmem:[%s1991 + $0x28] sm:$0x3f]
  %v1998 = vld [vmem:[%s1991 + $0x30] sm:$0x3f]
  %v1999 = vld [vmem:[%s1991 + $0x38] sm:$0x3f]
  %v2000 = vmul.f32 %v1992, %v1769
  %v2001 = vmul.f32 %v1993, %v1770
  %v2002 = vmul.f32 %v1994, %v1771
  %v2003 = vmul.f32 %v1995, %v1772
  %v2004 = vmul.f32 %v1996, %v1769
  %v2005 = vmul.f32 %v1997, %v1770
  %v2006 = vmul.f32 %v1998, %v1771
  %v2007 = vmul.f32 %v1999, %v1772
  %v2008 = vadd.f32 %v1983, %v2000
  %v2009 = vadd.f32 %v1984, %v2001
  %v2010 = vadd.f32 %v1985, %v2002
  %v2011 = vadd.f32 %v1986, %v2003
  %v2012 = vadd.f32 %v1987, %v2004
  %v2013 = vadd.f32 %v1988, %v2005
  %v2014 = vadd.f32 %v1989, %v2006
  %v2015 = vadd.f32 %v1990, %v2007
  %s2016 = scalar_lea.vmem %s2, 64
  %2017 = vst [vmem:[%s2016] sm:$0xff] %v2008
  %2018 = vst [vmem:[%s2016 + $0x8] sm:$0xff] %v2009
  %2019 = vst [vmem:[%s2016 + $0x10] sm:$0xff] %v2010
  %2020 = vst.msk [vmem:[%s2016 + $0x18] sm:$0xff] %vm14, %v2011
  %2021 = vst [vmem:[%s2016 + $0x20] sm:$0x3f] %v2012
  %2022 = vst [vmem:[%s2016 + $0x28] sm:$0x3f] %v2013
  %2023 = vst [vmem:[%s2016 + $0x30] sm:$0x3f] %v2014
  %2024 = vst.msk [vmem:[%s2016 + $0x38] sm:$0x3f] %vm19, %v2015
  %v2025 = vld [vmem:[%s1702] sm:$0xff]
  %v2026 = vld [vmem:[%s1702 + $0x8] sm:$0xff]
  %v2027 = vld [vmem:[%s1702 + $0x10] sm:$0xff]
  %v2028 = vld [vmem:[%s1702 + $0x18] sm:$0xff]
  %v2029 = vld [vmem:[%s1702 + $0x20] sm:$0x3f]
  %v2030 = vld [vmem:[%s1702 + $0x28] sm:$0x3f]
  %v2031 = vld [vmem:[%s1702 + $0x30] sm:$0x3f]
  %v2032 = vld [vmem:[%s1702 + $0x38] sm:$0x3f]
  %v2033 = vmul.f32 %v2025, %v1540
  %v2034 = vmul.f32 %v2026, %v1541
  %v2035 = vmul.f32 %v2027, %v1542
  %v2036 = vmul.f32 %v2028, %v1543
  %v2037 = vmul.f32 %v2029, %v1540
  %v2038 = vmul.f32 %v2030, %v1541
  %v2039 = vmul.f32 %v2031, %v1542
  %v2040 = vmul.f32 %v2032, %v1543
  %v2041 = vadd.f32 %v2033, 0.0
  %v2042 = vadd.f32 %v2034, 0.0
  %v2043 = vadd.f32 %v2035, 0.0
  %v2044 = vadd.f32 %v2036, 0.0
  %v2045 = vadd.f32 %v2037, 0.0
  %v2046 = vadd.f32 %v2038, 0.0
  %v2047 = vadd.f32 %v2039, 0.0
  %v2048 = vadd.f32 %v2040, 0.0
  %v2049 = vld [vmem:[%s1731] sm:$0xff]
  %v2050 = vld [vmem:[%s1731 + $0x8] sm:$0xff]
  %v2051 = vld [vmem:[%s1731 + $0x10] sm:$0xff]
  %v2052 = vld [vmem:[%s1731 + $0x18] sm:$0xff]
  %v2053 = vld [vmem:[%s1731 + $0x20] sm:$0x3f]
  %v2054 = vld [vmem:[%s1731 + $0x28] sm:$0x3f]
  %v2055 = vld [vmem:[%s1731 + $0x30] sm:$0x3f]
  %v2056 = vld [vmem:[%s1731 + $0x38] sm:$0x3f]
  %v2057 = vmul.f32 %v2049, %v1569
  %v2058 = vmul.f32 %v2050, %v1570
  %v2059 = vmul.f32 %v2051, %v1571
  %v2060 = vmul.f32 %v2052, %v1572
  %v2061 = vmul.f32 %v2053, %v1569
  %v2062 = vmul.f32 %v2054, %v1570
  %v2063 = vmul.f32 %v2055, %v1571
  %v2064 = vmul.f32 %v2056, %v1572
  %v2065 = vadd.f32 %v2041, %v2057
  %v2066 = vadd.f32 %v2042, %v2058
  %v2067 = vadd.f32 %v2043, %v2059
  %v2068 = vadd.f32 %v2044, %v2060
  %v2069 = vadd.f32 %v2045, %v2061
  %v2070 = vadd.f32 %v2046, %v2062
  %v2071 = vadd.f32 %v2047, %v2063
  %v2072 = vadd.f32 %v2048, %v2064
  %v2073 = vld [vmem:[%s1760] sm:$0xff]
  %v2074 = vld [vmem:[%s1760 + $0x8] sm:$0xff]
  %v2075 = vld [vmem:[%s1760 + $0x10] sm:$0xff]
  %v2076 = vld [vmem:[%s1760 + $0x18] sm:$0xff]
  %v2077 = vld [vmem:[%s1760 + $0x20] sm:$0x3f]
  %v2078 = vld [vmem:[%s1760 + $0x28] sm:$0x3f]
  %v2079 = vld [vmem:[%s1760 + $0x30] sm:$0x3f]
  %v2080 = vld [vmem:[%s1760 + $0x38] sm:$0x3f]
  %v2081 = vmul.f32 %v2073, %v1598
  %v2082 = vmul.f32 %v2074, %v1599
  %v2083 = vmul.f32 %v2075, %v1600
  %v2084 = vmul.f32 %v2076, %v1601
  %v2085 = vmul.f32 %v2077, %v1598
  %v2086 = vmul.f32 %v2078, %v1599
  %v2087 = vmul.f32 %v2079, %v1600
  %v2088 = vmul.f32 %v2080, %v1601
  %v2089 = vadd.f32 %v2065, %v2081
  %v2090 = vadd.f32 %v2066, %v2082
  %v2091 = vadd.f32 %v2067, %v2083
  %v2092 = vadd.f32 %v2068, %v2084
  %v2093 = vadd.f32 %v2069, %v2085
  %v2094 = vadd.f32 %v2070, %v2086
  %v2095 = vadd.f32 %v2071, %v2087
  %v2096 = vadd.f32 %v2072, %v2088
  %v2097 = vld [vmem:[%s1941] sm:$0xff]
  %v2098 = vld [vmem:[%s1941 + $0x8] sm:$0xff]
  %v2099 = vld [vmem:[%s1941 + $0x10] sm:$0xff]
  %v2100 = vld [vmem:[%s1941 + $0x18] sm:$0xff]
  %v2101 = vld [vmem:[%s1941 + $0x20] sm:$0x3f]
  %v2102 = vld [vmem:[%s1941 + $0x28] sm:$0x3f]
  %v2103 = vld [vmem:[%s1941 + $0x30] sm:$0x3f]
  %v2104 = vld [vmem:[%s1941 + $0x38] sm:$0x3f]
  %v2105 = vmul.f32 %v2097, %v1626
  %v2106 = vmul.f32 %v2098, %v1627
  %v2107 = vmul.f32 %v2099, %v1628
  %v2108 = vmul.f32 %v2100, %v1629
  %v2109 = vmul.f32 %v2101, %v1626
  %v2110 = vmul.f32 %v2102, %v1627
  %v2111 = vmul.f32 %v2103, %v1628
  %v2112 = vmul.f32 %v2104, %v1629
  %v2113 = vadd.f32 %v2089, %v2105
  %v2114 = vadd.f32 %v2090, %v2106
  %v2115 = vadd.f32 %v2091, %v2107
  %v2116 = vadd.f32 %v2092, %v2108
  %v2117 = vadd.f32 %v2093, %v2109
  %v2118 = vadd.f32 %v2094, %v2110
  %v2119 = vadd.f32 %v2095, %v2111
  %v2120 = vadd.f32 %v2096, %v2112
  %v2121 = vld [vmem:[%s1966] sm:$0xff]
  %v2122 = vld [vmem:[%s1966 + $0x8] sm:$0xff]
  %v2123 = vld [vmem:[%s1966 + $0x10] sm:$0xff]
  %v2124 = vld [vmem:[%s1966 + $0x18] sm:$0xff]
  %v2125 = vld [vmem:[%s1966 + $0x20] sm:$0x3f]
  %v2126 = vld [vmem:[%s1966 + $0x28] sm:$0x3f]
  %v2127 = vld [vmem:[%s1966 + $0x30] sm:$0x3f]
  %v2128 = vld [vmem:[%s1966 + $0x38] sm:$0x3f]
  %v2129 = vmul.f32 %v2121, %v1654
  %v2130 = vmul.f32 %v2122, %v1655
  %v2131 = vmul.f32 %v2123, %v1656
  %v2132 = vmul.f32 %v2124, %v1657
  %v2133 = vmul.f32 %v2125, %v1654
  %v2134 = vmul.f32 %v2126, %v1655
  %v2135 = vmul.f32 %v2127, %v1656
  %v2136 = vmul.f32 %v2128, %v1657
  %v2137 = vadd.f32 %v2113, %v2129
  %v2138 = vadd.f32 %v2114, %v2130
  %v2139 = vadd.f32 %v2115, %v2131
  %v2140 = vadd.f32 %v2116, %v2132
  %v2141 = vadd.f32 %v2117, %v2133
  %v2142 = vadd.f32 %v2118, %v2134
  %v2143 = vadd.f32 %v2119, %v2135
  %v2144 = vadd.f32 %v2120, %v2136
  %v2145 = vld [vmem:[%s1991] sm:$0xff]
  %v2146 = vld [vmem:[%s1991 + $0x8] sm:$0xff]
  %v2147 = vld [vmem:[%s1991 + $0x10] sm:$0xff]
  %v2148 = vld [vmem:[%s1991 + $0x18] sm:$0xff]
  %v2149 = vld [vmem:[%s1991 + $0x20] sm:$0x3f]
  %v2150 = vld [vmem:[%s1991 + $0x28] sm:$0x3f]
  %v2151 = vld [vmem:[%s1991 + $0x30] sm:$0x3f]
  %v2152 = vld [vmem:[%s1991 + $0x38] sm:$0x3f]
  %v2153 = vmul.f32 %v2145, %v1682
  %v2154 = vmul.f32 %v2146, %v1683
  %v2155 = vmul.f32 %v2147, %v1684
  %v2156 = vmul.f32 %v2148, %v1685
  %v2157 = vmul.f32 %v2149, %v1682
  %v2158 = vmul.f32 %v2150, %v1683
  %v2159 = vmul.f32 %v2151, %v1684
  %v2160 = vmul.f32 %v2152, %v1685
  %v2161 = vadd.f32 %v2137, %v2153
  %v2162 = vadd.f32 %v2138, %v2154
  %v2163 = vadd.f32 %v2139, %v2155
  %v2164 = vadd.f32 %v2140, %v2156
  %v2165 = vadd.f32 %v2141, %v2157
  %v2166 = vadd.f32 %v2142, %v2158
  %v2167 = vadd.f32 %v2143, %v2159
  %v2168 = vadd.f32 %v2144, %v2160
  %s2169 = scalar_lea.vmem [#allocation2], 256
  %v2170 = vld [vmem:[%s2169] sm:$0xff]
  %v2171 = vld [vmem:[%s2169 + $0x8] sm:$0xff]
  %v2172 = vld [vmem:[%s2169 + $0x10] sm:$0xff]
  %v2173 = vld [vmem:[%s2169 + $0x18] sm:$0xff]
  %v2174 = vld [vmem:[%s2169 + $0x20] sm:$0x3f]
  %v2175 = vld [vmem:[%s2169 + $0x28] sm:$0x3f]
  %v2176 = vld [vmem:[%s2169 + $0x30] sm:$0x3f]
  %v2177 = vld [vmem:[%s2169 + $0x38] sm:$0x3f]
  %v2178 = vmul.f32 %v2170, %v1711
  %v2179 = vmul.f32 %v2171, %v1712
  %v2180 = vmul.f32 %v2172, %v1713
  %v2181 = vmul.f32 %v2173, %v1714
  %v2182 = vmul.f32 %v2174, %v1711
  %v2183 = vmul.f32 %v2175, %v1712
  %v2184 = vmul.f32 %v2176, %v1713
  %v2185 = vmul.f32 %v2177, %v1714
  %v2186 = vadd.f32 %v2161, %v2178
  %v2187 = vadd.f32 %v2162, %v2179
  %v2188 = vadd.f32 %v2163, %v2180
  %v2189 = vadd.f32 %v2164, %v2181
  %v2190 = vadd.f32 %v2165, %v2182
  %v2191 = vadd.f32 %v2166, %v2183
  %v2192 = vadd.f32 %v2167, %v2184
  %v2193 = vadd.f32 %v2168, %v2185
  %s2194 = scalar_lea.vmem [#allocation2], 1280
  %v2195 = vld [vmem:[%s2194] sm:$0xff]
  %v2196 = vld [vmem:[%s2194 + $0x8] sm:$0xff]
  %v2197 = vld [vmem:[%s2194 + $0x10] sm:$0xff]
  %v2198 = vld [vmem:[%s2194 + $0x18] sm:$0xff]
  %v2199 = vld [vmem:[%s2194 + $0x20] sm:$0x3f]
  %v2200 = vld [vmem:[%s2194 + $0x28] sm:$0x3f]
  %v2201 = vld [vmem:[%s2194 + $0x30] sm:$0x3f]
  %v2202 = vld [vmem:[%s2194 + $0x38] sm:$0x3f]
  %v2203 = vmul.f32 %v2195, %v1740
  %v2204 = vmul.f32 %v2196, %v1741
  %v2205 = vmul.f32 %v2197, %v1742
  %v2206 = vmul.f32 %v2198, %v1743
  %v2207 = vmul.f32 %v2199, %v1740
  %v2208 = vmul.f32 %v2200, %v1741
  %v2209 = vmul.f32 %v2201, %v1742
  %v2210 = vmul.f32 %v2202, %v1743
  %v2211 = vadd.f32 %v2186, %v2203
  %v2212 = vadd.f32 %v2187, %v2204
  %v2213 = vadd.f32 %v2188, %v2205
  %v2214 = vadd.f32 %v2189, %v2206
  %v2215 = vadd.f32 %v2190, %v2207
  %v2216 = vadd.f32 %v2191, %v2208
  %v2217 = vadd.f32 %v2192, %v2209
  %v2218 = vadd.f32 %v2193, %v2210
  %s2219 = scalar_lea.vmem [#allocation2], 2304
  %v2220 = vld [vmem:[%s2219] sm:$0xff]
  %v2221 = vld [vmem:[%s2219 + $0x8] sm:$0xff]
  %v2222 = vld [vmem:[%s2219 + $0x10] sm:$0xff]
  %v2223 = vld [vmem:[%s2219 + $0x18] sm:$0xff]
  %v2224 = vld [vmem:[%s2219 + $0x20] sm:$0x3f]
  %v2225 = vld [vmem:[%s2219 + $0x28] sm:$0x3f]
  %v2226 = vld [vmem:[%s2219 + $0x30] sm:$0x3f]
  %v2227 = vld [vmem:[%s2219 + $0x38] sm:$0x3f]
  %v2228 = vmul.f32 %v2220, %v1769
  %v2229 = vmul.f32 %v2221, %v1770
  %v2230 = vmul.f32 %v2222, %v1771
  %v2231 = vmul.f32 %v2223, %v1772
  %v2232 = vmul.f32 %v2224, %v1769
  %v2233 = vmul.f32 %v2225, %v1770
  %v2234 = vmul.f32 %v2226, %v1771
  %v2235 = vmul.f32 %v2227, %v1772
  %v2236 = vadd.f32 %v2211, %v2228
  %v2237 = vadd.f32 %v2212, %v2229
  %v2238 = vadd.f32 %v2213, %v2230
  %v2239 = vadd.f32 %v2214, %v2231
  %v2240 = vadd.f32 %v2215, %v2232
  %v2241 = vadd.f32 %v2216, %v2233
  %v2242 = vadd.f32 %v2217, %v2234
  %v2243 = vadd.f32 %v2218, %v2235
  %s2244 = scalar_lea.vmem %s2, 128
  %2245 = vst [vmem:[%s2244] sm:$0xff] %v2236
  %2246 = vst [vmem:[%s2244 + $0x8] sm:$0xff] %v2237
  %2247 = vst [vmem:[%s2244 + $0x10] sm:$0xff] %v2238
  %2248 = vst.msk [vmem:[%s2244 + $0x18] sm:$0xff] %vm14, %v2239
  %2249 = vst [vmem:[%s2244 + $0x20] sm:$0x3f] %v2240
  %2250 = vst [vmem:[%s2244 + $0x28] sm:$0x3f] %v2241
  %2251 = vst [vmem:[%s2244 + $0x30] sm:$0x3f] %v2242
  %2252 = vst.msk [vmem:[%s2244 + $0x38] sm:$0x3f] %vm19, %v2243
  %v2253 = vld [vmem:[%s1941] sm:$0xff]
  %v2254 = vld [vmem:[%s1941 + $0x8] sm:$0xff]
  %v2255 = vld [vmem:[%s1941 + $0x10] sm:$0xff]
  %v2256 = vld [vmem:[%s1941 + $0x18] sm:$0xff]
  %v2257 = vld [vmem:[%s1941 + $0x20] sm:$0x3f]
  %v2258 = vld [vmem:[%s1941 + $0x28] sm:$0x3f]
  %v2259 = vld [vmem:[%s1941 + $0x30] sm:$0x3f]
  %v2260 = vld [vmem:[%s1941 + $0x38] sm:$0x3f]
  %v2261 = vmul.f32 %v2253, %v1540
  %v2262 = vmul.f32 %v2254, %v1541
  %v2263 = vmul.f32 %v2255, %v1542
  %v2264 = vmul.f32 %v2256, %v1543
  %v2265 = vmul.f32 %v2257, %v1540
  %v2266 = vmul.f32 %v2258, %v1541
  %v2267 = vmul.f32 %v2259, %v1542
  %v2268 = vmul.f32 %v2260, %v1543
  %v2269 = vadd.f32 %v2261, 0.0
  %v2270 = vadd.f32 %v2262, 0.0
  %v2271 = vadd.f32 %v2263, 0.0
  %v2272 = vadd.f32 %v2264, 0.0
  %v2273 = vadd.f32 %v2265, 0.0
  %v2274 = vadd.f32 %v2266, 0.0
  %v2275 = vadd.f32 %v2267, 0.0
  %v2276 = vadd.f32 %v2268, 0.0
  %v2277 = vld [vmem:[%s1966] sm:$0xff]
  %v2278 = vld [vmem:[%s1966 + $0x8] sm:$0xff]
  %v2279 = vld [vmem:[%s1966 + $0x10] sm:$0xff]
  %v2280 = vld [vmem:[%s1966 + $0x18] sm:$0xff]
  %v2281 = vld [vmem:[%s1966 + $0x20] sm:$0x3f]
  %v2282 = vld [vmem:[%s1966 + $0x28] sm:$0x3f]
  %v2283 = vld [vmem:[%s1966 + $0x30] sm:$0x3f]
  %v2284 = vld [vmem:[%s1966 + $0x38] sm:$0x3f]
  %v2285 = vmul.f32 %v2277, %v1569
  %v2286 = vmul.f32 %v2278, %v1570
  %v2287 = vmul.f32 %v2279, %v1571
  %v2288 = vmul.f32 %v2280, %v1572
  %v2289 = vmul.f32 %v2281, %v1569
  %v2290 = vmul.f32 %v2282, %v1570
  %v2291 = vmul.f32 %v2283, %v1571
  %v2292 = vmul.f32 %v2284, %v1572
  %v2293 = vadd.f32 %v2269, %v2285
  %v2294 = vadd.f32 %v2270, %v2286
  %v2295 = vadd.f32 %v2271, %v2287
  %v2296 = vadd.f32 %v2272, %v2288
  %v2297 = vadd.f32 %v2273, %v2289
  %v2298 = vadd.f32 %v2274, %v2290
  %v2299 = vadd.f32 %v2275, %v2291
  %v2300 = vadd.f32 %v2276, %v2292
  %v2301 = vld [vmem:[%s1991] sm:$0xff]
  %v2302 = vld [vmem:[%s1991 + $0x8] sm:$0xff]
  %v2303 = vld [vmem:[%s1991 + $0x10] sm:$0xff]
  %v2304 = vld [vmem:[%s1991 + $0x18] sm:$0xff]
  %v2305 = vld [vmem:[%s1991 + $0x20] sm:$0x3f]
  %v2306 = vld [vmem:[%s1991 + $0x28] sm:$0x3f]
  %v2307 = vld [vmem:[%s1991 + $0x30] sm:$0x3f]
  %v2308 = vld [vmem:[%s1991 + $0x38] sm:$0x3f]
  %v2309 = vmul.f32 %v2301, %v1598
  %v2310 = vmul.f32 %v2302, %v1599
  %v2311 = vmul.f32 %v2303, %v1600
  %v2312 = vmul.f32 %v2304, %v1601
  %v2313 = vmul.f32 %v2305, %v1598
  %v2314 = vmul.f32 %v2306, %v1599
  %v2315 = vmul.f32 %v2307, %v1600
  %v2316 = vmul.f32 %v2308, %v1601
  %v2317 = vadd.f32 %v2293, %v2309
  %v2318 = vadd.f32 %v2294, %v2310
  %v2319 = vadd.f32 %v2295, %v2311
  %v2320 = vadd.f32 %v2296, %v2312
  %v2321 = vadd.f32 %v2297, %v2313
  %v2322 = vadd.f32 %v2298, %v2314
  %v2323 = vadd.f32 %v2299, %v2315
  %v2324 = vadd.f32 %v2300, %v2316
  %v2325 = vld [vmem:[%s2169] sm:$0xff]
  %v2326 = vld [vmem:[%s2169 + $0x8] sm:$0xff]
  %v2327 = vld [vmem:[%s2169 + $0x10] sm:$0xff]
  %v2328 = vld [vmem:[%s2169 + $0x18] sm:$0xff]
  %v2329 = vld [vmem:[%s2169 + $0x20] sm:$0x3f]
  %v2330 = vld [vmem:[%s2169 + $0x28] sm:$0x3f]
  %v2331 = vld [vmem:[%s2169 + $0x30] sm:$0x3f]
  %v2332 = vld [vmem:[%s2169 + $0x38] sm:$0x3f]
  %v2333 = vmul.f32 %v2325, %v1626
  %v2334 = vmul.f32 %v2326, %v1627
  %v2335 = vmul.f32 %v2327, %v1628
  %v2336 = vmul.f32 %v2328, %v1629
  %v2337 = vmul.f32 %v2329, %v1626
  %v2338 = vmul.f32 %v2330, %v1627
  %v2339 = vmul.f32 %v2331, %v1628
  %v2340 = vmul.f32 %v2332, %v1629
  %v2341 = vadd.f32 %v2317, %v2333
  %v2342 = vadd.f32 %v2318, %v2334
  %v2343 = vadd.f32 %v2319, %v2335
  %v2344 = vadd.f32 %v2320, %v2336
  %v2345 = vadd.f32 %v2321, %v2337
  %v2346 = vadd.f32 %v2322, %v2338
  %v2347 = vadd.f32 %v2323, %v2339
  %v2348 = vadd.f32 %v2324, %v2340
  %v2349 = vld [vmem:[%s2194] sm:$0xff]
  %v2350 = vld [vmem:[%s2194 + $0x8] sm:$0xff]
  %v2351 = vld [vmem:[%s2194 + $0x10] sm:$0xff]
  %v2352 = vld [vmem:[%s2194 + $0x18] sm:$0xff]
  %v2353 = vld [vmem:[%s2194 + $0x20] sm:$0x3f]
  %v2354 = vld [vmem:[%s2194 + $0x28] sm:$0x3f]
  %v2355 = vld [vmem:[%s2194 + $0x30] sm:$0x3f]
  %v2356 = vld [vmem:[%s2194 + $0x38] sm:$0x3f]
  %v2357 = vmul.f32 %v2349, %v1654
  %v2358 = vmul.f32 %v2350, %v1655
  %v2359 = vmul.f32 %v2351, %v1656
  %v2360 = vmul.f32 %v2352, %v1657
  %v2361 = vmul.f32 %v2353, %v1654
  %v2362 = vmul.f32 %v2354, %v1655
  %v2363 = vmul.f32 %v2355, %v1656
  %v2364 = vmul.f32 %v2356, %v1657
  %v2365 = vadd.f32 %v2341, %v2357
  %v2366 = vadd.f32 %v2342, %v2358
  %v2367 = vadd.f32 %v2343, %v2359
  %v2368 = vadd.f32 %v2344, %v2360
  %v2369 = vadd.f32 %v2345, %v2361
  %v2370 = vadd.f32 %v2346, %v2362
  %v2371 = vadd.f32 %v2347, %v2363
  %v2372 = vadd.f32 %v2348, %v2364
  %v2373 = vld [vmem:[%s2219] sm:$0xff]
  %v2374 = vld [vmem:[%s2219 + $0x8] sm:$0xff]
  %v2375 = vld [vmem:[%s2219 + $0x10] sm:$0xff]
  %v2376 = vld [vmem:[%s2219 + $0x18] sm:$0xff]
  %v2377 = vld [vmem:[%s2219 + $0x20] sm:$0x3f]
  %v2378 = vld [vmem:[%s2219 + $0x28] sm:$0x3f]
  %v2379 = vld [vmem:[%s2219 + $0x30] sm:$0x3f]
  %v2380 = vld [vmem:[%s2219 + $0x38] sm:$0x3f]
  %v2381 = vmul.f32 %v2373, %v1682
  %v2382 = vmul.f32 %v2374, %v1683
  %v2383 = vmul.f32 %v2375, %v1684
  %v2384 = vmul.f32 %v2376, %v1685
  %v2385 = vmul.f32 %v2377, %v1682
  %v2386 = vmul.f32 %v2378, %v1683
  %v2387 = vmul.f32 %v2379, %v1684
  %v2388 = vmul.f32 %v2380, %v1685
  %v2389 = vadd.f32 %v2365, %v2381
  %v2390 = vadd.f32 %v2366, %v2382
  %v2391 = vadd.f32 %v2367, %v2383
  %v2392 = vadd.f32 %v2368, %v2384
  %v2393 = vadd.f32 %v2369, %v2385
  %v2394 = vadd.f32 %v2370, %v2386
  %v2395 = vadd.f32 %v2371, %v2387
  %v2396 = vadd.f32 %v2372, %v2388
  %s2397 = scalar_lea.vmem [#allocation2], 320
  %v2398 = vld [vmem:[%s2397] sm:$0xff]
  %v2399 = vld [vmem:[%s2397 + $0x8] sm:$0xff]
  %v2400 = vld [vmem:[%s2397 + $0x10] sm:$0xff]
  %v2401 = vld [vmem:[%s2397 + $0x18] sm:$0xff]
  %v2402 = vld [vmem:[%s2397 + $0x20] sm:$0x3f]
  %v2403 = vld [vmem:[%s2397 + $0x28] sm:$0x3f]
  %v2404 = vld [vmem:[%s2397 + $0x30] sm:$0x3f]
  %v2405 = vld [vmem:[%s2397 + $0x38] sm:$0x3f]
  %v2406 = vmul.f32 %v2398, %v1711
  %v2407 = vmul.f32 %v2399, %v1712
  %v2408 = vmul.f32 %v2400, %v1713
  %v2409 = vmul.f32 %v2401, %v1714
  %v2410 = vmul.f32 %v2402, %v1711
  %v2411 = vmul.f32 %v2403, %v1712
  %v2412 = vmul.f32 %v2404, %v1713
  %v2413 = vmul.f32 %v2405, %v1714
  %v2414 = vadd.f32 %v2389, %v2406
  %v2415 = vadd.f32 %v2390, %v2407
  %v2416 = vadd.f32 %v2391, %v2408
  %v2417 = vadd.f32 %v2392, %v2409
  %v2418 = vadd.f32 %v2393, %v2410
  %v2419 = vadd.f32 %v2394, %v2411
  %v2420 = vadd.f32 %v2395, %v2412
  %v2421 = vadd.f32 %v2396, %v2413
  %s2422 = scalar_lea.vmem [#allocation2], 1344
  %v2423 = vld [vmem:[%s2422] sm:$0xff]
  %v2424 = vld [vmem:[%s2422 + $0x8] sm:$0xff]
  %v2425 = vld [vmem:[%s2422 + $0x10] sm:$0xff]
  %v2426 = vld [vmem:[%s2422 + $0x18] sm:$0xff]
  %v2427 = vld [vmem:[%s2422 + $0x20] sm:$0x3f]
  %v2428 = vld [vmem:[%s2422 + $0x28] sm:$0x3f]
  %v2429 = vld [vmem:[%s2422 + $0x30] sm:$0x3f]
  %v2430 = vld [vmem:[%s2422 + $0x38] sm:$0x3f]
  %v2431 = vmul.f32 %v2423, %v1740
  %v2432 = vmul.f32 %v2424, %v1741
  %v2433 = vmul.f32 %v2425, %v1742
  %v2434 = vmul.f32 %v2426, %v1743
  %v2435 = vmul.f32 %v2427, %v1740
  %v2436 = vmul.f32 %v2428, %v1741
  %v2437 = vmul.f32 %v2429, %v1742
  %v2438 = vmul.f32 %v2430, %v1743
  %v2439 = vadd.f32 %v2414, %v2431
  %v2440 = vadd.f32 %v2415, %v2432
  %v2441 = vadd.f32 %v2416, %v2433
  %v2442 = vadd.f32 %v2417, %v2434
  %v2443 = vadd.f32 %v2418, %v2435
  %v2444 = vadd.f32 %v2419, %v2436
  %v2445 = vadd.f32 %v2420, %v2437
  %v2446 = vadd.f32 %v2421, %v2438
  %s2447 = scalar_lea.vmem [#allocation2], 2368
  %v2448 = vld [vmem:[%s2447] sm:$0xff]
  %v2449 = vld [vmem:[%s2447 + $0x8] sm:$0xff]
  %v2450 = vld [vmem:[%s2447 + $0x10] sm:$0xff]
  %v2451 = vld [vmem:[%s2447 + $0x18] sm:$0xff]
  %v2452 = vld [vmem:[%s2447 + $0x20] sm:$0x3f]
  %v2453 = vld [vmem:[%s2447 + $0x28] sm:$0x3f]
  %v2454 = vld [vmem:[%s2447 + $0x30] sm:$0x3f]
  %v2455 = vld [vmem:[%s2447 + $0x38] sm:$0x3f]
  %v2456 = vmul.f32 %v2448, %v1769
  %v2457 = vmul.f32 %v2449, %v1770
  %v2458 = vmul.f32 %v2450, %v1771
  %v2459 = vmul.f32 %v2451, %v1772
  %v2460 = vmul.f32 %v2452, %v1769
  %v2461 = vmul.f32 %v2453, %v1770
  %v2462 = vmul.f32 %v2454, %v1771
  %v2463 = vmul.f32 %v2455, %v1772
  %v2464 = vadd.f32 %v2439, %v2456
  %v2465 = vadd.f32 %v2440, %v2457
  %v2466 = vadd.f32 %v2441, %v2458
  %v2467 = vadd.f32 %v2442, %v2459
  %v2468 = vadd.f32 %v2443, %v2460
  %v2469 = vadd.f32 %v2444, %v2461
  %v2470 = vadd.f32 %v2445, %v2462
  %v2471 = vadd.f32 %v2446, %v2463
  %s2472 = scalar_lea.vmem %s2, 192
  %2473 = vst [vmem:[%s2472] sm:$0xff] %v2464
  %2474 = vst [vmem:[%s2472 + $0x8] sm:$0xff] %v2465
  %2475 = vst [vmem:[%s2472 + $0x10] sm:$0xff] %v2466
  %2476 = vst.msk [vmem:[%s2472 + $0x18] sm:$0xff] %vm14, %v2467
  %2477 = vst [vmem:[%s2472 + $0x20] sm:$0x3f] %v2468
  %2478 = vst [vmem:[%s2472 + $0x28] sm:$0x3f] %v2469
  %2479 = vst [vmem:[%s2472 + $0x30] sm:$0x3f] %v2470
  %2480 = vst.msk [vmem:[%s2472 + $0x38] sm:$0x3f] %vm19, %v2471
  %v2481 = vld [vmem:[%s2169] sm:$0xff]
  %v2482 = vld [vmem:[%s2169 + $0x8] sm:$0xff]
  %v2483 = vld [vmem:[%s2169 + $0x10] sm:$0xff]
  %v2484 = vld [vmem:[%s2169 + $0x18] sm:$0xff]
  %v2485 = vld [vmem:[%s2169 + $0x20] sm:$0x3f]
  %v2486 = vld [vmem:[%s2169 + $0x28] sm:$0x3f]
  %v2487 = vld [vmem:[%s2169 + $0x30] sm:$0x3f]
  %v2488 = vld [vmem:[%s2169 + $0x38] sm:$0x3f]
  %v2489 = vmul.f32 %v2481, %v1540
  %v2490 = vmul.f32 %v2482, %v1541
  %v2491 = vmul.f32 %v2483, %v1542
  %v2492 = vmul.f32 %v2484, %v1543
  %v2493 = vmul.f32 %v2485, %v1540
  %v2494 = vmul.f32 %v2486, %v1541
  %v2495 = vmul.f32 %v2487, %v1542
  %v2496 = vmul.f32 %v2488, %v1543
  %v2497 = vadd.f32 %v2489, 0.0
  %v2498 = vadd.f32 %v2490, 0.0
  %v2499 = vadd.f32 %v2491, 0.0
  %v2500 = vadd.f32 %v2492, 0.0
  %v2501 = vadd.f32 %v2493, 0.0
  %v2502 = vadd.f32 %v2494, 0.0
  %v2503 = vadd.f32 %v2495, 0.0
  %v2504 = vadd.f32 %v2496, 0.0
  %v2505 = vld [vmem:[%s2194] sm:$0xff]
  %v2506 = vld [vmem:[%s2194 + $0x8] sm:$0xff]
  %v2507 = vld [vmem:[%s2194 + $0x10] sm:$0xff]
  %v2508 = vld [vmem:[%s2194 + $0x18] sm:$0xff]
  %v2509 = vld [vmem:[%s2194 + $0x20] sm:$0x3f]
  %v2510 = vld [vmem:[%s2194 + $0x28] sm:$0x3f]
  %v2511 = vld [vmem:[%s2194 + $0x30] sm:$0x3f]
  %v2512 = vld [vmem:[%s2194 + $0x38] sm:$0x3f]
  %v2513 = vmul.f32 %v2505, %v1569
  %v2514 = vmul.f32 %v2506, %v1570
  %v2515 = vmul.f32 %v2507, %v1571
  %v2516 = vmul.f32 %v2508, %v1572
  %v2517 = vmul.f32 %v2509, %v1569
  %v2518 = vmul.f32 %v2510, %v1570
  %v2519 = vmul.f32 %v2511, %v1571
  %v2520 = vmul.f32 %v2512, %v1572
  %v2521 = vadd.f32 %v2497, %v2513
  %v2522 = vadd.f32 %v2498, %v2514
  %v2523 = vadd.f32 %v2499, %v2515
  %v2524 = vadd.f32 %v2500, %v2516
  %v2525 = vadd.f32 %v2501, %v2517
  %v2526 = vadd.f32 %v2502, %v2518
  %v2527 = vadd.f32 %v2503, %v2519
  %v2528 = vadd.f32 %v2504, %v2520
  %v2529 = vld [vmem:[%s2219] sm:$0xff]
  %v2530 = vld [vmem:[%s2219 + $0x8] sm:$0xff]
  %v2531 = vld [vmem:[%s2219 + $0x10] sm:$0xff]
  %v2532 = vld [vmem:[%s2219 + $0x18] sm:$0xff]
  %v2533 = vld [vmem:[%s2219 + $0x20] sm:$0x3f]
  %v2534 = vld [vmem:[%s2219 + $0x28] sm:$0x3f]
  %v2535 = vld [vmem:[%s2219 + $0x30] sm:$0x3f]
  %v2536 = vld [vmem:[%s2219 + $0x38] sm:$0x3f]
  %v2537 = vmul.f32 %v2529, %v1598
  %v2538 = vmul.f32 %v2530, %v1599
  %v2539 = vmul.f32 %v2531, %v1600
  %v2540 = vmul.f32 %v2532, %v1601
  %v2541 = vmul.f32 %v2533, %v1598
  %v2542 = vmul.f32 %v2534, %v1599
  %v2543 = vmul.f32 %v2535, %v1600
  %v2544 = vmul.f32 %v2536, %v1601
  %v2545 = vadd.f32 %v2521, %v2537
  %v2546 = vadd.f32 %v2522, %v2538
  %v2547 = vadd.f32 %v2523, %v2539
  %v2548 = vadd.f32 %v2524, %v2540
  %v2549 = vadd.f32 %v2525, %v2541
  %v2550 = vadd.f32 %v2526, %v2542
  %v2551 = vadd.f32 %v2527, %v2543
  %v2552 = vadd.f32 %v2528, %v2544
  %v2553 = vld [vmem:[%s2397] sm:$0xff]
  %v2554 = vld [vmem:[%s2397 + $0x8] sm:$0xff]
  %v2555 = vld [vmem:[%s2397 + $0x10] sm:$0xff]
  %v2556 = vld [vmem:[%s2397 + $0x18] sm:$0xff]
  %v2557 = vld [vmem:[%s2397 + $0x20] sm:$0x3f]
  %v2558 = vld [vmem:[%s2397 + $0x28] sm:$0x3f]
  %v2559 = vld [vmem:[%s2397 + $0x30] sm:$0x3f]
  %v2560 = vld [vmem:[%s2397 + $0x38] sm:$0x3f]
  %v2561 = vmul.f32 %v2553, %v1626
  %v2562 = vmul.f32 %v2554, %v1627
  %v2563 = vmul.f32 %v2555, %v1628
  %v2564 = vmul.f32 %v2556, %v1629
  %v2565 = vmul.f32 %v2557, %v1626
  %v2566 = vmul.f32 %v2558, %v1627
  %v2567 = vmul.f32 %v2559, %v1628
  %v2568 = vmul.f32 %v2560, %v1629
  %v2569 = vadd.f32 %v2545, %v2561
  %v2570 = vadd.f32 %v2546, %v2562
  %v2571 = vadd.f32 %v2547, %v2563
  %v2572 = vadd.f32 %v2548, %v2564
  %v2573 = vadd.f32 %v2549, %v2565
  %v2574 = vadd.f32 %v2550, %v2566
  %v2575 = vadd.f32 %v2551, %v2567
  %v2576 = vadd.f32 %v2552, %v2568
  %v2577 = vld [vmem:[%s2422] sm:$0xff]
  %v2578 = vld [vmem:[%s2422 + $0x8] sm:$0xff]
  %v2579 = vld [vmem:[%s2422 + $0x10] sm:$0xff]
  %v2580 = vld [vmem:[%s2422 + $0x18] sm:$0xff]
  %v2581 = vld [vmem:[%s2422 + $0x20] sm:$0x3f]
  %v2582 = vld [vmem:[%s2422 + $0x28] sm:$0x3f]
  %v2583 = vld [vmem:[%s2422 + $0x30] sm:$0x3f]
  %v2584 = vld [vmem:[%s2422 + $0x38] sm:$0x3f]
  %v2585 = vmul.f32 %v2577, %v1654
  %v2586 = vmul.f32 %v2578, %v1655
  %v2587 = vmul.f32 %v2579, %v1656
  %v2588 = vmul.f32 %v2580, %v1657
  %v2589 = vmul.f32 %v2581, %v1654
  %v2590 = vmul.f32 %v2582, %v1655
  %v2591 = vmul.f32 %v2583, %v1656
  %v2592 = vmul.f32 %v2584, %v1657
  %v2593 = vadd.f32 %v2569, %v2585
  %v2594 = vadd.f32 %v2570, %v2586
  %v2595 = vadd.f32 %v2571, %v2587
  %v2596 = vadd.f32 %v2572, %v2588
  %v2597 = vadd.f32 %v2573, %v2589
  %v2598 = vadd.f32 %v2574, %v2590
  %v2599 = vadd.f32 %v2575, %v2591
  %v2600 = vadd.f32 %v2576, %v2592
  %v2601 = vld [vmem:[%s2447] sm:$0xff]
  %v2602 = vld [vmem:[%s2447 + $0x8] sm:$0xff]
  %v2603 = vld [vmem:[%s2447 + $0x10] sm:$0xff]
  %v2604 = vld [vmem:[%s2447 + $0x18] sm:$0xff]
  %v2605 = vld [vmem:[%s2447 + $0x20] sm:$0x3f]
  %v2606 = vld [vmem:[%s2447 + $0x28] sm:$0x3f]
  %v2607 = vld [vmem:[%s2447 + $0x30] sm:$0x3f]
  %v2608 = vld [vmem:[%s2447 + $0x38] sm:$0x3f]
  %v2609 = vmul.f32 %v2601, %v1682
  %v2610 = vmul.f32 %v2602, %v1683
  %v2611 = vmul.f32 %v2603, %v1684
  %v2612 = vmul.f32 %v2604, %v1685
  %v2613 = vmul.f32 %v2605, %v1682
  %v2614 = vmul.f32 %v2606, %v1683
  %v2615 = vmul.f32 %v2607, %v1684
  %v2616 = vmul.f32 %v2608, %v1685
  %v2617 = vadd.f32 %v2593, %v2609
  %v2618 = vadd.f32 %v2594, %v2610
  %v2619 = vadd.f32 %v2595, %v2611
  %v2620 = vadd.f32 %v2596, %v2612
  %v2621 = vadd.f32 %v2597, %v2613
  %v2622 = vadd.f32 %v2598, %v2614
  %v2623 = vadd.f32 %v2599, %v2615
  %v2624 = vadd.f32 %v2600, %v2616
  %s2625 = scalar_lea.vmem [#allocation2], 384
  %v2626 = vld [vmem:[%s2625] sm:$0xff]
  %v2627 = vld [vmem:[%s2625 + $0x8] sm:$0xff]
  %v2628 = vld [vmem:[%s2625 + $0x10] sm:$0xff]
  %v2629 = vld [vmem:[%s2625 + $0x18] sm:$0xff]
  %v2630 = vld [vmem:[%s2625 + $0x20] sm:$0x3f]
  %v2631 = vld [vmem:[%s2625 + $0x28] sm:$0x3f]
  %v2632 = vld [vmem:[%s2625 + $0x30] sm:$0x3f]
  %v2633 = vld [vmem:[%s2625 + $0x38] sm:$0x3f]
  %v2634 = vmul.f32 %v2626, %v1711
  %v2635 = vmul.f32 %v2627, %v1712
  %v2636 = vmul.f32 %v2628, %v1713
  %v2637 = vmul.f32 %v2629, %v1714
  %v2638 = vmul.f32 %v2630, %v1711
  %v2639 = vmul.f32 %v2631, %v1712
  %v2640 = vmul.f32 %v2632, %v1713
  %v2641 = vmul.f32 %v2633, %v1714
  %v2642 = vadd.f32 %v2617, %v2634
  %v2643 = vadd.f32 %v2618, %v2635
  %v2644 = vadd.f32 %v2619, %v2636
  %v2645 = vadd.f32 %v2620, %v2637
  %v2646 = vadd.f32 %v2621, %v2638
  %v2647 = vadd.f32 %v2622, %v2639
  %v2648 = vadd.f32 %v2623, %v2640
  %v2649 = vadd.f32 %v2624, %v2641
  %s2650 = scalar_lea.vmem [#allocation2], 1408
  %v2651 = vld [vmem:[%s2650] sm:$0xff]
  %v2652 = vld [vmem:[%s2650 + $0x8] sm:$0xff]
  %v2653 = vld [vmem:[%s2650 + $0x10] sm:$0xff]
  %v2654 = vld [vmem:[%s2650 + $0x18] sm:$0xff]
  %v2655 = vld [vmem:[%s2650 + $0x20] sm:$0x3f]
  %v2656 = vld [vmem:[%s2650 + $0x28] sm:$0x3f]
  %v2657 = vld [vmem:[%s2650 + $0x30] sm:$0x3f]
  %v2658 = vld [vmem:[%s2650 + $0x38] sm:$0x3f]
  %v2659 = vmul.f32 %v2651, %v1740
  %v2660 = vmul.f32 %v2652, %v1741
  %v2661 = vmul.f32 %v2653, %v1742
  %v2662 = vmul.f32 %v2654, %v1743
  %v2663 = vmul.f32 %v2655, %v1740
  %v2664 = vmul.f32 %v2656, %v1741
  %v2665 = vmul.f32 %v2657, %v1742
  %v2666 = vmul.f32 %v2658, %v1743
  %v2667 = vadd.f32 %v2642, %v2659
  %v2668 = vadd.f32 %v2643, %v2660
  %v2669 = vadd.f32 %v2644, %v2661
  %v2670 = vadd.f32 %v2645, %v2662
  %v2671 = vadd.f32 %v2646, %v2663
  %v2672 = vadd.f32 %v2647, %v2664
  %v2673 = vadd.f32 %v2648, %v2665
  %v2674 = vadd.f32 %v2649, %v2666
  %s2675 = scalar_lea.vmem [#allocation2], 2432
  %v2676 = vld [vmem:[%s2675] sm:$0xff]
  %v2677 = vld [vmem:[%s2675 + $0x8] sm:$0xff]
  %v2678 = vld [vmem:[%s2675 + $0x10] sm:$0xff]
  %v2679 = vld [vmem:[%s2675 + $0x18] sm:$0xff]
  %v2680 = vld [vmem:[%s2675 + $0x20] sm:$0x3f]
  %v2681 = vld [vmem:[%s2675 + $0x28] sm:$0x3f]
  %v2682 = vld [vmem:[%s2675 + $0x30] sm:$0x3f]
  %v2683 = vld [vmem:[%s2675 + $0x38] sm:$0x3f]
  %v2684 = vmul.f32 %v2676, %v1769
  %v2685 = vmul.f32 %v2677, %v1770
  %v2686 = vmul.f32 %v2678, %v1771
  %v2687 = vmul.f32 %v2679, %v1772
  %v2688 = vmul.f32 %v2680, %v1769
  %v2689 = vmul.f32 %v2681, %v1770
  %v2690 = vmul.f32 %v2682, %v1771
  %v2691 = vmul.f32 %v2683, %v1772
  %v2692 = vadd.f32 %v2667, %v2684
  %v2693 = vadd.f32 %v2668, %v2685
  %v2694 = vadd.f32 %v2669, %v2686
  %v2695 = vadd.f32 %v2670, %v2687
  %v2696 = vadd.f32 %v2671, %v2688
  %v2697 = vadd.f32 %v2672, %v2689
  %v2698 = vadd.f32 %v2673, %v2690
  %v2699 = vadd.f32 %v2674, %v2691
  %s2700 = scalar_lea.vmem %s2, 256
  %2701 = vst [vmem:[%s2700] sm:$0xff] %v2692
  %2702 = vst [vmem:[%s2700 + $0x8] sm:$0xff] %v2693
  %2703 = vst [vmem:[%s2700 + $0x10] sm:$0xff] %v2694
  %2704 = vst.msk [vmem:[%s2700 + $0x18] sm:$0xff] %vm14, %v2695
  %2705 = vst [vmem:[%s2700 + $0x20] sm:$0x3f] %v2696
  %2706 = vst [vmem:[%s2700 + $0x28] sm:$0x3f] %v2697
  %2707 = vst [vmem:[%s2700 + $0x30] sm:$0x3f] %v2698
  %2708 = vst.msk [vmem:[%s2700 + $0x38] sm:$0x3f] %vm19, %v2699
  %v2709 = vld [vmem:[%s2397] sm:$0xff]
  %v2710 = vld [vmem:[%s2397 + $0x8] sm:$0xff]
  %v2711 = vld [vmem:[%s2397 + $0x10] sm:$0xff]
  %v2712 = vld [vmem:[%s2397 + $0x18] sm:$0xff]
  %v2713 = vld [vmem:[%s2397 + $0x20] sm:$0x3f]
  %v2714 = vld [vmem:[%s2397 + $0x28] sm:$0x3f]
  %v2715 = vld [vmem:[%s2397 + $0x30] sm:$0x3f]
  %v2716 = vld [vmem:[%s2397 + $0x38] sm:$0x3f]
  %v2717 = vmul.f32 %v2709, %v1540
  %v2718 = vmul.f32 %v2710, %v1541
  %v2719 = vmul.f32 %v2711, %v1542
  %v2720 = vmul.f32 %v2712, %v1543
  %v2721 = vmul.f32 %v2713, %v1540
  %v2722 = vmul.f32 %v2714, %v1541
  %v2723 = vmul.f32 %v2715, %v1542
  %v2724 = vmul.f32 %v2716, %v1543
  %v2725 = vadd.f32 %v2717, 0.0
  %v2726 = vadd.f32 %v2718, 0.0
  %v2727 = vadd.f32 %v2719, 0.0
  %v2728 = vadd.f32 %v2720, 0.0
  %v2729 = vadd.f32 %v2721, 0.0
  %v2730 = vadd.f32 %v2722, 0.0
  %v2731 = vadd.f32 %v2723, 0.0
  %v2732 = vadd.f32 %v2724, 0.0
  %v2733 = vld [vmem:[%s2422] sm:$0xff]
  %v2734 = vld [vmem:[%s2422 + $0x8] sm:$0xff]
  %v2735 = vld [vmem:[%s2422 + $0x10] sm:$0xff]
  %v2736 = vld [vmem:[%s2422 + $0x18] sm:$0xff]
  %v2737 = vld [vmem:[%s2422 + $0x20] sm:$0x3f]
  %v2738 = vld [vmem:[%s2422 + $0x28] sm:$0x3f]
  %v2739 = vld [vmem:[%s2422 + $0x30] sm:$0x3f]
  %v2740 = vld [vmem:[%s2422 + $0x38] sm:$0x3f]
  %v2741 = vmul.f32 %v2733, %v1569
  %v2742 = vmul.f32 %v2734, %v1570
  %v2743 = vmul.f32 %v2735, %v1571
  %v2744 = vmul.f32 %v2736, %v1572
  %v2745 = vmul.f32 %v2737, %v1569
  %v2746 = vmul.f32 %v2738, %v1570
  %v2747 = vmul.f32 %v2739, %v1571
  %v2748 = vmul.f32 %v2740, %v1572
  %v2749 = vadd.f32 %v2725, %v2741
  %v2750 = vadd.f32 %v2726, %v2742
  %v2751 = vadd.f32 %v2727, %v2743
  %v2752 = vadd.f32 %v2728, %v2744
  %v2753 = vadd.f32 %v2729, %v2745
  %v2754 = vadd.f32 %v2730, %v2746
  %v2755 = vadd.f32 %v2731, %v2747
  %v2756 = vadd.f32 %v2732, %v2748
  %v2757 = vld [vmem:[%s2447] sm:$0xff]
  %v2758 = vld [vmem:[%s2447 + $0x8] sm:$0xff]
  %v2759 = vld [vmem:[%s2447 + $0x10] sm:$0xff]
  %v2760 = vld [vmem:[%s2447 + $0x18] sm:$0xff]
  %v2761 = vld [vmem:[%s2447 + $0x20] sm:$0x3f]
  %v2762 = vld [vmem:[%s2447 + $0x28] sm:$0x3f]
  %v2763 = vld [vmem:[%s2447 + $0x30] sm:$0x3f]
  %v2764 = vld [vmem:[%s2447 + $0x38] sm:$0x3f]
  %v2765 = vmul.f32 %v2757, %v1598
  %v2766 = vmul.f32 %v2758, %v1599
  %v2767 = vmul.f32 %v2759, %v1600
  %v2768 = vmul.f32 %v2760, %v1601
  %v2769 = vmul.f32 %v2761, %v1598
  %v2770 = vmul.f32 %v2762, %v1599
  %v2771 = vmul.f32 %v2763, %v1600
  %v2772 = vmul.f32 %v2764, %v1601
  %v2773 = vadd.f32 %v2749, %v2765
  %v2774 = vadd.f32 %v2750, %v2766
  %v2775 = vadd.f32 %v2751, %v2767
  %v2776 = vadd.f32 %v2752, %v2768
  %v2777 = vadd.f32 %v2753, %v2769
  %v2778 = vadd.f32 %v2754, %v2770
  %v2779 = vadd.f32 %v2755, %v2771
  %v2780 = vadd.f32 %v2756, %v2772
  %v2781 = vld [vmem:[%s2625] sm:$0xff]
  %v2782 = vld [vmem:[%s2625 + $0x8] sm:$0xff]
  %v2783 = vld [vmem:[%s2625 + $0x10] sm:$0xff]
  %v2784 = vld [vmem:[%s2625 + $0x18] sm:$0xff]
  %v2785 = vld [vmem:[%s2625 + $0x20] sm:$0x3f]
  %v2786 = vld [vmem:[%s2625 + $0x28] sm:$0x3f]
  %v2787 = vld [vmem:[%s2625 + $0x30] sm:$0x3f]
  %v2788 = vld [vmem:[%s2625 + $0x38] sm:$0x3f]
  %v2789 = vmul.f32 %v2781, %v1626
  %v2790 = vmul.f32 %v2782, %v1627
  %v2791 = vmul.f32 %v2783, %v1628
  %v2792 = vmul.f32 %v2784, %v1629
  %v2793 = vmul.f32 %v2785, %v1626
  %v2794 = vmul.f32 %v2786, %v1627
  %v2795 = vmul.f32 %v2787, %v1628
  %v2796 = vmul.f32 %v2788, %v1629
  %v2797 = vadd.f32 %v2773, %v2789
  %v2798 = vadd.f32 %v2774, %v2790
  %v2799 = vadd.f32 %v2775, %v2791
  %v2800 = vadd.f32 %v2776, %v2792
  %v2801 = vadd.f32 %v2777, %v2793
  %v2802 = vadd.f32 %v2778, %v2794
  %v2803 = vadd.f32 %v2779, %v2795
  %v2804 = vadd.f32 %v2780, %v2796
  %v2805 = vld [vmem:[%s2650] sm:$0xff]
  %v2806 = vld [vmem:[%s2650 + $0x8] sm:$0xff]
  %v2807 = vld [vmem:[%s2650 + $0x10] sm:$0xff]
  %v2808 = vld [vmem:[%s2650 + $0x18] sm:$0xff]
  %v2809 = vld [vmem:[%s2650 + $0x20] sm:$0x3f]
  %v2810 = vld [vmem:[%s2650 + $0x28] sm:$0x3f]
  %v2811 = vld [vmem:[%s2650 + $0x30] sm:$0x3f]
  %v2812 = vld [vmem:[%s2650 + $0x38] sm:$0x3f]
  %v2813 = vmul.f32 %v2805, %v1654
  %v2814 = vmul.f32 %v2806, %v1655
  %v2815 = vmul.f32 %v2807, %v1656
  %v2816 = vmul.f32 %v2808, %v1657
  %v2817 = vmul.f32 %v2809, %v1654
  %v2818 = vmul.f32 %v2810, %v1655
  %v2819 = vmul.f32 %v2811, %v1656
  %v2820 = vmul.f32 %v2812, %v1657
  %v2821 = vadd.f32 %v2797, %v2813
  %v2822 = vadd.f32 %v2798, %v2814
  %v2823 = vadd.f32 %v2799, %v2815
  %v2824 = vadd.f32 %v2800, %v2816
  %v2825 = vadd.f32 %v2801, %v2817
  %v2826 = vadd.f32 %v2802, %v2818
  %v2827 = vadd.f32 %v2803, %v2819
  %v2828 = vadd.f32 %v2804, %v2820
  %v2829 = vld [vmem:[%s2675] sm:$0xff]
  %v2830 = vld [vmem:[%s2675 + $0x8] sm:$0xff]
  %v2831 = vld [vmem:[%s2675 + $0x10] sm:$0xff]
  %v2832 = vld [vmem:[%s2675 + $0x18] sm:$0xff]
  %v2833 = vld [vmem:[%s2675 + $0x20] sm:$0x3f]
  %v2834 = vld [vmem:[%s2675 + $0x28] sm:$0x3f]
  %v2835 = vld [vmem:[%s2675 + $0x30] sm:$0x3f]
  %v2836 = vld [vmem:[%s2675 + $0x38] sm:$0x3f]
  %v2837 = vmul.f32 %v2829, %v1682
  %v2838 = vmul.f32 %v2830, %v1683
  %v2839 = vmul.f32 %v2831, %v1684
  %v2840 = vmul.f32 %v2832, %v1685
  %v2841 = vmul.f32 %v2833, %v1682
  %v2842 = vmul.f32 %v2834, %v1683
  %v2843 = vmul.f32 %v2835, %v1684
  %v2844 = vmul.f32 %v2836, %v1685
  %v2845 = vadd.f32 %v2821, %v2837
  %v2846 = vadd.f32 %v2822, %v2838
  %v2847 = vadd.f32 %v2823, %v2839
  %v2848 = vadd.f32 %v2824, %v2840
  %v2849 = vadd.f32 %v2825, %v2841
  %v2850 = vadd.f32 %v2826, %v2842
  %v2851 = vadd.f32 %v2827, %v2843
  %v2852 = vadd.f32 %v2828, %v2844
  %s2853 = scalar_lea.vmem [#allocation2], 448
  %v2854 = vld [vmem:[%s2853] sm:$0xff]
  %v2855 = vld [vmem:[%s2853 + $0x8] sm:$0xff]
  %v2856 = vld [vmem:[%s2853 + $0x10] sm:$0xff]
  %v2857 = vld [vmem:[%s2853 + $0x18] sm:$0xff]
  %v2858 = vld [vmem:[%s2853 + $0x20] sm:$0x3f]
  %v2859 = vld [vmem:[%s2853 + $0x28] sm:$0x3f]
  %v2860 = vld [vmem:[%s2853 + $0x30] sm:$0x3f]
  %v2861 = vld [vmem:[%s2853 + $0x38] sm:$0x3f]
  %v2862 = vmul.f32 %v2854, %v1711
  %v2863 = vmul.f32 %v2855, %v1712
  %v2864 = vmul.f32 %v2856, %v1713
  %v2865 = vmul.f32 %v2857, %v1714
  %v2866 = vmul.f32 %v2858, %v1711
  %v2867 = vmul.f32 %v2859, %v1712
  %v2868 = vmul.f32 %v2860, %v1713
  %v2869 = vmul.f32 %v2861, %v1714
  %v2870 = vadd.f32 %v2845, %v2862
  %v2871 = vadd.f32 %v2846, %v2863
  %v2872 = vadd.f32 %v2847, %v2864
  %v2873 = vadd.f32 %v2848, %v2865
  %v2874 = vadd.f32 %v2849, %v2866
  %v2875 = vadd.f32 %v2850, %v2867
  %v2876 = vadd.f32 %v2851, %v2868
  %v2877 = vadd.f32 %v2852, %v2869
  %s2878 = scalar_lea.vmem [#allocation2], 1472
  %v2879 = vld [vmem:[%s2878] sm:$0xff]
  %v2880 = vld [vmem:[%s2878 + $0x8] sm:$0xff]
  %v2881 = vld [vmem:[%s2878 + $0x10] sm:$0xff]
  %v2882 = vld [vmem:[%s2878 + $0x18] sm:$0xff]
  %v2883 = vld [vmem:[%s2878 + $0x20] sm:$0x3f]
  %v2884 = vld [vmem:[%s2878 + $0x28] sm:$0x3f]
  %v2885 = vld [vmem:[%s2878 + $0x30] sm:$0x3f]
  %v2886 = vld [vmem:[%s2878 + $0x38] sm:$0x3f]
  %v2887 = vmul.f32 %v2879, %v1740
  %v2888 = vmul.f32 %v2880, %v1741
  %v2889 = vmul.f32 %v2881, %v1742
  %v2890 = vmul.f32 %v2882, %v1743
  %v2891 = vmul.f32 %v2883, %v1740
  %v2892 = vmul.f32 %v2884, %v1741
  %v2893 = vmul.f32 %v2885, %v1742
  %v2894 = vmul.f32 %v2886, %v1743
  %v2895 = vadd.f32 %v2870, %v2887
  %v2896 = vadd.f32 %v2871, %v2888
  %v2897 = vadd.f32 %v2872, %v2889
  %v2898 = vadd.f32 %v2873, %v2890
  %v2899 = vadd.f32 %v2874, %v2891
  %v2900 = vadd.f32 %v2875, %v2892
  %v2901 = vadd.f32 %v2876, %v2893
  %v2902 = vadd.f32 %v2877, %v2894
  %s2903 = scalar_lea.vmem [#allocation2], 2496
  %v2904 = vld [vmem:[%s2903] sm:$0xff]
  %v2905 = vld [vmem:[%s2903 + $0x8] sm:$0xff]
  %v2906 = vld [vmem:[%s2903 + $0x10] sm:$0xff]
  %v2907 = vld [vmem:[%s2903 + $0x18] sm:$0xff]
  %v2908 = vld [vmem:[%s2903 + $0x20] sm:$0x3f]
  %v2909 = vld [vmem:[%s2903 + $0x28] sm:$0x3f]
  %v2910 = vld [vmem:[%s2903 + $0x30] sm:$0x3f]
  %v2911 = vld [vmem:[%s2903 + $0x38] sm:$0x3f]
  %v2912 = vmul.f32 %v2904, %v1769
  %v2913 = vmul.f32 %v2905, %v1770
  %v2914 = vmul.f32 %v2906, %v1771
  %v2915 = vmul.f32 %v2907, %v1772
  %v2916 = vmul.f32 %v2908, %v1769
  %v2917 = vmul.f32 %v2909, %v1770
  %v2918 = vmul.f32 %v2910, %v1771
  %v2919 = vmul.f32 %v2911, %v1772
  %v2920 = vadd.f32 %v2895, %v2912
  %v2921 = vadd.f32 %v2896, %v2913
  %v2922 = vadd.f32 %v2897, %v2914
  %v2923 = vadd.f32 %v2898, %v2915
  %v2924 = vadd.f32 %v2899, %v2916
  %v2925 = vadd.f32 %v2900, %v2917
  %v2926 = vadd.f32 %v2901, %v2918
  %v2927 = vadd.f32 %v2902, %v2919
  %s2928 = scalar_lea.vmem %s2, 320
  %2929 = vst [vmem:[%s2928] sm:$0xff] %v2920
  %2930 = vst [vmem:[%s2928 + $0x8] sm:$0xff] %v2921
  %2931 = vst [vmem:[%s2928 + $0x10] sm:$0xff] %v2922
  %2932 = vst.msk [vmem:[%s2928 + $0x18] sm:$0xff] %vm14, %v2923
  %2933 = vst [vmem:[%s2928 + $0x20] sm:$0x3f] %v2924
  %2934 = vst [vmem:[%s2928 + $0x28] sm:$0x3f] %v2925
  %2935 = vst [vmem:[%s2928 + $0x30] sm:$0x3f] %v2926
  %2936 = vst.msk [vmem:[%s2928 + $0x38] sm:$0x3f] %vm19, %v2927
  %v2937 = vld [vmem:[%s2625] sm:$0xff]
  %v2938 = vld [vmem:[%s2625 + $0x8] sm:$0xff]
  %v2939 = vld [vmem:[%s2625 + $0x10] sm:$0xff]
  %v2940 = vld [vmem:[%s2625 + $0x18] sm:$0xff]
  %v2941 = vld [vmem:[%s2625 + $0x20] sm:$0x3f]
  %v2942 = vld [vmem:[%s2625 + $0x28] sm:$0x3f]
  %v2943 = vld [vmem:[%s2625 + $0x30] sm:$0x3f]
  %v2944 = vld [vmem:[%s2625 + $0x38] sm:$0x3f]
  %v2945 = vmul.f32 %v2937, %v1540
  %v2946 = vmul.f32 %v2938, %v1541
  %v2947 = vmul.f32 %v2939, %v1542
  %v2948 = vmul.f32 %v2940, %v1543
  %v2949 = vmul.f32 %v2941, %v1540
  %v2950 = vmul.f32 %v2942, %v1541
  %v2951 = vmul.f32 %v2943, %v1542
  %v2952 = vmul.f32 %v2944, %v1543
  %v2953 = vadd.f32 %v2945, 0.0
  %v2954 = vadd.f32 %v2946, 0.0
  %v2955 = vadd.f32 %v2947, 0.0
  %v2956 = vadd.f32 %v2948, 0.0
  %v2957 = vadd.f32 %v2949, 0.0
  %v2958 = vadd.f32 %v2950, 0.0
  %v2959 = vadd.f32 %v2951, 0.0
  %v2960 = vadd.f32 %v2952, 0.0
  %v2961 = vld [vmem:[%s2650] sm:$0xff]
  %v2962 = vld [vmem:[%s2650 + $0x8] sm:$0xff]
  %v2963 = vld [vmem:[%s2650 + $0x10] sm:$0xff]
  %v2964 = vld [vmem:[%s2650 + $0x18] sm:$0xff]
  %v2965 = vld [vmem:[%s2650 + $0x20] sm:$0x3f]
  %v2966 = vld [vmem:[%s2650 + $0x28] sm:$0x3f]
  %v2967 = vld [vmem:[%s2650 + $0x30] sm:$0x3f]
  %v2968 = vld [vmem:[%s2650 + $0x38] sm:$0x3f]
  %v2969 = vmul.f32 %v2961, %v1569
  %v2970 = vmul.f32 %v2962, %v1570
  %v2971 = vmul.f32 %v2963, %v1571
  %v2972 = vmul.f32 %v2964, %v1572
  %v2973 = vmul.f32 %v2965, %v1569
  %v2974 = vmul.f32 %v2966, %v1570
  %v2975 = vmul.f32 %v2967, %v1571
  %v2976 = vmul.f32 %v2968, %v1572
  %v2977 = vadd.f32 %v2953, %v2969
  %v2978 = vadd.f32 %v2954, %v2970
  %v2979 = vadd.f32 %v2955, %v2971
  %v2980 = vadd.f32 %v2956, %v2972
  %v2981 = vadd.f32 %v2957, %v2973
  %v2982 = vadd.f32 %v2958, %v2974
  %v2983 = vadd.f32 %v2959, %v2975
  %v2984 = vadd.f32 %v2960, %v2976
  %v2985 = vld [vmem:[%s2675] sm:$0xff]
  %v2986 = vld [vmem:[%s2675 + $0x8] sm:$0xff]
  %v2987 = vld [vmem:[%s2675 + $0x10] sm:$0xff]
  %v2988 = vld [vmem:[%s2675 + $0x18] sm:$0xff]
  %v2989 = vld [vmem:[%s2675 + $0x20] sm:$0x3f]
  %v2990 = vld [vmem:[%s2675 + $0x28] sm:$0x3f]
  %v2991 = vld [vmem:[%s2675 + $0x30] sm:$0x3f]
  %v2992 = vld [vmem:[%s2675 + $0x38] sm:$0x3f]
  %v2993 = vmul.f32 %v2985, %v1598
  %v2994 = vmul.f32 %v2986, %v1599
  %v2995 = vmul.f32 %v2987, %v1600
  %v2996 = vmul.f32 %v2988, %v1601
  %v2997 = vmul.f32 %v2989, %v1598
  %v2998 = vmul.f32 %v2990, %v1599
  %v2999 = vmul.f32 %v2991, %v1600
  %v3000 = vmul.f32 %v2992, %v1601
  %v3001 = vadd.f32 %v2977, %v2993
  %v3002 = vadd.f32 %v2978, %v2994
  %v3003 = vadd.f32 %v2979, %v2995
  %v3004 = vadd.f32 %v2980, %v2996
  %v3005 = vadd.f32 %v2981, %v2997
  %v3006 = vadd.f32 %v2982, %v2998
  %v3007 = vadd.f32 %v2983, %v2999
  %v3008 = vadd.f32 %v2984, %v3000
  %v3009 = vld [vmem:[%s2853] sm:$0xff]
  %v3010 = vld [vmem:[%s2853 + $0x8] sm:$0xff]
  %v3011 = vld [vmem:[%s2853 + $0x10] sm:$0xff]
  %v3012 = vld [vmem:[%s2853 + $0x18] sm:$0xff]
  %v3013 = vld [vmem:[%s2853 + $0x20] sm:$0x3f]
  %v3014 = vld [vmem:[%s2853 + $0x28] sm:$0x3f]
  %v3015 = vld [vmem:[%s2853 + $0x30] sm:$0x3f]
  %v3016 = vld [vmem:[%s2853 + $0x38] sm:$0x3f]
  %v3017 = vmul.f32 %v3009, %v1626
  %v3018 = vmul.f32 %v3010, %v1627
  %v3019 = vmul.f32 %v3011, %v1628
  %v3020 = vmul.f32 %v3012, %v1629
  %v3021 = vmul.f32 %v3013, %v1626
  %v3022 = vmul.f32 %v3014, %v1627
  %v3023 = vmul.f32 %v3015, %v1628
  %v3024 = vmul.f32 %v3016, %v1629
  %v3025 = vadd.f32 %v3001, %v3017
  %v3026 = vadd.f32 %v3002, %v3018
  %v3027 = vadd.f32 %v3003, %v3019
  %v3028 = vadd.f32 %v3004, %v3020
  %v3029 = vadd.f32 %v3005, %v3021
  %v3030 = vadd.f32 %v3006, %v3022
  %v3031 = vadd.f32 %v3007, %v3023
  %v3032 = vadd.f32 %v3008, %v3024
  %v3033 = vld [vmem:[%s2878] sm:$0xff]
  %v3034 = vld [vmem:[%s2878 + $0x8] sm:$0xff]
  %v3035 = vld [vmem:[%s2878 + $0x10] sm:$0xff]
  %v3036 = vld [vmem:[%s2878 + $0x18] sm:$0xff]
  %v3037 = vld [vmem:[%s2878 + $0x20] sm:$0x3f]
  %v3038 = vld [vmem:[%s2878 + $0x28] sm:$0x3f]
  %v3039 = vld [vmem:[%s2878 + $0x30] sm:$0x3f]
  %v3040 = vld [vmem:[%s2878 + $0x38] sm:$0x3f]
  %v3041 = vmul.f32 %v3033, %v1654
  %v3042 = vmul.f32 %v3034, %v1655
  %v3043 = vmul.f32 %v3035, %v1656
  %v3044 = vmul.f32 %v3036, %v1657
  %v3045 = vmul.f32 %v3037, %v1654
  %v3046 = vmul.f32 %v3038, %v1655
  %v3047 = vmul.f32 %v3039, %v1656
  %v3048 = vmul.f32 %v3040, %v1657
  %v3049 = vadd.f32 %v3025, %v3041
  %v3050 = vadd.f32 %v3026, %v3042
  %v3051 = vadd.f32 %v3027, %v3043
  %v3052 = vadd.f32 %v3028, %v3044
  %v3053 = vadd.f32 %v3029, %v3045
  %v3054 = vadd.f32 %v3030, %v3046
  %v3055 = vadd.f32 %v3031, %v3047
  %v3056 = vadd.f32 %v3032, %v3048
  %v3057 = vld [vmem:[%s2903] sm:$0xff]
  %v3058 = vld [vmem:[%s2903 + $0x8] sm:$0xff]
  %v3059 = vld [vmem:[%s2903 + $0x10] sm:$0xff]
  %v3060 = vld [vmem:[%s2903 + $0x18] sm:$0xff]
  %v3061 = vld [vmem:[%s2903 + $0x20] sm:$0x3f]
  %v3062 = vld [vmem:[%s2903 + $0x28] sm:$0x3f]
  %v3063 = vld [vmem:[%s2903 + $0x30] sm:$0x3f]
  %v3064 = vld [vmem:[%s2903 + $0x38] sm:$0x3f]
  %v3065 = vmul.f32 %v3057, %v1682
  %v3066 = vmul.f32 %v3058, %v1683
  %v3067 = vmul.f32 %v3059, %v1684
  %v3068 = vmul.f32 %v3060, %v1685
  %v3069 = vmul.f32 %v3061, %v1682
  %v3070 = vmul.f32 %v3062, %v1683
  %v3071 = vmul.f32 %v3063, %v1684
  %v3072 = vmul.f32 %v3064, %v1685
  %v3073 = vadd.f32 %v3049, %v3065
  %v3074 = vadd.f32 %v3050, %v3066
  %v3075 = vadd.f32 %v3051, %v3067
  %v3076 = vadd.f32 %v3052, %v3068
  %v3077 = vadd.f32 %v3053, %v3069
  %v3078 = vadd.f32 %v3054, %v3070
  %v3079 = vadd.f32 %v3055, %v3071
  %v3080 = vadd.f32 %v3056, %v3072
  %s3081 = scalar_lea.vmem [#allocation2], 512
  %v3082 = vld [vmem:[%s3081] sm:$0xff]
  %v3083 = vld [vmem:[%s3081 + $0x8] sm:$0xff]
  %v3084 = vld [vmem:[%s3081 + $0x10] sm:$0xff]
  %v3085 = vld [vmem:[%s3081 + $0x18] sm:$0xff]
  %v3086 = vld [vmem:[%s3081 + $0x20] sm:$0x3f]
  %v3087 = vld [vmem:[%s3081 + $0x28] sm:$0x3f]
  %v3088 = vld [vmem:[%s3081 + $0x30] sm:$0x3f]
  %v3089 = vld [vmem:[%s3081 + $0x38] sm:$0x3f]
  %v3090 = vmul.f32 %v3082, %v1711
  %v3091 = vmul.f32 %v3083, %v1712
  %v3092 = vmul.f32 %v3084, %v1713
  %v3093 = vmul.f32 %v3085, %v1714
  %v3094 = vmul.f32 %v3086, %v1711
  %v3095 = vmul.f32 %v3087, %v1712
  %v3096 = vmul.f32 %v3088, %v1713
  %v3097 = vmul.f32 %v3089, %v1714
  %v3098 = vadd.f32 %v3073, %v3090
  %v3099 = vadd.f32 %v3074, %v3091
  %v3100 = vadd.f32 %v3075, %v3092
  %v3101 = vadd.f32 %v3076, %v3093
  %v3102 = vadd.f32 %v3077, %v3094
  %v3103 = vadd.f32 %v3078, %v3095
  %v3104 = vadd.f32 %v3079, %v3096
  %v3105 = vadd.f32 %v3080, %v3097
  %s3106 = scalar_lea.vmem [#allocation2], 1536
  %v3107 = vld [vmem:[%s3106] sm:$0xff]
  %v3108 = vld [vmem:[%s3106 + $0x8] sm:$0xff]
  %v3109 = vld [vmem:[%s3106 + $0x10] sm:$0xff]
  %v3110 = vld [vmem:[%s3106 + $0x18] sm:$0xff]
  %v3111 = vld [vmem:[%s3106 + $0x20] sm:$0x3f]
  %v3112 = vld [vmem:[%s3106 + $0x28] sm:$0x3f]
  %v3113 = vld [vmem:[%s3106 + $0x30] sm:$0x3f]
  %v3114 = vld [vmem:[%s3106 + $0x38] sm:$0x3f]
  %v3115 = vmul.f32 %v3107, %v1740
  %v3116 = vmul.f32 %v3108, %v1741
  %v3117 = vmul.f32 %v3109, %v1742
  %v3118 = vmul.f32 %v3110, %v1743
  %v3119 = vmul.f32 %v3111, %v1740
  %v3120 = vmul.f32 %v3112, %v1741
  %v3121 = vmul.f32 %v3113, %v1742
  %v3122 = vmul.f32 %v3114, %v1743
  %v3123 = vadd.f32 %v3098, %v3115
  %v3124 = vadd.f32 %v3099, %v3116
  %v3125 = vadd.f32 %v3100, %v3117
  %v3126 = vadd.f32 %v3101, %v3118
  %v3127 = vadd.f32 %v3102, %v3119
  %v3128 = vadd.f32 %v3103, %v3120
  %v3129 = vadd.f32 %v3104, %v3121
  %v3130 = vadd.f32 %v3105, %v3122
  %s3131 = scalar_lea.vmem [#allocation2], 2560
  %v3132 = vld [vmem:[%s3131] sm:$0xff]
  %v3133 = vld [vmem:[%s3131 + $0x8] sm:$0xff]
  %v3134 = vld [vmem:[%s3131 + $0x10] sm:$0xff]
  %v3135 = vld [vmem:[%s3131 + $0x18] sm:$0xff]
  %v3136 = vld [vmem:[%s3131 + $0x20] sm:$0x3f]
  %v3137 = vld [vmem:[%s3131 + $0x28] sm:$0x3f]
  %v3138 = vld [vmem:[%s3131 + $0x30] sm:$0x3f]
  %v3139 = vld [vmem:[%s3131 + $0x38] sm:$0x3f]
  %v3140 = vmul.f32 %v3132, %v1769
  %v3141 = vmul.f32 %v3133, %v1770
  %v3142 = vmul.f32 %v3134, %v1771
  %v3143 = vmul.f32 %v3135, %v1772
  %v3144 = vmul.f32 %v3136, %v1769
  %v3145 = vmul.f32 %v3137, %v1770
  %v3146 = vmul.f32 %v3138, %v1771
  %v3147 = vmul.f32 %v3139, %v1772
  %v3148 = vadd.f32 %v3123, %v3140
  %v3149 = vadd.f32 %v3124, %v3141
  %v3150 = vadd.f32 %v3125, %v3142
  %v3151 = vadd.f32 %v3126, %v3143
  %v3152 = vadd.f32 %v3127, %v3144
  %v3153 = vadd.f32 %v3128, %v3145
  %v3154 = vadd.f32 %v3129, %v3146
  %v3155 = vadd.f32 %v3130, %v3147
  %s3156 = scalar_lea.vmem %s2, 384
  %3157 = vst [vmem:[%s3156] sm:$0xff] %v3148
  %3158 = vst [vmem:[%s3156 + $0x8] sm:$0xff] %v3149
  %3159 = vst [vmem:[%s3156 + $0x10] sm:$0xff] %v3150
  %3160 = vst.msk [vmem:[%s3156 + $0x18] sm:$0xff] %vm14, %v3151
  %3161 = vst [vmem:[%s3156 + $0x20] sm:$0x3f] %v3152
  %3162 = vst [vmem:[%s3156 + $0x28] sm:$0x3f] %v3153
  %3163 = vst [vmem:[%s3156 + $0x30] sm:$0x3f] %v3154
  %3164 = vst.msk [vmem:[%s3156 + $0x38] sm:$0x3f] %vm19, %v3155
  %v3165 = vld [vmem:[%s2853] sm:$0xff]
  %v3166 = vld [vmem:[%s2853 + $0x8] sm:$0xff]
  %v3167 = vld [vmem:[%s2853 + $0x10] sm:$0xff]
  %v3168 = vld [vmem:[%s2853 + $0x18] sm:$0xff]
  %v3169 = vld [vmem:[%s2853 + $0x20] sm:$0x3f]
  %v3170 = vld [vmem:[%s2853 + $0x28] sm:$0x3f]
  %v3171 = vld [vmem:[%s2853 + $0x30] sm:$0x3f]
  %v3172 = vld [vmem:[%s2853 + $0x38] sm:$0x3f]
  %v3173 = vmul.f32 %v3165, %v1540
  %v3174 = vmul.f32 %v3166, %v1541
  %v3175 = vmul.f32 %v3167, %v1542
  %v3176 = vmul.f32 %v3168, %v1543
  %v3177 = vmul.f32 %v3169, %v1540
  %v3178 = vmul.f32 %v3170, %v1541
  %v3179 = vmul.f32 %v3171, %v1542
  %v3180 = vmul.f32 %v3172, %v1543
  %v3181 = vadd.f32 %v3173, 0.0
  %v3182 = vadd.f32 %v3174, 0.0
  %v3183 = vadd.f32 %v3175, 0.0
  %v3184 = vadd.f32 %v3176, 0.0
  %v3185 = vadd.f32 %v3177, 0.0
  %v3186 = vadd.f32 %v3178, 0.0
  %v3187 = vadd.f32 %v3179, 0.0
  %v3188 = vadd.f32 %v3180, 0.0
  %v3189 = vld [vmem:[%s2878] sm:$0xff]
  %v3190 = vld [vmem:[%s2878 + $0x8] sm:$0xff]
  %v3191 = vld [vmem:[%s2878 + $0x10] sm:$0xff]
  %v3192 = vld [vmem:[%s2878 + $0x18] sm:$0xff]
  %v3193 = vld [vmem:[%s2878 + $0x20] sm:$0x3f]
  %v3194 = vld [vmem:[%s2878 + $0x28] sm:$0x3f]
  %v3195 = vld [vmem:[%s2878 + $0x30] sm:$0x3f]
  %v3196 = vld [vmem:[%s2878 + $0x38] sm:$0x3f]
  %v3197 = vmul.f32 %v3189, %v1569
  %v3198 = vmul.f32 %v3190, %v1570
  %v3199 = vmul.f32 %v3191, %v1571
  %v3200 = vmul.f32 %v3192, %v1572
  %v3201 = vmul.f32 %v3193, %v1569
  %v3202 = vmul.f32 %v3194, %v1570
  %v3203 = vmul.f32 %v3195, %v1571
  %v3204 = vmul.f32 %v3196, %v1572
  %v3205 = vadd.f32 %v3181, %v3197
  %v3206 = vadd.f32 %v3182, %v3198
  %v3207 = vadd.f32 %v3183, %v3199
  %v3208 = vadd.f32 %v3184, %v3200
  %v3209 = vadd.f32 %v3185, %v3201
  %v3210 = vadd.f32 %v3186, %v3202
  %v3211 = vadd.f32 %v3187, %v3203
  %v3212 = vadd.f32 %v3188, %v3204
  %v3213 = vld [vmem:[%s2903] sm:$0xff]
  %v3214 = vld [vmem:[%s2903 + $0x8] sm:$0xff]
  %v3215 = vld [vmem:[%s2903 + $0x10] sm:$0xff]
  %v3216 = vld [vmem:[%s2903 + $0x18] sm:$0xff]
  %v3217 = vld [vmem:[%s2903 + $0x20] sm:$0x3f]
  %v3218 = vld [vmem:[%s2903 + $0x28] sm:$0x3f]
  %v3219 = vld [vmem:[%s2903 + $0x30] sm:$0x3f]
  %v3220 = vld [vmem:[%s2903 + $0x38] sm:$0x3f]
  %v3221 = vmul.f32 %v3213, %v1598
  %v3222 = vmul.f32 %v3214, %v1599
  %v3223 = vmul.f32 %v3215, %v1600
  %v3224 = vmul.f32 %v3216, %v1601
  %v3225 = vmul.f32 %v3217, %v1598
  %v3226 = vmul.f32 %v3218, %v1599
  %v3227 = vmul.f32 %v3219, %v1600
  %v3228 = vmul.f32 %v3220, %v1601
  %v3229 = vadd.f32 %v3205, %v3221
  %v3230 = vadd.f32 %v3206, %v3222
  %v3231 = vadd.f32 %v3207, %v3223
  %v3232 = vadd.f32 %v3208, %v3224
  %v3233 = vadd.f32 %v3209, %v3225
  %v3234 = vadd.f32 %v3210, %v3226
  %v3235 = vadd.f32 %v3211, %v3227
  %v3236 = vadd.f32 %v3212, %v3228
  %v3237 = vld [vmem:[%s3081] sm:$0xff]
  %v3238 = vld [vmem:[%s3081 + $0x8] sm:$0xff]
  %v3239 = vld [vmem:[%s3081 + $0x10] sm:$0xff]
  %v3240 = vld [vmem:[%s3081 + $0x18] sm:$0xff]
  %v3241 = vld [vmem:[%s3081 + $0x20] sm:$0x3f]
  %v3242 = vld [vmem:[%s3081 + $0x28] sm:$0x3f]
  %v3243 = vld [vmem:[%s3081 + $0x30] sm:$0x3f]
  %v3244 = vld [vmem:[%s3081 + $0x38] sm:$0x3f]
  %v3245 = vmul.f32 %v3237, %v1626
  %v3246 = vmul.f32 %v3238, %v1627
  %v3247 = vmul.f32 %v3239, %v1628
  %v3248 = vmul.f32 %v3240, %v1629
  %v3249 = vmul.f32 %v3241, %v1626
  %v3250 = vmul.f32 %v3242, %v1627
  %v3251 = vmul.f32 %v3243, %v1628
  %v3252 = vmul.f32 %v3244, %v1629
  %v3253 = vadd.f32 %v3229, %v3245
  %v3254 = vadd.f32 %v3230, %v3246
  %v3255 = vadd.f32 %v3231, %v3247
  %v3256 = vadd.f32 %v3232, %v3248
  %v3257 = vadd.f32 %v3233, %v3249
  %v3258 = vadd.f32 %v3234, %v3250
  %v3259 = vadd.f32 %v3235, %v3251
  %v3260 = vadd.f32 %v3236, %v3252
  %v3261 = vld [vmem:[%s3106] sm:$0xff]
  %v3262 = vld [vmem:[%s3106 + $0x8] sm:$0xff]
  %v3263 = vld [vmem:[%s3106 + $0x10] sm:$0xff]
  %v3264 = vld [vmem:[%s3106 + $0x18] sm:$0xff]
  %v3265 = vld [vmem:[%s3106 + $0x20] sm:$0x3f]
  %v3266 = vld [vmem:[%s3106 + $0x28] sm:$0x3f]
  %v3267 = vld [vmem:[%s3106 + $0x30] sm:$0x3f]
  %v3268 = vld [vmem:[%s3106 + $0x38] sm:$0x3f]
  %v3269 = vmul.f32 %v3261, %v1654
  %v3270 = vmul.f32 %v3262, %v1655
  %v3271 = vmul.f32 %v3263, %v1656
  %v3272 = vmul.f32 %v3264, %v1657
  %v3273 = vmul.f32 %v3265, %v1654
  %v3274 = vmul.f32 %v3266, %v1655
  %v3275 = vmul.f32 %v3267, %v1656
  %v3276 = vmul.f32 %v3268, %v1657
  %v3277 = vadd.f32 %v3253, %v3269
  %v3278 = vadd.f32 %v3254, %v3270
  %v3279 = vadd.f32 %v3255, %v3271
  %v3280 = vadd.f32 %v3256, %v3272
  %v3281 = vadd.f32 %v3257, %v3273
  %v3282 = vadd.f32 %v3258, %v3274
  %v3283 = vadd.f32 %v3259, %v3275
  %v3284 = vadd.f32 %v3260, %v3276
  %v3285 = vld [vmem:[%s3131] sm:$0xff]
  %v3286 = vld [vmem:[%s3131 + $0x8] sm:$0xff]
  %v3287 = vld [vmem:[%s3131 + $0x10] sm:$0xff]
  %v3288 = vld [vmem:[%s3131 + $0x18] sm:$0xff]
  %v3289 = vld [vmem:[%s3131 + $0x20] sm:$0x3f]
  %v3290 = vld [vmem:[%s3131 + $0x28] sm:$0x3f]
  %v3291 = vld [vmem:[%s3131 + $0x30] sm:$0x3f]
  %v3292 = vld [vmem:[%s3131 + $0x38] sm:$0x3f]
  %v3293 = vmul.f32 %v3285, %v1682
  %v3294 = vmul.f32 %v3286, %v1683
  %v3295 = vmul.f32 %v3287, %v1684
  %v3296 = vmul.f32 %v3288, %v1685
  %v3297 = vmul.f32 %v3289, %v1682
  %v3298 = vmul.f32 %v3290, %v1683
  %v3299 = vmul.f32 %v3291, %v1684
  %v3300 = vmul.f32 %v3292, %v1685
  %v3301 = vadd.f32 %v3277, %v3293
  %v3302 = vadd.f32 %v3278, %v3294
  %v3303 = vadd.f32 %v3279, %v3295
  %v3304 = vadd.f32 %v3280, %v3296
  %v3305 = vadd.f32 %v3281, %v3297
  %v3306 = vadd.f32 %v3282, %v3298
  %v3307 = vadd.f32 %v3283, %v3299
  %v3308 = vadd.f32 %v3284, %v3300
  %s3309 = scalar_lea.vmem [#allocation2], 576
  %v3310 = vld [vmem:[%s3309] sm:$0xff]
  %v3311 = vld [vmem:[%s3309 + $0x8] sm:$0xff]
  %v3312 = vld [vmem:[%s3309 + $0x10] sm:$0xff]
  %v3313 = vld [vmem:[%s3309 + $0x18] sm:$0xff]
  %v3314 = vld [vmem:[%s3309 + $0x20] sm:$0x3f]
  %v3315 = vld [vmem:[%s3309 + $0x28] sm:$0x3f]
  %v3316 = vld [vmem:[%s3309 + $0x30] sm:$0x3f]
  %v3317 = vld [vmem:[%s3309 + $0x38] sm:$0x3f]
  %v3318 = vmul.f32 %v3310, %v1711
  %v3319 = vmul.f32 %v3311, %v1712
  %v3320 = vmul.f32 %v3312, %v1713
  %v3321 = vmul.f32 %v3313, %v1714
  %v3322 = vmul.f32 %v3314, %v1711
  %v3323 = vmul.f32 %v3315, %v1712
  %v3324 = vmul.f32 %v3316, %v1713
  %v3325 = vmul.f32 %v3317, %v1714
  %v3326 = vadd.f32 %v3301, %v3318
  %v3327 = vadd.f32 %v3302, %v3319
  %v3328 = vadd.f32 %v3303, %v3320
  %v3329 = vadd.f32 %v3304, %v3321
  %v3330 = vadd.f32 %v3305, %v3322
  %v3331 = vadd.f32 %v3306, %v3323
  %v3332 = vadd.f32 %v3307, %v3324
  %v3333 = vadd.f32 %v3308, %v3325
  %s3334 = scalar_lea.vmem [#allocation2], 1600
  %v3335 = vld [vmem:[%s3334] sm:$0xff]
  %v3336 = vld [vmem:[%s3334 + $0x8] sm:$0xff]
  %v3337 = vld [vmem:[%s3334 + $0x10] sm:$0xff]
  %v3338 = vld [vmem:[%s3334 + $0x18] sm:$0xff]
  %v3339 = vld [vmem:[%s3334 + $0x20] sm:$0x3f]
  %v3340 = vld [vmem:[%s3334 + $0x28] sm:$0x3f]
  %v3341 = vld [vmem:[%s3334 + $0x30] sm:$0x3f]
  %v3342 = vld [vmem:[%s3334 + $0x38] sm:$0x3f]
  %v3343 = vmul.f32 %v3335, %v1740
  %v3344 = vmul.f32 %v3336, %v1741
  %v3345 = vmul.f32 %v3337, %v1742
  %v3346 = vmul.f32 %v3338, %v1743
  %v3347 = vmul.f32 %v3339, %v1740
  %v3348 = vmul.f32 %v3340, %v1741
  %v3349 = vmul.f32 %v3341, %v1742
  %v3350 = vmul.f32 %v3342, %v1743
  %v3351 = vadd.f32 %v3326, %v3343
  %v3352 = vadd.f32 %v3327, %v3344
  %v3353 = vadd.f32 %v3328, %v3345
  %v3354 = vadd.f32 %v3329, %v3346
  %v3355 = vadd.f32 %v3330, %v3347
  %v3356 = vadd.f32 %v3331, %v3348
  %v3357 = vadd.f32 %v3332, %v3349
  %v3358 = vadd.f32 %v3333, %v3350
  %s3359 = scalar_lea.vmem [#allocation2], 2624
  %v3360 = vld [vmem:[%s3359] sm:$0xff]
  %v3361 = vld [vmem:[%s3359 + $0x8] sm:$0xff]
  %v3362 = vld [vmem:[%s3359 + $0x10] sm:$0xff]
  %v3363 = vld [vmem:[%s3359 + $0x18] sm:$0xff]
  %v3364 = vld [vmem:[%s3359 + $0x20] sm:$0x3f]
  %v3365 = vld [vmem:[%s3359 + $0x28] sm:$0x3f]
  %v3366 = vld [vmem:[%s3359 + $0x30] sm:$0x3f]
  %v3367 = vld [vmem:[%s3359 + $0x38] sm:$0x3f]
  %v3368 = vmul.f32 %v3360, %v1769
  %v3369 = vmul.f32 %v3361, %v1770
  %v3370 = vmul.f32 %v3362, %v1771
  %v3371 = vmul.f32 %v3363, %v1772
  %v3372 = vmul.f32 %v3364, %v1769
  %v3373 = vmul.f32 %v3365, %v1770
  %v3374 = vmul.f32 %v3366, %v1771
  %v3375 = vmul.f32 %v3367, %v1772
  %v3376 = vadd.f32 %v3351, %v3368
  %v3377 = vadd.f32 %v3352, %v3369
  %v3378 = vadd.f32 %v3353, %v3370
  %v3379 = vadd.f32 %v3354, %v3371
  %v3380 = vadd.f32 %v3355, %v3372
  %v3381 = vadd.f32 %v3356, %v3373
  %v3382 = vadd.f32 %v3357, %v3374
  %v3383 = vadd.f32 %v3358, %v3375
  %s3384 = scalar_lea.vmem %s2, 448
  %3385 = vst [vmem:[%s3384] sm:$0xff] %v3376
  %3386 = vst [vmem:[%s3384 + $0x8] sm:$0xff] %v3377
  %3387 = vst [vmem:[%s3384 + $0x10] sm:$0xff] %v3378
  %3388 = vst.msk [vmem:[%s3384 + $0x18] sm:$0xff] %vm14, %v3379
  %3389 = vst [vmem:[%s3384 + $0x20] sm:$0x3f] %v3380
  %3390 = vst [vmem:[%s3384 + $0x28] sm:$0x3f] %v3381
  %3391 = vst [vmem:[%s3384 + $0x30] sm:$0x3f] %v3382
  %3392 = vst.msk [vmem:[%s3384 + $0x38] sm:$0x3f] %vm19, %v3383
  %v3393 = vld [vmem:[%s3081] sm:$0xff]
  %v3394 = vld [vmem:[%s3081 + $0x8] sm:$0xff]
  %v3395 = vld [vmem:[%s3081 + $0x10] sm:$0xff]
  %v3396 = vld [vmem:[%s3081 + $0x18] sm:$0xff]
  %v3397 = vld [vmem:[%s3081 + $0x20] sm:$0x3f]
  %v3398 = vld [vmem:[%s3081 + $0x28] sm:$0x3f]
  %v3399 = vld [vmem:[%s3081 + $0x30] sm:$0x3f]
  %v3400 = vld [vmem:[%s3081 + $0x38] sm:$0x3f]
  %v3401 = vmul.f32 %v3393, %v1540
  %v3402 = vmul.f32 %v3394, %v1541
  %v3403 = vmul.f32 %v3395, %v1542
  %v3404 = vmul.f32 %v3396, %v1543
  %v3405 = vmul.f32 %v3397, %v1540
  %v3406 = vmul.f32 %v3398, %v1541
  %v3407 = vmul.f32 %v3399, %v1542
  %v3408 = vmul.f32 %v3400, %v1543
  %v3409 = vadd.f32 %v3401, 0.0
  %v3410 = vadd.f32 %v3402, 0.0
  %v3411 = vadd.f32 %v3403, 0.0
  %v3412 = vadd.f32 %v3404, 0.0
  %v3413 = vadd.f32 %v3405, 0.0
  %v3414 = vadd.f32 %v3406, 0.0
  %v3415 = vadd.f32 %v3407, 0.0
  %v3416 = vadd.f32 %v3408, 0.0
  %v3417 = vld [vmem:[%s3106] sm:$0xff]
  %v3418 = vld [vmem:[%s3106 + $0x8] sm:$0xff]
  %v3419 = vld [vmem:[%s3106 + $0x10] sm:$0xff]
  %v3420 = vld [vmem:[%s3106 + $0x18] sm:$0xff]
  %v3421 = vld [vmem:[%s3106 + $0x20] sm:$0x3f]
  %v3422 = vld [vmem:[%s3106 + $0x28] sm:$0x3f]
  %v3423 = vld [vmem:[%s3106 + $0x30] sm:$0x3f]
  %v3424 = vld [vmem:[%s3106 + $0x38] sm:$0x3f]
  %v3425 = vmul.f32 %v3417, %v1569
  %v3426 = vmul.f32 %v3418, %v1570
  %v3427 = vmul.f32 %v3419, %v1571
  %v3428 = vmul.f32 %v3420, %v1572
  %v3429 = vmul.f32 %v3421, %v1569
  %v3430 = vmul.f32 %v3422, %v1570
  %v3431 = vmul.f32 %v3423, %v1571
  %v3432 = vmul.f32 %v3424, %v1572
  %v3433 = vadd.f32 %v3409, %v3425
  %v3434 = vadd.f32 %v3410, %v3426
  %v3435 = vadd.f32 %v3411, %v3427
  %v3436 = vadd.f32 %v3412, %v3428
  %v3437 = vadd.f32 %v3413, %v3429
  %v3438 = vadd.f32 %v3414, %v3430
  %v3439 = vadd.f32 %v3415, %v3431
  %v3440 = vadd.f32 %v3416, %v3432
  %v3441 = vld [vmem:[%s3131] sm:$0xff]
  %v3442 = vld [vmem:[%s3131 + $0x8] sm:$0xff]
  %v3443 = vld [vmem:[%s3131 + $0x10] sm:$0xff]
  %v3444 = vld [vmem:[%s3131 + $0x18] sm:$0xff]
  %v3445 = vld [vmem:[%s3131 + $0x20] sm:$0x3f]
  %v3446 = vld [vmem:[%s3131 + $0x28] sm:$0x3f]
  %v3447 = vld [vmem:[%s3131 + $0x30] sm:$0x3f]
  %v3448 = vld [vmem:[%s3131 + $0x38] sm:$0x3f]
  %v3449 = vmul.f32 %v3441, %v1598
  %v3450 = vmul.f32 %v3442, %v1599
  %v3451 = vmul.f32 %v3443, %v1600
  %v3452 = vmul.f32 %v3444, %v1601
  %v3453 = vmul.f32 %v3445, %v1598
  %v3454 = vmul.f32 %v3446, %v1599
  %v3455 = vmul.f32 %v3447, %v1600
  %v3456 = vmul.f32 %v3448, %v1601
  %v3457 = vadd.f32 %v3433, %v3449
  %v3458 = vadd.f32 %v3434, %v3450
  %v3459 = vadd.f32 %v3435, %v3451
  %v3460 = vadd.f32 %v3436, %v3452
  %v3461 = vadd.f32 %v3437, %v3453
  %v3462 = vadd.f32 %v3438, %v3454
  %v3463 = vadd.f32 %v3439, %v3455
  %v3464 = vadd.f32 %v3440, %v3456
  %v3465 = vld [vmem:[%s3309] sm:$0xff]
  %v3466 = vld [vmem:[%s3309 + $0x8] sm:$0xff]
  %v3467 = vld [vmem:[%s3309 + $0x10] sm:$0xff]
  %v3468 = vld [vmem:[%s3309 + $0x18] sm:$0xff]
  %v3469 = vld [vmem:[%s3309 + $0x20] sm:$0x3f]
  %v3470 = vld [vmem:[%s3309 + $0x28] sm:$0x3f]
  %v3471 = vld [vmem:[%s3309 + $0x30] sm:$0x3f]
  %v3472 = vld [vmem:[%s3309 + $0x38] sm:$0x3f]
  %v3473 = vmul.f32 %v3465, %v1626
  %v3474 = vmul.f32 %v3466, %v1627
  %v3475 = vmul.f32 %v3467, %v1628
  %v3476 = vmul.f32 %v3468, %v1629
  %v3477 = vmul.f32 %v3469, %v1626
  %v3478 = vmul.f32 %v3470, %v1627
  %v3479 = vmul.f32 %v3471, %v1628
  %v3480 = vmul.f32 %v3472, %v1629
  %v3481 = vadd.f32 %v3457, %v3473
  %v3482 = vadd.f32 %v3458, %v3474
  %v3483 = vadd.f32 %v3459, %v3475
  %v3484 = vadd.f32 %v3460, %v3476
  %v3485 = vadd.f32 %v3461, %v3477
  %v3486 = vadd.f32 %v3462, %v3478
  %v3487 = vadd.f32 %v3463, %v3479
  %v3488 = vadd.f32 %v3464, %v3480
  %v3489 = vld [vmem:[%s3334] sm:$0xff]
  %v3490 = vld [vmem:[%s3334 + $0x8] sm:$0xff]
  %v3491 = vld [vmem:[%s3334 + $0x10] sm:$0xff]
  %v3492 = vld [vmem:[%s3334 + $0x18] sm:$0xff]
  %v3493 = vld [vmem:[%s3334 + $0x20] sm:$0x3f]
  %v3494 = vld [vmem:[%s3334 + $0x28] sm:$0x3f]
  %v3495 = vld [vmem:[%s3334 + $0x30] sm:$0x3f]
  %v3496 = vld [vmem:[%s3334 + $0x38] sm:$0x3f]
  %v3497 = vmul.f32 %v3489, %v1654
  %v3498 = vmul.f32 %v3490, %v1655
  %v3499 = vmul.f32 %v3491, %v1656
  %v3500 = vmul.f32 %v3492, %v1657
  %v3501 = vmul.f32 %v3493, %v1654
  %v3502 = vmul.f32 %v3494, %v1655
  %v3503 = vmul.f32 %v3495, %v1656
  %v3504 = vmul.f32 %v3496, %v1657
  %v3505 = vadd.f32 %v3481, %v3497
  %v3506 = vadd.f32 %v3482, %v3498
  %v3507 = vadd.f32 %v3483, %v3499
  %v3508 = vadd.f32 %v3484, %v3500
  %v3509 = vadd.f32 %v3485, %v3501
  %v3510 = vadd.f32 %v3486, %v3502
  %v3511 = vadd.f32 %v3487, %v3503
  %v3512 = vadd.f32 %v3488, %v3504
  %v3513 = vld [vmem:[%s3359] sm:$0xff]
  %v3514 = vld [vmem:[%s3359 + $0x8] sm:$0xff]
  %v3515 = vld [vmem:[%s3359 + $0x10] sm:$0xff]
  %v3516 = vld [vmem:[%s3359 + $0x18] sm:$0xff]
  %v3517 = vld [vmem:[%s3359 + $0x20] sm:$0x3f]
  %v3518 = vld [vmem:[%s3359 + $0x28] sm:$0x3f]
  %v3519 = vld [vmem:[%s3359 + $0x30] sm:$0x3f]
  %v3520 = vld [vmem:[%s3359 + $0x38] sm:$0x3f]
  %v3521 = vmul.f32 %v3513, %v1682
  %v3522 = vmul.f32 %v3514, %v1683
  %v3523 = vmul.f32 %v3515, %v1684
  %v3524 = vmul.f32 %v3516, %v1685
  %v3525 = vmul.f32 %v3517, %v1682
  %v3526 = vmul.f32 %v3518, %v1683
  %v3527 = vmul.f32 %v3519, %v1684
  %v3528 = vmul.f32 %v3520, %v1685
  %v3529 = vadd.f32 %v3505, %v3521
  %v3530 = vadd.f32 %v3506, %v3522
  %v3531 = vadd.f32 %v3507, %v3523
  %v3532 = vadd.f32 %v3508, %v3524
  %v3533 = vadd.f32 %v3509, %v3525
  %v3534 = vadd.f32 %v3510, %v3526
  %v3535 = vadd.f32 %v3511, %v3527
  %v3536 = vadd.f32 %v3512, %v3528
  %s3537 = scalar_lea.vmem [#allocation2], 640
  %v3538 = vld [vmem:[%s3537] sm:$0xff]
  %v3539 = vld [vmem:[%s3537 + $0x8] sm:$0xff]
  %v3540 = vld [vmem:[%s3537 + $0x10] sm:$0xff]
  %v3541 = vld [vmem:[%s3537 + $0x18] sm:$0xff]
  %v3542 = vld [vmem:[%s3537 + $0x20] sm:$0x3f]
  %v3543 = vld [vmem:[%s3537 + $0x28] sm:$0x3f]
  %v3544 = vld [vmem:[%s3537 + $0x30] sm:$0x3f]
  %v3545 = vld [vmem:[%s3537 + $0x38] sm:$0x3f]
  %v3546 = vmul.f32 %v3538, %v1711
  %v3547 = vmul.f32 %v3539, %v1712
  %v3548 = vmul.f32 %v3540, %v1713
  %v3549 = vmul.f32 %v3541, %v1714
  %v3550 = vmul.f32 %v3542, %v1711
  %v3551 = vmul.f32 %v3543, %v1712
  %v3552 = vmul.f32 %v3544, %v1713
  %v3553 = vmul.f32 %v3545, %v1714
  %v3554 = vadd.f32 %v3529, %v3546
  %v3555 = vadd.f32 %v3530, %v3547
  %v3556 = vadd.f32 %v3531, %v3548
  %v3557 = vadd.f32 %v3532, %v3549
  %v3558 = vadd.f32 %v3533, %v3550
  %v3559 = vadd.f32 %v3534, %v3551
  %v3560 = vadd.f32 %v3535, %v3552
  %v3561 = vadd.f32 %v3536, %v3553
  %s3562 = scalar_lea.vmem [#allocation2], 1664
  %v3563 = vld [vmem:[%s3562] sm:$0xff]
  %v3564 = vld [vmem:[%s3562 + $0x8] sm:$0xff]
  %v3565 = vld [vmem:[%s3562 + $0x10] sm:$0xff]
  %v3566 = vld [vmem:[%s3562 + $0x18] sm:$0xff]
  %v3567 = vld [vmem:[%s3562 + $0x20] sm:$0x3f]
  %v3568 = vld [vmem:[%s3562 + $0x28] sm:$0x3f]
  %v3569 = vld [vmem:[%s3562 + $0x30] sm:$0x3f]
  %v3570 = vld [vmem:[%s3562 + $0x38] sm:$0x3f]
  %v3571 = vmul.f32 %v3563, %v1740
  %v3572 = vmul.f32 %v3564, %v1741
  %v3573 = vmul.f32 %v3565, %v1742
  %v3574 = vmul.f32 %v3566, %v1743
  %v3575 = vmul.f32 %v3567, %v1740
  %v3576 = vmul.f32 %v3568, %v1741
  %v3577 = vmul.f32 %v3569, %v1742
  %v3578 = vmul.f32 %v3570, %v1743
  %v3579 = vadd.f32 %v3554, %v3571
  %v3580 = vadd.f32 %v3555, %v3572
  %v3581 = vadd.f32 %v3556, %v3573
  %v3582 = vadd.f32 %v3557, %v3574
  %v3583 = vadd.f32 %v3558, %v3575
  %v3584 = vadd.f32 %v3559, %v3576
  %v3585 = vadd.f32 %v3560, %v3577
  %v3586 = vadd.f32 %v3561, %v3578
  %s3587 = scalar_lea.vmem [#allocation2], 2688
  %v3588 = vld [vmem:[%s3587] sm:$0xff]
  %v3589 = vld [vmem:[%s3587 + $0x8] sm:$0xff]
  %v3590 = vld [vmem:[%s3587 + $0x10] sm:$0xff]
  %v3591 = vld [vmem:[%s3587 + $0x18] sm:$0xff]
  %v3592 = vld [vmem:[%s3587 + $0x20] sm:$0x3f]
  %v3593 = vld [vmem:[%s3587 + $0x28] sm:$0x3f]
  %v3594 = vld [vmem:[%s3587 + $0x30] sm:$0x3f]
  %v3595 = vld [vmem:[%s3587 + $0x38] sm:$0x3f]
  %v3596 = vmul.f32 %v3588, %v1769
  %v3597 = vmul.f32 %v3589, %v1770
  %v3598 = vmul.f32 %v3590, %v1771
  %v3599 = vmul.f32 %v3591, %v1772
  %v3600 = vmul.f32 %v3592, %v1769
  %v3601 = vmul.f32 %v3593, %v1770
  %v3602 = vmul.f32 %v3594, %v1771
  %v3603 = vmul.f32 %v3595, %v1772
  %v3604 = vadd.f32 %v3579, %v3596
  %v3605 = vadd.f32 %v3580, %v3597
  %v3606 = vadd.f32 %v3581, %v3598
  %v3607 = vadd.f32 %v3582, %v3599
  %v3608 = vadd.f32 %v3583, %v3600
  %v3609 = vadd.f32 %v3584, %v3601
  %v3610 = vadd.f32 %v3585, %v3602
  %v3611 = vadd.f32 %v3586, %v3603
  %s3612 = scalar_lea.vmem %s2, 512
  %3613 = vst [vmem:[%s3612] sm:$0xff] %v3604
  %3614 = vst [vmem:[%s3612 + $0x8] sm:$0xff] %v3605
  %3615 = vst [vmem:[%s3612 + $0x10] sm:$0xff] %v3606
  %3616 = vst.msk [vmem:[%s3612 + $0x18] sm:$0xff] %vm14, %v3607
  %3617 = vst [vmem:[%s3612 + $0x20] sm:$0x3f] %v3608
  %3618 = vst [vmem:[%s3612 + $0x28] sm:$0x3f] %v3609
  %3619 = vst [vmem:[%s3612 + $0x30] sm:$0x3f] %v3610
  %3620 = vst.msk [vmem:[%s3612 + $0x38] sm:$0x3f] %vm19, %v3611
  %v3621 = vld [vmem:[%s3309] sm:$0xff]
  %v3622 = vld [vmem:[%s3309 + $0x8] sm:$0xff]
  %v3623 = vld [vmem:[%s3309 + $0x10] sm:$0xff]
  %v3624 = vld [vmem:[%s3309 + $0x18] sm:$0xff]
  %v3625 = vld [vmem:[%s3309 + $0x20] sm:$0x3f]
  %v3626 = vld [vmem:[%s3309 + $0x28] sm:$0x3f]
  %v3627 = vld [vmem:[%s3309 + $0x30] sm:$0x3f]
  %v3628 = vld [vmem:[%s3309 + $0x38] sm:$0x3f]
  %v3629 = vmul.f32 %v3621, %v1540
  %v3630 = vmul.f32 %v3622, %v1541
  %v3631 = vmul.f32 %v3623, %v1542
  %v3632 = vmul.f32 %v3624, %v1543
  %v3633 = vmul.f32 %v3625, %v1540
  %v3634 = vmul.f32 %v3626, %v1541
  %v3635 = vmul.f32 %v3627, %v1542
  %v3636 = vmul.f32 %v3628, %v1543
  %v3637 = vadd.f32 %v3629, 0.0
  %v3638 = vadd.f32 %v3630, 0.0
  %v3639 = vadd.f32 %v3631, 0.0
  %v3640 = vadd.f32 %v3632, 0.0
  %v3641 = vadd.f32 %v3633, 0.0
  %v3642 = vadd.f32 %v3634, 0.0
  %v3643 = vadd.f32 %v3635, 0.0
  %v3644 = vadd.f32 %v3636, 0.0
  %v3645 = vld [vmem:[%s3334] sm:$0xff]
  %v3646 = vld [vmem:[%s3334 + $0x8] sm:$0xff]
  %v3647 = vld [vmem:[%s3334 + $0x10] sm:$0xff]
  %v3648 = vld [vmem:[%s3334 + $0x18] sm:$0xff]
  %v3649 = vld [vmem:[%s3334 + $0x20] sm:$0x3f]
  %v3650 = vld [vmem:[%s3334 + $0x28] sm:$0x3f]
  %v3651 = vld [vmem:[%s3334 + $0x30] sm:$0x3f]
  %v3652 = vld [vmem:[%s3334 + $0x38] sm:$0x3f]
  %v3653 = vmul.f32 %v3645, %v1569
  %v3654 = vmul.f32 %v3646, %v1570
  %v3655 = vmul.f32 %v3647, %v1571
  %v3656 = vmul.f32 %v3648, %v1572
  %v3657 = vmul.f32 %v3649, %v1569
  %v3658 = vmul.f32 %v3650, %v1570
  %v3659 = vmul.f32 %v3651, %v1571
  %v3660 = vmul.f32 %v3652, %v1572
  %v3661 = vadd.f32 %v3637, %v3653
  %v3662 = vadd.f32 %v3638, %v3654
  %v3663 = vadd.f32 %v3639, %v3655
  %v3664 = vadd.f32 %v3640, %v3656
  %v3665 = vadd.f32 %v3641, %v3657
  %v3666 = vadd.f32 %v3642, %v3658
  %v3667 = vadd.f32 %v3643, %v3659
  %v3668 = vadd.f32 %v3644, %v3660
  %v3669 = vld [vmem:[%s3359] sm:$0xff]
  %v3670 = vld [vmem:[%s3359 + $0x8] sm:$0xff]
  %v3671 = vld [vmem:[%s3359 + $0x10] sm:$0xff]
  %v3672 = vld [vmem:[%s3359 + $0x18] sm:$0xff]
  %v3673 = vld [vmem:[%s3359 + $0x20] sm:$0x3f]
  %v3674 = vld [vmem:[%s3359 + $0x28] sm:$0x3f]
  %v3675 = vld [vmem:[%s3359 + $0x30] sm:$0x3f]
  %v3676 = vld [vmem:[%s3359 + $0x38] sm:$0x3f]
  %v3677 = vmul.f32 %v3669, %v1598
  %v3678 = vmul.f32 %v3670, %v1599
  %v3679 = vmul.f32 %v3671, %v1600
  %v3680 = vmul.f32 %v3672, %v1601
  %v3681 = vmul.f32 %v3673, %v1598
  %v3682 = vmul.f32 %v3674, %v1599
  %v3683 = vmul.f32 %v3675, %v1600
  %v3684 = vmul.f32 %v3676, %v1601
  %v3685 = vadd.f32 %v3661, %v3677
  %v3686 = vadd.f32 %v3662, %v3678
  %v3687 = vadd.f32 %v3663, %v3679
  %v3688 = vadd.f32 %v3664, %v3680
  %v3689 = vadd.f32 %v3665, %v3681
  %v3690 = vadd.f32 %v3666, %v3682
  %v3691 = vadd.f32 %v3667, %v3683
  %v3692 = vadd.f32 %v3668, %v3684
  %v3693 = vld [vmem:[%s3537] sm:$0xff]
  %v3694 = vld [vmem:[%s3537 + $0x8] sm:$0xff]
  %v3695 = vld [vmem:[%s3537 + $0x10] sm:$0xff]
  %v3696 = vld [vmem:[%s3537 + $0x18] sm:$0xff]
  %v3697 = vld [vmem:[%s3537 + $0x20] sm:$0x3f]
  %v3698 = vld [vmem:[%s3537 + $0x28] sm:$0x3f]
  %v3699 = vld [vmem:[%s3537 + $0x30] sm:$0x3f]
  %v3700 = vld [vmem:[%s3537 + $0x38] sm:$0x3f]
  %v3701 = vmul.f32 %v3693, %v1626
  %v3702 = vmul.f32 %v3694, %v1627
  %v3703 = vmul.f32 %v3695, %v1628
  %v3704 = vmul.f32 %v3696, %v1629
  %v3705 = vmul.f32 %v3697, %v1626
  %v3706 = vmul.f32 %v3698, %v1627
  %v3707 = vmul.f32 %v3699, %v1628
  %v3708 = vmul.f32 %v3700, %v1629
  %v3709 = vadd.f32 %v3685, %v3701
  %v3710 = vadd.f32 %v3686, %v3702
  %v3711 = vadd.f32 %v3687, %v3703
  %v3712 = vadd.f32 %v3688, %v3704
  %v3713 = vadd.f32 %v3689, %v3705
  %v3714 = vadd.f32 %v3690, %v3706
  %v3715 = vadd.f32 %v3691, %v3707
  %v3716 = vadd.f32 %v3692, %v3708
  %v3717 = vld [vmem:[%s3562] sm:$0xff]
  %v3718 = vld [vmem:[%s3562 + $0x8] sm:$0xff]
  %v3719 = vld [vmem:[%s3562 + $0x10] sm:$0xff]
  %v3720 = vld [vmem:[%s3562 + $0x18] sm:$0xff]
  %v3721 = vld [vmem:[%s3562 + $0x20] sm:$0x3f]
  %v3722 = vld [vmem:[%s3562 + $0x28] sm:$0x3f]
  %v3723 = vld [vmem:[%s3562 + $0x30] sm:$0x3f]
  %v3724 = vld [vmem:[%s3562 + $0x38] sm:$0x3f]
  %v3725 = vmul.f32 %v3717, %v1654
  %v3726 = vmul.f32 %v3718, %v1655
  %v3727 = vmul.f32 %v3719, %v1656
  %v3728 = vmul.f32 %v3720, %v1657
  %v3729 = vmul.f32 %v3721, %v1654
  %v3730 = vmul.f32 %v3722, %v1655
  %v3731 = vmul.f32 %v3723, %v1656
  %v3732 = vmul.f32 %v3724, %v1657
  %v3733 = vadd.f32 %v3709, %v3725
  %v3734 = vadd.f32 %v3710, %v3726
  %v3735 = vadd.f32 %v3711, %v3727
  %v3736 = vadd.f32 %v3712, %v3728
  %v3737 = vadd.f32 %v3713, %v3729
  %v3738 = vadd.f32 %v3714, %v3730
  %v3739 = vadd.f32 %v3715, %v3731
  %v3740 = vadd.f32 %v3716, %v3732
  %v3741 = vld [vmem:[%s3587] sm:$0xff]
  %v3742 = vld [vmem:[%s3587 + $0x8] sm:$0xff]
  %v3743 = vld [vmem:[%s3587 + $0x10] sm:$0xff]
  %v3744 = vld [vmem:[%s3587 + $0x18] sm:$0xff]
  %v3745 = vld [vmem:[%s3587 + $0x20] sm:$0x3f]
  %v3746 = vld [vmem:[%s3587 + $0x28] sm:$0x3f]
  %v3747 = vld [vmem:[%s3587 + $0x30] sm:$0x3f]
  %v3748 = vld [vmem:[%s3587 + $0x38] sm:$0x3f]
  %v3749 = vmul.f32 %v3741, %v1682
  %v3750 = vmul.f32 %v3742, %v1683
  %v3751 = vmul.f32 %v3743, %v1684
  %v3752 = vmul.f32 %v3744, %v1685
  %v3753 = vmul.f32 %v3745, %v1682
  %v3754 = vmul.f32 %v3746, %v1683
  %v3755 = vmul.f32 %v3747, %v1684
  %v3756 = vmul.f32 %v3748, %v1685
  %v3757 = vadd.f32 %v3733, %v3749
  %v3758 = vadd.f32 %v3734, %v3750
  %v3759 = vadd.f32 %v3735, %v3751
  %v3760 = vadd.f32 %v3736, %v3752
  %v3761 = vadd.f32 %v3737, %v3753
  %v3762 = vadd.f32 %v3738, %v3754
  %v3763 = vadd.f32 %v3739, %v3755
  %v3764 = vadd.f32 %v3740, %v3756
  %s3765 = scalar_lea.vmem [#allocation2], 704
  %v3766 = vld [vmem:[%s3765] sm:$0xff]
  %v3767 = vld [vmem:[%s3765 + $0x8] sm:$0xff]
  %v3768 = vld [vmem:[%s3765 + $0x10] sm:$0xff]
  %v3769 = vld [vmem:[%s3765 + $0x18] sm:$0xff]
  %v3770 = vld [vmem:[%s3765 + $0x20] sm:$0x3f]
  %v3771 = vld [vmem:[%s3765 + $0x28] sm:$0x3f]
  %v3772 = vld [vmem:[%s3765 + $0x30] sm:$0x3f]
  %v3773 = vld [vmem:[%s3765 + $0x38] sm:$0x3f]
  %v3774 = vmul.f32 %v3766, %v1711
  %v3775 = vmul.f32 %v3767, %v1712
  %v3776 = vmul.f32 %v3768, %v1713
  %v3777 = vmul.f32 %v3769, %v1714
  %v3778 = vmul.f32 %v3770, %v1711
  %v3779 = vmul.f32 %v3771, %v1712
  %v3780 = vmul.f32 %v3772, %v1713
  %v3781 = vmul.f32 %v3773, %v1714
  %v3782 = vadd.f32 %v3757, %v3774
  %v3783 = vadd.f32 %v3758, %v3775
  %v3784 = vadd.f32 %v3759, %v3776
  %v3785 = vadd.f32 %v3760, %v3777
  %v3786 = vadd.f32 %v3761, %v3778
  %v3787 = vadd.f32 %v3762, %v3779
  %v3788 = vadd.f32 %v3763, %v3780
  %v3789 = vadd.f32 %v3764, %v3781
  %s3790 = scalar_lea.vmem [#allocation2], 1728
  %v3791 = vld [vmem:[%s3790] sm:$0xff]
  %v3792 = vld [vmem:[%s3790 + $0x8] sm:$0xff]
  %v3793 = vld [vmem:[%s3790 + $0x10] sm:$0xff]
  %v3794 = vld [vmem:[%s3790 + $0x18] sm:$0xff]
  %v3795 = vld [vmem:[%s3790 + $0x20] sm:$0x3f]
  %v3796 = vld [vmem:[%s3790 + $0x28] sm:$0x3f]
  %v3797 = vld [vmem:[%s3790 + $0x30] sm:$0x3f]
  %v3798 = vld [vmem:[%s3790 + $0x38] sm:$0x3f]
  %v3799 = vmul.f32 %v3791, %v1740
  %v3800 = vmul.f32 %v3792, %v1741
  %v3801 = vmul.f32 %v3793, %v1742
  %v3802 = vmul.f32 %v3794, %v1743
  %v3803 = vmul.f32 %v3795, %v1740
  %v3804 = vmul.f32 %v3796, %v1741
  %v3805 = vmul.f32 %v3797, %v1742
  %v3806 = vmul.f32 %v3798, %v1743
  %v3807 = vadd.f32 %v3782, %v3799
  %v3808 = vadd.f32 %v3783, %v3800
  %v3809 = vadd.f32 %v3784, %v3801
  %v3810 = vadd.f32 %v3785, %v3802
  %v3811 = vadd.f32 %v3786, %v3803
  %v3812 = vadd.f32 %v3787, %v3804
  %v3813 = vadd.f32 %v3788, %v3805
  %v3814 = vadd.f32 %v3789, %v3806
  %s3815 = scalar_lea.vmem [#allocation2], 2752
  %v3816 = vld [vmem:[%s3815] sm:$0xff]
  %v3817 = vld [vmem:[%s3815 + $0x8] sm:$0xff]
  %v3818 = vld [vmem:[%s3815 + $0x10] sm:$0xff]
  %v3819 = vld [vmem:[%s3815 + $0x18] sm:$0xff]
  %v3820 = vld [vmem:[%s3815 + $0x20] sm:$0x3f]
  %v3821 = vld [vmem:[%s3815 + $0x28] sm:$0x3f]
  %v3822 = vld [vmem:[%s3815 + $0x30] sm:$0x3f]
  %v3823 = vld [vmem:[%s3815 + $0x38] sm:$0x3f]
  %v3824 = vmul.f32 %v3816, %v1769
  %v3825 = vmul.f32 %v3817, %v1770
  %v3826 = vmul.f32 %v3818, %v1771
  %v3827 = vmul.f32 %v3819, %v1772
  %v3828 = vmul.f32 %v3820, %v1769
  %v3829 = vmul.f32 %v3821, %v1770
  %v3830 = vmul.f32 %v3822, %v1771
  %v3831 = vmul.f32 %v3823, %v1772
  %v3832 = vadd.f32 %v3807, %v3824
  %v3833 = vadd.f32 %v3808, %v3825
  %v3834 = vadd.f32 %v3809, %v3826
  %v3835 = vadd.f32 %v3810, %v3827
  %v3836 = vadd.f32 %v3811, %v3828
  %v3837 = vadd.f32 %v3812, %v3829
  %v3838 = vadd.f32 %v3813, %v3830
  %v3839 = vadd.f32 %v3814, %v3831
  %s3840 = scalar_lea.vmem %s2, 576
  %3841 = vst [vmem:[%s3840] sm:$0xff] %v3832
  %3842 = vst [vmem:[%s3840 + $0x8] sm:$0xff] %v3833
  %3843 = vst [vmem:[%s3840 + $0x10] sm:$0xff] %v3834
  %3844 = vst.msk [vmem:[%s3840 + $0x18] sm:$0xff] %vm14, %v3835
  %3845 = vst [vmem:[%s3840 + $0x20] sm:$0x3f] %v3836
  %3846 = vst [vmem:[%s3840 + $0x28] sm:$0x3f] %v3837
  %3847 = vst [vmem:[%s3840 + $0x30] sm:$0x3f] %v3838
  %3848 = vst.msk [vmem:[%s3840 + $0x38] sm:$0x3f] %vm19, %v3839
  %v3849 = vld [vmem:[%s3537] sm:$0xff]
  %v3850 = vld [vmem:[%s3537 + $0x8] sm:$0xff]
  %v3851 = vld [vmem:[%s3537 + $0x10] sm:$0xff]
  %v3852 = vld [vmem:[%s3537 + $0x18] sm:$0xff]
  %v3853 = vld [vmem:[%s3537 + $0x20] sm:$0x3f]
  %v3854 = vld [vmem:[%s3537 + $0x28] sm:$0x3f]
  %v3855 = vld [vmem:[%s3537 + $0x30] sm:$0x3f]
  %v3856 = vld [vmem:[%s3537 + $0x38] sm:$0x3f]
  %v3857 = vmul.f32 %v3849, %v1540
  %v3858 = vmul.f32 %v3850, %v1541
  %v3859 = vmul.f32 %v3851, %v1542
  %v3860 = vmul.f32 %v3852, %v1543
  %v3861 = vmul.f32 %v3853, %v1540
  %v3862 = vmul.f32 %v3854, %v1541
  %v3863 = vmul.f32 %v3855, %v1542
  %v3864 = vmul.f32 %v3856, %v1543
  %v3865 = vadd.f32 %v3857, 0.0
  %v3866 = vadd.f32 %v3858, 0.0
  %v3867 = vadd.f32 %v3859, 0.0
  %v3868 = vadd.f32 %v3860, 0.0
  %v3869 = vadd.f32 %v3861, 0.0
  %v3870 = vadd.f32 %v3862, 0.0
  %v3871 = vadd.f32 %v3863, 0.0
  %v3872 = vadd.f32 %v3864, 0.0
  %v3873 = vld [vmem:[%s3562] sm:$0xff]
  %v3874 = vld [vmem:[%s3562 + $0x8] sm:$0xff]
  %v3875 = vld [vmem:[%s3562 + $0x10] sm:$0xff]
  %v3876 = vld [vmem:[%s3562 + $0x18] sm:$0xff]
  %v3877 = vld [vmem:[%s3562 + $0x20] sm:$0x3f]
  %v3878 = vld [vmem:[%s3562 + $0x28] sm:$0x3f]
  %v3879 = vld [vmem:[%s3562 + $0x30] sm:$0x3f]
  %v3880 = vld [vmem:[%s3562 + $0x38] sm:$0x3f]
  %v3881 = vmul.f32 %v3873, %v1569
  %v3882 = vmul.f32 %v3874, %v1570
  %v3883 = vmul.f32 %v3875, %v1571
  %v3884 = vmul.f32 %v3876, %v1572
  %v3885 = vmul.f32 %v3877, %v1569
  %v3886 = vmul.f32 %v3878, %v1570
  %v3887 = vmul.f32 %v3879, %v1571
  %v3888 = vmul.f32 %v3880, %v1572
  %v3889 = vadd.f32 %v3865, %v3881
  %v3890 = vadd.f32 %v3866, %v3882
  %v3891 = vadd.f32 %v3867, %v3883
  %v3892 = vadd.f32 %v3868, %v3884
  %v3893 = vadd.f32 %v3869, %v3885
  %v3894 = vadd.f32 %v3870, %v3886
  %v3895 = vadd.f32 %v3871, %v3887
  %v3896 = vadd.f32 %v3872, %v3888
  %v3897 = vld [vmem:[%s3587] sm:$0xff]
  %v3898 = vld [vmem:[%s3587 + $0x8] sm:$0xff]
  %v3899 = vld [vmem:[%s3587 + $0x10] sm:$0xff]
  %v3900 = vld [vmem:[%s3587 + $0x18] sm:$0xff]
  %v3901 = vld [vmem:[%s3587 + $0x20] sm:$0x3f]
  %v3902 = vld [vmem:[%s3587 + $0x28] sm:$0x3f]
  %v3903 = vld [vmem:[%s3587 + $0x30] sm:$0x3f]
  %v3904 = vld [vmem:[%s3587 + $0x38] sm:$0x3f]
  %v3905 = vmul.f32 %v3897, %v1598
  %v3906 = vmul.f32 %v3898, %v1599
  %v3907 = vmul.f32 %v3899, %v1600
  %v3908 = vmul.f32 %v3900, %v1601
  %v3909 = vmul.f32 %v3901, %v1598
  %v3910 = vmul.f32 %v3902, %v1599
  %v3911 = vmul.f32 %v3903, %v1600
  %v3912 = vmul.f32 %v3904, %v1601
  %v3913 = vadd.f32 %v3889, %v3905
  %v3914 = vadd.f32 %v3890, %v3906
  %v3915 = vadd.f32 %v3891, %v3907
  %v3916 = vadd.f32 %v3892, %v3908
  %v3917 = vadd.f32 %v3893, %v3909
  %v3918 = vadd.f32 %v3894, %v3910
  %v3919 = vadd.f32 %v3895, %v3911
  %v3920 = vadd.f32 %v3896, %v3912
  %v3921 = vld [vmem:[%s3765] sm:$0xff]
  %v3922 = vld [vmem:[%s3765 + $0x8] sm:$0xff]
  %v3923 = vld [vmem:[%s3765 + $0x10] sm:$0xff]
  %v3924 = vld [vmem:[%s3765 + $0x18] sm:$0xff]
  %v3925 = vld [vmem:[%s3765 + $0x20] sm:$0x3f]
  %v3926 = vld [vmem:[%s3765 + $0x28] sm:$0x3f]
  %v3927 = vld [vmem:[%s3765 + $0x30] sm:$0x3f]
  %v3928 = vld [vmem:[%s3765 + $0x38] sm:$0x3f]
  %v3929 = vmul.f32 %v3921, %v1626
  %v3930 = vmul.f32 %v3922, %v1627
  %v3931 = vmul.f32 %v3923, %v1628
  %v3932 = vmul.f32 %v3924, %v1629
  %v3933 = vmul.f32 %v3925, %v1626
  %v3934 = vmul.f32 %v3926, %v1627
  %v3935 = vmul.f32 %v3927, %v1628
  %v3936 = vmul.f32 %v3928, %v1629
  %v3937 = vadd.f32 %v3913, %v3929
  %v3938 = vadd.f32 %v3914, %v3930
  %v3939 = vadd.f32 %v3915, %v3931
  %v3940 = vadd.f32 %v3916, %v3932
  %v3941 = vadd.f32 %v3917, %v3933
  %v3942 = vadd.f32 %v3918, %v3934
  %v3943 = vadd.f32 %v3919, %v3935
  %v3944 = vadd.f32 %v3920, %v3936
  %v3945 = vld [vmem:[%s3790] sm:$0xff]
  %v3946 = vld [vmem:[%s3790 + $0x8] sm:$0xff]
  %v3947 = vld [vmem:[%s3790 + $0x10] sm:$0xff]
  %v3948 = vld [vmem:[%s3790 + $0x18] sm:$0xff]
  %v3949 = vld [vmem:[%s3790 + $0x20] sm:$0x3f]
  %v3950 = vld [vmem:[%s3790 + $0x28] sm:$0x3f]
  %v3951 = vld [vmem:[%s3790 + $0x30] sm:$0x3f]
  %v3952 = vld [vmem:[%s3790 + $0x38] sm:$0x3f]
  %v3953 = vmul.f32 %v3945, %v1654
  %v3954 = vmul.f32 %v3946, %v1655
  %v3955 = vmul.f32 %v3947, %v1656
  %v3956 = vmul.f32 %v3948, %v1657
  %v3957 = vmul.f32 %v3949, %v1654
  %v3958 = vmul.f32 %v3950, %v1655
  %v3959 = vmul.f32 %v3951, %v1656
  %v3960 = vmul.f32 %v3952, %v1657
  %v3961 = vadd.f32 %v3937, %v3953
  %v3962 = vadd.f32 %v3938, %v3954
  %v3963 = vadd.f32 %v3939, %v3955
  %v3964 = vadd.f32 %v3940, %v3956
  %v3965 = vadd.f32 %v3941, %v3957
  %v3966 = vadd.f32 %v3942, %v3958
  %v3967 = vadd.f32 %v3943, %v3959
  %v3968 = vadd.f32 %v3944, %v3960
  %v3969 = vld [vmem:[%s3815] sm:$0xff]
  %v3970 = vld [vmem:[%s3815 + $0x8] sm:$0xff]
  %v3971 = vld [vmem:[%s3815 + $0x10] sm:$0xff]
  %v3972 = vld [vmem:[%s3815 + $0x18] sm:$0xff]
  %v3973 = vld [vmem:[%s3815 + $0x20] sm:$0x3f]
  %v3974 = vld [vmem:[%s3815 + $0x28] sm:$0x3f]
  %v3975 = vld [vmem:[%s3815 + $0x30] sm:$0x3f]
  %v3976 = vld [vmem:[%s3815 + $0x38] sm:$0x3f]
  %v3977 = vmul.f32 %v3969, %v1682
  %v3978 = vmul.f32 %v3970, %v1683
  %v3979 = vmul.f32 %v3971, %v1684
  %v3980 = vmul.f32 %v3972, %v1685
  %v3981 = vmul.f32 %v3973, %v1682
  %v3982 = vmul.f32 %v3974, %v1683
  %v3983 = vmul.f32 %v3975, %v1684
  %v3984 = vmul.f32 %v3976, %v1685
  %v3985 = vadd.f32 %v3961, %v3977
  %v3986 = vadd.f32 %v3962, %v3978
  %v3987 = vadd.f32 %v3963, %v3979
  %v3988 = vadd.f32 %v3964, %v3980
  %v3989 = vadd.f32 %v3965, %v3981
  %v3990 = vadd.f32 %v3966, %v3982
  %v3991 = vadd.f32 %v3967, %v3983
  %v3992 = vadd.f32 %v3968, %v3984
  %s3993 = scalar_lea.vmem [#allocation2], 768
  %v3994 = vld [vmem:[%s3993] sm:$0xff]
  %v3995 = vld [vmem:[%s3993 + $0x8] sm:$0xff]
  %v3996 = vld [vmem:[%s3993 + $0x10] sm:$0xff]
  %v3997 = vld [vmem:[%s3993 + $0x18] sm:$0xff]
  %v3998 = vld [vmem:[%s3993 + $0x20] sm:$0x3f]
  %v3999 = vld [vmem:[%s3993 + $0x28] sm:$0x3f]
  %v4000 = vld [vmem:[%s3993 + $0x30] sm:$0x3f]
  %v4001 = vld [vmem:[%s3993 + $0x38] sm:$0x3f]
  %v4002 = vmul.f32 %v3994, %v1711
  %v4003 = vmul.f32 %v3995, %v1712
  %v4004 = vmul.f32 %v3996, %v1713
  %v4005 = vmul.f32 %v3997, %v1714
  %v4006 = vmul.f32 %v3998, %v1711
  %v4007 = vmul.f32 %v3999, %v1712
  %v4008 = vmul.f32 %v4000, %v1713
  %v4009 = vmul.f32 %v4001, %v1714
  %v4010 = vadd.f32 %v3985, %v4002
  %v4011 = vadd.f32 %v3986, %v4003
  %v4012 = vadd.f32 %v3987, %v4004
  %v4013 = vadd.f32 %v3988, %v4005
  %v4014 = vadd.f32 %v3989, %v4006
  %v4015 = vadd.f32 %v3990, %v4007
  %v4016 = vadd.f32 %v3991, %v4008
  %v4017 = vadd.f32 %v3992, %v4009
  %s4018 = scalar_lea.vmem [#allocation2], 1792
  %v4019 = vld [vmem:[%s4018] sm:$0xff]
  %v4020 = vld [vmem:[%s4018 + $0x8] sm:$0xff]
  %v4021 = vld [vmem:[%s4018 + $0x10] sm:$0xff]
  %v4022 = vld [vmem:[%s4018 + $0x18] sm:$0xff]
  %v4023 = vld [vmem:[%s4018 + $0x20] sm:$0x3f]
  %v4024 = vld [vmem:[%s4018 + $0x28] sm:$0x3f]
  %v4025 = vld [vmem:[%s4018 + $0x30] sm:$0x3f]
  %v4026 = vld [vmem:[%s4018 + $0x38] sm:$0x3f]
  %v4027 = vmul.f32 %v4019, %v1740
  %v4028 = vmul.f32 %v4020, %v1741
  %v4029 = vmul.f32 %v4021, %v1742
  %v4030 = vmul.f32 %v4022, %v1743
  %v4031 = vmul.f32 %v4023, %v1740
  %v4032 = vmul.f32 %v4024, %v1741
  %v4033 = vmul.f32 %v4025, %v1742
  %v4034 = vmul.f32 %v4026, %v1743
  %v4035 = vadd.f32 %v4010, %v4027
  %v4036 = vadd.f32 %v4011, %v4028
  %v4037 = vadd.f32 %v4012, %v4029
  %v4038 = vadd.f32 %v4013, %v4030
  %v4039 = vadd.f32 %v4014, %v4031
  %v4040 = vadd.f32 %v4015, %v4032
  %v4041 = vadd.f32 %v4016, %v4033
  %v4042 = vadd.f32 %v4017, %v4034
  %s4043 = scalar_lea.vmem [#allocation2], 2816
  %v4044 = vld [vmem:[%s4043] sm:$0xff]
  %v4045 = vld [vmem:[%s4043 + $0x8] sm:$0xff]
  %v4046 = vld [vmem:[%s4043 + $0x10] sm:$0xff]
  %v4047 = vld [vmem:[%s4043 + $0x18] sm:$0xff]
  %v4048 = vld [vmem:[%s4043 + $0x20] sm:$0x3f]
  %v4049 = vld [vmem:[%s4043 + $0x28] sm:$0x3f]
  %v4050 = vld [vmem:[%s4043 + $0x30] sm:$0x3f]
  %v4051 = vld [vmem:[%s4043 + $0x38] sm:$0x3f]
  %v4052 = vmul.f32 %v4044, %v1769
  %v4053 = vmul.f32 %v4045, %v1770
  %v4054 = vmul.f32 %v4046, %v1771
  %v4055 = vmul.f32 %v4047, %v1772
  %v4056 = vmul.f32 %v4048, %v1769
  %v4057 = vmul.f32 %v4049, %v1770
  %v4058 = vmul.f32 %v4050, %v1771
  %v4059 = vmul.f32 %v4051, %v1772
  %v4060 = vadd.f32 %v4035, %v4052
  %v4061 = vadd.f32 %v4036, %v4053
  %v4062 = vadd.f32 %v4037, %v4054
  %v4063 = vadd.f32 %v4038, %v4055
  %v4064 = vadd.f32 %v4039, %v4056
  %v4065 = vadd.f32 %v4040, %v4057
  %v4066 = vadd.f32 %v4041, %v4058
  %v4067 = vadd.f32 %v4042, %v4059
  %s4068 = scalar_lea.vmem %s2, 640
  %4069 = vst [vmem:[%s4068] sm:$0xff] %v4060
  %4070 = vst [vmem:[%s4068 + $0x8] sm:$0xff] %v4061
  %4071 = vst [vmem:[%s4068 + $0x10] sm:$0xff] %v4062
  %4072 = vst.msk [vmem:[%s4068 + $0x18] sm:$0xff] %vm14, %v4063
  %4073 = vst [vmem:[%s4068 + $0x20] sm:$0x3f] %v4064
  %4074 = vst [vmem:[%s4068 + $0x28] sm:$0x3f] %v4065
  %4075 = vst [vmem:[%s4068 + $0x30] sm:$0x3f] %v4066
  %4076 = vst.msk [vmem:[%s4068 + $0x38] sm:$0x3f] %vm19, %v4067
  %v4077 = vld [vmem:[%s3765] sm:$0xff]
  %v4078 = vld [vmem:[%s3765 + $0x8] sm:$0xff]
  %v4079 = vld [vmem:[%s3765 + $0x10] sm:$0xff]
  %v4080 = vld [vmem:[%s3765 + $0x18] sm:$0xff]
  %v4081 = vld [vmem:[%s3765 + $0x20] sm:$0x3f]
  %v4082 = vld [vmem:[%s3765 + $0x28] sm:$0x3f]
  %v4083 = vld [vmem:[%s3765 + $0x30] sm:$0x3f]
  %v4084 = vld [vmem:[%s3765 + $0x38] sm:$0x3f]
  %v4085 = vmul.f32 %v4077, %v1540
  %v4086 = vmul.f32 %v4078, %v1541
  %v4087 = vmul.f32 %v4079, %v1542
  %v4088 = vmul.f32 %v4080, %v1543
  %v4089 = vmul.f32 %v4081, %v1540
  %v4090 = vmul.f32 %v4082, %v1541
  %v4091 = vmul.f32 %v4083, %v1542
  %v4092 = vmul.f32 %v4084, %v1543
  %v4093 = vadd.f32 %v4085, 0.0
  %v4094 = vadd.f32 %v4086, 0.0
  %v4095 = vadd.f32 %v4087, 0.0
  %v4096 = vadd.f32 %v4088, 0.0
  %v4097 = vadd.f32 %v4089, 0.0
  %v4098 = vadd.f32 %v4090, 0.0
  %v4099 = vadd.f32 %v4091, 0.0
  %v4100 = vadd.f32 %v4092, 0.0
  %v4101 = vld [vmem:[%s3790] sm:$0xff]
  %v4102 = vld [vmem:[%s3790 + $0x8] sm:$0xff]
  %v4103 = vld [vmem:[%s3790 + $0x10] sm:$0xff]
  %v4104 = vld [vmem:[%s3790 + $0x18] sm:$0xff]
  %v4105 = vld [vmem:[%s3790 + $0x20] sm:$0x3f]
  %v4106 = vld [vmem:[%s3790 + $0x28] sm:$0x3f]
  %v4107 = vld [vmem:[%s3790 + $0x30] sm:$0x3f]
  %v4108 = vld [vmem:[%s3790 + $0x38] sm:$0x3f]
  %v4109 = vmul.f32 %v4101, %v1569
  %v4110 = vmul.f32 %v4102, %v1570
  %v4111 = vmul.f32 %v4103, %v1571
  %v4112 = vmul.f32 %v4104, %v1572
  %v4113 = vmul.f32 %v4105, %v1569
  %v4114 = vmul.f32 %v4106, %v1570
  %v4115 = vmul.f32 %v4107, %v1571
  %v4116 = vmul.f32 %v4108, %v1572
  %v4117 = vadd.f32 %v4093, %v4109
  %v4118 = vadd.f32 %v4094, %v4110
  %v4119 = vadd.f32 %v4095, %v4111
  %v4120 = vadd.f32 %v4096, %v4112
  %v4121 = vadd.f32 %v4097, %v4113
  %v4122 = vadd.f32 %v4098, %v4114
  %v4123 = vadd.f32 %v4099, %v4115
  %v4124 = vadd.f32 %v4100, %v4116
  %v4125 = vld [vmem:[%s3815] sm:$0xff]
  %v4126 = vld [vmem:[%s3815 + $0x8] sm:$0xff]
  %v4127 = vld [vmem:[%s3815 + $0x10] sm:$0xff]
  %v4128 = vld [vmem:[%s3815 + $0x18] sm:$0xff]
  %v4129 = vld [vmem:[%s3815 + $0x20] sm:$0x3f]
  %v4130 = vld [vmem:[%s3815 + $0x28] sm:$0x3f]
  %v4131 = vld [vmem:[%s3815 + $0x30] sm:$0x3f]
  %v4132 = vld [vmem:[%s3815 + $0x38] sm:$0x3f]
  %v4133 = vmul.f32 %v4125, %v1598
  %v4134 = vmul.f32 %v4126, %v1599
  %v4135 = vmul.f32 %v4127, %v1600
  %v4136 = vmul.f32 %v4128, %v1601
  %v4137 = vmul.f32 %v4129, %v1598
  %v4138 = vmul.f32 %v4130, %v1599
  %v4139 = vmul.f32 %v4131, %v1600
  %v4140 = vmul.f32 %v4132, %v1601
  %v4141 = vadd.f32 %v4117, %v4133
  %v4142 = vadd.f32 %v4118, %v4134
  %v4143 = vadd.f32 %v4119, %v4135
  %v4144 = vadd.f32 %v4120, %v4136
  %v4145 = vadd.f32 %v4121, %v4137
  %v4146 = vadd.f32 %v4122, %v4138
  %v4147 = vadd.f32 %v4123, %v4139
  %v4148 = vadd.f32 %v4124, %v4140
  %v4149 = vld [vmem:[%s3993] sm:$0xff]
  %v4150 = vld [vmem:[%s3993 + $0x8] sm:$0xff]
  %v4151 = vld [vmem:[%s3993 + $0x10] sm:$0xff]
  %v4152 = vld [vmem:[%s3993 + $0x18] sm:$0xff]
  %v4153 = vld [vmem:[%s3993 + $0x20] sm:$0x3f]
  %v4154 = vld [vmem:[%s3993 + $0x28] sm:$0x3f]
  %v4155 = vld [vmem:[%s3993 + $0x30] sm:$0x3f]
  %v4156 = vld [vmem:[%s3993 + $0x38] sm:$0x3f]
  %v4157 = vmul.f32 %v4149, %v1626
  %v4158 = vmul.f32 %v4150, %v1627
  %v4159 = vmul.f32 %v4151, %v1628
  %v4160 = vmul.f32 %v4152, %v1629
  %v4161 = vmul.f32 %v4153, %v1626
  %v4162 = vmul.f32 %v4154, %v1627
  %v4163 = vmul.f32 %v4155, %v1628
  %v4164 = vmul.f32 %v4156, %v1629
  %v4165 = vadd.f32 %v4141, %v4157
  %v4166 = vadd.f32 %v4142, %v4158
  %v4167 = vadd.f32 %v4143, %v4159
  %v4168 = vadd.f32 %v4144, %v4160
  %v4169 = vadd.f32 %v4145, %v4161
  %v4170 = vadd.f32 %v4146, %v4162
  %v4171 = vadd.f32 %v4147, %v4163
  %v4172 = vadd.f32 %v4148, %v4164
  %v4173 = vld [vmem:[%s4018] sm:$0xff]
  %v4174 = vld [vmem:[%s4018 + $0x8] sm:$0xff]
  %v4175 = vld [vmem:[%s4018 + $0x10] sm:$0xff]
  %v4176 = vld [vmem:[%s4018 + $0x18] sm:$0xff]
  %v4177 = vld [vmem:[%s4018 + $0x20] sm:$0x3f]
  %v4178 = vld [vmem:[%s4018 + $0x28] sm:$0x3f]
  %v4179 = vld [vmem:[%s4018 + $0x30] sm:$0x3f]
  %v4180 = vld [vmem:[%s4018 + $0x38] sm:$0x3f]
  %v4181 = vmul.f32 %v4173, %v1654
  %v4182 = vmul.f32 %v4174, %v1655
  %v4183 = vmul.f32 %v4175, %v1656
  %v4184 = vmul.f32 %v4176, %v1657
  %v4185 = vmul.f32 %v4177, %v1654
  %v4186 = vmul.f32 %v4178, %v1655
  %v4187 = vmul.f32 %v4179, %v1656
  %v4188 = vmul.f32 %v4180, %v1657
  %v4189 = vadd.f32 %v4165, %v4181
  %v4190 = vadd.f32 %v4166, %v4182
  %v4191 = vadd.f32 %v4167, %v4183
  %v4192 = vadd.f32 %v4168, %v4184
  %v4193 = vadd.f32 %v4169, %v4185
  %v4194 = vadd.f32 %v4170, %v4186
  %v4195 = vadd.f32 %v4171, %v4187
  %v4196 = vadd.f32 %v4172, %v4188
  %v4197 = vld [vmem:[%s4043] sm:$0xff]
  %v4198 = vld [vmem:[%s4043 + $0x8] sm:$0xff]
  %v4199 = vld [vmem:[%s4043 + $0x10] sm:$0xff]
  %v4200 = vld [vmem:[%s4043 + $0x18] sm:$0xff]
  %v4201 = vld [vmem:[%s4043 + $0x20] sm:$0x3f]
  %v4202 = vld [vmem:[%s4043 + $0x28] sm:$0x3f]
  %v4203 = vld [vmem:[%s4043 + $0x30] sm:$0x3f]
  %v4204 = vld [vmem:[%s4043 + $0x38] sm:$0x3f]
  %v4205 = vmul.f32 %v4197, %v1682
  %v4206 = vmul.f32 %v4198, %v1683
  %v4207 = vmul.f32 %v4199, %v1684
  %v4208 = vmul.f32 %v4200, %v1685
  %v4209 = vmul.f32 %v4201, %v1682
  %v4210 = vmul.f32 %v4202, %v1683
  %v4211 = vmul.f32 %v4203, %v1684
  %v4212 = vmul.f32 %v4204, %v1685
  %v4213 = vadd.f32 %v4189, %v4205
  %v4214 = vadd.f32 %v4190, %v4206
  %v4215 = vadd.f32 %v4191, %v4207
  %v4216 = vadd.f32 %v4192, %v4208
  %v4217 = vadd.f32 %v4193, %v4209
  %v4218 = vadd.f32 %v4194, %v4210
  %v4219 = vadd.f32 %v4195, %v4211
  %v4220 = vadd.f32 %v4196, %v4212
  %s4221 = scalar_lea.vmem [#allocation2], 832
  %v4222 = vld [vmem:[%s4221] sm:$0xff]
  %v4223 = vld [vmem:[%s4221 + $0x8] sm:$0xff]
  %v4224 = vld [vmem:[%s4221 + $0x10] sm:$0xff]
  %v4225 = vld [vmem:[%s4221 + $0x18] sm:$0xff]
  %v4226 = vld [vmem:[%s4221 + $0x20] sm:$0x3f]
  %v4227 = vld [vmem:[%s4221 + $0x28] sm:$0x3f]
  %v4228 = vld [vmem:[%s4221 + $0x30] sm:$0x3f]
  %v4229 = vld [vmem:[%s4221 + $0x38] sm:$0x3f]
  %v4230 = vmul.f32 %v4222, %v1711
  %v4231 = vmul.f32 %v4223, %v1712
  %v4232 = vmul.f32 %v4224, %v1713
  %v4233 = vmul.f32 %v4225, %v1714
  %v4234 = vmul.f32 %v4226, %v1711
  %v4235 = vmul.f32 %v4227, %v1712
  %v4236 = vmul.f32 %v4228, %v1713
  %v4237 = vmul.f32 %v4229, %v1714
  %v4238 = vadd.f32 %v4213, %v4230
  %v4239 = vadd.f32 %v4214, %v4231
  %v4240 = vadd.f32 %v4215, %v4232
  %v4241 = vadd.f32 %v4216, %v4233
  %v4242 = vadd.f32 %v4217, %v4234
  %v4243 = vadd.f32 %v4218, %v4235
  %v4244 = vadd.f32 %v4219, %v4236
  %v4245 = vadd.f32 %v4220, %v4237
  %s4246 = scalar_lea.vmem [#allocation2], 1856
  %v4247 = vld [vmem:[%s4246] sm:$0xff]
  %v4248 = vld [vmem:[%s4246 + $0x8] sm:$0xff]
  %v4249 = vld [vmem:[%s4246 + $0x10] sm:$0xff]
  %v4250 = vld [vmem:[%s4246 + $0x18] sm:$0xff]
  %v4251 = vld [vmem:[%s4246 + $0x20] sm:$0x3f]
  %v4252 = vld [vmem:[%s4246 + $0x28] sm:$0x3f]
  %v4253 = vld [vmem:[%s4246 + $0x30] sm:$0x3f]
  %v4254 = vld [vmem:[%s4246 + $0x38] sm:$0x3f]
  %v4255 = vmul.f32 %v4247, %v1740
  %v4256 = vmul.f32 %v4248, %v1741
  %v4257 = vmul.f32 %v4249, %v1742
  %v4258 = vmul.f32 %v4250, %v1743
  %v4259 = vmul.f32 %v4251, %v1740
  %v4260 = vmul.f32 %v4252, %v1741
  %v4261 = vmul.f32 %v4253, %v1742
  %v4262 = vmul.f32 %v4254, %v1743
  %v4263 = vadd.f32 %v4238, %v4255
  %v4264 = vadd.f32 %v4239, %v4256
  %v4265 = vadd.f32 %v4240, %v4257
  %v4266 = vadd.f32 %v4241, %v4258
  %v4267 = vadd.f32 %v4242, %v4259
  %v4268 = vadd.f32 %v4243, %v4260
  %v4269 = vadd.f32 %v4244, %v4261
  %v4270 = vadd.f32 %v4245, %v4262
  %s4271 = scalar_lea.vmem [#allocation2], 2880
  %v4272 = vld [vmem:[%s4271] sm:$0xff]
  %v4273 = vld [vmem:[%s4271 + $0x8] sm:$0xff]
  %v4274 = vld [vmem:[%s4271 + $0x10] sm:$0xff]
  %v4275 = vld [vmem:[%s4271 + $0x18] sm:$0xff]
  %v4276 = vld [vmem:[%s4271 + $0x20] sm:$0x3f]
  %v4277 = vld [vmem:[%s4271 + $0x28] sm:$0x3f]
  %v4278 = vld [vmem:[%s4271 + $0x30] sm:$0x3f]
  %v4279 = vld [vmem:[%s4271 + $0x38] sm:$0x3f]
  %v4280 = vmul.f32 %v4272, %v1769
  %v4281 = vmul.f32 %v4273, %v1770
  %v4282 = vmul.f32 %v4274, %v1771
  %v4283 = vmul.f32 %v4275, %v1772
  %v4284 = vmul.f32 %v4276, %v1769
  %v4285 = vmul.f32 %v4277, %v1770
  %v4286 = vmul.f32 %v4278, %v1771
  %v4287 = vmul.f32 %v4279, %v1772
  %v4288 = vadd.f32 %v4263, %v4280
  %v4289 = vadd.f32 %v4264, %v4281
  %v4290 = vadd.f32 %v4265, %v4282
  %v4291 = vadd.f32 %v4266, %v4283
  %v4292 = vadd.f32 %v4267, %v4284
  %v4293 = vadd.f32 %v4268, %v4285
  %v4294 = vadd.f32 %v4269, %v4286
  %v4295 = vadd.f32 %v4270, %v4287
  %s4296 = scalar_lea.vmem %s2, 704
  %4297 = vst [vmem:[%s4296] sm:$0xff] %v4288
  %4298 = vst [vmem:[%s4296 + $0x8] sm:$0xff] %v4289
  %4299 = vst [vmem:[%s4296 + $0x10] sm:$0xff] %v4290
  %4300 = vst.msk [vmem:[%s4296 + $0x18] sm:$0xff] %vm14, %v4291
  %4301 = vst [vmem:[%s4296 + $0x20] sm:$0x3f] %v4292
  %4302 = vst [vmem:[%s4296 + $0x28] sm:$0x3f] %v4293
  %4303 = vst [vmem:[%s4296 + $0x30] sm:$0x3f] %v4294
  %4304 = vst.msk [vmem:[%s4296 + $0x38] sm:$0x3f] %vm19, %v4295
  %v4305 = vld [vmem:[%s3993] sm:$0xff]
  %v4306 = vld [vmem:[%s3993 + $0x8] sm:$0xff]
  %v4307 = vld [vmem:[%s3993 + $0x10] sm:$0xff]
  %v4308 = vld [vmem:[%s3993 + $0x18] sm:$0xff]
  %v4309 = vld [vmem:[%s3993 + $0x20] sm:$0x3f]
  %v4310 = vld [vmem:[%s3993 + $0x28] sm:$0x3f]
  %v4311 = vld [vmem:[%s3993 + $0x30] sm:$0x3f]
  %v4312 = vld [vmem:[%s3993 + $0x38] sm:$0x3f]
  %v4313 = vmul.f32 %v4305, %v1540
  %v4314 = vmul.f32 %v4306, %v1541
  %v4315 = vmul.f32 %v4307, %v1542
  %v4316 = vmul.f32 %v4308, %v1543
  %v4317 = vmul.f32 %v4309, %v1540
  %v4318 = vmul.f32 %v4310, %v1541
  %v4319 = vmul.f32 %v4311, %v1542
  %v4320 = vmul.f32 %v4312, %v1543
  %v4321 = vadd.f32 %v4313, 0.0
  %v4322 = vadd.f32 %v4314, 0.0
  %v4323 = vadd.f32 %v4315, 0.0
  %v4324 = vadd.f32 %v4316, 0.0
  %v4325 = vadd.f32 %v4317, 0.0
  %v4326 = vadd.f32 %v4318, 0.0
  %v4327 = vadd.f32 %v4319, 0.0
  %v4328 = vadd.f32 %v4320, 0.0
  %v4329 = vld [vmem:[%s4018] sm:$0xff]
  %v4330 = vld [vmem:[%s4018 + $0x8] sm:$0xff]
  %v4331 = vld [vmem:[%s4018 + $0x10] sm:$0xff]
  %v4332 = vld [vmem:[%s4018 + $0x18] sm:$0xff]
  %v4333 = vld [vmem:[%s4018 + $0x20] sm:$0x3f]
  %v4334 = vld [vmem:[%s4018 + $0x28] sm:$0x3f]
  %v4335 = vld [vmem:[%s4018 + $0x30] sm:$0x3f]
  %v4336 = vld [vmem:[%s4018 + $0x38] sm:$0x3f]
  %v4337 = vmul.f32 %v4329, %v1569
  %v4338 = vmul.f32 %v4330, %v1570
  %v4339 = vmul.f32 %v4331, %v1571
  %v4340 = vmul.f32 %v4332, %v1572
  %v4341 = vmul.f32 %v4333, %v1569
  %v4342 = vmul.f32 %v4334, %v1570
  %v4343 = vmul.f32 %v4335, %v1571
  %v4344 = vmul.f32 %v4336, %v1572
  %v4345 = vadd.f32 %v4321, %v4337
  %v4346 = vadd.f32 %v4322, %v4338
  %v4347 = vadd.f32 %v4323, %v4339
  %v4348 = vadd.f32 %v4324, %v4340
  %v4349 = vadd.f32 %v4325, %v4341
  %v4350 = vadd.f32 %v4326, %v4342
  %v4351 = vadd.f32 %v4327, %v4343
  %v4352 = vadd.f32 %v4328, %v4344
  %v4353 = vld [vmem:[%s4043] sm:$0xff]
  %v4354 = vld [vmem:[%s4043 + $0x8] sm:$0xff]
  %v4355 = vld [vmem:[%s4043 + $0x10] sm:$0xff]
  %v4356 = vld [vmem:[%s4043 + $0x18] sm:$0xff]
  %v4357 = vld [vmem:[%s4043 + $0x20] sm:$0x3f]
  %v4358 = vld [vmem:[%s4043 + $0x28] sm:$0x3f]
  %v4359 = vld [vmem:[%s4043 + $0x30] sm:$0x3f]
  %v4360 = vld [vmem:[%s4043 + $0x38] sm:$0x3f]
  %v4361 = vmul.f32 %v4353, %v1598
  %v4362 = vmul.f32 %v4354, %v1599
  %v4363 = vmul.f32 %v4355, %v1600
  %v4364 = vmul.f32 %v4356, %v1601
  %v4365 = vmul.f32 %v4357, %v1598
  %v4366 = vmul.f32 %v4358, %v1599
  %v4367 = vmul.f32 %v4359, %v1600
  %v4368 = vmul.f32 %v4360, %v1601
  %v4369 = vadd.f32 %v4345, %v4361
  %v4370 = vadd.f32 %v4346, %v4362
  %v4371 = vadd.f32 %v4347, %v4363
  %v4372 = vadd.f32 %v4348, %v4364
  %v4373 = vadd.f32 %v4349, %v4365
  %v4374 = vadd.f32 %v4350, %v4366
  %v4375 = vadd.f32 %v4351, %v4367
  %v4376 = vadd.f32 %v4352, %v4368
  %v4377 = vld [vmem:[%s4221] sm:$0xff]
  %v4378 = vld [vmem:[%s4221 + $0x8] sm:$0xff]
  %v4379 = vld [vmem:[%s4221 + $0x10] sm:$0xff]
  %v4380 = vld [vmem:[%s4221 + $0x18] sm:$0xff]
  %v4381 = vld [vmem:[%s4221 + $0x20] sm:$0x3f]
  %v4382 = vld [vmem:[%s4221 + $0x28] sm:$0x3f]
  %v4383 = vld [vmem:[%s4221 + $0x30] sm:$0x3f]
  %v4384 = vld [vmem:[%s4221 + $0x38] sm:$0x3f]
  %v4385 = vmul.f32 %v4377, %v1626
  %v4386 = vmul.f32 %v4378, %v1627
  %v4387 = vmul.f32 %v4379, %v1628
  %v4388 = vmul.f32 %v4380, %v1629
  %v4389 = vmul.f32 %v4381, %v1626
  %v4390 = vmul.f32 %v4382, %v1627
  %v4391 = vmul.f32 %v4383, %v1628
  %v4392 = vmul.f32 %v4384, %v1629
  %v4393 = vadd.f32 %v4369, %v4385
  %v4394 = vadd.f32 %v4370, %v4386
  %v4395 = vadd.f32 %v4371, %v4387
  %v4396 = vadd.f32 %v4372, %v4388
  %v4397 = vadd.f32 %v4373, %v4389
  %v4398 = vadd.f32 %v4374, %v4390
  %v4399 = vadd.f32 %v4375, %v4391
  %v4400 = vadd.f32 %v4376, %v4392
  %v4401 = vld [vmem:[%s4246] sm:$0xff]
  %v4402 = vld [vmem:[%s4246 + $0x8] sm:$0xff]
  %v4403 = vld [vmem:[%s4246 + $0x10] sm:$0xff]
  %v4404 = vld [vmem:[%s4246 + $0x18] sm:$0xff]
  %v4405 = vld [vmem:[%s4246 + $0x20] sm:$0x3f]
  %v4406 = vld [vmem:[%s4246 + $0x28] sm:$0x3f]
  %v4407 = vld [vmem:[%s4246 + $0x30] sm:$0x3f]
  %v4408 = vld [vmem:[%s4246 + $0x38] sm:$0x3f]
  %v4409 = vmul.f32 %v4401, %v1654
  %v4410 = vmul.f32 %v4402, %v1655
  %v4411 = vmul.f32 %v4403, %v1656
  %v4412 = vmul.f32 %v4404, %v1657
  %v4413 = vmul.f32 %v4405, %v1654
  %v4414 = vmul.f32 %v4406, %v1655
  %v4415 = vmul.f32 %v4407, %v1656
  %v4416 = vmul.f32 %v4408, %v1657
  %v4417 = vadd.f32 %v4393, %v4409
  %v4418 = vadd.f32 %v4394, %v4410
  %v4419 = vadd.f32 %v4395, %v4411
  %v4420 = vadd.f32 %v4396, %v4412
  %v4421 = vadd.f32 %v4397, %v4413
  %v4422 = vadd.f32 %v4398, %v4414
  %v4423 = vadd.f32 %v4399, %v4415
  %v4424 = vadd.f32 %v4400, %v4416
  %v4425 = vld [vmem:[%s4271] sm:$0xff]
  %v4426 = vld [vmem:[%s4271 + $0x8] sm:$0xff]
  %v4427 = vld [vmem:[%s4271 + $0x10] sm:$0xff]
  %v4428 = vld [vmem:[%s4271 + $0x18] sm:$0xff]
  %v4429 = vld [vmem:[%s4271 + $0x20] sm:$0x3f]
  %v4430 = vld [vmem:[%s4271 + $0x28] sm:$0x3f]
  %v4431 = vld [vmem:[%s4271 + $0x30] sm:$0x3f]
  %v4432 = vld [vmem:[%s4271 + $0x38] sm:$0x3f]
  %v4433 = vmul.f32 %v4425, %v1682
  %v4434 = vmul.f32 %v4426, %v1683
  %v4435 = vmul.f32 %v4427, %v1684
  %v4436 = vmul.f32 %v4428, %v1685
  %v4437 = vmul.f32 %v4429, %v1682
  %v4438 = vmul.f32 %v4430, %v1683
  %v4439 = vmul.f32 %v4431, %v1684
  %v4440 = vmul.f32 %v4432, %v1685
  %v4441 = vadd.f32 %v4417, %v4433
  %v4442 = vadd.f32 %v4418, %v4434
  %v4443 = vadd.f32 %v4419, %v4435
  %v4444 = vadd.f32 %v4420, %v4436
  %v4445 = vadd.f32 %v4421, %v4437
  %v4446 = vadd.f32 %v4422, %v4438
  %v4447 = vadd.f32 %v4423, %v4439
  %v4448 = vadd.f32 %v4424, %v4440
  %s4449 = scalar_lea.vmem [#allocation2], 896
  %v4450 = vld [vmem:[%s4449] sm:$0xff]
  %v4451 = vld [vmem:[%s4449 + $0x8] sm:$0xff]
  %v4452 = vld [vmem:[%s4449 + $0x10] sm:$0xff]
  %v4453 = vld [vmem:[%s4449 + $0x18] sm:$0xff]
  %v4454 = vld [vmem:[%s4449 + $0x20] sm:$0x3f]
  %v4455 = vld [vmem:[%s4449 + $0x28] sm:$0x3f]
  %v4456 = vld [vmem:[%s4449 + $0x30] sm:$0x3f]
  %v4457 = vld [vmem:[%s4449 + $0x38] sm:$0x3f]
  %v4458 = vmul.f32 %v4450, %v1711
  %v4459 = vmul.f32 %v4451, %v1712
  %v4460 = vmul.f32 %v4452, %v1713
  %v4461 = vmul.f32 %v4453, %v1714
  %v4462 = vmul.f32 %v4454, %v1711
  %v4463 = vmul.f32 %v4455, %v1712
  %v4464 = vmul.f32 %v4456, %v1713
  %v4465 = vmul.f32 %v4457, %v1714
  %v4466 = vadd.f32 %v4441, %v4458
  %v4467 = vadd.f32 %v4442, %v4459
  %v4468 = vadd.f32 %v4443, %v4460
  %v4469 = vadd.f32 %v4444, %v4461
  %v4470 = vadd.f32 %v4445, %v4462
  %v4471 = vadd.f32 %v4446, %v4463
  %v4472 = vadd.f32 %v4447, %v4464
  %v4473 = vadd.f32 %v4448, %v4465
  %s4474 = scalar_lea.vmem [#allocation2], 1920
  %v4475 = vld [vmem:[%s4474] sm:$0xff]
  %v4476 = vld [vmem:[%s4474 + $0x8] sm:$0xff]
  %v4477 = vld [vmem:[%s4474 + $0x10] sm:$0xff]
  %v4478 = vld [vmem:[%s4474 + $0x18] sm:$0xff]
  %v4479 = vld [vmem:[%s4474 + $0x20] sm:$0x3f]
  %v4480 = vld [vmem:[%s4474 + $0x28] sm:$0x3f]
  %v4481 = vld [vmem:[%s4474 + $0x30] sm:$0x3f]
  %v4482 = vld [vmem:[%s4474 + $0x38] sm:$0x3f]
  %v4483 = vmul.f32 %v4475, %v1740
  %v4484 = vmul.f32 %v4476, %v1741
  %v4485 = vmul.f32 %v4477, %v1742
  %v4486 = vmul.f32 %v4478, %v1743
  %v4487 = vmul.f32 %v4479, %v1740
  %v4488 = vmul.f32 %v4480, %v1741
  %v4489 = vmul.f32 %v4481, %v1742
  %v4490 = vmul.f32 %v4482, %v1743
  %v4491 = vadd.f32 %v4466, %v4483
  %v4492 = vadd.f32 %v4467, %v4484
  %v4493 = vadd.f32 %v4468, %v4485
  %v4494 = vadd.f32 %v4469, %v4486
  %v4495 = vadd.f32 %v4470, %v4487
  %v4496 = vadd.f32 %v4471, %v4488
  %v4497 = vadd.f32 %v4472, %v4489
  %v4498 = vadd.f32 %v4473, %v4490
  %s4499 = scalar_lea.vmem [#allocation2], 2944
  %v4500 = vld [vmem:[%s4499] sm:$0xff]
  %v4501 = vld [vmem:[%s4499 + $0x8] sm:$0xff]
  %v4502 = vld [vmem:[%s4499 + $0x10] sm:$0xff]
  %v4503 = vld [vmem:[%s4499 + $0x18] sm:$0xff]
  %v4504 = vld [vmem:[%s4499 + $0x20] sm:$0x3f]
  %v4505 = vld [vmem:[%s4499 + $0x28] sm:$0x3f]
  %v4506 = vld [vmem:[%s4499 + $0x30] sm:$0x3f]
  %v4507 = vld [vmem:[%s4499 + $0x38] sm:$0x3f]
  %v4508 = vmul.f32 %v4500, %v1769
  %v4509 = vmul.f32 %v4501, %v1770
  %v4510 = vmul.f32 %v4502, %v1771
  %v4511 = vmul.f32 %v4503, %v1772
  %v4512 = vmul.f32 %v4504, %v1769
  %v4513 = vmul.f32 %v4505, %v1770
  %v4514 = vmul.f32 %v4506, %v1771
  %v4515 = vmul.f32 %v4507, %v1772
  %v4516 = vadd.f32 %v4491, %v4508
  %v4517 = vadd.f32 %v4492, %v4509
  %v4518 = vadd.f32 %v4493, %v4510
  %v4519 = vadd.f32 %v4494, %v4511
  %v4520 = vadd.f32 %v4495, %v4512
  %v4521 = vadd.f32 %v4496, %v4513
  %v4522 = vadd.f32 %v4497, %v4514
  %v4523 = vadd.f32 %v4498, %v4515
  %s4524 = scalar_lea.vmem %s2, 768
  %4525 = vst [vmem:[%s4524] sm:$0xff] %v4516
  %4526 = vst [vmem:[%s4524 + $0x8] sm:$0xff] %v4517
  %4527 = vst [vmem:[%s4524 + $0x10] sm:$0xff] %v4518
  %4528 = vst.msk [vmem:[%s4524 + $0x18] sm:$0xff] %vm14, %v4519
  %4529 = vst [vmem:[%s4524 + $0x20] sm:$0x3f] %v4520
  %4530 = vst [vmem:[%s4524 + $0x28] sm:$0x3f] %v4521
  %4531 = vst [vmem:[%s4524 + $0x30] sm:$0x3f] %v4522
  %4532 = vst.msk [vmem:[%s4524 + $0x38] sm:$0x3f] %vm19, %v4523
  %v4533 = vld [vmem:[%s4221] sm:$0xff]
  %v4534 = vld [vmem:[%s4221 + $0x8] sm:$0xff]
  %v4535 = vld [vmem:[%s4221 + $0x10] sm:$0xff]
  %v4536 = vld [vmem:[%s4221 + $0x18] sm:$0xff]
  %v4537 = vld [vmem:[%s4221 + $0x20] sm:$0x3f]
  %v4538 = vld [vmem:[%s4221 + $0x28] sm:$0x3f]
  %v4539 = vld [vmem:[%s4221 + $0x30] sm:$0x3f]
  %v4540 = vld [vmem:[%s4221 + $0x38] sm:$0x3f]
  %v4541 = vmul.f32 %v4533, %v1540
  %v4542 = vmul.f32 %v4534, %v1541
  %v4543 = vmul.f32 %v4535, %v1542
  %v4544 = vmul.f32 %v4536, %v1543
  %v4545 = vmul.f32 %v4537, %v1540
  %v4546 = vmul.f32 %v4538, %v1541
  %v4547 = vmul.f32 %v4539, %v1542
  %v4548 = vmul.f32 %v4540, %v1543
  %v4549 = vadd.f32 %v4541, 0.0
  %v4550 = vadd.f32 %v4542, 0.0
  %v4551 = vadd.f32 %v4543, 0.0
  %v4552 = vadd.f32 %v4544, 0.0
  %v4553 = vadd.f32 %v4545, 0.0
  %v4554 = vadd.f32 %v4546, 0.0
  %v4555 = vadd.f32 %v4547, 0.0
  %v4556 = vadd.f32 %v4548, 0.0
  %v4557 = vld [vmem:[%s4246] sm:$0xff]
  %v4558 = vld [vmem:[%s4246 + $0x8] sm:$0xff]
  %v4559 = vld [vmem:[%s4246 + $0x10] sm:$0xff]
  %v4560 = vld [vmem:[%s4246 + $0x18] sm:$0xff]
  %v4561 = vld [vmem:[%s4246 + $0x20] sm:$0x3f]
  %v4562 = vld [vmem:[%s4246 + $0x28] sm:$0x3f]
  %v4563 = vld [vmem:[%s4246 + $0x30] sm:$0x3f]
  %v4564 = vld [vmem:[%s4246 + $0x38] sm:$0x3f]
  %v4565 = vmul.f32 %v4557, %v1569
  %v4566 = vmul.f32 %v4558, %v1570
  %v4567 = vmul.f32 %v4559, %v1571
  %v4568 = vmul.f32 %v4560, %v1572
  %v4569 = vmul.f32 %v4561, %v1569
  %v4570 = vmul.f32 %v4562, %v1570
  %v4571 = vmul.f32 %v4563, %v1571
  %v4572 = vmul.f32 %v4564, %v1572
  %v4573 = vadd.f32 %v4549, %v4565
  %v4574 = vadd.f32 %v4550, %v4566
  %v4575 = vadd.f32 %v4551, %v4567
  %v4576 = vadd.f32 %v4552, %v4568
  %v4577 = vadd.f32 %v4553, %v4569
  %v4578 = vadd.f32 %v4554, %v4570
  %v4579 = vadd.f32 %v4555, %v4571
  %v4580 = vadd.f32 %v4556, %v4572
  %v4581 = vld [vmem:[%s4271] sm:$0xff]
  %v4582 = vld [vmem:[%s4271 + $0x8] sm:$0xff]
  %v4583 = vld [vmem:[%s4271 + $0x10] sm:$0xff]
  %v4584 = vld [vmem:[%s4271 + $0x18] sm:$0xff]
  %v4585 = vld [vmem:[%s4271 + $0x20] sm:$0x3f]
  %v4586 = vld [vmem:[%s4271 + $0x28] sm:$0x3f]
  %v4587 = vld [vmem:[%s4271 + $0x30] sm:$0x3f]
  %v4588 = vld [vmem:[%s4271 + $0x38] sm:$0x3f]
  %v4589 = vmul.f32 %v4581, %v1598
  %v4590 = vmul.f32 %v4582, %v1599
  %v4591 = vmul.f32 %v4583, %v1600
  %v4592 = vmul.f32 %v4584, %v1601
  %v4593 = vmul.f32 %v4585, %v1598
  %v4594 = vmul.f32 %v4586, %v1599
  %v4595 = vmul.f32 %v4587, %v1600
  %v4596 = vmul.f32 %v4588, %v1601
  %v4597 = vadd.f32 %v4573, %v4589
  %v4598 = vadd.f32 %v4574, %v4590
  %v4599 = vadd.f32 %v4575, %v4591
  %v4600 = vadd.f32 %v4576, %v4592
  %v4601 = vadd.f32 %v4577, %v4593
  %v4602 = vadd.f32 %v4578, %v4594
  %v4603 = vadd.f32 %v4579, %v4595
  %v4604 = vadd.f32 %v4580, %v4596
  %v4605 = vld [vmem:[%s4449] sm:$0xff]
  %v4606 = vld [vmem:[%s4449 + $0x8] sm:$0xff]
  %v4607 = vld [vmem:[%s4449 + $0x10] sm:$0xff]
  %v4608 = vld [vmem:[%s4449 + $0x18] sm:$0xff]
  %v4609 = vld [vmem:[%s4449 + $0x20] sm:$0x3f]
  %v4610 = vld [vmem:[%s4449 + $0x28] sm:$0x3f]
  %v4611 = vld [vmem:[%s4449 + $0x30] sm:$0x3f]
  %v4612 = vld [vmem:[%s4449 + $0x38] sm:$0x3f]
  %v4613 = vmul.f32 %v4605, %v1626
  %v4614 = vmul.f32 %v4606, %v1627
  %v4615 = vmul.f32 %v4607, %v1628
  %v4616 = vmul.f32 %v4608, %v1629
  %v4617 = vmul.f32 %v4609, %v1626
  %v4618 = vmul.f32 %v4610, %v1627
  %v4619 = vmul.f32 %v4611, %v1628
  %v4620 = vmul.f32 %v4612, %v1629
  %v4621 = vadd.f32 %v4597, %v4613
  %v4622 = vadd.f32 %v4598, %v4614
  %v4623 = vadd.f32 %v4599, %v4615
  %v4624 = vadd.f32 %v4600, %v4616
  %v4625 = vadd.f32 %v4601, %v4617
  %v4626 = vadd.f32 %v4602, %v4618
  %v4627 = vadd.f32 %v4603, %v4619
  %v4628 = vadd.f32 %v4604, %v4620
  %v4629 = vld [vmem:[%s4474] sm:$0xff]
  %v4630 = vld [vmem:[%s4474 + $0x8] sm:$0xff]
  %v4631 = vld [vmem:[%s4474 + $0x10] sm:$0xff]
  %v4632 = vld [vmem:[%s4474 + $0x18] sm:$0xff]
  %v4633 = vld [vmem:[%s4474 + $0x20] sm:$0x3f]
  %v4634 = vld [vmem:[%s4474 + $0x28] sm:$0x3f]
  %v4635 = vld [vmem:[%s4474 + $0x30] sm:$0x3f]
  %v4636 = vld [vmem:[%s4474 + $0x38] sm:$0x3f]
  %v4637 = vmul.f32 %v4629, %v1654
  %v4638 = vmul.f32 %v4630, %v1655
  %v4639 = vmul.f32 %v4631, %v1656
  %v4640 = vmul.f32 %v4632, %v1657
  %v4641 = vmul.f32 %v4633, %v1654
  %v4642 = vmul.f32 %v4634, %v1655
  %v4643 = vmul.f32 %v4635, %v1656
  %v4644 = vmul.f32 %v4636, %v1657
  %v4645 = vadd.f32 %v4621, %v4637
  %v4646 = vadd.f32 %v4622, %v4638
  %v4647 = vadd.f32 %v4623, %v4639
  %v4648 = vadd.f32 %v4624, %v4640
  %v4649 = vadd.f32 %v4625, %v4641
  %v4650 = vadd.f32 %v4626, %v4642
  %v4651 = vadd.f32 %v4627, %v4643
  %v4652 = vadd.f32 %v4628, %v4644
  %v4653 = vld [vmem:[%s4499] sm:$0xff]
  %v4654 = vld [vmem:[%s4499 + $0x8] sm:$0xff]
  %v4655 = vld [vmem:[%s4499 + $0x10] sm:$0xff]
  %v4656 = vld [vmem:[%s4499 + $0x18] sm:$0xff]
  %v4657 = vld [vmem:[%s4499 + $0x20] sm:$0x3f]
  %v4658 = vld [vmem:[%s4499 + $0x28] sm:$0x3f]
  %v4659 = vld [vmem:[%s4499 + $0x30] sm:$0x3f]
  %v4660 = vld [vmem:[%s4499 + $0x38] sm:$0x3f]
  %v4661 = vmul.f32 %v4653, %v1682
  %v4662 = vmul.f32 %v4654, %v1683
  %v4663 = vmul.f32 %v4655, %v1684
  %v4664 = vmul.f32 %v4656, %v1685
  %v4665 = vmul.f32 %v4657, %v1682
  %v4666 = vmul.f32 %v4658, %v1683
  %v4667 = vmul.f32 %v4659, %v1684
  %v4668 = vmul.f32 %v4660, %v1685
  %v4669 = vadd.f32 %v4645, %v4661
  %v4670 = vadd.f32 %v4646, %v4662
  %v4671 = vadd.f32 %v4647, %v4663
  %v4672 = vadd.f32 %v4648, %v4664
  %v4673 = vadd.f32 %v4649, %v4665
  %v4674 = vadd.f32 %v4650, %v4666
  %v4675 = vadd.f32 %v4651, %v4667
  %v4676 = vadd.f32 %v4652, %v4668
  %s4677 = scalar_lea.vmem [#allocation2], 960
  %v4678 = vld [vmem:[%s4677] sm:$0xff]
  %v4679 = vld [vmem:[%s4677 + $0x8] sm:$0xff]
  %v4680 = vld [vmem:[%s4677 + $0x10] sm:$0xff]
  %v4681 = vld [vmem:[%s4677 + $0x18] sm:$0xff]
  %v4682 = vld [vmem:[%s4677 + $0x20] sm:$0x3f]
  %v4683 = vld [vmem:[%s4677 + $0x28] sm:$0x3f]
  %v4684 = vld [vmem:[%s4677 + $0x30] sm:$0x3f]
  %v4685 = vld [vmem:[%s4677 + $0x38] sm:$0x3f]
  %v4686 = vmul.f32 %v4678, %v1711
  %v4687 = vmul.f32 %v4679, %v1712
  %v4688 = vmul.f32 %v4680, %v1713
  %v4689 = vmul.f32 %v4681, %v1714
  %v4690 = vmul.f32 %v4682, %v1711
  %v4691 = vmul.f32 %v4683, %v1712
  %v4692 = vmul.f32 %v4684, %v1713
  %v4693 = vmul.f32 %v4685, %v1714
  %v4694 = vadd.f32 %v4669, %v4686
  %v4695 = vadd.f32 %v4670, %v4687
  %v4696 = vadd.f32 %v4671, %v4688
  %v4697 = vadd.f32 %v4672, %v4689
  %v4698 = vadd.f32 %v4673, %v4690
  %v4699 = vadd.f32 %v4674, %v4691
  %v4700 = vadd.f32 %v4675, %v4692
  %v4701 = vadd.f32 %v4676, %v4693
  %s4702 = scalar_lea.vmem [#allocation2], 1984
  %v4703 = vld [vmem:[%s4702] sm:$0xff]
  %v4704 = vld [vmem:[%s4702 + $0x8] sm:$0xff]
  %v4705 = vld [vmem:[%s4702 + $0x10] sm:$0xff]
  %v4706 = vld [vmem:[%s4702 + $0x18] sm:$0xff]
  %v4707 = vld [vmem:[%s4702 + $0x20] sm:$0x3f]
  %v4708 = vld [vmem:[%s4702 + $0x28] sm:$0x3f]
  %v4709 = vld [vmem:[%s4702 + $0x30] sm:$0x3f]
  %v4710 = vld [vmem:[%s4702 + $0x38] sm:$0x3f]
  %v4711 = vmul.f32 %v4703, %v1740
  %v4712 = vmul.f32 %v4704, %v1741
  %v4713 = vmul.f32 %v4705, %v1742
  %v4714 = vmul.f32 %v4706, %v1743
  %v4715 = vmul.f32 %v4707, %v1740
  %v4716 = vmul.f32 %v4708, %v1741
  %v4717 = vmul.f32 %v4709, %v1742
  %v4718 = vmul.f32 %v4710, %v1743
  %v4719 = vadd.f32 %v4694, %v4711
  %v4720 = vadd.f32 %v4695, %v4712
  %v4721 = vadd.f32 %v4696, %v4713
  %v4722 = vadd.f32 %v4697, %v4714
  %v4723 = vadd.f32 %v4698, %v4715
  %v4724 = vadd.f32 %v4699, %v4716
  %v4725 = vadd.f32 %v4700, %v4717
  %v4726 = vadd.f32 %v4701, %v4718
  %s4727 = scalar_lea.vmem [#allocation2], 3008
  %v4728 = vld [vmem:[%s4727] sm:$0xff]
  %v4729 = vld [vmem:[%s4727 + $0x8] sm:$0xff]
  %v4730 = vld [vmem:[%s4727 + $0x10] sm:$0xff]
  %v4731 = vld [vmem:[%s4727 + $0x18] sm:$0xff]
  %v4732 = vld [vmem:[%s4727 + $0x20] sm:$0x3f]
  %v4733 = vld [vmem:[%s4727 + $0x28] sm:$0x3f]
  %v4734 = vld [vmem:[%s4727 + $0x30] sm:$0x3f]
  %v4735 = vld [vmem:[%s4727 + $0x38] sm:$0x3f]
  %v4736 = vmul.f32 %v4728, %v1769
  %v4737 = vmul.f32 %v4729, %v1770
  %v4738 = vmul.f32 %v4730, %v1771
  %v4739 = vmul.f32 %v4731, %v1772
  %v4740 = vmul.f32 %v4732, %v1769
  %v4741 = vmul.f32 %v4733, %v1770
  %v4742 = vmul.f32 %v4734, %v1771
  %v4743 = vmul.f32 %v4735, %v1772
  %v4744 = vadd.f32 %v4719, %v4736
  %v4745 = vadd.f32 %v4720, %v4737
  %v4746 = vadd.f32 %v4721, %v4738
  %v4747 = vadd.f32 %v4722, %v4739
  %v4748 = vadd.f32 %v4723, %v4740
  %v4749 = vadd.f32 %v4724, %v4741
  %v4750 = vadd.f32 %v4725, %v4742
  %v4751 = vadd.f32 %v4726, %v4743
  %s4752 = scalar_lea.vmem %s2, 832
  %4753 = vst [vmem:[%s4752] sm:$0xff] %v4744
  %4754 = vst [vmem:[%s4752 + $0x8] sm:$0xff] %v4745
  %4755 = vst [vmem:[%s4752 + $0x10] sm:$0xff] %v4746
  %4756 = vst.msk [vmem:[%s4752 + $0x18] sm:$0xff] %vm14, %v4747
  %4757 = vst [vmem:[%s4752 + $0x20] sm:$0x3f] %v4748
  %4758 = vst [vmem:[%s4752 + $0x28] sm:$0x3f] %v4749
  %4759 = vst [vmem:[%s4752 + $0x30] sm:$0x3f] %v4750
  %4760 = vst.msk [vmem:[%s4752 + $0x38] sm:$0x3f] %vm19, %v4751
  // Predicated region
  $region10: #{depthwise_conv2d_nchw.1} parent=0 // pred_check
    _
  $region11: #{depthwise_conv2d_nchw.1} parent=0 // pred_check_branch
    %4762 = sbr.rel (0) target = $region13
  $region12: #{depthwise_conv2d_nchw.1} parent=0 // pred_region
    _
  $region13: #{depthwise_conv2d_nchw.1} parent=0 // pred_fallthru
    _
  // Predicated region
  $region14: #{depthwise_conv2d_nchw.1} parent=0 // pred_check
    _
  $region15: #{depthwise_conv2d_nchw.1} parent=0 // pred_check_branch
    %4764 = sbr.rel (0) target = $region17
  $region16: #{depthwise_conv2d_nchw.1} parent=0 // pred_region
    _
  $region17: #{depthwise_conv2d_nchw.1} parent=0 // pred_fallthru
    _

</llo_original>
